<compile_context>
chip_gen: v6e
topology: v6e:2x2x1
jax: 0.10.0
libtpu: 0.0.40
codegen_flags: <defaults>
</compile_context>

<pallas_src>
import functools

import numpy as np
import jax
import jax.numpy as jnp
from jax import lax
from jax.experimental import pallas as pl
from jax.experimental.pallas import tpu as pltpu


def _round_up(x, m):
    return (x + m - 1) // m * m


# ----------------------------------------------------------------------------
# In-kernel helpers (all operate on VMEM refs / values)
# ----------------------------------------------------------------------------
def _build_patches(apad_ref, p_ref, *, H, W, C, P0):
    """3x3 im2col patches (N, 9*C) for a row-major (H*W, C) activation.

    The activation lives in apad_ref[P0:P0+H*W, :]; the rows above/below are
    zero, so vertical out-of-range taps read zeros for free and only the
    horizontal (w) boundary needs masking."""
    N = H * W
    # w-coordinate of every flat row (W is a power of two here).
    w_idx = lax.broadcasted_iota(jnp.int32, (N, C), 0) & (W - 1)
    for dh in (-1, 0, 1):
        for dw in (-1, 0, 1):
            off = dh * W + dw
            sh = apad_ref[P0 + off:P0 + off + N, :]
            if dw == -1:
                sh = jnp.where(w_idx >= 1, sh, 0.0)
            elif dw == 1:
                sh = jnp.where(w_idx <= W - 2, sh, 0.0)
            tap = (dh + 1) * 3 + (dw + 1)
            p_ref[:, tap * C:(tap + 1) * C] = sh.astype(p_ref.dtype)


def _maxpool_into(y_ref, th_ref, dst_ref, *, H, W, dst_off):
    """2x2 / stride-2 max pool of the row-major (H*W, C) activation in y_ref.

    Horizontal pairs are adjacent flat rows (stride-2 sublane reads); vertical
    pairs are adjacent W//2-row blocks (aligned static slices).  Result is
    written to dst_ref[dst_off : dst_off + (H//2)*(W//2), :]."""
    N = H * W
    Hp, Wp = H // 2, W // 2
    th_ref[...] = jnp.maximum(y_ref[pl.ds(0, N // 2, stride=2), :],
                              y_ref[pl.ds(1, N // 2, stride=2), :])
    for ph in range(Hp):
        a = th_ref[(2 * ph) * Wp:(2 * ph + 1) * Wp, :]
        b = th_ref[(2 * ph + 1) * Wp:(2 * ph + 2) * Wp, :]
        dst_ref[dst_off + ph * Wp:dst_off + (ph + 1) * Wp, :] = jnp.maximum(a, b)


# ----------------------------------------------------------------------------
# Fused forward kernel (one batch element per grid step)
# ----------------------------------------------------------------------------
def _cnn_kernel(x1p_ref, w1_ref, aff1_ref, w2_ref, aff2_ref, w3_ref, aff3_ref,
                fc1w_ref, fc1b_ref, fc2w_ref, fc2b_ref, fc3w_ref, fc3b_ref,
                o_ref,
                y1_ref, th1_ref, apad2_ref, p2_ref, y2_ref, th2_ref,
                apad3_ref, p3_ref, y3_ref,
                *, H, W):
    f32 = jnp.float32
    H1, W1 = H, W
    H2, W2 = H // 2, W // 2
    H3, W3 = H // 4, W // 4
    C1, C2, C3 = 32, 64, 128
    P2 = _round_up(W2 + 1, 8)          # zero-pad rows above/below layer-2 act
    P3 = _round_up(W3 + 1, 8)          # zero-pad rows above/below layer-3 act

    def conv_block(patches, w_ref, aff_ref):
        # conv (taps folded into K) + bias + ReLU + BatchNorm(inference)
        y = jnp.dot(patches, w_ref[...], preferred_element_type=f32)
        y = jnp.maximum(y + aff_ref[0:1, :], 0.0)
        return y * aff_ref[1:2, :] + aff_ref[2:3, :]

    # ---- layer 1: conv 1->32 on precomputed (N, 9) patches, max-pool --------
    y1_ref[...] = conv_block(x1p_ref[0], w1_ref, aff1_ref)        # (N1, 32)
    apad2_ref[...] = jnp.zeros_like(apad2_ref)
    _maxpool_into(y1_ref, th1_ref, apad2_ref, H=H1, W=W1, dst_off=P2)

    # ---- layer 2: conv 32->64, patches built in-kernel, max-pool ------------
    _build_patches(apad2_ref, p2_ref, H=H2, W=W2, C=C1, P0=P2)
    y2_ref[...] = conv_block(p2_ref[...], w2_ref, aff2_ref)       # (N2, 64)
    apad3_ref[...] = jnp.zeros_like(apad3_ref)
    _maxpool_into(y2_ref, th2_ref, apad3_ref, H=H2, W=W2, dst_off=P3)

    # ---- layer 3: conv 64->128, patches built in-kernel ---------------------
    _build_patches(apad3_ref, p3_ref, H=H3, W=W3, C=C2, P0=P3)
    y3_ref[...] = conv_block(p3_ref[...], w3_ref, aff3_ref)       # (N3, 128)

    # ---- AdaptiveAvgPool2d((4,4)) fused with fc1 (both linear) --------------
    # fc1 weight is pre-arranged as (16, 128, 256) = (spatial cell, channel, out)
    # so torch's channel-major Flatten order is honoured with no transpose.
    kh, kw = H3 // 4, W3 // 4
    inv = 1.0 / float(kh * kw)
    h1 = fc1b_ref[...]                                            # (1, 256)
    for ph in range(4):
        for pw in range(4):
            zp = jnp.zeros((1, C3), f32)
            for i in range(kh):
                for j in range(kw):
                    r = (ph * kh + i) * W3 + (pw * kw + j)
                    zp = zp + y3_ref[r:r + 1, :]
            zp = (zp * inv).astype(fc1w_ref.dtype)
            h1 = h1 + jnp.dot(zp, fc1w_ref[ph * 4 + pw],
                              preferred_element_type=f32)
    h1 = jnp.maximum(h1, 0.0)
    # Dropout(0.3) / Dropout(0.2) are identity in eval mode.
    h2 = jnp.dot(h1.astype(fc2w_ref.dtype), fc2w_ref[...],
                 preferred_element_type=f32) + fc2b_ref[...]
    h2 = jnp.maximum(h2, 0.0)
    out = jnp.sum(h2 * fc3w_ref[...], axis=1, keepdims=True) + fc3b_ref[...]
    o_ref[0] = out                                                # (1, 1)


# ----------------------------------------------------------------------------
# pallas_call plumbing
# ----------------------------------------------------------------------------
def _fused_cnn_call(B, H, W):
    N1 = H * W
    N2 = (H // 2) * (W // 2)
    N3 = (H // 4) * (W // 4)
    P2 = _round_up(W // 2 + 1, 8)
    P3 = _round_up(W // 4 + 1, 8)

    def cmap2(_):
        return (0, 0)

    grid_spec = pltpu.PrefetchScalarGridSpec(
        num_scalar_prefetch=0,
        grid=(B,),
        in_specs=[
            pl.BlockSpec((1, N1, 9), lambda b: (b, 0, 0)),      # layer-1 patches
            pl.BlockSpec((9, 32), cmap2),                       # conv1 w
            pl.BlockSpec((3, 32), cmap2),                       # bias/scale/shift 1
            pl.BlockSpec((288, 64), cmap2),                     # conv2 w
            pl.BlockSpec((3, 64), cmap2),                       # bias/scale/shift 2
            pl.BlockSpec((576, 128), cmap2),                    # conv3 w
            pl.BlockSpec((3, 128), cmap2),                      # bias/scale/shift 3
            pl.BlockSpec((16, 128, 256), lambda b: (0, 0, 0)),  # fc1 w (p, c, f)
            pl.BlockSpec((1, 256), cmap2),                      # fc1 b
            pl.BlockSpec((256, 64), cmap2),                     # fc2 w
            pl.BlockSpec((1, 64), cmap2),                       # fc2 b
            pl.BlockSpec((1, 64), cmap2),                       # fc3 w (row)
            pl.BlockSpec((1, 1), cmap2),                        # fc3 b
        ],
        out_specs=pl.BlockSpec((1, 1, 1), lambda b: (b, 0, 0)),
        scratch_shapes=[
            pltpu.VMEM((N1, 32), jnp.float32),                  # y1
            pltpu.VMEM((N1 // 2, 32), jnp.float32),             # th1
            pltpu.VMEM((N2 + 2 * P2, 32), jnp.float32),         # apad2 (padded act)
            pltpu.VMEM((N2, 9 * 32), jnp.bfloat16),             # patches 2
            pltpu.VMEM((N2, 64), jnp.float32),                  # y2
            pltpu.VMEM((N2 // 2, 64), jnp.float32),             # th2
            pltpu.VMEM((N3 + 2 * P3, 64), jnp.float32),         # apad3 (padded act)
            pltpu.VMEM((N3, 9 * 64), jnp.bfloat16),             # patches 3
            pltpu.VMEM((N3, 128), jnp.float32),                 # y3
        ],
    )
    return pl.pallas_call(
        functools.partial(_cnn_kernel, H=H, W=W),
        out_shape=jax.ShapeDtypeStruct((B, 1, 1), jnp.float32),
        grid_spec=grid_spec,
        compiler_params=pltpu.CompilerParams(
            dimension_semantics=("parallel",)),   # v7x: one batch elem per core
    )


def cnn_forward(x, params):
    """Mirrors CNNModel.forward (eval mode)."""
    if x.ndim == 3:
        x = x[:, None]                                    # unsqueeze(1)
    B, _, H, W = x.shape
    assert H % 16 == 0 and W % 16 == 0, "need H, W multiples of 16"
    # TODO(synk): general AdaptiveAvgPool2d window logic when H//4, W//4 are not
    # divisible by 4 (here the pool is an exact 2x2 average, as in PyTorch).

    # --- tiny layer-1 glue: 9-tap im2col for the single input channel --------
    xi = x.reshape(B, H, W).astype(jnp.float32)
    xp = jnp.pad(xi, ((0, 0), (1, 1), (1, 1)))
    p1 = jnp.stack([xp[:, dh:dh + H, dw:dw + W].reshape(B, H * W)
                    for dh in range(3) for dw in range(3)], axis=-1)
    p1 = p1.astype(jnp.bfloat16)                          # (B, H*W, 9)

    bf = jnp.bfloat16
    w1 = params["conv1_w"].astype(bf)                     # (9,   32)
    w2 = params["conv2_w"].astype(bf)                     # (288, 64)
    w3 = params["conv3_w"].astype(bf)                     # (576, 128)
    aff1, aff2, aff3 = params["aff1"], params["aff2"], params["aff3"]
    fw1, fb1 = params["fc1"]
    fw2, fb2 = params["fc2"]
    fw3, fb3 = params["fc3"]
    # Offline re-layout of fc1: torch Flatten index = c*16 + (ph*4+pw)
    #   (2048, 256) -> (c, p, f) -> (p, c, f)
    fc1w = fw1.reshape(128, 16, 256).transpose(1, 0, 2).astype(bf)
    fc2w = fw2.astype(bf)
    fc3w = fw3.reshape(1, 64)                             # applied on the VPU

    out = _fused_cnn_call(B, H, W)(
        p1, w1, aff1, w2, aff2, w3, aff3,
        fc1w, fb1, fc2w, fb2, fc3w, fb3)
    return out.reshape(B, 1)


# ----------------------------------------------------------------------------
# Deterministic parameter init (shapes match the PyTorch module)
# ----------------------------------------------------------------------------
def init_params(key):
    ks = jax.random.split(key, 12)
    eps = 1e-5

    def conv_w(k, cin, cout):
        bound = 1.0 / np.sqrt(cin * 9)
        # rows ordered tap*cin + c_in, tap = (dh+1)*3 + (dw+1)
        return jax.random.uniform(k, (9 * cin, cout), jnp.float32, -bound, bound)

    def aff(kb, kbn, cout):
        # row 0: conv bias, row 1: BN scale, row 2: BN shift (inference-folded)
        b = jax.random.uniform(kb, (1, cout), jnp.float32, -0.1, 0.1)
        k1, k2, k3, k4 = jax.random.split(kbn, 4)
        gamma = 1.0 + 0.1 * jax.random.normal(k1, (1, cout), jnp.float32)
        beta = 0.1 * jax.random.normal(k2, (1, cout), jnp.float32)
        mean = 0.1 * jax.random.normal(k3, (1, cout), jnp.float32)
        var = jax.random.uniform(k4, (1, cout), jnp.float32, 0.5, 1.5)
        scale = gamma / jnp.sqrt(var + eps)
        shift = beta - mean * scale
        return jnp.concatenate([b, scale, shift], axis=0)   # (3, cout)

    def lin(k, fin, fout):
        k1, k2 = jax.random.split(k)
        bound = 1.0 / np.sqrt(fin)
        w = jax.random.uniform(k1, (fin, fout), jnp.float32, -bound, bound)
        b = jax.random.uniform(k2, (1, fout), jnp.float32, -bound, bound)
        return w, b

    return {
        "conv1_w": conv_w(ks[0], 1, 32),
        "aff1": aff(ks[1], ks[2], 32),
        "conv2_w": conv_w(ks[3], 32, 64),
        "aff2": aff(ks[4], ks[5], 64),
        "conv3_w": conv_w(ks[6], 64, 128),
        "aff3": aff(ks[7], ks[8], 128),
        "fc1": lin(ks[9], 128 * 4 * 4, 256),
        "fc2": lin(ks[10], 256, 64),
        "fc3": lin(ks[11], 64, 1),
    }


# ----------------------------------------------------------------------------
if __name__ == "__main__":
    key = jax.random.PRNGKey(0)
    kp, kx = jax.random.split(key)
    params = init_params(kp)

    B, H, W = 2, 32, 32                       # NCHW input (B, 1, H, W)
    x = jax.random.normal(kx, (B, 1, H, W), jnp.float32)

    out = jax.jit(cnn_forward)(x, params)
    out = jax.block_until_ready(out)

    assert out.shape == (B, 1)
    assert bool(jnp.all(jnp.isfinite(out)))
    print("KERNEL_OK")
</pallas_src>

<mosaic_0001>
module attributes {stable_mosaic.version = 11 : i64} {
  func.func @_cnn_kernel(%arg0: i32, %arg1: memref<1x1024x9xbf16, #tpu.memory_space<vmem>>, %arg2: memref<9x32xbf16, #tpu.memory_space<vmem>>, %arg3: memref<3x32xf32, #tpu.memory_space<vmem>>, %arg4: memref<288x64xbf16, #tpu.memory_space<vmem>>, %arg5: memref<3x64xf32, #tpu.memory_space<vmem>>, %arg6: memref<576x128xbf16, #tpu.memory_space<vmem>>, %arg7: memref<3x128xf32, #tpu.memory_space<vmem>>, %arg8: memref<16x128x256xbf16, #tpu.memory_space<vmem>>, %arg9: memref<1x256xf32, #tpu.memory_space<vmem>>, %arg10: memref<256x64xbf16, #tpu.memory_space<vmem>>, %arg11: memref<1x64xf32, #tpu.memory_space<vmem>>, %arg12: memref<1x64xf32, #tpu.memory_space<vmem>>, %arg13: memref<1x1xf32, #tpu.memory_space<vmem>>, %arg14: memref<1x1x1xf32, #tpu.memory_space<vmem>>, %arg15: memref<1024x32xf32, #tpu.memory_space<vmem>>, %arg16: memref<512x32xf32, #tpu.memory_space<vmem>>, %arg17: memref<304x32xf32, #tpu.memory_space<vmem>>, %arg18: memref<256x288xbf16, #tpu.memory_space<vmem>>, %arg19: memref<256x64xf32, #tpu.memory_space<vmem>>, %arg20: memref<128x64xf32, #tpu.memory_space<vmem>>, %arg21: memref<96x64xf32, #tpu.memory_space<vmem>>, %arg22: memref<64x576xbf16, #tpu.memory_space<vmem>>, %arg23: memref<64x128xf32, #tpu.memory_space<vmem>>) attributes {dimension_semantics = [#tpu.dimension_semantics<parallel>], iteration_bounds = array<i64: 2>, scalar_prefetch = 0 : i64, scratch_operands = 9 : i64, tpu.core_type = #tpu.core_type<tc>, window_params = [{transform_indices = @transform_0, window_bounds = array<i64: 1, 1024, 9>}, {pipeline_mode = #tpu.pipeline_mode<synchronous>, transform_indices = @transform_1, window_bounds = array<i64: 9, 32>}, {pipeline_mode = #tpu.pipeline_mode<synchronous>, transform_indices = @transform_2, window_bounds = array<i64: 3, 32>}, {pipeline_mode = #tpu.pipeline_mode<synchronous>, transform_indices = @transform_3, window_bounds = array<i64: 288, 64>}, {pipeline_mode = #tpu.pipeline_mode<synchronous>, transform_indices = @transform_4, window_bounds = array<i64: 3, 64>}, {pipeline_mode = #tpu.pipeline_mode<synchronous>, transform_indices = @transform_5, window_bounds = array<i64: 576, 128>}, {pipeline_mode = #tpu.pipeline_mode<synchronous>, transform_indices = @transform_6, window_bounds = array<i64: 3, 128>}, {pipeline_mode = #tpu.pipeline_mode<synchronous>, transform_indices = @transform_7, window_bounds = array<i64: 16, 128, 256>}, {pipeline_mode = #tpu.pipeline_mode<synchronous>, transform_indices = @transform_8, window_bounds = array<i64: 1, 256>}, {pipeline_mode = #tpu.pipeline_mode<synchronous>, transform_indices = @transform_9, window_bounds = array<i64: 256, 64>}, {pipeline_mode = #tpu.pipeline_mode<synchronous>, transform_indices = @transform_10, window_bounds = array<i64: 1, 64>}, {pipeline_mode = #tpu.pipeline_mode<synchronous>, transform_indices = @transform_11, window_bounds = array<i64: 1, 64>}, {pipeline_mode = #tpu.pipeline_mode<synchronous>, transform_indices = @transform_12, window_bounds = array<i64: 1, 1>}, {transform_indices = @transform_13, window_bounds = array<i64: 1, 1, 1>}]} {
    %c0 = arith.constant 0 : index
    %c0_0 = arith.constant 0 : index
    %c0_1 = arith.constant 0 : index
    %0 = vector.load %arg1[%c0, %c0_0, %c0_1] : memref<1x1024x9xbf16, #tpu.memory_space<vmem>>, vector<1x1024x9xbf16>
    %1 = vector.shape_cast %0 : vector<1x1024x9xbf16> to vector<1024x9xbf16>
    %c0_2 = arith.constant 0 : index
    %c0_3 = arith.constant 0 : index
    %2 = vector.load %arg2[%c0_2, %c0_3] : memref<9x32xbf16, #tpu.memory_space<vmem>>, vector<9x32xbf16>
    %cst = arith.constant dense<0.000000e+00> : vector<1024x32xf32>
    %3 = tpu.matmul %1, %2, %cst {dimension_numbers = #tpu.dot_dimension_numbers<[1], [0], [0], [1], [0, 0, 1, 1], [], []>} : vector<1024x9xbf16>, vector<9x32xbf16>, vector<1024x32xf32> -> vector<1024x32xf32>
    %c0_4 = arith.constant 0 : index
    %c0_5 = arith.constant 0 : index
    %4 = vector.load %arg3[%c0_4, %c0_5] : memref<3x32xf32, #tpu.memory_space<vmem>>, vector<1x32xf32>
    %5 = vector.broadcast %4 : vector<1x32xf32> to vector<1024x32xf32>
    %6 = arith.addf %3, %5 : vector<1024x32xf32>
    %cst_6 = arith.constant 0.000000e+00 : f32
    %7 = vector.broadcast %cst_6 : f32 to vector<1024x32xf32>
    %8 = arith.maximumf %6, %7 : vector<1024x32xf32>
    %c1 = arith.constant 1 : index
    %c0_7 = arith.constant 0 : index
    %9 = vector.load %arg3[%c1, %c0_7] : memref<3x32xf32, #tpu.memory_space<vmem>>, vector<1x32xf32>
    %10 = vector.broadcast %9 : vector<1x32xf32> to vector<1024x32xf32>
    %11 = arith.mulf %8, %10 : vector<1024x32xf32>
    %c2 = arith.constant 2 : index
    %c0_8 = arith.constant 0 : index
    %12 = vector.load %arg3[%c2, %c0_8] : memref<3x32xf32, #tpu.memory_space<vmem>>, vector<1x32xf32>
    %13 = vector.broadcast %12 : vector<1x32xf32> to vector<1024x32xf32>
    %14 = arith.addf %11, %13 : vector<1024x32xf32>
    %c0_9 = arith.constant 0 : index
    %c0_10 = arith.constant 0 : index
    %15 = vector.load %arg15[%c0_9, %c0_10] : memref<1024x32xf32, #tpu.memory_space<vmem>>, vector<1024x32xf32>
    tpu.vector_store %arg15[%c0_9, %c0_10], %14 {strides = array<i32>} : memref<1024x32xf32, #tpu.memory_space<vmem>>, vector<1024x32xf32>,
    %cst_11 = arith.constant 0.000000e+00 : f32
    %16 = vector.broadcast %cst_11 : f32 to vector<304x32xf32>
    %c0_12 = arith.constant 0 : index
    %c0_13 = arith.constant 0 : index
    %17 = vector.load %arg17[%c0_12, %c0_13] : memref<304x32xf32, #tpu.memory_space<vmem>>, vector<304x32xf32>
    tpu.vector_store %arg17[%c0_12, %c0_13], %16 {strides = array<i32>} : memref<304x32xf32, #tpu.memory_space<vmem>>, vector<304x32xf32>,
    %c0_14 = arith.constant 0 : index
    %c0_15 = arith.constant 0 : index
    %18 = tpu.strided_load %arg15[%c0_14, %c0_15] {strides = array<i32: 2, 1>} : memref<1024x32xf32, #tpu.memory_space<vmem>>, vector<512x32xf32>
    %c1_16 = arith.constant 1 : index
    %c0_17 = arith.constant 0 : index
    %19 = tpu.strided_load %arg15[%c1_16, %c0_17] {strides = array<i32: 2, 1>} : memref<1024x32xf32, #tpu.memory_space<vmem>>, vector<512x32xf32>
    %20 = arith.maximumf %18, %19 : vector<512x32xf32>
    %c0_18 = arith.constant 0 : index
    %c0_19 = arith.constant 0 : index
    %21 = vector.load %arg16[%c0_18, %c0_19] : memref<512x32xf32, #tpu.memory_space<vmem>>, vector<512x32xf32>
    tpu.vector_store %arg16[%c0_18, %c0_19], %20 {strides = array<i32>} : memref<512x32xf32, #tpu.memory_space<vmem>>, vector<512x32xf32>,
    %c0_20 = arith.constant 0 : index
    %c0_21 = arith.constant 0 : index
    %22 = vector.load %arg16[%c0_20, %c0_21] : memref<512x32xf32, #tpu.memory_space<vmem>>, vector<16x32xf32>
    %c16 = arith.constant 16 : index
    %c0_22 = arith.constant 0 : index
    %23 = vector.load %arg16[%c16, %c0_22] : memref<512x32xf32, #tpu.memory_space<vmem>>, vector<16x32xf32>
    %24 = arith.maximumf %22, %23 : vector<16x32xf32>
    %c24 = arith.constant 24 : index
    %c0_23 = arith.constant 0 : index
    %25 = vector.load %arg17[%c24, %c0_23] : memref<304x32xf32, #tpu.memory_space<vmem>>, vector<16x32xf32>
    tpu.vector_store %arg17[%c24, %c0_23], %24 {strides = array<i32>} : memref<304x32xf32, #tpu.memory_space<vmem>>, vector<16x32xf32>,
    %c32 = arith.constant 32 : index
    %c0_24 = arith.constant 0 : index
    %26 = vector.load %arg16[%c32, %c0_24] : memref<512x32xf32, #tpu.memory_space<vmem>>, vector<16x32xf32>
    %c48 = arith.constant 48 : index
    %c0_25 = arith.constant 0 : index
    %27 = vector.load %arg16[%c48, %c0_25] : memref<512x32xf32, #tpu.memory_space<vmem>>, vector<16x32xf32>
    %28 = arith.maximumf %26, %27 : vector<16x32xf32>
    %c40 = arith.constant 40 : index
    %c0_26 = arith.constant 0 : index
    %29 = vector.load %arg17[%c40, %c0_26] : memref<304x32xf32, #tpu.memory_space<vmem>>, vector<16x32xf32>
    tpu.vector_store %arg17[%c40, %c0_26], %28 {strides = array<i32>} : memref<304x32xf32, #tpu.memory_space<vmem>>, vector<16x32xf32>,
    %c64 = arith.constant 64 : index
    %c0_27 = arith.constant 0 : index
    %30 = vector.load %arg16[%c64, %c0_27] : memref<512x32xf32, #tpu.memory_space<vmem>>, vector<16x32xf32>
    %c80 = arith.constant 80 : index
    %c0_28 = arith.constant 0 : index
    %31 = vector.load %arg16[%c80, %c0_28] : memref<512x32xf32, #tpu.memory_space<vmem>>, vector<16x32xf32>
    %32 = arith.maximumf %30, %31 : vector<16x32xf32>
    %c56 = arith.constant 56 : index
    %c0_29 = arith.constant 0 : index
    %33 = vector.load %arg17[%c56, %c0_29] : memref<304x32xf32, #tpu.memory_space<vmem>>, vector<16x32xf32>
    tpu.vector_store %arg17[%c56, %c0_29], %32 {strides = array<i32>} : memref<304x32xf32, #tpu.memory_space<vmem>>, vector<16x32xf32>,
    %c96 = arith.constant 96 : index
    %c0_30 = arith.constant 0 : index
    %34 = vector.load %arg16[%c96, %c0_30] : memref<512x32xf32, #tpu.memory_space<vmem>>, vector<16x32xf32>
    %c112 = arith.constant 112 : index
    %c0_31 = arith.constant 0 : index
    %35 = vector.load %arg16[%c112, %c0_31] : memref<512x32xf32, #tpu.memory_space<vmem>>, vector<16x32xf32>
    %36 = arith.maximumf %34, %35 : vector<16x32xf32>
    %c72 = arith.constant 72 : index
    %c0_32 = arith.constant 0 : index
    %37 = vector.load %arg17[%c72, %c0_32] : memref<304x32xf32, #tpu.memory_space<vmem>>, vector<16x32xf32>
    tpu.vector_store %arg17[%c72, %c0_32], %36 {strides = array<i32>} : memref<304x32xf32, #tpu.memory_space<vmem>>, vector<16x32xf32>,
    %c128 = arith.constant 128 : index
    %c0_33 = arith.constant 0 : index
    %38 = vector.load %arg16[%c128, %c0_33] : memref<512x32xf32, #tpu.memory_space<vmem>>, vector<16x32xf32>
    %c144 = arith.constant 144 : index
    %c0_34 = arith.constant 0 : index
    %39 = vector.load %arg16[%c144, %c0_34] : memref<512x32xf32, #tpu.memory_space<vmem>>, vector<16x32xf32>
    %40 = arith.maximumf %38, %39 : vector<16x32xf32>
    %c88 = arith.constant 88 : index
    %c0_35 = arith.constant 0 : index
    %41 = vector.load %arg17[%c88, %c0_35] : memref<304x32xf32, #tpu.memory_space<vmem>>, vector<16x32xf32>
    tpu.vector_store %arg17[%c88, %c0_35], %40 {strides = array<i32>} : memref<304x32xf32, #tpu.memory_space<vmem>>, vector<16x32xf32>,
    %c160 = arith.constant 160 : index
    %c0_36 = arith.constant 0 : index
    %42 = vector.load %arg16[%c160, %c0_36] : memref<512x32xf32, #tpu.memory_space<vmem>>, vector<16x32xf32>
    %c176 = arith.constant 176 : index
    %c0_37 = arith.constant 0 : index
    %43 = vector.load %arg16[%c176, %c0_37] : memref<512x32xf32, #tpu.memory_space<vmem>>, vector<16x32xf32>
    %44 = arith.maximumf %42, %43 : vector<16x32xf32>
    %c104 = arith.constant 104 : index
    %c0_38 = arith.constant 0 : index
    %45 = vector.load %arg17[%c104, %c0_38] : memref<304x32xf32, #tpu.memory_space<vmem>>, vector<16x32xf32>
    tpu.vector_store %arg17[%c104, %c0_38], %44 {strides = array<i32>} : memref<304x32xf32, #tpu.memory_space<vmem>>, vector<16x32xf32>,
    %c192 = arith.constant 192 : index
    %c0_39 = arith.constant 0 : index
    %46 = vector.load %arg16[%c192, %c0_39] : memref<512x32xf32, #tpu.memory_space<vmem>>, vector<16x32xf32>
    %c208 = arith.constant 208 : index
    %c0_40 = arith.constant 0 : index
    %47 = vector.load %arg16[%c208, %c0_40] : memref<512x32xf32, #tpu.memory_space<vmem>>, vector<16x32xf32>
    %48 = arith.maximumf %46, %47 : vector<16x32xf32>
    %c120 = arith.constant 120 : index
    %c0_41 = arith.constant 0 : index
    %49 = vector.load %arg17[%c120, %c0_41] : memref<304x32xf32, #tpu.memory_space<vmem>>, vector<16x32xf32>
    tpu.vector_store %arg17[%c120, %c0_41], %48 {strides = array<i32>} : memref<304x32xf32, #tpu.memory_space<vmem>>, vector<16x32xf32>,
    %c224 = arith.constant 224 : index
    %c0_42 = arith.constant 0 : index
    %50 = vector.load %arg16[%c224, %c0_42] : memref<512x32xf32, #tpu.memory_space<vmem>>, vector<16x32xf32>
    %c240 = arith.constant 240 : index
    %c0_43 = arith.constant 0 : index
    %51 = vector.load %arg16[%c240, %c0_43] : memref<512x32xf32, #tpu.memory_space<vmem>>, vector<16x32xf32>
    %52 = arith.maximumf %50, %51 : vector<16x32xf32>
    %c136 = arith.constant 136 : index
    %c0_44 = arith.constant 0 : index
    %53 = vector.load %arg17[%c136, %c0_44] : memref<304x32xf32, #tpu.memory_space<vmem>>, vector<16x32xf32>
    tpu.vector_store %arg17[%c136, %c0_44], %52 {strides = array<i32>} : memref<304x32xf32, #tpu.memory_space<vmem>>, vector<16x32xf32>,
    %c256 = arith.constant 256 : index
    %c0_45 = arith.constant 0 : index
    %54 = vector.load %arg16[%c256, %c0_45] : memref<512x32xf32, #tpu.memory_space<vmem>>, vector<16x32xf32>
    %c272 = arith.constant 272 : index
    %c0_46 = arith.constant 0 : index
    %55 = vector.load %arg16[%c272, %c0_46] : memref<512x32xf32, #tpu.memory_space<vmem>>, vector<16x32xf32>
    %56 = arith.maximumf %54, %55 : vector<16x32xf32>
    %c152 = arith.constant 152 : index
    %c0_47 = arith.constant 0 : index
    %57 = vector.load %arg17[%c152, %c0_47] : memref<304x32xf32, #tpu.memory_space<vmem>>, vector<16x32xf32>
    tpu.vector_store %arg17[%c152, %c0_47], %56 {strides = array<i32>} : memref<304x32xf32, #tpu.memory_space<vmem>>, vector<16x32xf32>,
    %c288 = arith.constant 288 : index
    %c0_48 = arith.constant 0 : index
    %58 = vector.load %arg16[%c288, %c0_48] : memref<512x32xf32, #tpu.memory_space<vmem>>, vector<16x32xf32>
    %c304 = arith.constant 304 : index
    %c0_49 = arith.constant 0 : index
    %59 = vector.load %arg16[%c304, %c0_49] : memref<512x32xf32, #tpu.memory_space<vmem>>, vector<16x32xf32>
    %60 = arith.maximumf %58, %59 : vector<16x32xf32>
    %c168 = arith.constant 168 : index
    %c0_50 = arith.constant 0 : index
    %61 = vector.load %arg17[%c168, %c0_50] : memref<304x32xf32, #tpu.memory_space<vmem>>, vector<16x32xf32>
    tpu.vector_store %arg17[%c168, %c0_50], %60 {strides = array<i32>} : memref<304x32xf32, #tpu.memory_space<vmem>>, vector<16x32xf32>,
    %c320 = arith.constant 320 : index
    %c0_51 = arith.constant 0 : index
    %62 = vector.load %arg16[%c320, %c0_51] : memref<512x32xf32, #tpu.memory_space<vmem>>, vector<16x32xf32>
    %c336 = arith.constant 336 : index
    %c0_52 = arith.constant 0 : index
    %63 = vector.load %arg16[%c336, %c0_52] : memref<512x32xf32, #tpu.memory_space<vmem>>, vector<16x32xf32>
    %64 = arith.maximumf %62, %63 : vector<16x32xf32>
    %c184 = arith.constant 184 : index
    %c0_53 = arith.constant 0 : index
    %65 = vector.load %arg17[%c184, %c0_53] : memref<304x32xf32, #tpu.memory_space<vmem>>, vector<16x32xf32>
    tpu.vector_store %arg17[%c184, %c0_53], %64 {strides = array<i32>} : memref<304x32xf32, #tpu.memory_space<vmem>>, vector<16x32xf32>,
    %c352 = arith.constant 352 : index
    %c0_54 = arith.constant 0 : index
    %66 = vector.load %arg16[%c352, %c0_54] : memref<512x32xf32, #tpu.memory_space<vmem>>, vector<16x32xf32>
    %c368 = arith.constant 368 : index
    %c0_55 = arith.constant 0 : index
    %67 = vector.load %arg16[%c368, %c0_55] : memref<512x32xf32, #tpu.memory_space<vmem>>, vector<16x32xf32>
    %68 = arith.maximumf %66, %67 : vector<16x32xf32>
    %c200 = arith.constant 200 : index
    %c0_56 = arith.constant 0 : index
    %69 = vector.load %arg17[%c200, %c0_56] : memref<304x32xf32, #tpu.memory_space<vmem>>, vector<16x32xf32>
    tpu.vector_store %arg17[%c200, %c0_56], %68 {strides = array<i32>} : memref<304x32xf32, #tpu.memory_space<vmem>>, vector<16x32xf32>,
    %c384 = arith.constant 384 : index
    %c0_57 = arith.constant 0 : index
    %70 = vector.load %arg16[%c384, %c0_57] : memref<512x32xf32, #tpu.memory_space<vmem>>, vector<16x32xf32>
    %c400 = arith.constant 400 : index
    %c0_58 = arith.constant 0 : index
    %71 = vector.load %arg16[%c400, %c0_58] : memref<512x32xf32, #tpu.memory_space<vmem>>, vector<16x32xf32>
    %72 = arith.maximumf %70, %71 : vector<16x32xf32>
    %c216 = arith.constant 216 : index
    %c0_59 = arith.constant 0 : index
    %73 = vector.load %arg17[%c216, %c0_59] : memref<304x32xf32, #tpu.memory_space<vmem>>, vector<16x32xf32>
    tpu.vector_store %arg17[%c216, %c0_59], %72 {strides = array<i32>} : memref<304x32xf32, #tpu.memory_space<vmem>>, vector<16x32xf32>,
    %c416 = arith.constant 416 : index
    %c0_60 = arith.constant 0 : index
    %74 = vector.load %arg16[%c416, %c0_60] : memref<512x32xf32, #tpu.memory_space<vmem>>, vector<16x32xf32>
    %c432 = arith.constant 432 : index
    %c0_61 = arith.constant 0 : index
    %75 = vector.load %arg16[%c432, %c0_61] : memref<512x32xf32, #tpu.memory_space<vmem>>, vector<16x32xf32>
    %76 = arith.maximumf %74, %75 : vector<16x32xf32>
    %c232 = arith.constant 232 : index
    %c0_62 = arith.constant 0 : index
    %77 = vector.load %arg17[%c232, %c0_62] : memref<304x32xf32, #tpu.memory_space<vmem>>, vector<16x32xf32>
    tpu.vector_store %arg17[%c232, %c0_62], %76 {strides = array<i32>} : memref<304x32xf32, #tpu.memory_space<vmem>>, vector<16x32xf32>,
    %c448 = arith.constant 448 : index
    %c0_63 = arith.constant 0 : index
    %78 = vector.load %arg16[%c448, %c0_63] : memref<512x32xf32, #tpu.memory_space<vmem>>, vector<16x32xf32>
    %c464 = arith.constant 464 : index
    %c0_64 = arith.constant 0 : index
    %79 = vector.load %arg16[%c464, %c0_64] : memref<512x32xf32, #tpu.memory_space<vmem>>, vector<16x32xf32>
    %80 = arith.maximumf %78, %79 : vector<16x32xf32>
    %c248 = arith.constant 248 : index
    %c0_65 = arith.constant 0 : index
    %81 = vector.load %arg17[%c248, %c0_65] : memref<304x32xf32, #tpu.memory_space<vmem>>, vector<16x32xf32>
    tpu.vector_store %arg17[%c248, %c0_65], %80 {strides = array<i32>} : memref<304x32xf32, #tpu.memory_space<vmem>>, vector<16x32xf32>,
    %c480 = arith.constant 480 : index
    %c0_66 = arith.constant 0 : index
    %82 = vector.load %arg16[%c480, %c0_66] : memref<512x32xf32, #tpu.memory_space<vmem>>, vector<16x32xf32>
    %c496 = arith.constant 496 : index
    %c0_67 = arith.constant 0 : index
    %83 = vector.load %arg16[%c496, %c0_67] : memref<512x32xf32, #tpu.memory_space<vmem>>, vector<16x32xf32>
    %84 = arith.maximumf %82, %83 : vector<16x32xf32>
    %c264 = arith.constant 264 : index
    %c0_68 = arith.constant 0 : index
    %85 = vector.load %arg17[%c264, %c0_68] : memref<304x32xf32, #tpu.memory_space<vmem>>, vector<16x32xf32>
    tpu.vector_store %arg17[%c264, %c0_68], %84 {strides = array<i32>} : memref<304x32xf32, #tpu.memory_space<vmem>>, vector<16x32xf32>,
    %86 = tpu.iota {dimensions = array<i32: 0>} : vector<256x32xi32>
    %c15_i32 = arith.constant 15 : i32
    %87 = vector.broadcast %c15_i32 : i32 to vector<256x32xi32>
    %88 = arith.andi %86, %87 : vector<256x32xi32>
    %c7 = arith.constant 7 : index
    %c0_69 = arith.constant 0 : index
    %89 = vector.load %arg17[%c7, %c0_69] : memref<304x32xf32, #tpu.memory_space<vmem>>, vector<256x32xf32>
    %c1_i32 = arith.constant 1 : i32
    %90 = vector.broadcast %c1_i32 : i32 to vector<256x32xi32>
    %91 = arith.cmpi sge, %88, %90 : vector<256x32xi32>
    %cst_70 = arith.constant 0.000000e+00 : f32
    %92 = vector.broadcast %cst_70 : f32 to vector<256x32xf32>
    %93 = arith.select %91, %89, %92 : vector<256x32xi1>, vector<256x32xf32>
    %94 = arith.truncf %93 : vector<256x32xf32> to vector<256x32xbf16>
    %c0_71 = arith.constant 0 : index
    %c0_72 = arith.constant 0 : index
    %95 = vector.load %arg18[%c0_71, %c0_72] : memref<256x288xbf16, #tpu.memory_space<vmem>>, vector<256x32xbf16>
    tpu.vector_store %arg18[%c0_71, %c0_72], %94 {strides = array<i32>} : memref<256x288xbf16, #tpu.memory_space<vmem>>, vector<256x32xbf16>,
    %c8 = arith.constant 8 : index
    %c0_73 = arith.constant 0 : index
    %96 = vector.load %arg17[%c8, %c0_73] : memref<304x32xf32, #tpu.memory_space<vmem>>, vector<256x32xf32>
    %97 = arith.truncf %96 : vector<256x32xf32> to vector<256x32xbf16>
    %c0_74 = arith.constant 0 : index
    %c32_75 = arith.constant 32 : index
    %98 = vector.load %arg18[%c0_74, %c32_75] : memref<256x288xbf16, #tpu.memory_space<vmem>>, vector<256x32xbf16>
    tpu.vector_store %arg18[%c0_74, %c32_75], %97 {strides = array<i32>} : memref<256x288xbf16, #tpu.memory_space<vmem>>, vector<256x32xbf16>,
    %c9 = arith.constant 9 : index
    %c0_76 = arith.constant 0 : index
    %99 = vector.load %arg17[%c9, %c0_76] : memref<304x32xf32, #tpu.memory_space<vmem>>, vector<256x32xf32>
    %c14_i32 = arith.constant 14 : i32
    %100 = vector.broadcast %c14_i32 : i32 to vector<256x32xi32>
    %101 = arith.cmpi sle, %88, %100 : vector<256x32xi32>
    %cst_77 = arith.constant 0.000000e+00 : f32
    %102 = vector.broadcast %cst_77 : f32 to vector<256x32xf32>
    %103 = arith.select %101, %99, %102 : vector<256x32xi1>, vector<256x32xf32>
    %104 = arith.truncf %103 : vector<256x32xf32> to vector<256x32xbf16>
    %c0_78 = arith.constant 0 : index
    %c64_79 = arith.constant 64 : index
    %105 = vector.load %arg18[%c0_78, %c64_79] : memref<256x288xbf16, #tpu.memory_space<vmem>>, vector<256x32xbf16>
    tpu.vector_store %arg18[%c0_78, %c64_79], %104 {strides = array<i32>} : memref<256x288xbf16, #tpu.memory_space<vmem>>, vector<256x32xbf16>,
    %c23 = arith.constant 23 : index
    %c0_80 = arith.constant 0 : index
    %106 = vector.load %arg17[%c23, %c0_80] : memref<304x32xf32, #tpu.memory_space<vmem>>, vector<256x32xf32>
    %c1_i32_81 = arith.constant 1 : i32
    %107 = vector.broadcast %c1_i32_81 : i32 to vector<256x32xi32>
    %108 = arith.cmpi sge, %88, %107 : vector<256x32xi32>
    %cst_82 = arith.constant 0.000000e+00 : f32
    %109 = vector.broadcast %cst_82 : f32 to vector<256x32xf32>
    %110 = arith.select %108, %106, %109 : vector<256x32xi1>, vector<256x32xf32>
    %111 = arith.truncf %110 : vector<256x32xf32> to vector<256x32xbf16>
    %c0_83 = arith.constant 0 : index
    %c96_84 = arith.constant 96 : index
    %112 = vector.load %arg18[%c0_83, %c96_84] : memref<256x288xbf16, #tpu.memory_space<vmem>>, vector<256x32xbf16>
    tpu.vector_store %arg18[%c0_83, %c96_84], %111 {strides = array<i32>} : memref<256x288xbf16, #tpu.memory_space<vmem>>, vector<256x32xbf16>,
    %c24_85 = arith.constant 24 : index
    %c0_86 = arith.constant 0 : index
    %113 = vector.load %arg17[%c24_85, %c0_86] : memref<304x32xf32, #tpu.memory_space<vmem>>, vector<256x32xf32>
    %114 = arith.truncf %113 : vector<256x32xf32> to vector<256x32xbf16>
    %c0_87 = arith.constant 0 : index
    %c128_88 = arith.constant 128 : index
    %115 = vector.load %arg18[%c0_87, %c128_88] : memref<256x288xbf16, #tpu.memory_space<vmem>>, vector<256x32xbf16>
    tpu.vector_store %arg18[%c0_87, %c128_88], %114 {strides = array<i32>} : memref<256x288xbf16, #tpu.memory_space<vmem>>, vector<256x32xbf16>,
    %c25 = arith.constant 25 : index
    %c0_89 = arith.constant 0 : index
    %116 = vector.load %arg17[%c25, %c0_89] : memref<304x32xf32, #tpu.memory_space<vmem>>, vector<256x32xf32>
    %c14_i32_90 = arith.constant 14 : i32
    %117 = vector.broadcast %c14_i32_90 : i32 to vector<256x32xi32>
    %118 = arith.cmpi sle, %88, %117 : vector<256x32xi32>
    %cst_91 = arith.constant 0.000000e+00 : f32
    %119 = vector.broadcast %cst_91 : f32 to vector<256x32xf32>
    %120 = arith.select %118, %116, %119 : vector<256x32xi1>, vector<256x32xf32>
    %121 = arith.truncf %120 : vector<256x32xf32> to vector<256x32xbf16>
    %c0_92 = arith.constant 0 : index
    %c160_93 = arith.constant 160 : index
    %122 = vector.load %arg18[%c0_92, %c160_93] : memref<256x288xbf16, #tpu.memory_space<vmem>>, vector<256x32xbf16>
    tpu.vector_store %arg18[%c0_92, %c160_93], %121 {strides = array<i32>} : memref<256x288xbf16, #tpu.memory_space<vmem>>, vector<256x32xbf16>,
    %c39 = arith.constant 39 : index
    %c0_94 = arith.constant 0 : index
    %123 = vector.load %arg17[%c39, %c0_94] : memref<304x32xf32, #tpu.memory_space<vmem>>, vector<256x32xf32>
    %c1_i32_95 = arith.constant 1 : i32
    %124 = vector.broadcast %c1_i32_95 : i32 to vector<256x32xi32>
    %125 = arith.cmpi sge, %88, %124 : vector<256x32xi32>
    %cst_96 = arith.constant 0.000000e+00 : f32
    %126 = vector.broadcast %cst_96 : f32 to vector<256x32xf32>
    %127 = arith.select %125, %123, %126 : vector<256x32xi1>, vector<256x32xf32>
    %128 = arith.truncf %127 : vector<256x32xf32> to vector<256x32xbf16>
    %c0_97 = arith.constant 0 : index
    %c192_98 = arith.constant 192 : index
    %129 = vector.load %arg18[%c0_97, %c192_98] : memref<256x288xbf16, #tpu.memory_space<vmem>>, vector<256x32xbf16>
    tpu.vector_store %arg18[%c0_97, %c192_98], %128 {strides = array<i32>} : memref<256x288xbf16, #tpu.memory_space<vmem>>, vector<256x32xbf16>,
    %c40_99 = arith.constant 40 : index
    %c0_100 = arith.constant 0 : index
    %130 = vector.load %arg17[%c40_99, %c0_100] : memref<304x32xf32, #tpu.memory_space<vmem>>, vector<256x32xf32>
    %131 = arith.truncf %130 : vector<256x32xf32> to vector<256x32xbf16>
    %c0_101 = arith.constant 0 : index
    %c224_102 = arith.constant 224 : index
    %132 = vector.load %arg18[%c0_101, %c224_102] : memref<256x288xbf16, #tpu.memory_space<vmem>>, vector<256x32xbf16>
    tpu.vector_store %arg18[%c0_101, %c224_102], %131 {strides = array<i32>} : memref<256x288xbf16, #tpu.memory_space<vmem>>, vector<256x32xbf16>,
    %c41 = arith.constant 41 : index
    %c0_103 = arith.constant 0 : index
    %133 = vector.load %arg17[%c41, %c0_103] : memref<304x32xf32, #tpu.memory_space<vmem>>, vector<256x32xf32>
    %c14_i32_104 = arith.constant 14 : i32
    %134 = vector.broadcast %c14_i32_104 : i32 to vector<256x32xi32>
    %135 = arith.cmpi sle, %88, %134 : vector<256x32xi32>
    %cst_105 = arith.constant 0.000000e+00 : f32
    %136 = vector.broadcast %cst_105 : f32 to vector<256x32xf32>
    %137 = arith.select %135, %133, %136 : vector<256x32xi1>, vector<256x32xf32>
    %138 = arith.truncf %137 : vector<256x32xf32> to vector<256x32xbf16>
    %c0_106 = arith.constant 0 : index
    %c256_107 = arith.constant 256 : index
    %139 = vector.load %arg18[%c0_106, %c256_107] : memref<256x288xbf16, #tpu.memory_space<vmem>>, vector<256x32xbf16>
    tpu.vector_store %arg18[%c0_106, %c256_107], %138 {strides = array<i32>} : memref<256x288xbf16, #tpu.memory_space<vmem>>, vector<256x32xbf16>,
    %c0_108 = arith.constant 0 : index
    %c0_109 = arith.constant 0 : index
    %140 = vector.load %arg18[%c0_108, %c0_109] : memref<256x288xbf16, #tpu.memory_space<vmem>>, vector<256x288xbf16>
    %c0_110 = arith.constant 0 : index
    %c0_111 = arith.constant 0 : index
    %141 = vector.load %arg4[%c0_110, %c0_111] : memref<288x64xbf16, #tpu.memory_space<vmem>>, vector<288x64xbf16>
    %cst_112 = arith.constant dense<0.000000e+00> : vector<256x64xf32>
    %142 = tpu.matmul %140, %141, %cst_112 {dimension_numbers = #tpu.dot_dimension_numbers<[1], [0], [0], [1], [0, 0, 1, 1], [], []>} : vector<256x288xbf16>, vector<288x64xbf16>, vector<256x64xf32> -> vector<256x64xf32>
    %c0_113 = arith.constant 0 : index
    %c0_114 = arith.constant 0 : index
    %143 = vector.load %arg5[%c0_113, %c0_114] : memref<3x64xf32, #tpu.memory_space<vmem>>, vector<1x64xf32>
    %144 = vector.broadcast %143 : vector<1x64xf32> to vector<256x64xf32>
    %145 = arith.addf %142, %144 : vector<256x64xf32>
    %cst_115 = arith.constant 0.000000e+00 : f32
    %146 = vector.broadcast %cst_115 : f32 to vector<256x64xf32>
    %147 = arith.maximumf %145, %146 : vector<256x64xf32>
    %c1_116 = arith.constant 1 : index
    %c0_117 = arith.constant 0 : index
    %148 = vector.load %arg5[%c1_116, %c0_117] : memref<3x64xf32, #tpu.memory_space<vmem>>, vector<1x64xf32>
    %149 = vector.broadcast %148 : vector<1x64xf32> to vector<256x64xf32>
    %150 = arith.mulf %147, %149 : vector<256x64xf32>
    %c2_118 = arith.constant 2 : index
    %c0_119 = arith.constant 0 : index
    %151 = vector.load %arg5[%c2_118, %c0_119] : memref<3x64xf32, #tpu.memory_space<vmem>>, vector<1x64xf32>
    %152 = vector.broadcast %151 : vector<1x64xf32> to vector<256x64xf32>
    %153 = arith.addf %150, %152 : vector<256x64xf32>
    %c0_120 = arith.constant 0 : index
    %c0_121 = arith.constant 0 : index
    %154 = vector.load %arg19[%c0_120, %c0_121] : memref<256x64xf32, #tpu.memory_space<vmem>>, vector<256x64xf32>
    tpu.vector_store %arg19[%c0_120, %c0_121], %153 {strides = array<i32>} : memref<256x64xf32, #tpu.memory_space<vmem>>, vector<256x64xf32>,
    %cst_122 = arith.constant 0.000000e+00 : f32
    %155 = vector.broadcast %cst_122 : f32 to vector<96x64xf32>
    %c0_123 = arith.constant 0 : index
    %c0_124 = arith.constant 0 : index
    %156 = vector.load %arg21[%c0_123, %c0_124] : memref<96x64xf32, #tpu.memory_space<vmem>>, vector<96x64xf32>
    tpu.vector_store %arg21[%c0_123, %c0_124], %155 {strides = array<i32>} : memref<96x64xf32, #tpu.memory_space<vmem>>, vector<96x64xf32>,
    %c0_125 = arith.constant 0 : index
    %c0_126 = arith.constant 0 : index
    %157 = tpu.strided_load %arg19[%c0_125, %c0_126] {strides = array<i32: 2, 1>} : memref<256x64xf32, #tpu.memory_space<vmem>>, vector<128x64xf32>
    %c1_127 = arith.constant 1 : index
    %c0_128 = arith.constant 0 : index
    %158 = tpu.strided_load %arg19[%c1_127, %c0_128] {strides = array<i32: 2, 1>} : memref<256x64xf32, #tpu.memory_space<vmem>>, vector<128x64xf32>
    %159 = arith.maximumf %157, %158 : vector<128x64xf32>
    %c0_129 = arith.constant 0 : index
    %c0_130 = arith.constant 0 : index
    %160 = vector.load %arg20[%c0_129, %c0_130] : memref<128x64xf32, #tpu.memory_space<vmem>>, vector<128x64xf32>
    tpu.vector_store %arg20[%c0_129, %c0_130], %159 {strides = array<i32>} : memref<128x64xf32, #tpu.memory_space<vmem>>, vector<128x64xf32>,
    %c0_131 = arith.constant 0 : index
    %c0_132 = arith.constant 0 : index
    %161 = vector.load %arg20[%c0_131, %c0_132] : memref<128x64xf32, #tpu.memory_space<vmem>>, vector<8x64xf32>
    %c8_133 = arith.constant 8 : index
    %c0_134 = arith.constant 0 : index
    %162 = vector.load %arg20[%c8_133, %c0_134] : memref<128x64xf32, #tpu.memory_space<vmem>>, vector<8x64xf32>
    %163 = arith.maximumf %161, %162 : vector<8x64xf32>
    %c16_135 = arith.constant 16 : index
    %c0_136 = arith.constant 0 : index
    %164 = vector.load %arg21[%c16_135, %c0_136] : memref<96x64xf32, #tpu.memory_space<vmem>>, vector<8x64xf32>
    tpu.vector_store %arg21[%c16_135, %c0_136], %163 {strides = array<i32>} : memref<96x64xf32, #tpu.memory_space<vmem>>, vector<8x64xf32>,
    %c16_137 = arith.constant 16 : index
    %c0_138 = arith.constant 0 : index
    %165 = vector.load %arg20[%c16_137, %c0_138] : memref<128x64xf32, #tpu.memory_space<vmem>>, vector<8x64xf32>
    %c24_139 = arith.constant 24 : index
    %c0_140 = arith.constant 0 : index
    %166 = vector.load %arg20[%c24_139, %c0_140] : memref<128x64xf32, #tpu.memory_space<vmem>>, vector<8x64xf32>
    %167 = arith.maximumf %165, %166 : vector<8x64xf32>
    %c24_141 = arith.constant 24 : index
    %c0_142 = arith.constant 0 : index
    %168 = vector.load %arg21[%c24_141, %c0_142] : memref<96x64xf32, #tpu.memory_space<vmem>>, vector<8x64xf32>
    tpu.vector_store %arg21[%c24_141, %c0_142], %167 {strides = array<i32>} : memref<96x64xf32, #tpu.memory_space<vmem>>, vector<8x64xf32>,
    %c32_143 = arith.constant 32 : index
    %c0_144 = arith.constant 0 : index
    %169 = vector.load %arg20[%c32_143, %c0_144] : memref<128x64xf32, #tpu.memory_space<vmem>>, vector<8x64xf32>
    %c40_145 = arith.constant 40 : index
    %c0_146 = arith.constant 0 : index
    %170 = vector.load %arg20[%c40_145, %c0_146] : memref<128x64xf32, #tpu.memory_space<vmem>>, vector<8x64xf32>
    %171 = arith.maximumf %169, %170 : vector<8x64xf32>
    %c32_147 = arith.constant 32 : index
    %c0_148 = arith.constant 0 : index
    %172 = vector.load %arg21[%c32_147, %c0_148] : memref<96x64xf32, #tpu.memory_space<vmem>>, vector<8x64xf32>
    tpu.vector_store %arg21[%c32_147, %c0_148], %171 {strides = array<i32>} : memref<96x64xf32, #tpu.memory_space<vmem>>, vector<8x64xf32>,
    %c48_149 = arith.constant 48 : index
    %c0_150 = arith.constant 0 : index
    %173 = vector.load %arg20[%c48_149, %c0_150] : memref<128x64xf32, #tpu.memory_space<vmem>>, vector<8x64xf32>
    %c56_151 = arith.constant 56 : index
    %c0_152 = arith.constant 0 : index
    %174 = vector.load %arg20[%c56_151, %c0_152] : memref<128x64xf32, #tpu.memory_space<vmem>>, vector<8x64xf32>
    %175 = arith.maximumf %173, %174 : vector<8x64xf32>
    %c40_153 = arith.constant 40 : index
    %c0_154 = arith.constant 0 : index
    %176 = vector.load %arg21[%c40_153, %c0_154] : memref<96x64xf32, #tpu.memory_space<vmem>>, vector<8x64xf32>
    tpu.vector_store %arg21[%c40_153, %c0_154], %175 {strides = array<i32>} : memref<96x64xf32, #tpu.memory_space<vmem>>, vector<8x64xf32>,
    %c64_155 = arith.constant 64 : index
    %c0_156 = arith.constant 0 : index
    %177 = vector.load %arg20[%c64_155, %c0_156] : memref<128x64xf32, #tpu.memory_space<vmem>>, vector<8x64xf32>
    %c72_157 = arith.constant 72 : index
    %c0_158 = arith.constant 0 : index
    %178 = vector.load %arg20[%c72_157, %c0_158] : memref<128x64xf32, #tpu.memory_space<vmem>>, vector<8x64xf32>
    %179 = arith.maximumf %177, %178 : vector<8x64xf32>
    %c48_159 = arith.constant 48 : index
    %c0_160 = arith.constant 0 : index
    %180 = vector.load %arg21[%c48_159, %c0_160] : memref<96x64xf32, #tpu.memory_space<vmem>>, vector<8x64xf32>
    tpu.vector_store %arg21[%c48_159, %c0_160], %179 {strides = array<i32>} : memref<96x64xf32, #tpu.memory_space<vmem>>, vector<8x64xf32>,
    %c80_161 = arith.constant 80 : index
    %c0_162 = arith.constant 0 : index
    %181 = vector.load %arg20[%c80_161, %c0_162] : memref<128x64xf32, #tpu.memory_space<vmem>>, vector<8x64xf32>
    %c88_163 = arith.constant 88 : index
    %c0_164 = arith.constant 0 : index
    %182 = vector.load %arg20[%c88_163, %c0_164] : memref<128x64xf32, #tpu.memory_space<vmem>>, vector<8x64xf32>
    %183 = arith.maximumf %181, %182 : vector<8x64xf32>
    %c56_165 = arith.constant 56 : index
    %c0_166 = arith.constant 0 : index
    %184 = vector.load %arg21[%c56_165, %c0_166] : memref<96x64xf32, #tpu.memory_space<vmem>>, vector<8x64xf32>
    tpu.vector_store %arg21[%c56_165, %c0_166], %183 {strides = array<i32>} : memref<96x64xf32, #tpu.memory_space<vmem>>, vector<8x64xf32>,
    %c96_167 = arith.constant 96 : index
    %c0_168 = arith.constant 0 : index
    %185 = vector.load %arg20[%c96_167, %c0_168] : memref<128x64xf32, #tpu.memory_space<vmem>>, vector<8x64xf32>
    %c104_169 = arith.constant 104 : index
    %c0_170 = arith.constant 0 : index
    %186 = vector.load %arg20[%c104_169, %c0_170] : memref<128x64xf32, #tpu.memory_space<vmem>>, vector<8x64xf32>
    %187 = arith.maximumf %185, %186 : vector<8x64xf32>
    %c64_171 = arith.constant 64 : index
    %c0_172 = arith.constant 0 : index
    %188 = vector.load %arg21[%c64_171, %c0_172] : memref<96x64xf32, #tpu.memory_space<vmem>>, vector<8x64xf32>
    tpu.vector_store %arg21[%c64_171, %c0_172], %187 {strides = array<i32>} : memref<96x64xf32, #tpu.memory_space<vmem>>, vector<8x64xf32>,
    %c112_173 = arith.constant 112 : index
    %c0_174 = arith.constant 0 : index
    %189 = vector.load %arg20[%c112_173, %c0_174] : memref<128x64xf32, #tpu.memory_space<vmem>>, vector<8x64xf32>
    %c120_175 = arith.constant 120 : index
    %c0_176 = arith.constant 0 : index
    %190 = vector.load %arg20[%c120_175, %c0_176] : memref<128x64xf32, #tpu.memory_space<vmem>>, vector<8x64xf32>
    %191 = arith.maximumf %189, %190 : vector<8x64xf32>
    %c72_177 = arith.constant 72 : index
    %c0_178 = arith.constant 0 : index
    %192 = vector.load %arg21[%c72_177, %c0_178] : memref<96x64xf32, #tpu.memory_space<vmem>>, vector<8x64xf32>
    tpu.vector_store %arg21[%c72_177, %c0_178], %191 {strides = array<i32>} : memref<96x64xf32, #tpu.memory_space<vmem>>, vector<8x64xf32>,
    %193 = tpu.iota {dimensions = array<i32: 0>} : vector<64x64xi32>
    %c7_i32 = arith.constant 7 : i32
    %194 = vector.broadcast %c7_i32 : i32 to vector<64x64xi32>
    %195 = arith.andi %193, %194 : vector<64x64xi32>
    %c7_179 = arith.constant 7 : index
    %c0_180 = arith.constant 0 : index
    %196 = vector.load %arg21[%c7_179, %c0_180] : memref<96x64xf32, #tpu.memory_space<vmem>>, vector<64x64xf32>
    %c1_i32_181 = arith.constant 1 : i32
    %197 = vector.broadcast %c1_i32_181 : i32 to vector<64x64xi32>
    %198 = arith.cmpi sge, %195, %197 : vector<64x64xi32>
    %cst_182 = arith.constant 0.000000e+00 : f32
    %199 = vector.broadcast %cst_182 : f32 to vector<64x64xf32>
    %200 = arith.select %198, %196, %199 : vector<64x64xi1>, vector<64x64xf32>
    %201 = arith.truncf %200 : vector<64x64xf32> to vector<64x64xbf16>
    %c0_183 = arith.constant 0 : index
    %c0_184 = arith.constant 0 : index
    %202 = vector.load %arg22[%c0_183, %c0_184] : memref<64x576xbf16, #tpu.memory_space<vmem>>, vector<64x64xbf16>
    tpu.vector_store %arg22[%c0_183, %c0_184], %201 {strides = array<i32>} : memref<64x576xbf16, #tpu.memory_space<vmem>>, vector<64x64xbf16>,
    %c8_185 = arith.constant 8 : index
    %c0_186 = arith.constant 0 : index
    %203 = vector.load %arg21[%c8_185, %c0_186] : memref<96x64xf32, #tpu.memory_space<vmem>>, vector<64x64xf32>
    %204 = arith.truncf %203 : vector<64x64xf32> to vector<64x64xbf16>
    %c0_187 = arith.constant 0 : index
    %c64_188 = arith.constant 64 : index
    %205 = vector.load %arg22[%c0_187, %c64_188] : memref<64x576xbf16, #tpu.memory_space<vmem>>, vector<64x64xbf16>
    tpu.vector_store %arg22[%c0_187, %c64_188], %204 {strides = array<i32>} : memref<64x576xbf16, #tpu.memory_space<vmem>>, vector<64x64xbf16>,
    %c9_189 = arith.constant 9 : index
    %c0_190 = arith.constant 0 : index
    %206 = vector.load %arg21[%c9_189, %c0_190] : memref<96x64xf32, #tpu.memory_space<vmem>>, vector<64x64xf32>
    %c6_i32 = arith.constant 6 : i32
    %207 = vector.broadcast %c6_i32 : i32 to vector<64x64xi32>
    %208 = arith.cmpi sle, %195, %207 : vector<64x64xi32>
    %cst_191 = arith.constant 0.000000e+00 : f32
    %209 = vector.broadcast %cst_191 : f32 to vector<64x64xf32>
    %210 = arith.select %208, %206, %209 : vector<64x64xi1>, vector<64x64xf32>
    %211 = arith.truncf %210 : vector<64x64xf32> to vector<64x64xbf16>
    %c0_192 = arith.constant 0 : index
    %c128_193 = arith.constant 128 : index
    %212 = vector.load %arg22[%c0_192, %c128_193] : memref<64x576xbf16, #tpu.memory_space<vmem>>, vector<64x64xbf16>
    tpu.vector_store %arg22[%c0_192, %c128_193], %211 {strides = array<i32>} : memref<64x576xbf16, #tpu.memory_space<vmem>>, vector<64x64xbf16>,
    %c15 = arith.constant 15 : index
    %c0_194 = arith.constant 0 : index
    %213 = vector.load %arg21[%c15, %c0_194] : memref<96x64xf32, #tpu.memory_space<vmem>>, vector<64x64xf32>
    %c1_i32_195 = arith.constant 1 : i32
    %214 = vector.broadcast %c1_i32_195 : i32 to vector<64x64xi32>
    %215 = arith.cmpi sge, %195, %214 : vector<64x64xi32>
    %cst_196 = arith.constant 0.000000e+00 : f32
    %216 = vector.broadcast %cst_196 : f32 to vector<64x64xf32>
    %217 = arith.select %215, %213, %216 : vector<64x64xi1>, vector<64x64xf32>
    %218 = arith.truncf %217 : vector<64x64xf32> to vector<64x64xbf16>
    %c0_197 = arith.constant 0 : index
    %c192_198 = arith.constant 192 : index
    %219 = vector.load %arg22[%c0_197, %c192_198] : memref<64x576xbf16, #tpu.memory_space<vmem>>, vector<64x64xbf16>
    tpu.vector_store %arg22[%c0_197, %c192_198], %218 {strides = array<i32>} : memref<64x576xbf16, #tpu.memory_space<vmem>>, vector<64x64xbf16>,
    %c16_199 = arith.constant 16 : index
    %c0_200 = arith.constant 0 : index
    %220 = vector.load %arg21[%c16_199, %c0_200] : memref<96x64xf32, #tpu.memory_space<vmem>>, vector<64x64xf32>
    %221 = arith.truncf %220 : vector<64x64xf32> to vector<64x64xbf16>
    %c0_201 = arith.constant 0 : index
    %c256_202 = arith.constant 256 : index
    %222 = vector.load %arg22[%c0_201, %c256_202] : memref<64x576xbf16, #tpu.memory_space<vmem>>, vector<64x64xbf16>
    tpu.vector_store %arg22[%c0_201, %c256_202], %221 {strides = array<i32>} : memref<64x576xbf16, #tpu.memory_space<vmem>>, vector<64x64xbf16>,
    %c17 = arith.constant 17 : index
    %c0_203 = arith.constant 0 : index
    %223 = vector.load %arg21[%c17, %c0_203] : memref<96x64xf32, #tpu.memory_space<vmem>>, vector<64x64xf32>
    %c6_i32_204 = arith.constant 6 : i32
    %224 = vector.broadcast %c6_i32_204 : i32 to vector<64x64xi32>
    %225 = arith.cmpi sle, %195, %224 : vector<64x64xi32>
    %cst_205 = arith.constant 0.000000e+00 : f32
    %226 = vector.broadcast %cst_205 : f32 to vector<64x64xf32>
    %227 = arith.select %225, %223, %226 : vector<64x64xi1>, vector<64x64xf32>
    %228 = arith.truncf %227 : vector<64x64xf32> to vector<64x64xbf16>
    %c0_206 = arith.constant 0 : index
    %c320_207 = arith.constant 320 : index
    %229 = vector.load %arg22[%c0_206, %c320_207] : memref<64x576xbf16, #tpu.memory_space<vmem>>, vector<64x64xbf16>
    tpu.vector_store %arg22[%c0_206, %c320_207], %228 {strides = array<i32>} : memref<64x576xbf16, #tpu.memory_space<vmem>>, vector<64x64xbf16>,
    %c23_208 = arith.constant 23 : index
    %c0_209 = arith.constant 0 : index
    %230 = vector.load %arg21[%c23_208, %c0_209] : memref<96x64xf32, #tpu.memory_space<vmem>>, vector<64x64xf32>
    %c1_i32_210 = arith.constant 1 : i32
    %231 = vector.broadcast %c1_i32_210 : i32 to vector<64x64xi32>
    %232 = arith.cmpi sge, %195, %231 : vector<64x64xi32>
    %cst_211 = arith.constant 0.000000e+00 : f32
    %233 = vector.broadcast %cst_211 : f32 to vector<64x64xf32>
    %234 = arith.select %232, %230, %233 : vector<64x64xi1>, vector<64x64xf32>
    %235 = arith.truncf %234 : vector<64x64xf32> to vector<64x64xbf16>
    %c0_212 = arith.constant 0 : index
    %c384_213 = arith.constant 384 : index
    %236 = vector.load %arg22[%c0_212, %c384_213] : memref<64x576xbf16, #tpu.memory_space<vmem>>, vector<64x64xbf16>
    tpu.vector_store %arg22[%c0_212, %c384_213], %235 {strides = array<i32>} : memref<64x576xbf16, #tpu.memory_space<vmem>>, vector<64x64xbf16>,
    %c24_214 = arith.constant 24 : index
    %c0_215 = arith.constant 0 : index
    %237 = vector.load %arg21[%c24_214, %c0_215] : memref<96x64xf32, #tpu.memory_space<vmem>>, vector<64x64xf32>
    %238 = arith.truncf %237 : vector<64x64xf32> to vector<64x64xbf16>
    %c0_216 = arith.constant 0 : index
    %c448_217 = arith.constant 448 : index
    %239 = vector.load %arg22[%c0_216, %c448_217] : memref<64x576xbf16, #tpu.memory_space<vmem>>, vector<64x64xbf16>
    tpu.vector_store %arg22[%c0_216, %c448_217], %238 {strides = array<i32>} : memref<64x576xbf16, #tpu.memory_space<vmem>>, vector<64x64xbf16>,
    %c25_218 = arith.constant 25 : index
    %c0_219 = arith.constant 0 : index
    %240 = vector.load %arg21[%c25_218, %c0_219] : memref<96x64xf32, #tpu.memory_space<vmem>>, vector<64x64xf32>
    %c6_i32_220 = arith.constant 6 : i32
    %241 = vector.broadcast %c6_i32_220 : i32 to vector<64x64xi32>
    %242 = arith.cmpi sle, %195, %241 : vector<64x64xi32>
    %cst_221 = arith.constant 0.000000e+00 : f32
    %243 = vector.broadcast %cst_221 : f32 to vector<64x64xf32>
    %244 = arith.select %242, %240, %243 : vector<64x64xi1>, vector<64x64xf32>
    %245 = arith.truncf %244 : vector<64x64xf32> to vector<64x64xbf16>
    %c0_222 = arith.constant 0 : index
    %c512 = arith.constant 512 : index
    %246 = vector.load %arg22[%c0_222, %c512] : memref<64x576xbf16, #tpu.memory_space<vmem>>, vector<64x64xbf16>
    tpu.vector_store %arg22[%c0_222, %c512], %245 {strides = array<i32>} : memref<64x576xbf16, #tpu.memory_space<vmem>>, vector<64x64xbf16>,
    %c0_223 = arith.constant 0 : index
    %c0_224 = arith.constant 0 : index
    %247 = vector.load %arg22[%c0_223, %c0_224] : memref<64x576xbf16, #tpu.memory_space<vmem>>, vector<64x576xbf16>
    %c0_225 = arith.constant 0 : index
    %c0_226 = arith.constant 0 : index
    %248 = vector.load %arg6[%c0_225, %c0_226] : memref<576x128xbf16, #tpu.memory_space<vmem>>, vector<576x128xbf16>
    %cst_227 = arith.constant dense<0.000000e+00> : vector<64x128xf32>
    %249 = tpu.matmul %247, %248, %cst_227 {dimension_numbers = #tpu.dot_dimension_numbers<[1], [0], [0], [1], [0, 0, 1, 1], [], []>} : vector<64x576xbf16>, vector<576x128xbf16>, vector<64x128xf32> -> vector<64x128xf32>
    %c0_228 = arith.constant 0 : index
    %c0_229 = arith.constant 0 : index
    %250 = vector.load %arg7[%c0_228, %c0_229] : memref<3x128xf32, #tpu.memory_space<vmem>>, vector<1x128xf32>
    %251 = vector.broadcast %250 : vector<1x128xf32> to vector<64x128xf32>
    %252 = arith.addf %249, %251 : vector<64x128xf32>
    %cst_230 = arith.constant 0.000000e+00 : f32
    %253 = vector.broadcast %cst_230 : f32 to vector<64x128xf32>
    %254 = arith.maximumf %252, %253 : vector<64x128xf32>
    %c1_231 = arith.constant 1 : index
    %c0_232 = arith.constant 0 : index
    %255 = vector.load %arg7[%c1_231, %c0_232] : memref<3x128xf32, #tpu.memory_space<vmem>>, vector<1x128xf32>
    %256 = vector.broadcast %255 : vector<1x128xf32> to vector<64x128xf32>
    %257 = arith.mulf %254, %256 : vector<64x128xf32>
    %c2_233 = arith.constant 2 : index
    %c0_234 = arith.constant 0 : index
    %258 = vector.load %arg7[%c2_233, %c0_234] : memref<3x128xf32, #tpu.memory_space<vmem>>, vector<1x128xf32>
    %259 = vector.broadcast %258 : vector<1x128xf32> to vector<64x128xf32>
    %260 = arith.addf %257, %259 : vector<64x128xf32>
    %c0_235 = arith.constant 0 : index
    %c0_236 = arith.constant 0 : index
    %261 = vector.load %arg23[%c0_235, %c0_236] : memref<64x128xf32, #tpu.memory_space<vmem>>, vector<64x128xf32>
    tpu.vector_store %arg23[%c0_235, %c0_236], %260 {strides = array<i32>} : memref<64x128xf32, #tpu.memory_space<vmem>>, vector<64x128xf32>,
    %c0_237 = arith.constant 0 : index
    %c0_238 = arith.constant 0 : index
    %262 = vector.load %arg9[%c0_237, %c0_238] : memref<1x256xf32, #tpu.memory_space<vmem>>, vector<1x256xf32>
    %cst_239 = arith.constant 0.000000e+00 : f32
    %263 = vector.broadcast %cst_239 : f32 to vector<1x128xf32>
    %c0_240 = arith.constant 0 : index
    %c0_241 = arith.constant 0 : index
    %264 = vector.load %arg23[%c0_240, %c0_241] : memref<64x128xf32, #tpu.memory_space<vmem>>, vector<1x128xf32>
    %265 = arith.addf %263, %264 : vector<1x128xf32>
    %c1_242 = arith.constant 1 : index
    %c0_243 = arith.constant 0 : index
    %266 = vector.load %arg23[%c1_242, %c0_243] : memref<64x128xf32, #tpu.memory_space<vmem>>, vector<1x128xf32>
    %267 = arith.addf %265, %266 : vector<1x128xf32>
    %c8_244 = arith.constant 8 : index
    %c0_245 = arith.constant 0 : index
    %268 = vector.load %arg23[%c8_244, %c0_245] : memref<64x128xf32, #tpu.memory_space<vmem>>, vector<1x128xf32>
    %269 = arith.addf %267, %268 : vector<1x128xf32>
    %c9_246 = arith.constant 9 : index
    %c0_247 = arith.constant 0 : index
    %270 = vector.load %arg23[%c9_246, %c0_247] : memref<64x128xf32, #tpu.memory_space<vmem>>, vector<1x128xf32>
    %271 = arith.addf %269, %270 : vector<1x128xf32>
    %cst_248 = arith.constant 2.500000e-01 : f32
    %272 = vector.broadcast %cst_248 : f32 to vector<1x128xf32>
    %273 = arith.mulf %271, %272 : vector<1x128xf32>
    %274 = arith.truncf %273 : vector<1x128xf32> to vector<1x128xbf16>
    %c0_249 = arith.constant 0 : index
    %c0_250 = arith.constant 0 : index
    %c0_251 = arith.constant 0 : index
    %275 = vector.load %arg8[%c0_249, %c0_250, %c0_251] : memref<16x128x256xbf16, #tpu.memory_space<vmem>>, vector<1x128x256xbf16>
    %276 = vector.shape_cast %275 : vector<1x128x256xbf16> to vector<128x256xbf16>
    %cst_252 = arith.constant dense<0.000000e+00> : vector<1x256xf32>
    %277 = tpu.matmul %274, %276, %cst_252 {dimension_numbers = #tpu.dot_dimension_numbers<[1], [0], [0], [1], [0, 0, 1, 1], [], []>} : vector<1x128xbf16>, vector<128x256xbf16>, vector<1x256xf32> -> vector<1x256xf32>
    %278 = arith.addf %262, %277 : vector<1x256xf32>
    %cst_253 = arith.constant 0.000000e+00 : f32
    %279 = vector.broadcast %cst_253 : f32 to vector<1x128xf32>
    %c2_254 = arith.constant 2 : index
    %c0_255 = arith.constant 0 : index
    %280 = vector.load %arg23[%c2_254, %c0_255] : memref<64x128xf32, #tpu.memory_space<vmem>>, vector<1x128xf32>
    %281 = arith.addf %279, %280 : vector<1x128xf32>
    %c3 = arith.constant 3 : index
    %c0_256 = arith.constant 0 : index
    %282 = vector.load %arg23[%c3, %c0_256] : memref<64x128xf32, #tpu.memory_space<vmem>>, vector<1x128xf32>
    %283 = arith.addf %281, %282 : vector<1x128xf32>
    %c10 = arith.constant 10 : index
    %c0_257 = arith.constant 0 : index
    %284 = vector.load %arg23[%c10, %c0_257] : memref<64x128xf32, #tpu.memory_space<vmem>>, vector<1x128xf32>
    %285 = arith.addf %283, %284 : vector<1x128xf32>
    %c11 = arith.constant 11 : index
    %c0_258 = arith.constant 0 : index
    %286 = vector.load %arg23[%c11, %c0_258] : memref<64x128xf32, #tpu.memory_space<vmem>>, vector<1x128xf32>
    %287 = arith.addf %285, %286 : vector<1x128xf32>
    %cst_259 = arith.constant 2.500000e-01 : f32
    %288 = vector.broadcast %cst_259 : f32 to vector<1x128xf32>
    %289 = arith.mulf %287, %288 : vector<1x128xf32>
    %290 = arith.truncf %289 : vector<1x128xf32> to vector<1x128xbf16>
    %c1_260 = arith.constant 1 : index
    %c0_261 = arith.constant 0 : index
    %c0_262 = arith.constant 0 : index
    %291 = vector.load %arg8[%c1_260, %c0_261, %c0_262] : memref<16x128x256xbf16, #tpu.memory_space<vmem>>, vector<1x128x256xbf16>
    %292 = vector.shape_cast %291 : vector<1x128x256xbf16> to vector<128x256xbf16>
    %cst_263 = arith.constant dense<0.000000e+00> : vector<1x256xf32>
    %293 = tpu.matmul %290, %292, %cst_263 {dimension_numbers = #tpu.dot_dimension_numbers<[1], [0], [0], [1], [0, 0, 1, 1], [], []>} : vector<1x128xbf16>, vector<128x256xbf16>, vector<1x256xf32> -> vector<1x256xf32>
    %294 = arith.addf %278, %293 : vector<1x256xf32>
    %cst_264 = arith.constant 0.000000e+00 : f32
    %295 = vector.broadcast %cst_264 : f32 to vector<1x128xf32>
    %c4 = arith.constant 4 : index
    %c0_265 = arith.constant 0 : index
    %296 = vector.load %arg23[%c4, %c0_265] : memref<64x128xf32, #tpu.memory_space<vmem>>, vector<1x128xf32>
    %297 = arith.addf %295, %296 : vector<1x128xf32>
    %c5 = arith.constant 5 : index
    %c0_266 = arith.constant 0 : index
    %298 = vector.load %arg23[%c5, %c0_266] : memref<64x128xf32, #tpu.memory_space<vmem>>, vector<1x128xf32>
    %299 = arith.addf %297, %298 : vector<1x128xf32>
    %c12 = arith.constant 12 : index
    %c0_267 = arith.constant 0 : index
    %300 = vector.load %arg23[%c12, %c0_267] : memref<64x128xf32, #tpu.memory_space<vmem>>, vector<1x128xf32>
    %301 = arith.addf %299, %300 : vector<1x128xf32>
    %c13 = arith.constant 13 : index
    %c0_268 = arith.constant 0 : index
    %302 = vector.load %arg23[%c13, %c0_268] : memref<64x128xf32, #tpu.memory_space<vmem>>, vector<1x128xf32>
    %303 = arith.addf %301, %302 : vector<1x128xf32>
    %cst_269 = arith.constant 2.500000e-01 : f32
    %304 = vector.broadcast %cst_269 : f32 to vector<1x128xf32>
    %305 = arith.mulf %303, %304 : vector<1x128xf32>
    %306 = arith.truncf %305 : vector<1x128xf32> to vector<1x128xbf16>
    %c2_270 = arith.constant 2 : index
    %c0_271 = arith.constant 0 : index
    %c0_272 = arith.constant 0 : index
    %307 = vector.load %arg8[%c2_270, %c0_271, %c0_272] : memref<16x128x256xbf16, #tpu.memory_space<vmem>>, vector<1x128x256xbf16>
    %308 = vector.shape_cast %307 : vector<1x128x256xbf16> to vector<128x256xbf16>
    %cst_273 = arith.constant dense<0.000000e+00> : vector<1x256xf32>
    %309 = tpu.matmul %306, %308, %cst_273 {dimension_numbers = #tpu.dot_dimension_numbers<[1], [0], [0], [1], [0, 0, 1, 1], [], []>} : vector<1x128xbf16>, vector<128x256xbf16>, vector<1x256xf32> -> vector<1x256xf32>
    %310 = arith.addf %294, %309 : vector<1x256xf32>
    %cst_274 = arith.constant 0.000000e+00 : f32
    %311 = vector.broadcast %cst_274 : f32 to vector<1x128xf32>
    %c6 = arith.constant 6 : index
    %c0_275 = arith.constant 0 : index
    %312 = vector.load %arg23[%c6, %c0_275] : memref<64x128xf32, #tpu.memory_space<vmem>>, vector<1x128xf32>
    %313 = arith.addf %311, %312 : vector<1x128xf32>
    %c7_276 = arith.constant 7 : index
    %c0_277 = arith.constant 0 : index
    %314 = vector.load %arg23[%c7_276, %c0_277] : memref<64x128xf32, #tpu.memory_space<vmem>>, vector<1x128xf32>
    %315 = arith.addf %313, %314 : vector<1x128xf32>
    %c14 = arith.constant 14 : index
    %c0_278 = arith.constant 0 : index
    %316 = vector.load %arg23[%c14, %c0_278] : memref<64x128xf32, #tpu.memory_space<vmem>>, vector<1x128xf32>
    %317 = arith.addf %315, %316 : vector<1x128xf32>
    %c15_279 = arith.constant 15 : index
    %c0_280 = arith.constant 0 : index
    %318 = vector.load %arg23[%c15_279, %c0_280] : memref<64x128xf32, #tpu.memory_space<vmem>>, vector<1x128xf32>
    %319 = arith.addf %317, %318 : vector<1x128xf32>
    %cst_281 = arith.constant 2.500000e-01 : f32
    %320 = vector.broadcast %cst_281 : f32 to vector<1x128xf32>
    %321 = arith.mulf %319, %320 : vector<1x128xf32>
    %322 = arith.truncf %321 : vector<1x128xf32> to vector<1x128xbf16>
    %c3_282 = arith.constant 3 : index
    %c0_283 = arith.constant 0 : index
    %c0_284 = arith.constant 0 : index
    %323 = vector.load %arg8[%c3_282, %c0_283, %c0_284] : memref<16x128x256xbf16, #tpu.memory_space<vmem>>, vector<1x128x256xbf16>
    %324 = vector.shape_cast %323 : vector<1x128x256xbf16> to vector<128x256xbf16>
    %cst_285 = arith.constant dense<0.000000e+00> : vector<1x256xf32>
    %325 = tpu.matmul %322, %324, %cst_285 {dimension_numbers = #tpu.dot_dimension_numbers<[1], [0], [0], [1], [0, 0, 1, 1], [], []>} : vector<1x128xbf16>, vector<128x256xbf16>, vector<1x256xf32> -> vector<1x256xf32>
    %326 = arith.addf %310, %325 : vector<1x256xf32>
    %cst_286 = arith.constant 0.000000e+00 : f32
    %327 = vector.broadcast %cst_286 : f32 to vector<1x128xf32>
    %c16_287 = arith.constant 16 : index
    %c0_288 = arith.constant 0 : index
    %328 = vector.load %arg23[%c16_287, %c0_288] : memref<64x128xf32, #tpu.memory_space<vmem>>, vector<1x128xf32>
    %329 = arith.addf %327, %328 : vector<1x128xf32>
    %c17_289 = arith.constant 17 : index
    %c0_290 = arith.constant 0 : index
    %330 = vector.load %arg23[%c17_289, %c0_290] : memref<64x128xf32, #tpu.memory_space<vmem>>, vector<1x128xf32>
    %331 = arith.addf %329, %330 : vector<1x128xf32>
    %c24_291 = arith.constant 24 : index
    %c0_292 = arith.constant 0 : index
    %332 = vector.load %arg23[%c24_291, %c0_292] : memref<64x128xf32, #tpu.memory_space<vmem>>, vector<1x128xf32>
    %333 = arith.addf %331, %332 : vector<1x128xf32>
    %c25_293 = arith.constant 25 : index
    %c0_294 = arith.constant 0 : index
    %334 = vector.load %arg23[%c25_293, %c0_294] : memref<64x128xf32, #tpu.memory_space<vmem>>, vector<1x128xf32>
    %335 = arith.addf %333, %334 : vector<1x128xf32>
    %cst_295 = arith.constant 2.500000e-01 : f32
    %336 = vector.broadcast %cst_295 : f32 to vector<1x128xf32>
    %337 = arith.mulf %335, %336 : vector<1x128xf32>
    %338 = arith.truncf %337 : vector<1x128xf32> to vector<1x128xbf16>
    %c4_296 = arith.constant 4 : index
    %c0_297 = arith.constant 0 : index
    %c0_298 = arith.constant 0 : index
    %339 = vector.load %arg8[%c4_296, %c0_297, %c0_298] : memref<16x128x256xbf16, #tpu.memory_space<vmem>>, vector<1x128x256xbf16>
    %340 = vector.shape_cast %339 : vector<1x128x256xbf16> to vector<128x256xbf16>
    %cst_299 = arith.constant dense<0.000000e+00> : vector<1x256xf32>
    %341 = tpu.matmul %338, %340, %cst_299 {dimension_numbers = #tpu.dot_dimension_numbers<[1], [0], [0], [1], [0, 0, 1, 1], [], []>} : vector<1x128xbf16>, vector<128x256xbf16>, vector<1x256xf32> -> vector<1x256xf32>
    %342 = arith.addf %326, %341 : vector<1x256xf32>
    %cst_300 = arith.constant 0.000000e+00 : f32
    %343 = vector.broadcast %cst_300 : f32 to vector<1x128xf32>
    %c18 = arith.constant 18 : index
    %c0_301 = arith.constant 0 : index
    %344 = vector.load %arg23[%c18, %c0_301] : memref<64x128xf32, #tpu.memory_space<vmem>>, vector<1x128xf32>
    %345 = arith.addf %343, %344 : vector<1x128xf32>
    %c19 = arith.constant 19 : index
    %c0_302 = arith.constant 0 : index
    %346 = vector.load %arg23[%c19, %c0_302] : memref<64x128xf32, #tpu.memory_space<vmem>>, vector<1x128xf32>
    %347 = arith.addf %345, %346 : vector<1x128xf32>
    %c26 = arith.constant 26 : index
    %c0_303 = arith.constant 0 : index
    %348 = vector.load %arg23[%c26, %c0_303] : memref<64x128xf32, #tpu.memory_space<vmem>>, vector<1x128xf32>
    %349 = arith.addf %347, %348 : vector<1x128xf32>
    %c27 = arith.constant 27 : index
    %c0_304 = arith.constant 0 : index
    %350 = vector.load %arg23[%c27, %c0_304] : memref<64x128xf32, #tpu.memory_space<vmem>>, vector<1x128xf32>
    %351 = arith.addf %349, %350 : vector<1x128xf32>
    %cst_305 = arith.constant 2.500000e-01 : f32
    %352 = vector.broadcast %cst_305 : f32 to vector<1x128xf32>
    %353 = arith.mulf %351, %352 : vector<1x128xf32>
    %354 = arith.truncf %353 : vector<1x128xf32> to vector<1x128xbf16>
    %c5_306 = arith.constant 5 : index
    %c0_307 = arith.constant 0 : index
    %c0_308 = arith.constant 0 : index
    %355 = vector.load %arg8[%c5_306, %c0_307, %c0_308] : memref<16x128x256xbf16, #tpu.memory_space<vmem>>, vector<1x128x256xbf16>
    %356 = vector.shape_cast %355 : vector<1x128x256xbf16> to vector<128x256xbf16>
    %cst_309 = arith.constant dense<0.000000e+00> : vector<1x256xf32>
    %357 = tpu.matmul %354, %356, %cst_309 {dimension_numbers = #tpu.dot_dimension_numbers<[1], [0], [0], [1], [0, 0, 1, 1], [], []>} : vector<1x128xbf16>, vector<128x256xbf16>, vector<1x256xf32> -> vector<1x256xf32>
    %358 = arith.addf %342, %357 : vector<1x256xf32>
    %cst_310 = arith.constant 0.000000e+00 : f32
    %359 = vector.broadcast %cst_310 : f32 to vector<1x128xf32>
    %c20 = arith.constant 20 : index
    %c0_311 = arith.constant 0 : index
    %360 = vector.load %arg23[%c20, %c0_311] : memref<64x128xf32, #tpu.memory_space<vmem>>, vector<1x128xf32>
    %361 = arith.addf %359, %360 : vector<1x128xf32>
    %c21 = arith.constant 21 : index
    %c0_312 = arith.constant 0 : index
    %362 = vector.load %arg23[%c21, %c0_312] : memref<64x128xf32, #tpu.memory_space<vmem>>, vector<1x128xf32>
    %363 = arith.addf %361, %362 : vector<1x128xf32>
    %c28 = arith.constant 28 : index
    %c0_313 = arith.constant 0 : index
    %364 = vector.load %arg23[%c28, %c0_313] : memref<64x128xf32, #tpu.memory_space<vmem>>, vector<1x128xf32>
    %365 = arith.addf %363, %364 : vector<1x128xf32>
    %c29 = arith.constant 29 : index
    %c0_314 = arith.constant 0 : index
    %366 = vector.load %arg23[%c29, %c0_314] : memref<64x128xf32, #tpu.memory_space<vmem>>, vector<1x128xf32>
    %367 = arith.addf %365, %366 : vector<1x128xf32>
    %cst_315 = arith.constant 2.500000e-01 : f32
    %368 = vector.broadcast %cst_315 : f32 to vector<1x128xf32>
    %369 = arith.mulf %367, %368 : vector<1x128xf32>
    %370 = arith.truncf %369 : vector<1x128xf32> to vector<1x128xbf16>
    %c6_316 = arith.constant 6 : index
    %c0_317 = arith.constant 0 : index
    %c0_318 = arith.constant 0 : index
    %371 = vector.load %arg8[%c6_316, %c0_317, %c0_318] : memref<16x128x256xbf16, #tpu.memory_space<vmem>>, vector<1x128x256xbf16>
    %372 = vector.shape_cast %371 : vector<1x128x256xbf16> to vector<128x256xbf16>
    %cst_319 = arith.constant dense<0.000000e+00> : vector<1x256xf32>
    %373 = tpu.matmul %370, %372, %cst_319 {dimension_numbers = #tpu.dot_dimension_numbers<[1], [0], [0], [1], [0, 0, 1, 1], [], []>} : vector<1x128xbf16>, vector<128x256xbf16>, vector<1x256xf32> -> vector<1x256xf32>
    %374 = arith.addf %358, %373 : vector<1x256xf32>
    %cst_320 = arith.constant 0.000000e+00 : f32
    %375 = vector.broadcast %cst_320 : f32 to vector<1x128xf32>
    %c22 = arith.constant 22 : index
    %c0_321 = arith.constant 0 : index
    %376 = vector.load %arg23[%c22, %c0_321] : memref<64x128xf32, #tpu.memory_space<vmem>>, vector<1x128xf32>
    %377 = arith.addf %375, %376 : vector<1x128xf32>
    %c23_322 = arith.constant 23 : index
    %c0_323 = arith.constant 0 : index
    %378 = vector.load %arg23[%c23_322, %c0_323] : memref<64x128xf32, #tpu.memory_space<vmem>>, vector<1x128xf32>
    %379 = arith.addf %377, %378 : vector<1x128xf32>
    %c30 = arith.constant 30 : index
    %c0_324 = arith.constant 0 : index
    %380 = vector.load %arg23[%c30, %c0_324] : memref<64x128xf32, #tpu.memory_space<vmem>>, vector<1x128xf32>
    %381 = arith.addf %379, %380 : vector<1x128xf32>
    %c31 = arith.constant 31 : index
    %c0_325 = arith.constant 0 : index
    %382 = vector.load %arg23[%c31, %c0_325] : memref<64x128xf32, #tpu.memory_space<vmem>>, vector<1x128xf32>
    %383 = arith.addf %381, %382 : vector<1x128xf32>
    %cst_326 = arith.constant 2.500000e-01 : f32
    %384 = vector.broadcast %cst_326 : f32 to vector<1x128xf32>
    %385 = arith.mulf %383, %384 : vector<1x128xf32>
    %386 = arith.truncf %385 : vector<1x128xf32> to vector<1x128xbf16>
    %c7_327 = arith.constant 7 : index
    %c0_328 = arith.constant 0 : index
    %c0_329 = arith.constant 0 : index
    %387 = vector.load %arg8[%c7_327, %c0_328, %c0_329] : memref<16x128x256xbf16, #tpu.memory_space<vmem>>, vector<1x128x256xbf16>
    %388 = vector.shape_cast %387 : vector<1x128x256xbf16> to vector<128x256xbf16>
    %cst_330 = arith.constant dense<0.000000e+00> : vector<1x256xf32>
    %389 = tpu.matmul %386, %388, %cst_330 {dimension_numbers = #tpu.dot_dimension_numbers<[1], [0], [0], [1], [0, 0, 1, 1], [], []>} : vector<1x128xbf16>, vector<128x256xbf16>, vector<1x256xf32> -> vector<1x256xf32>
    %390 = arith.addf %374, %389 : vector<1x256xf32>
    %cst_331 = arith.constant 0.000000e+00 : f32
    %391 = vector.broadcast %cst_331 : f32 to vector<1x128xf32>
    %c32_332 = arith.constant 32 : index
    %c0_333 = arith.constant 0 : index
    %392 = vector.load %arg23[%c32_332, %c0_333] : memref<64x128xf32, #tpu.memory_space<vmem>>, vector<1x128xf32>
    %393 = arith.addf %391, %392 : vector<1x128xf32>
    %c33 = arith.constant 33 : index
    %c0_334 = arith.constant 0 : index
    %394 = vector.load %arg23[%c33, %c0_334] : memref<64x128xf32, #tpu.memory_space<vmem>>, vector<1x128xf32>
    %395 = arith.addf %393, %394 : vector<1x128xf32>
    %c40_335 = arith.constant 40 : index
    %c0_336 = arith.constant 0 : index
    %396 = vector.load %arg23[%c40_335, %c0_336] : memref<64x128xf32, #tpu.memory_space<vmem>>, vector<1x128xf32>
    %397 = arith.addf %395, %396 : vector<1x128xf32>
    %c41_337 = arith.constant 41 : index
    %c0_338 = arith.constant 0 : index
    %398 = vector.load %arg23[%c41_337, %c0_338] : memref<64x128xf32, #tpu.memory_space<vmem>>, vector<1x128xf32>
    %399 = arith.addf %397, %398 : vector<1x128xf32>
    %cst_339 = arith.constant 2.500000e-01 : f32
    %400 = vector.broadcast %cst_339 : f32 to vector<1x128xf32>
    %401 = arith.mulf %399, %400 : vector<1x128xf32>
    %402 = arith.truncf %401 : vector<1x128xf32> to vector<1x128xbf16>
    %c8_340 = arith.constant 8 : index
    %c0_341 = arith.constant 0 : index
    %c0_342 = arith.constant 0 : index
    %403 = vector.load %arg8[%c8_340, %c0_341, %c0_342] : memref<16x128x256xbf16, #tpu.memory_space<vmem>>, vector<1x128x256xbf16>
    %404 = vector.shape_cast %403 : vector<1x128x256xbf16> to vector<128x256xbf16>
    %cst_343 = arith.constant dense<0.000000e+00> : vector<1x256xf32>
    %405 = tpu.matmul %402, %404, %cst_343 {dimension_numbers = #tpu.dot_dimension_numbers<[1], [0], [0], [1], [0, 0, 1, 1], [], []>} : vector<1x128xbf16>, vector<128x256xbf16>, vector<1x256xf32> -> vector<1x256xf32>
    %406 = arith.addf %390, %405 : vector<1x256xf32>
    %cst_344 = arith.constant 0.000000e+00 : f32
    %407 = vector.broadcast %cst_344 : f32 to vector<1x128xf32>
    %c34 = arith.constant 34 : index
    %c0_345 = arith.constant 0 : index
    %408 = vector.load %arg23[%c34, %c0_345] : memref<64x128xf32, #tpu.memory_space<vmem>>, vector<1x128xf32>
    %409 = arith.addf %407, %408 : vector<1x128xf32>
    %c35 = arith.constant 35 : index
    %c0_346 = arith.constant 0 : index
    %410 = vector.load %arg23[%c35, %c0_346] : memref<64x128xf32, #tpu.memory_space<vmem>>, vector<1x128xf32>
    %411 = arith.addf %409, %410 : vector<1x128xf32>
    %c42 = arith.constant 42 : index
    %c0_347 = arith.constant 0 : index
    %412 = vector.load %arg23[%c42, %c0_347] : memref<64x128xf32, #tpu.memory_space<vmem>>, vector<1x128xf32>
    %413 = arith.addf %411, %412 : vector<1x128xf32>
    %c43 = arith.constant 43 : index
    %c0_348 = arith.constant 0 : index
    %414 = vector.load %arg23[%c43, %c0_348] : memref<64x128xf32, #tpu.memory_space<vmem>>, vector<1x128xf32>
    %415 = arith.addf %413, %414 : vector<1x128xf32>
    %cst_349 = arith.constant 2.500000e-01 : f32
    %416 = vector.broadcast %cst_349 : f32 to vector<1x128xf32>
    %417 = arith.mulf %415, %416 : vector<1x128xf32>
    %418 = arith.truncf %417 : vector<1x128xf32> to vector<1x128xbf16>
    %c9_350 = arith.constant 9 : index
    %c0_351 = arith.constant 0 : index
    %c0_352 = arith.constant 0 : index
    %419 = vector.load %arg8[%c9_350, %c0_351, %c0_352] : memref<16x128x256xbf16, #tpu.memory_space<vmem>>, vector<1x128x256xbf16>
    %420 = vector.shape_cast %419 : vector<1x128x256xbf16> to vector<128x256xbf16>
    %cst_353 = arith.constant dense<0.000000e+00> : vector<1x256xf32>
    %421 = tpu.matmul %418, %420, %cst_353 {dimension_numbers = #tpu.dot_dimension_numbers<[1], [0], [0], [1], [0, 0, 1, 1], [], []>} : vector<1x128xbf16>, vector<128x256xbf16>, vector<1x256xf32> -> vector<1x256xf32>
    %422 = arith.addf %406, %421 : vector<1x256xf32>
    %cst_354 = arith.constant 0.000000e+00 : f32
    %423 = vector.broadcast %cst_354 : f32 to vector<1x128xf32>
    %c36 = arith.constant 36 : index
    %c0_355 = arith.constant 0 : index
    %424 = vector.load %arg23[%c36, %c0_355] : memref<64x128xf32, #tpu.memory_space<vmem>>, vector<1x128xf32>
    %425 = arith.addf %423, %424 : vector<1x128xf32>
    %c37 = arith.constant 37 : index
    %c0_356 = arith.constant 0 : index
    %426 = vector.load %arg23[%c37, %c0_356] : memref<64x128xf32, #tpu.memory_space<vmem>>, vector<1x128xf32>
    %427 = arith.addf %425, %426 : vector<1x128xf32>
    %c44 = arith.constant 44 : index
    %c0_357 = arith.constant 0 : index
    %428 = vector.load %arg23[%c44, %c0_357] : memref<64x128xf32, #tpu.memory_space<vmem>>, vector<1x128xf32>
    %429 = arith.addf %427, %428 : vector<1x128xf32>
    %c45 = arith.constant 45 : index
    %c0_358 = arith.constant 0 : index
    %430 = vector.load %arg23[%c45, %c0_358] : memref<64x128xf32, #tpu.memory_space<vmem>>, vector<1x128xf32>
    %431 = arith.addf %429, %430 : vector<1x128xf32>
    %cst_359 = arith.constant 2.500000e-01 : f32
    %432 = vector.broadcast %cst_359 : f32 to vector<1x128xf32>
    %433 = arith.mulf %431, %432 : vector<1x128xf32>
    %434 = arith.truncf %433 : vector<1x128xf32> to vector<1x128xbf16>
    %c10_360 = arith.constant 10 : index
    %c0_361 = arith.constant 0 : index
    %c0_362 = arith.constant 0 : index
    %435 = vector.load %arg8[%c10_360, %c0_361, %c0_362] : memref<16x128x256xbf16, #tpu.memory_space<vmem>>, vector<1x128x256xbf16>
    %436 = vector.shape_cast %435 : vector<1x128x256xbf16> to vector<128x256xbf16>
    %cst_363 = arith.constant dense<0.000000e+00> : vector<1x256xf32>
    %437 = tpu.matmul %434, %436, %cst_363 {dimension_numbers = #tpu.dot_dimension_numbers<[1], [0], [0], [1], [0, 0, 1, 1], [], []>} : vector<1x128xbf16>, vector<128x256xbf16>, vector<1x256xf32> -> vector<1x256xf32>
    %438 = arith.addf %422, %437 : vector<1x256xf32>
    %cst_364 = arith.constant 0.000000e+00 : f32
    %439 = vector.broadcast %cst_364 : f32 to vector<1x128xf32>
    %c38 = arith.constant 38 : index
    %c0_365 = arith.constant 0 : index
    %440 = vector.load %arg23[%c38, %c0_365] : memref<64x128xf32, #tpu.memory_space<vmem>>, vector<1x128xf32>
    %441 = arith.addf %439, %440 : vector<1x128xf32>
    %c39_366 = arith.constant 39 : index
    %c0_367 = arith.constant 0 : index
    %442 = vector.load %arg23[%c39_366, %c0_367] : memref<64x128xf32, #tpu.memory_space<vmem>>, vector<1x128xf32>
    %443 = arith.addf %441, %442 : vector<1x128xf32>
    %c46 = arith.constant 46 : index
    %c0_368 = arith.constant 0 : index
    %444 = vector.load %arg23[%c46, %c0_368] : memref<64x128xf32, #tpu.memory_space<vmem>>, vector<1x128xf32>
    %445 = arith.addf %443, %444 : vector<1x128xf32>
    %c47 = arith.constant 47 : index
    %c0_369 = arith.constant 0 : index
    %446 = vector.load %arg23[%c47, %c0_369] : memref<64x128xf32, #tpu.memory_space<vmem>>, vector<1x128xf32>
    %447 = arith.addf %445, %446 : vector<1x128xf32>
    %cst_370 = arith.constant 2.500000e-01 : f32
    %448 = vector.broadcast %cst_370 : f32 to vector<1x128xf32>
    %449 = arith.mulf %447, %448 : vector<1x128xf32>
    %450 = arith.truncf %449 : vector<1x128xf32> to vector<1x128xbf16>
    %c11_371 = arith.constant 11 : index
    %c0_372 = arith.constant 0 : index
    %c0_373 = arith.constant 0 : index
    %451 = vector.load %arg8[%c11_371, %c0_372, %c0_373] : memref<16x128x256xbf16, #tpu.memory_space<vmem>>, vector<1x128x256xbf16>
    %452 = vector.shape_cast %451 : vector<1x128x256xbf16> to vector<128x256xbf16>
    %cst_374 = arith.constant dense<0.000000e+00> : vector<1x256xf32>
    %453 = tpu.matmul %450, %452, %cst_374 {dimension_numbers = #tpu.dot_dimension_numbers<[1], [0], [0], [1], [0, 0, 1, 1], [], []>} : vector<1x128xbf16>, vector<128x256xbf16>, vector<1x256xf32> -> vector<1x256xf32>
    %454 = arith.addf %438, %453 : vector<1x256xf32>
    %cst_375 = arith.constant 0.000000e+00 : f32
    %455 = vector.broadcast %cst_375 : f32 to vector<1x128xf32>
    %c48_376 = arith.constant 48 : index
    %c0_377 = arith.constant 0 : index
    %456 = vector.load %arg23[%c48_376, %c0_377] : memref<64x128xf32, #tpu.memory_space<vmem>>, vector<1x128xf32>
    %457 = arith.addf %455, %456 : vector<1x128xf32>
    %c49 = arith.constant 49 : index
    %c0_378 = arith.constant 0 : index
    %458 = vector.load %arg23[%c49, %c0_378] : memref<64x128xf32, #tpu.memory_space<vmem>>, vector<1x128xf32>
    %459 = arith.addf %457, %458 : vector<1x128xf32>
    %c56_379 = arith.constant 56 : index
    %c0_380 = arith.constant 0 : index
    %460 = vector.load %arg23[%c56_379, %c0_380] : memref<64x128xf32, #tpu.memory_space<vmem>>, vector<1x128xf32>
    %461 = arith.addf %459, %460 : vector<1x128xf32>
    %c57 = arith.constant 57 : index
    %c0_381 = arith.constant 0 : index
    %462 = vector.load %arg23[%c57, %c0_381] : memref<64x128xf32, #tpu.memory_space<vmem>>, vector<1x128xf32>
    %463 = arith.addf %461, %462 : vector<1x128xf32>
    %cst_382 = arith.constant 2.500000e-01 : f32
    %464 = vector.broadcast %cst_382 : f32 to vector<1x128xf32>
    %465 = arith.mulf %463, %464 : vector<1x128xf32>
    %466 = arith.truncf %465 : vector<1x128xf32> to vector<1x128xbf16>
    %c12_383 = arith.constant 12 : index
    %c0_384 = arith.constant 0 : index
    %c0_385 = arith.constant 0 : index
    %467 = vector.load %arg8[%c12_383, %c0_384, %c0_385] : memref<16x128x256xbf16, #tpu.memory_space<vmem>>, vector<1x128x256xbf16>
    %468 = vector.shape_cast %467 : vector<1x128x256xbf16> to vector<128x256xbf16>
    %cst_386 = arith.constant dense<0.000000e+00> : vector<1x256xf32>
    %469 = tpu.matmul %466, %468, %cst_386 {dimension_numbers = #tpu.dot_dimension_numbers<[1], [0], [0], [1], [0, 0, 1, 1], [], []>} : vector<1x128xbf16>, vector<128x256xbf16>, vector<1x256xf32> -> vector<1x256xf32>
    %470 = arith.addf %454, %469 : vector<1x256xf32>
    %cst_387 = arith.constant 0.000000e+00 : f32
    %471 = vector.broadcast %cst_387 : f32 to vector<1x128xf32>
    %c50 = arith.constant 50 : index
    %c0_388 = arith.constant 0 : index
    %472 = vector.load %arg23[%c50, %c0_388] : memref<64x128xf32, #tpu.memory_space<vmem>>, vector<1x128xf32>
    %473 = arith.addf %471, %472 : vector<1x128xf32>
    %c51 = arith.constant 51 : index
    %c0_389 = arith.constant 0 : index
    %474 = vector.load %arg23[%c51, %c0_389] : memref<64x128xf32, #tpu.memory_space<vmem>>, vector<1x128xf32>
    %475 = arith.addf %473, %474 : vector<1x128xf32>
    %c58 = arith.constant 58 : index
    %c0_390 = arith.constant 0 : index
    %476 = vector.load %arg23[%c58, %c0_390] : memref<64x128xf32, #tpu.memory_space<vmem>>, vector<1x128xf32>
    %477 = arith.addf %475, %476 : vector<1x128xf32>
    %c59 = arith.constant 59 : index
    %c0_391 = arith.constant 0 : index
    %478 = vector.load %arg23[%c59, %c0_391] : memref<64x128xf32, #tpu.memory_space<vmem>>, vector<1x128xf32>
    %479 = arith.addf %477, %478 : vector<1x128xf32>
    %cst_392 = arith.constant 2.500000e-01 : f32
    %480 = vector.broadcast %cst_392 : f32 to vector<1x128xf32>
    %481 = arith.mulf %479, %480 : vector<1x128xf32>
    %482 = arith.truncf %481 : vector<1x128xf32> to vector<1x128xbf16>
    %c13_393 = arith.constant 13 : index
    %c0_394 = arith.constant 0 : index
    %c0_395 = arith.constant 0 : index
    %483 = vector.load %arg8[%c13_393, %c0_394, %c0_395] : memref<16x128x256xbf16, #tpu.memory_space<vmem>>, vector<1x128x256xbf16>
    %484 = vector.shape_cast %483 : vector<1x128x256xbf16> to vector<128x256xbf16>
    %cst_396 = arith.constant dense<0.000000e+00> : vector<1x256xf32>
    %485 = tpu.matmul %482, %484, %cst_396 {dimension_numbers = #tpu.dot_dimension_numbers<[1], [0], [0], [1], [0, 0, 1, 1], [], []>} : vector<1x128xbf16>, vector<128x256xbf16>, vector<1x256xf32> -> vector<1x256xf32>
    %486 = arith.addf %470, %485 : vector<1x256xf32>
    %cst_397 = arith.constant 0.000000e+00 : f32
    %487 = vector.broadcast %cst_397 : f32 to vector<1x128xf32>
    %c52 = arith.constant 52 : index
    %c0_398 = arith.constant 0 : index
    %488 = vector.load %arg23[%c52, %c0_398] : memref<64x128xf32, #tpu.memory_space<vmem>>, vector<1x128xf32>
    %489 = arith.addf %487, %488 : vector<1x128xf32>
    %c53 = arith.constant 53 : index
    %c0_399 = arith.constant 0 : index
    %490 = vector.load %arg23[%c53, %c0_399] : memref<64x128xf32, #tpu.memory_space<vmem>>, vector<1x128xf32>
    %491 = arith.addf %489, %490 : vector<1x128xf32>
    %c60 = arith.constant 60 : index
    %c0_400 = arith.constant 0 : index
    %492 = vector.load %arg23[%c60, %c0_400] : memref<64x128xf32, #tpu.memory_space<vmem>>, vector<1x128xf32>
    %493 = arith.addf %491, %492 : vector<1x128xf32>
    %c61 = arith.constant 61 : index
    %c0_401 = arith.constant 0 : index
    %494 = vector.load %arg23[%c61, %c0_401] : memref<64x128xf32, #tpu.memory_space<vmem>>, vector<1x128xf32>
    %495 = arith.addf %493, %494 : vector<1x128xf32>
    %cst_402 = arith.constant 2.500000e-01 : f32
    %496 = vector.broadcast %cst_402 : f32 to vector<1x128xf32>
    %497 = arith.mulf %495, %496 : vector<1x128xf32>
    %498 = arith.truncf %497 : vector<1x128xf32> to vector<1x128xbf16>
    %c14_403 = arith.constant 14 : index
    %c0_404 = arith.constant 0 : index
    %c0_405 = arith.constant 0 : index
    %499 = vector.load %arg8[%c14_403, %c0_404, %c0_405] : memref<16x128x256xbf16, #tpu.memory_space<vmem>>, vector<1x128x256xbf16>
    %500 = vector.shape_cast %499 : vector<1x128x256xbf16> to vector<128x256xbf16>
    %cst_406 = arith.constant dense<0.000000e+00> : vector<1x256xf32>
    %501 = tpu.matmul %498, %500, %cst_406 {dimension_numbers = #tpu.dot_dimension_numbers<[1], [0], [0], [1], [0, 0, 1, 1], [], []>} : vector<1x128xbf16>, vector<128x256xbf16>, vector<1x256xf32> -> vector<1x256xf32>
    %502 = arith.addf %486, %501 : vector<1x256xf32>
    %cst_407 = arith.constant 0.000000e+00 : f32
    %503 = vector.broadcast %cst_407 : f32 to vector<1x128xf32>
    %c54 = arith.constant 54 : index
    %c0_408 = arith.constant 0 : index
    %504 = vector.load %arg23[%c54, %c0_408] : memref<64x128xf32, #tpu.memory_space<vmem>>, vector<1x128xf32>
    %505 = arith.addf %503, %504 : vector<1x128xf32>
    %c55 = arith.constant 55 : index
    %c0_409 = arith.constant 0 : index
    %506 = vector.load %arg23[%c55, %c0_409] : memref<64x128xf32, #tpu.memory_space<vmem>>, vector<1x128xf32>
    %507 = arith.addf %505, %506 : vector<1x128xf32>
    %c62 = arith.constant 62 : index
    %c0_410 = arith.constant 0 : index
    %508 = vector.load %arg23[%c62, %c0_410] : memref<64x128xf32, #tpu.memory_space<vmem>>, vector<1x128xf32>
    %509 = arith.addf %507, %508 : vector<1x128xf32>
    %c63 = arith.constant 63 : index
    %c0_411 = arith.constant 0 : index
    %510 = vector.load %arg23[%c63, %c0_411] : memref<64x128xf32, #tpu.memory_space<vmem>>, vector<1x128xf32>
    %511 = arith.addf %509, %510 : vector<1x128xf32>
    %cst_412 = arith.constant 2.500000e-01 : f32
    %512 = vector.broadcast %cst_412 : f32 to vector<1x128xf32>
    %513 = arith.mulf %511, %512 : vector<1x128xf32>
    %514 = arith.truncf %513 : vector<1x128xf32> to vector<1x128xbf16>
    %c15_413 = arith.constant 15 : index
    %c0_414 = arith.constant 0 : index
    %c0_415 = arith.constant 0 : index
    %515 = vector.load %arg8[%c15_413, %c0_414, %c0_415] : memref<16x128x256xbf16, #tpu.memory_space<vmem>>, vector<1x128x256xbf16>
    %516 = vector.shape_cast %515 : vector<1x128x256xbf16> to vector<128x256xbf16>
    %cst_416 = arith.constant dense<0.000000e+00> : vector<1x256xf32>
    %517 = tpu.matmul %514, %516, %cst_416 {dimension_numbers = #tpu.dot_dimension_numbers<[1], [0], [0], [1], [0, 0, 1, 1], [], []>} : vector<1x128xbf16>, vector<128x256xbf16>, vector<1x256xf32> -> vector<1x256xf32>
    %518 = arith.addf %502, %517 : vector<1x256xf32>
    %cst_417 = arith.constant 0.000000e+00 : f32
    %519 = vector.broadcast %cst_417 : f32 to vector<1x256xf32>
    %520 = arith.maximumf %518, %519 : vector<1x256xf32>
    %521 = arith.truncf %520 : vector<1x256xf32> to vector<1x256xbf16>
    %c0_418 = arith.constant 0 : index
    %c0_419 = arith.constant 0 : index
    %522 = vector.load %arg10[%c0_418, %c0_419] : memref<256x64xbf16, #tpu.memory_space<vmem>>, vector<256x64xbf16>
    %cst_420 = arith.constant dense<0.000000e+00> : vector<1x64xf32>
    %523 = tpu.matmul %521, %522, %cst_420 {dimension_numbers = #tpu.dot_dimension_numbers<[1], [0], [0], [1], [0, 0, 1, 1], [], []>} : vector<1x256xbf16>, vector<256x64xbf16>, vector<1x64xf32> -> vector<1x64xf32>
    %c0_421 = arith.constant 0 : index
    %c0_422 = arith.constant 0 : index
    %524 = vector.load %arg11[%c0_421, %c0_422] : memref<1x64xf32, #tpu.memory_space<vmem>>, vector<1x64xf32>
    %525 = arith.addf %523, %524 : vector<1x64xf32>
    %cst_423 = arith.constant 0.000000e+00 : f32
    %526 = vector.broadcast %cst_423 : f32 to vector<1x64xf32>
    %527 = arith.maximumf %525, %526 : vector<1x64xf32>
    %c0_424 = arith.constant 0 : index
    %c0_425 = arith.constant 0 : index
    %528 = vector.load %arg12[%c0_424, %c0_425] : memref<1x64xf32, #tpu.memory_space<vmem>>, vector<1x64xf32>
    %529 = arith.mulf %527, %528 : vector<1x64xf32>
    %cst_426 = arith.constant dense<0.000000e+00> : vector<1xf32>
    %530 = vector.multi_reduction <add>, %529, %cst_426 [1] : vector<1x64xf32> to vector<1xf32>
    %531 = vector.shape_cast %530 : vector<1xf32> to vector<1x1xf32>
    %c0_427 = arith.constant 0 : index
    %c0_428 = arith.constant 0 : index
    %532 = vector.load %arg13[%c0_427, %c0_428] : memref<1x1xf32, #tpu.memory_space<vmem>>, vector<1x1xf32>
    %533 = arith.addf %531, %532 : vector<1x1xf32>
    %c0_429 = arith.constant 0 : index
    %c0_430 = arith.constant 0 : index
    %c0_431 = arith.constant 0 : index
    %534 = vector.load %arg14[%c0_429, %c0_430, %c0_431] : memref<1x1x1xf32, #tpu.memory_space<vmem>>, vector<1x1x1xf32>
    %535 = vector.shape_cast %534 : vector<1x1x1xf32> to vector<1x1xf32>
    %536 = vector.shape_cast %533 : vector<1x1xf32> to vector<1x1x1xf32>
    tpu.vector_store %arg14[%c0_429, %c0_430, %c0_431], %536 {strides = array<i32>} : memref<1x1x1xf32, #tpu.memory_space<vmem>>, vector<1x1x1xf32>,
    return
  }
  func.func @transform_0(%arg0: i32) -> (i32, i32, i32) {
    %c0_i32 = arith.constant 0 : i32
    %c0_i32_0 = arith.constant 0 : i32
    %c0_i32_1 = arith.constant 0 : i32
    return %arg0, %c0_i32, %c0_i32_0 : i32, i32, i32
  }
  func.func @transform_1(%arg0: i32) -> (i32, i32) {
    %c0_i32 = arith.constant 0 : i32
    %c0_i32_0 = arith.constant 0 : i32
    %c0_i32_1 = arith.constant 0 : i32
    return %c0_i32, %c0_i32_0 : i32, i32
  }
  func.func @transform_2(%arg0: i32) -> (i32, i32) {
    %c0_i32 = arith.constant 0 : i32
    %c0_i32_0 = arith.constant 0 : i32
    %c0_i32_1 = arith.constant 0 : i32
    return %c0_i32, %c0_i32_0 : i32, i32
  }
  func.func @transform_3(%arg0: i32) -> (i32, i32) {
    %c0_i32 = arith.constant 0 : i32
    %c0_i32_0 = arith.constant 0 : i32
    %c0_i32_1 = arith.constant 0 : i32
    return %c0_i32, %c0_i32_0 : i32, i32
  }
  func.func @transform_4(%arg0: i32) -> (i32, i32) {
    %c0_i32 = arith.constant 0 : i32
    %c0_i32_0 = arith.constant 0 : i32
    %c0_i32_1 = arith.constant 0 : i32
    return %c0_i32, %c0_i32_0 : i32, i32
  }
  func.func @transform_5(%arg0: i32) -> (i32, i32) {
    %c0_i32 = arith.constant 0 : i32
    %c0_i32_0 = arith.constant 0 : i32
    %c0_i32_1 = arith.constant 0 : i32
    return %c0_i32, %c0_i32_0 : i32, i32
  }
  func.func @transform_6(%arg0: i32) -> (i32, i32) {
    %c0_i32 = arith.constant 0 : i32
    %c0_i32_0 = arith.constant 0 : i32
    %c0_i32_1 = arith.constant 0 : i32
    return %c0_i32, %c0_i32_0 : i32, i32
  }
  func.func @transform_7(%arg0: i32) -> (i32, i32, i32) {
    %c0_i32 = arith.constant 0 : i32
    %c0_i32_0 = arith.constant 0 : i32
    %c0_i32_1 = arith.constant 0 : i32
    %c0_i32_2 = arith.constant 0 : i32
    return %c0_i32, %c0_i32_0, %c0_i32_1 : i32, i32, i32
  }
  func.func @transform_8(%arg0: i32) -> (i32, i32) {
    %c0_i32 = arith.constant 0 : i32
    %c0_i32_0 = arith.constant 0 : i32
    %c0_i32_1 = arith.constant 0 : i32
    return %c0_i32, %c0_i32_0 : i32, i32
  }
  func.func @transform_9(%arg0: i32) -> (i32, i32) {
    %c0_i32 = arith.constant 0 : i32
    %c0_i32_0 = arith.constant 0 : i32
    %c0_i32_1 = arith.constant 0 : i32
    return %c0_i32, %c0_i32_0 : i32, i32
  }
  func.func @transform_10(%arg0: i32) -> (i32, i32) {
    %c0_i32 = arith.constant 0 : i32
    %c0_i32_0 = arith.constant 0 : i32
    %c0_i32_1 = arith.constant 0 : i32
    return %c0_i32, %c0_i32_0 : i32, i32
  }
  func.func @transform_11(%arg0: i32) -> (i32, i32) {
    %c0_i32 = arith.constant 0 : i32
    %c0_i32_0 = arith.constant 0 : i32
    %c0_i32_1 = arith.constant 0 : i32
    return %c0_i32, %c0_i32_0 : i32, i32
  }
  func.func @transform_12(%arg0: i32) -> (i32, i32) {
    %c0_i32 = arith.constant 0 : i32
    %c0_i32_0 = arith.constant 0 : i32
    %c0_i32_1 = arith.constant 0 : i32
    return %c0_i32, %c0_i32_0 : i32, i32
  }
  func.func @transform_13(%arg0: i32) -> (i32, i32, i32) {
    %c0_i32 = arith.constant 0 : i32
    %c0_i32_0 = arith.constant 0 : i32
    %c0_i32_1 = arith.constant 0 : i32
    return %arg0, %c0_i32, %c0_i32_0 : i32, i32, i32
  }
}

</mosaic_0001>

<llo_original>
// kernel: cnn_forward.1
$region0: #{cnn_forward.1}
  #allocation0 [shape = 'u32[]', space=smem, size = 0x4, offset = 0x4, fixed_abs, tag = 'smem constant byte address 0x4 - core index']
  #allocation1 [shape = 'u32[144,128]{1,0:T(1,128)}', space=vmem, size = 0x12000, scoped, tag = 'internal scratch']
  #allocation2 [shape = 'f32[1024,32]{1,0:T(8,128)}', space=vmem, size = 0x80000, scoped, tag = 'scratch operand']
  #allocation3 [shape = 'f32[512,32]{1,0:T(8,128)}', space=vmem, size = 0x40000, scoped, tag = 'scratch operand']
  #allocation4 [shape = 'f32[304,32]{1,0:T(8,128)}', space=vmem, size = 0x26000, scoped, tag = 'scratch operand']
  #allocation5 [shape = 'bf16[256,288]{1,0:T(8,128)(2,1)}', space=vmem, size = 0x30000, scoped, tag = 'scratch operand']
  #allocation6 [shape = 'f32[256,64]{1,0:T(8,128)}', space=vmem, size = 0x20000, scoped, tag = 'scratch operand']
  #allocation7 [shape = 'f32[128,64]{1,0:T(8,128)}', space=vmem, size = 0x10000, scoped, tag = 'scratch operand']
  #allocation8 [shape = 'f32[96,64]{1,0:T(8,128)}', space=vmem, size = 0xc000, scoped, tag = 'scratch operand']
  #allocation9 [shape = 'bf16[64,576]{1,0:T(8,128)(2,1)}', space=vmem, size = 0x14000, scoped, tag = 'scratch operand']
  #allocation10 [shape = 'f32[64,128]{1,0:T(8,128)}', space=vmem, size = 0x8000, scoped, tag = 'scratch operand']
  #allocation11 [shape = 'f32[1,1]{1,0:T(1,128)S(1)}', space=vmem, size = 0x200, scoped, tag = 'scoped memory for cnn_forward.1']
  %s0 = inlined_call_operand.vmem [shape: bf16[2,1024,9], index: 0, kind: input, shape index: {}]
  %s1 = inlined_call_operand.vmem [shape: bf16[9,32], index: 1, kind: input, shape index: {}]
  %s2 = inlined_call_operand.vmem [shape: f32[3,32], index: 2, kind: input, shape index: {}]
  %s3 = inlined_call_operand.vmem [shape: bf16[288,64], index: 3, kind: input, shape index: {}]
  %s4 = inlined_call_operand.vmem [shape: f32[3,64], index: 4, kind: input, shape index: {}]
  %s5 = inlined_call_operand.vmem [shape: bf16[576,128], index: 5, kind: input, shape index: {}]
  %s6 = inlined_call_operand.vmem [shape: f32[3,128], index: 6, kind: input, shape index: {}]
  %s7 = inlined_call_operand.vmem [shape: bf16[16,128,256], index: 7, kind: input, shape index: {}]
  %s8 = inlined_call_operand.vmem [shape: f32[1,256], index: 8, kind: input, shape index: {}]
  %s9 = inlined_call_operand.vmem [shape: bf16[256,64], index: 9, kind: input, shape index: {}]
  %s10 = inlined_call_operand.vmem [shape: f32[1,64], index: 10, kind: input, shape index: {}]
  %s11 = inlined_call_operand.vmem [shape: f32[1,64], index: 11, kind: input, shape index: {}]
  %s12 = inlined_call_operand.<no memory space> [shape: f32[1,1], index: 12, kind: input, shape index: {}]
  %s13 = inlined_call_operand.vmem [shape: f32[2,1,1], index: 13, kind: output, shape index: {}]
  %s14 = sld [smem:[#allocation0]]
  $region85: #{cnn_forward.1} parent=0
    _
  %s16 = ssub.s32 1, %s14
  %s17 = scalar_select 0, %s16, %s14
  %v18 = vstv %s12
  %19 = vst [vmem:[#allocation11] sm:$0x1] %v18
  loop: start=0, step=1, limit=4
  $region2: #{cnn_forward.1} parent=0 // loop_pre_header
    _
  $region3: #{cnn_forward.1} parent=0 // loop_header
    %s21 = sphi 0, %s25
    %p22 = scmp.ge.s32.totalorder %s21, 4
    %s31 = sphi 0, %s33
    %s34 = sphi 0, %s31
    %s35 = sphi 0, %s34
    %s51 = sphi 0, %s35
    %s55 = sphi 0, %s55
    %s57 = sphi 0, %s55
    %s58 = sphi 0, %s57
    %s72 = sphi 0, %s58
    %s76 = sphi 0, %s76
    %s78 = sphi 0, %s76
    %s79 = sphi 0, %s78
    %s93 = sphi 0, %s79
    %s97 = sphi 0, %s97
    %s99 = sphi 0, %s97
    %s100 = sphi 0, %s99
    %s114 = sphi 0, %s100
    %s118 = sphi 0, %s118
    %s120 = sphi 0, %s118
    %s121 = sphi 0, %s120
    %s135 = sphi 0, %s121
    %s139 = sphi 0, %s139
    %s141 = sphi 0, %s139
    %s142 = sphi 0, %s141
    %s156 = sphi 0, %s142
    %s160 = sphi 0, %s160
    %s162 = sphi 0, %s160
    %s163 = sphi 0, %s162
    %s177 = sphi 0, %s163
    %s181 = sphi 0, %s181
    %s183 = sphi 0, %s181
    %s184 = sphi 0, %s183
    %s198 = sphi 0, %s184
    %s202 = sphi 0, %s202
    %s204 = sphi 0, %s202
    %s205 = sphi 0, %s204
    %s219 = sphi 0, %s205
    %s223 = sphi 0, %s223
    %s225 = sphi 0, %s223
    %s226 = sphi 0, %s225
    %s240 = sphi 0, %s226
    %s244 = sphi 0, %s244
    %s246 = sphi 0, %s244
    %s247 = sphi 0, %s246
    %s261 = sphi 0, %s247
    %s265 = sphi 0, %s265
    %s267 = sphi 0, %s265
    %s268 = sphi 0, %s267
    %s282 = sphi 0, %s268
    %s286 = sphi 0, %s286
    %s288 = sphi 0, %s286
    %s289 = sphi 0, %s288
    %s303 = sphi 0, %s289
    %s309 = sphi 0, %s311
    %s312 = sphi 0, %s309
    %s313 = sphi 0, %s312
    %s329 = sphi 0, %s313
  $region4: #{cnn_forward.1} parent=0 // loop_header_branch
    %24 = sbr.rel (%p22) target = $region8
  $region5: #{cnn_forward.1} parent=0 // loop_body
    %s26 = ssub.s32 %s21, 1
    %s27 = ssub.s32 %s21, 2
    %s28 = sadd.s32 %s21, 1
    %s29 = ssub.s32 %s21, %s28
    %p30 = scmp.eq.s32.totalorder %s29, 0
    %s32 = sadd.s32 %s31, 1
    %s33 = scalar_select %p30, %s31, %s32
    %p36 = pneg %p30
    %p37 = scmp.eq.s32.totalorder %s21, 1
    %p38 = por %p36, %p37
    %p39 = scmp.ne.s32.totalorder %s31, %s34
    %p40 = scmp.eq.s32.totalorder %s21, 0
    %p41 = por %p39, %p40
    %p42 = scmp.ne.s32.totalorder %s31, %s34
    %p43 = scmp.eq.s32.totalorder %s26, 1
    %p44 = por %p42, %p43
    %p45 = scmp.ne.s32.totalorder %s34, %s35
    %p46 = scmp.eq.s32.totalorder %s26, 0
    %p47 = por %p45, %p46
    %p48 = scmp.ne.s32.totalorder %s34, %s35
    %p49 = scmp.eq.s32.totalorder %s27, 1
    %p50 = por %p48, %p49
    %p52 = scmp.ne.s32.totalorder %s35, %s51
    %p53 = scmp.eq.s32.totalorder %s27, 0
    %p54 = por %p52, %p53
    %s56 = sadd.s32 %s55, 1
    %p59 = scmp.eq.s32.totalorder %s21, 1
    %p60 = scmp.ne.s32.totalorder %s55, %s57
    %p61 = scmp.eq.s32.totalorder %s21, 0
    %p62 = por %p60, %p61
    %p63 = scmp.ne.s32.totalorder %s55, %s57
    %p64 = scmp.eq.s32.totalorder %s26, 1
    %p65 = por %p63, %p64
    %p66 = scmp.ne.s32.totalorder %s57, %s58
    %p67 = scmp.eq.s32.totalorder %s26, 0
    %p68 = por %p66, %p67
    %p69 = scmp.ne.s32.totalorder %s57, %s58
    %p70 = scmp.eq.s32.totalorder %s27, 1
    %p71 = por %p69, %p70
    %p73 = scmp.ne.s32.totalorder %s58, %s72
    %p74 = scmp.eq.s32.totalorder %s27, 0
    %p75 = por %p73, %p74
    %s77 = sadd.s32 %s76, 1
    %p80 = scmp.eq.s32.totalorder %s21, 1
    %p81 = scmp.ne.s32.totalorder %s76, %s78
    %p82 = scmp.eq.s32.totalorder %s21, 0
    %p83 = por %p81, %p82
    %p84 = scmp.ne.s32.totalorder %s76, %s78
    %p85 = scmp.eq.s32.totalorder %s26, 1
    %p86 = por %p84, %p85
    %p87 = scmp.ne.s32.totalorder %s78, %s79
    %p88 = scmp.eq.s32.totalorder %s26, 0
    %p89 = por %p87, %p88
    %p90 = scmp.ne.s32.totalorder %s78, %s79
    %p91 = scmp.eq.s32.totalorder %s27, 1
    %p92 = por %p90, %p91
    %p94 = scmp.ne.s32.totalorder %s79, %s93
    %p95 = scmp.eq.s32.totalorder %s27, 0
    %p96 = por %p94, %p95
    %s98 = sadd.s32 %s97, 1
    %p101 = scmp.eq.s32.totalorder %s21, 1
    %p102 = scmp.ne.s32.totalorder %s97, %s99
    %p103 = scmp.eq.s32.totalorder %s21, 0
    %p104 = por %p102, %p103
    %p105 = scmp.ne.s32.totalorder %s97, %s99
    %p106 = scmp.eq.s32.totalorder %s26, 1
    %p107 = por %p105, %p106
    %p108 = scmp.ne.s32.totalorder %s99, %s100
    %p109 = scmp.eq.s32.totalorder %s26, 0
    %p110 = por %p108, %p109
    %p111 = scmp.ne.s32.totalorder %s99, %s100
    %p112 = scmp.eq.s32.totalorder %s27, 1
    %p113 = por %p111, %p112
    %p115 = scmp.ne.s32.totalorder %s100, %s114
    %p116 = scmp.eq.s32.totalorder %s27, 0
    %p117 = por %p115, %p116
    %s119 = sadd.s32 %s118, 1
    %p122 = scmp.eq.s32.totalorder %s21, 1
    %p123 = scmp.ne.s32.totalorder %s118, %s120
    %p124 = scmp.eq.s32.totalorder %s21, 0
    %p125 = por %p123, %p124
    %p126 = scmp.ne.s32.totalorder %s118, %s120
    %p127 = scmp.eq.s32.totalorder %s26, 1
    %p128 = por %p126, %p127
    %p129 = scmp.ne.s32.totalorder %s120, %s121
    %p130 = scmp.eq.s32.totalorder %s26, 0
    %p131 = por %p129, %p130
    %p132 = scmp.ne.s32.totalorder %s120, %s121
    %p133 = scmp.eq.s32.totalorder %s27, 1
    %p134 = por %p132, %p133
    %p136 = scmp.ne.s32.totalorder %s121, %s135
    %p137 = scmp.eq.s32.totalorder %s27, 0
    %p138 = por %p136, %p137
    %s140 = sadd.s32 %s139, 1
    %p143 = scmp.eq.s32.totalorder %s21, 1
    %p144 = scmp.ne.s32.totalorder %s139, %s141
    %p145 = scmp.eq.s32.totalorder %s21, 0
    %p146 = por %p144, %p145
    %p147 = scmp.ne.s32.totalorder %s139, %s141
    %p148 = scmp.eq.s32.totalorder %s26, 1
    %p149 = por %p147, %p148
    %p150 = scmp.ne.s32.totalorder %s141, %s142
    %p151 = scmp.eq.s32.totalorder %s26, 0
    %p152 = por %p150, %p151
    %p153 = scmp.ne.s32.totalorder %s141, %s142
    %p154 = scmp.eq.s32.totalorder %s27, 1
    %p155 = por %p153, %p154
    %p157 = scmp.ne.s32.totalorder %s142, %s156
    %p158 = scmp.eq.s32.totalorder %s27, 0
    %p159 = por %p157, %p158
    %s161 = sadd.s32 %s160, 1
    %p164 = scmp.eq.s32.totalorder %s21, 1
    %p165 = scmp.ne.s32.totalorder %s160, %s162
    %p166 = scmp.eq.s32.totalorder %s21, 0
    %p167 = por %p165, %p166
    %p168 = scmp.ne.s32.totalorder %s160, %s162
    %p169 = scmp.eq.s32.totalorder %s26, 1
    %p170 = por %p168, %p169
    %p171 = scmp.ne.s32.totalorder %s162, %s163
    %p172 = scmp.eq.s32.totalorder %s26, 0
    %p173 = por %p171, %p172
    %p174 = scmp.ne.s32.totalorder %s162, %s163
    %p175 = scmp.eq.s32.totalorder %s27, 1
    %p176 = por %p174, %p175
    %p178 = scmp.ne.s32.totalorder %s163, %s177
    %p179 = scmp.eq.s32.totalorder %s27, 0
    %p180 = por %p178, %p179
    %s182 = sadd.s32 %s181, 1
    %p185 = scmp.eq.s32.totalorder %s21, 1
    %p186 = scmp.ne.s32.totalorder %s181, %s183
    %p187 = scmp.eq.s32.totalorder %s21, 0
    %p188 = por %p186, %p187
    %p189 = scmp.ne.s32.totalorder %s181, %s183
    %p190 = scmp.eq.s32.totalorder %s26, 1
    %p191 = por %p189, %p190
    %p192 = scmp.ne.s32.totalorder %s183, %s184
    %p193 = scmp.eq.s32.totalorder %s26, 0
    %p194 = por %p192, %p193
    %p195 = scmp.ne.s32.totalorder %s183, %s184
    %p196 = scmp.eq.s32.totalorder %s27, 1
    %p197 = por %p195, %p196
    %p199 = scmp.ne.s32.totalorder %s184, %s198
    %p200 = scmp.eq.s32.totalorder %s27, 0
    %p201 = por %p199, %p200
    %s203 = sadd.s32 %s202, 1
    %p206 = scmp.eq.s32.totalorder %s21, 1
    %p207 = scmp.ne.s32.totalorder %s202, %s204
    %p208 = scmp.eq.s32.totalorder %s21, 0
    %p209 = por %p207, %p208
    %p210 = scmp.ne.s32.totalorder %s202, %s204
    %p211 = scmp.eq.s32.totalorder %s26, 1
    %p212 = por %p210, %p211
    %p213 = scmp.ne.s32.totalorder %s204, %s205
    %p214 = scmp.eq.s32.totalorder %s26, 0
    %p215 = por %p213, %p214
    %p216 = scmp.ne.s32.totalorder %s204, %s205
    %p217 = scmp.eq.s32.totalorder %s27, 1
    %p218 = por %p216, %p217
    %p220 = scmp.ne.s32.totalorder %s205, %s219
    %p221 = scmp.eq.s32.totalorder %s27, 0
    %p222 = por %p220, %p221
    %s224 = sadd.s32 %s223, 1
    %p227 = scmp.eq.s32.totalorder %s21, 1
    %p228 = scmp.ne.s32.totalorder %s223, %s225
    %p229 = scmp.eq.s32.totalorder %s21, 0
    %p230 = por %p228, %p229
    %p231 = scmp.ne.s32.totalorder %s223, %s225
    %p232 = scmp.eq.s32.totalorder %s26, 1
    %p233 = por %p231, %p232
    %p234 = scmp.ne.s32.totalorder %s225, %s226
    %p235 = scmp.eq.s32.totalorder %s26, 0
    %p236 = por %p234, %p235
    %p237 = scmp.ne.s32.totalorder %s225, %s226
    %p238 = scmp.eq.s32.totalorder %s27, 1
    %p239 = por %p237, %p238
    %p241 = scmp.ne.s32.totalorder %s226, %s240
    %p242 = scmp.eq.s32.totalorder %s27, 0
    %p243 = por %p241, %p242
    %s245 = sadd.s32 %s244, 1
    %p248 = scmp.eq.s32.totalorder %s21, 1
    %p249 = scmp.ne.s32.totalorder %s244, %s246
    %p250 = scmp.eq.s32.totalorder %s21, 0
    %p251 = por %p249, %p250
    %p252 = scmp.ne.s32.totalorder %s244, %s246
    %p253 = scmp.eq.s32.totalorder %s26, 1
    %p254 = por %p252, %p253
    %p255 = scmp.ne.s32.totalorder %s246, %s247
    %p256 = scmp.eq.s32.totalorder %s26, 0
    %p257 = por %p255, %p256
    %p258 = scmp.ne.s32.totalorder %s246, %s247
    %p259 = scmp.eq.s32.totalorder %s27, 1
    %p260 = por %p258, %p259
    %p262 = scmp.ne.s32.totalorder %s247, %s261
    %p263 = scmp.eq.s32.totalorder %s27, 0
    %p264 = por %p262, %p263
    %s266 = sadd.s32 %s265, 1
    %p269 = scmp.eq.s32.totalorder %s21, 1
    %p270 = scmp.ne.s32.totalorder %s265, %s267
    %p271 = scmp.eq.s32.totalorder %s21, 0
    %p272 = por %p270, %p271
    %p273 = scmp.ne.s32.totalorder %s265, %s267
    %p274 = scmp.eq.s32.totalorder %s26, 1
    %p275 = por %p273, %p274
    %p276 = scmp.ne.s32.totalorder %s267, %s268
    %p277 = scmp.eq.s32.totalorder %s26, 0
    %p278 = por %p276, %p277
    %p279 = scmp.ne.s32.totalorder %s267, %s268
    %p280 = scmp.eq.s32.totalorder %s27, 1
    %p281 = por %p279, %p280
    %p283 = scmp.ne.s32.totalorder %s268, %s282
    %p284 = scmp.eq.s32.totalorder %s27, 0
    %p285 = por %p283, %p284
    %s287 = sadd.s32 %s286, 1
    %p290 = scmp.eq.s32.totalorder %s21, 1
    %p291 = scmp.ne.s32.totalorder %s286, %s288
    %p292 = scmp.eq.s32.totalorder %s21, 0
    %p293 = por %p291, %p292
    %p294 = scmp.ne.s32.totalorder %s286, %s288
    %p295 = scmp.eq.s32.totalorder %s26, 1
    %p296 = por %p294, %p295
    %p297 = scmp.ne.s32.totalorder %s288, %s289
    %p298 = scmp.eq.s32.totalorder %s26, 0
    %p299 = por %p297, %p298
    %p300 = scmp.ne.s32.totalorder %s288, %s289
    %p301 = scmp.eq.s32.totalorder %s27, 1
    %p302 = por %p300, %p301
    %p304 = scmp.ne.s32.totalorder %s289, %s303
    %p305 = scmp.eq.s32.totalorder %s27, 0
    %p306 = por %p304, %p305
    %s307 = ssub.s32 %s21, %s28
    %p308 = scmp.eq.s32.totalorder %s307, 0
    %s310 = sadd.s32 %s309, 1
    %s311 = scalar_select %p308, %s309, %s310
    %p314 = pneg %p308
    %p315 = scmp.eq.s32.totalorder %s21, 1
    %p316 = por %p314, %p315
    %p317 = scmp.ne.s32.totalorder %s309, %s312
    %p318 = scmp.eq.s32.totalorder %s21, 0
    %p319 = por %p317, %p318
    %p320 = scmp.ne.s32.totalorder %s309, %s312
    %p321 = scmp.eq.s32.totalorder %s26, 1
    %p322 = por %p320, %p321
    %p323 = scmp.ne.s32.totalorder %s312, %s313
    %p324 = scmp.eq.s32.totalorder %s26, 0
    %p325 = por %p323, %p324
    %p326 = scmp.ne.s32.totalorder %s312, %s313
    %p327 = scmp.eq.s32.totalorder %s27, 1
    %p328 = por %p326, %p327
    %p330 = scmp.ne.s32.totalorder %s313, %s329
    %p331 = scmp.eq.s32.totalorder %s27, 0
    %p332 = por %p330, %p331
    %p333 = scmp.le.s32.totalorder 1, %s21
    %p334 = scmp.lt.s32.totalorder %s21, 3
    %p335 = pnand %p333, %p334
    %p336 = pneg %p335
    // Predicated region
    $region9: #{cnn_forward.1} parent=5 // pred_check
      _
    $region10: #{cnn_forward.1} parent=5 // pred_check_branch
      %338 = sbr.rel (%p335) target = $region12
    $region11: #{cnn_forward.1} parent=5 // pred_region
      %s339 = ssub.s32 %s21, 1
      // Predicated region
      $region13: #{cnn_forward.1} parent=11 // pred_check
        %p340 = pneg %p68
      $region14: #{cnn_forward.1} parent=11 // pred_check_branch
        %342 = sbr.rel (%p340) target = $region16
      $region15: #{cnn_forward.1} parent=11 // pred_region
        _
      $region16: #{cnn_forward.1} parent=11 // pred_fallthru
        _
      // Predicated region
      $region17: #{cnn_forward.1} parent=11 // pred_check
        %p343 = pneg %p89
      $region18: #{cnn_forward.1} parent=11 // pred_check_branch
        %345 = sbr.rel (%p343) target = $region20
      $region19: #{cnn_forward.1} parent=11 // pred_region
        _
      $region20: #{cnn_forward.1} parent=11 // pred_fallthru
        _
      // Predicated region
      $region21: #{cnn_forward.1} parent=11 // pred_check
        %p346 = pneg %p110
      $region22: #{cnn_forward.1} parent=11 // pred_check_branch
        %348 = sbr.rel (%p346) target = $region24
      $region23: #{cnn_forward.1} parent=11 // pred_region
        _
      $region24: #{cnn_forward.1} parent=11 // pred_fallthru
        _
      // Predicated region
      $region25: #{cnn_forward.1} parent=11 // pred_check
        %p349 = pneg %p131
      $region26: #{cnn_forward.1} parent=11 // pred_check_branch
        %351 = sbr.rel (%p349) target = $region28
      $region27: #{cnn_forward.1} parent=11 // pred_region
        _
      $region28: #{cnn_forward.1} parent=11 // pred_fallthru
        _
      // Predicated region
      $region29: #{cnn_forward.1} parent=11 // pred_check
        %p352 = pneg %p152
      $region30: #{cnn_forward.1} parent=11 // pred_check_branch
        %354 = sbr.rel (%p352) target = $region32
      $region31: #{cnn_forward.1} parent=11 // pred_region
        _
      $region32: #{cnn_forward.1} parent=11 // pred_fallthru
        _
      // Predicated region
      $region33: #{cnn_forward.1} parent=11 // pred_check
        %p355 = pneg %p173
      $region34: #{cnn_forward.1} parent=11 // pred_check_branch
        %357 = sbr.rel (%p355) target = $region36
      $region35: #{cnn_forward.1} parent=11 // pred_region
        _
      $region36: #{cnn_forward.1} parent=11 // pred_fallthru
        _
      // Predicated region
      $region37: #{cnn_forward.1} parent=11 // pred_check
        %p358 = pneg %p194
      $region38: #{cnn_forward.1} parent=11 // pred_check_branch
        %360 = sbr.rel (%p358) target = $region40
      $region39: #{cnn_forward.1} parent=11 // pred_region
        _
      $region40: #{cnn_forward.1} parent=11 // pred_fallthru
        _
      // Predicated region
      $region41: #{cnn_forward.1} parent=11 // pred_check
        %p361 = pneg %p215
      $region42: #{cnn_forward.1} parent=11 // pred_check_branch
        %363 = sbr.rel (%p361) target = $region44
      $region43: #{cnn_forward.1} parent=11 // pred_region
        _
      $region44: #{cnn_forward.1} parent=11 // pred_fallthru
        _
      // Predicated region
      $region45: #{cnn_forward.1} parent=11 // pred_check
        %p364 = pneg %p236
      $region46: #{cnn_forward.1} parent=11 // pred_check_branch
        %366 = sbr.rel (%p364) target = $region48
      $region47: #{cnn_forward.1} parent=11 // pred_region
        _
      $region48: #{cnn_forward.1} parent=11 // pred_fallthru
        _
      // Predicated region
      $region49: #{cnn_forward.1} parent=11 // pred_check
        %p367 = pneg %p257
      $region50: #{cnn_forward.1} parent=11 // pred_check_branch
        %369 = sbr.rel (%p367) target = $region52
      $region51: #{cnn_forward.1} parent=11 // pred_region
        _
      $region52: #{cnn_forward.1} parent=11 // pred_fallthru
        _
      // Predicated region
      $region53: #{cnn_forward.1} parent=11 // pred_check
        %p370 = pneg %p278
      $region54: #{cnn_forward.1} parent=11 // pred_check_branch
        %372 = sbr.rel (%p370) target = $region56
      $region55: #{cnn_forward.1} parent=11 // pred_region
        _
      $region56: #{cnn_forward.1} parent=11 // pred_fallthru
        _
      // Predicated region
      $region57: #{cnn_forward.1} parent=11 // pred_check
        %p373 = pneg %p299
      $region58: #{cnn_forward.1} parent=11 // pred_check_branch
        %375 = sbr.rel (%p373) target = $region60
      $region59: #{cnn_forward.1} parent=11 // pred_region
        _
      $region60: #{cnn_forward.1} parent=11 // pred_fallthru
        _
    $region12: #{cnn_forward.1} parent=5 // pred_fallthru
      _
    %p376 = scmp.lt.s32.totalorder %s21, 2
    // Predicated region
    $region61: #{cnn_forward.1} parent=5 // pred_check
      %p377 = pneg %p376
    $region62: #{cnn_forward.1} parent=5 // pred_check_branch
      %379 = sbr.rel (%p377) target = $region64
    $region63: #{cnn_forward.1} parent=5 // pred_region
      // Predicated region
      $region65: #{cnn_forward.1} parent=63 // pred_check
        %p380 = pneg %p41
      $region66: #{cnn_forward.1} parent=63 // pred_check_branch
        %382 = sbr.rel (%p380) target = $region68
      $region67: #{cnn_forward.1} parent=63 // pred_region
        %p383 = scmp.lt.s32.totalorder %s21, 1
        %s384 = scalar_select %p383, %s21, 1
        %s385 = smul.addr %s384, 128
        %s386 = smul.addr %s385, 4
        %s387 = scalar_lea.vmem %s0, %s386
      $region68: #{cnn_forward.1} parent=63 // pred_fallthru
        _
    $region64: #{cnn_forward.1} parent=5 // pred_fallthru
      _
    %p388 = scmp.le.s32.totalorder 1, %s21
    %p389 = scmp.lt.s32.totalorder %s21, 3
    %p390 = pnand %p388, %p389
    %p391 = pneg %p390
    // Predicated region
    $region69: #{cnn_forward.1} parent=5 // pred_check
      _
    $region70: #{cnn_forward.1} parent=5 // pred_check_branch
      %393 = sbr.rel (%p390) target = $region72
    $region71: #{cnn_forward.1} parent=5 // pred_region
      %s394 = ssub.s32 %s21, 1
      %p395 = scmp.lt.s32.totalorder %s26, 1
      %s396 = scalar_select %p395, %s26, 1
      %s397 = smul.addr %s396, 128
      %s398 = smul.addr %s397, 4
      %s399 = scalar_lea.vmem %s0, %s398
      %p400 = pneg %p47
      %p401 = pneg %p44
      %p402 = pneg %p68
      %p403 = pneg %p65
      %p404 = pneg %p89
      %p405 = pneg %p86
      %p406 = pneg %p110
      %p407 = pneg %p107
      %p408 = pneg %p131
      %p409 = pneg %p128
      %p410 = pneg %p152
      %p411 = pneg %p149
      %p412 = pneg %p173
      %p413 = pneg %p170
      %p414 = pneg %p194
      %p415 = pneg %p191
      %p416 = pneg %p215
      %p417 = pneg %p212
      %p418 = pneg %p236
      %p419 = pneg %p233
      %p420 = pneg %p257
      %p421 = pneg %p254
      %p422 = pneg %p278
      %p423 = pneg %p275
      %p424 = pneg %p299
      %p425 = pneg %p296
      %p426 = pneg %p325
      %p427 = pneg %p322
      %p428 = scmp.lt.s32.totalorder %s26, 1
      %s429 = scalar_select %p428, %s26, 1
      %s430 = scalar_lea.vmem %s13, %s429
      %p431 = scmp.lt.s32.totalorder %s26, 1
      %s432 = scalar_select %p431, %s26, 1
      %s433 = smul.addr %s432, 128
      %s434 = smul.addr %s433, 4
      %s435 = scalar_lea.vmem %s0, %s434
      %p436 = scmp.lt.s32.totalorder %s26, 1
      %s437 = scalar_select %p436, %s26, 1
      %s438 = scalar_lea.vmem %s13, %s437
      %v440 = vld [vmem:[%s435] sm:$0xf]
      %v441 = vld [vmem:[%s435 + $0x4] sm:$0xf]
      %v442 = vld [vmem:[%s435 + $0x8] sm:$0xf]
      %v443 = vld [vmem:[%s435 + $0xc] sm:$0xf]
      %v444 = vld [vmem:[%s435 + $0x10] sm:$0xf]
      %v445 = vld [vmem:[%s435 + $0x14] sm:$0xf]
      %v446 = vld [vmem:[%s435 + $0x18] sm:$0xf]
      %v447 = vld [vmem:[%s435 + $0x1c] sm:$0xf]
      %v448 = vld [vmem:[%s435 + $0x20] sm:$0xf]
      %v449 = vld [vmem:[%s435 + $0x24] sm:$0xf]
      %v450 = vld [vmem:[%s435 + $0x28] sm:$0xf]
      %v451 = vld [vmem:[%s435 + $0x2c] sm:$0xf]
      %v452 = vld [vmem:[%s435 + $0x30] sm:$0xf]
      %v453 = vld [vmem:[%s435 + $0x34] sm:$0xf]
      %v454 = vld [vmem:[%s435 + $0x38] sm:$0xf]
      %v455 = vld [vmem:[%s435 + $0x3c] sm:$0xf]
      %v456 = vld [vmem:[%s435 + $0x40] sm:$0xf]
      %v457 = vld [vmem:[%s435 + $0x44] sm:$0xf]
      %v458 = vld [vmem:[%s435 + $0x48] sm:$0xf]
      %v459 = vld [vmem:[%s435 + $0x4c] sm:$0xf]
      %v460 = vld [vmem:[%s435 + $0x50] sm:$0xf]
      %v461 = vld [vmem:[%s435 + $0x54] sm:$0xf]
      %v462 = vld [vmem:[%s435 + $0x58] sm:$0xf]
      %v463 = vld [vmem:[%s435 + $0x5c] sm:$0xf]
      %v464 = vld [vmem:[%s435 + $0x60] sm:$0xf]
      %v465 = vld [vmem:[%s435 + $0x64] sm:$0xf]
      %v466 = vld [vmem:[%s435 + $0x68] sm:$0xf]
      %v467 = vld [vmem:[%s435 + $0x6c] sm:$0xf]
      %v468 = vld [vmem:[%s435 + $0x70] sm:$0xf]
      %v469 = vld [vmem:[%s435 + $0x74] sm:$0xf]
      %v470 = vld [vmem:[%s435 + $0x78] sm:$0xf]
      %v471 = vld [vmem:[%s435 + $0x7c] sm:$0xf]
      %v472 = vld [vmem:[%s435 + $0x80] sm:$0xf]
      %v473 = vld [vmem:[%s435 + $0x84] sm:$0xf]
      %v474 = vld [vmem:[%s435 + $0x88] sm:$0xf]
      %v475 = vld [vmem:[%s435 + $0x8c] sm:$0xf]
      %v476 = vld [vmem:[%s435 + $0x90] sm:$0xf]
      %v477 = vld [vmem:[%s435 + $0x94] sm:$0xf]
      %v478 = vld [vmem:[%s435 + $0x98] sm:$0xf]
      %v479 = vld [vmem:[%s435 + $0x9c] sm:$0xf]
      %v480 = vld [vmem:[%s435 + $0xa0] sm:$0xf]
      %v481 = vld [vmem:[%s435 + $0xa4] sm:$0xf]
      %v482 = vld [vmem:[%s435 + $0xa8] sm:$0xf]
      %v483 = vld [vmem:[%s435 + $0xac] sm:$0xf]
      %v484 = vld [vmem:[%s435 + $0xb0] sm:$0xf]
      %v485 = vld [vmem:[%s435 + $0xb4] sm:$0xf]
      %v486 = vld [vmem:[%s435 + $0xb8] sm:$0xf]
      %v487 = vld [vmem:[%s435 + $0xbc] sm:$0xf]
      %v488 = vld [vmem:[%s435 + $0xc0] sm:$0xf]
      %v489 = vld [vmem:[%s435 + $0xc4] sm:$0xf]
      %v490 = vld [vmem:[%s435 + $0xc8] sm:$0xf]
      %v491 = vld [vmem:[%s435 + $0xcc] sm:$0xf]
      %v492 = vld [vmem:[%s435 + $0xd0] sm:$0xf]
      %v493 = vld [vmem:[%s435 + $0xd4] sm:$0xf]
      %v494 = vld [vmem:[%s435 + $0xd8] sm:$0xf]
      %v495 = vld [vmem:[%s435 + $0xdc] sm:$0xf]
      %v496 = vld [vmem:[%s435 + $0xe0] sm:$0xf]
      %v497 = vld [vmem:[%s435 + $0xe4] sm:$0xf]
      %v498 = vld [vmem:[%s435 + $0xe8] sm:$0xf]
      %v499 = vld [vmem:[%s435 + $0xec] sm:$0xf]
      %v500 = vld [vmem:[%s435 + $0xf0] sm:$0xf]
      %v501 = vld [vmem:[%s435 + $0xf4] sm:$0xf]
      %v502 = vld [vmem:[%s435 + $0xf8] sm:$0xf]
      %v503 = vld [vmem:[%s435 + $0xfc] sm:$0xf]
      %v504 = vld [vmem:[%s435 + $0x100] sm:$0xf]
      %v505 = vld [vmem:[%s435 + $0x104] sm:$0xf]
      %v506 = vld [vmem:[%s435 + $0x108] sm:$0xf]
      %v507 = vld [vmem:[%s435 + $0x10c] sm:$0xf]
      %v508 = vld [vmem:[%s435 + $0x110] sm:$0xf]
      %v509 = vld [vmem:[%s435 + $0x114] sm:$0xf]
      %v510 = vld [vmem:[%s435 + $0x118] sm:$0xf]
      %v511 = vld [vmem:[%s435 + $0x11c] sm:$0xf]
      %v512 = vld [vmem:[%s435 + $0x120] sm:$0xf]
      %v513 = vld [vmem:[%s435 + $0x124] sm:$0xf]
      %v514 = vld [vmem:[%s435 + $0x128] sm:$0xf]
      %v515 = vld [vmem:[%s435 + $0x12c] sm:$0xf]
      %v516 = vld [vmem:[%s435 + $0x130] sm:$0xf]
      %v517 = vld [vmem:[%s435 + $0x134] sm:$0xf]
      %v518 = vld [vmem:[%s435 + $0x138] sm:$0xf]
      %v519 = vld [vmem:[%s435 + $0x13c] sm:$0xf]
      %v520 = vld [vmem:[%s435 + $0x140] sm:$0xf]
      %v521 = vld [vmem:[%s435 + $0x144] sm:$0xf]
      %v522 = vld [vmem:[%s435 + $0x148] sm:$0xf]
      %v523 = vld [vmem:[%s435 + $0x14c] sm:$0xf]
      %v524 = vld [vmem:[%s435 + $0x150] sm:$0xf]
      %v525 = vld [vmem:[%s435 + $0x154] sm:$0xf]
      %v526 = vld [vmem:[%s435 + $0x158] sm:$0xf]
      %v527 = vld [vmem:[%s435 + $0x15c] sm:$0xf]
      %v528 = vld [vmem:[%s435 + $0x160] sm:$0xf]
      %v529 = vld [vmem:[%s435 + $0x164] sm:$0xf]
      %v530 = vld [vmem:[%s435 + $0x168] sm:$0xf]
      %v531 = vld [vmem:[%s435 + $0x16c] sm:$0xf]
      %v532 = vld [vmem:[%s435 + $0x170] sm:$0xf]
      %v533 = vld [vmem:[%s435 + $0x174] sm:$0xf]
      %v534 = vld [vmem:[%s435 + $0x178] sm:$0xf]
      %v535 = vld [vmem:[%s435 + $0x17c] sm:$0xf]
      %v536 = vld [vmem:[%s435 + $0x180] sm:$0xf]
      %v537 = vld [vmem:[%s435 + $0x184] sm:$0xf]
      %v538 = vld [vmem:[%s435 + $0x188] sm:$0xf]
      %v539 = vld [vmem:[%s435 + $0x18c] sm:$0xf]
      %v540 = vld [vmem:[%s435 + $0x190] sm:$0xf]
      %v541 = vld [vmem:[%s435 + $0x194] sm:$0xf]
      %v542 = vld [vmem:[%s435 + $0x198] sm:$0xf]
      %v543 = vld [vmem:[%s435 + $0x19c] sm:$0xf]
      %v544 = vld [vmem:[%s435 + $0x1a0] sm:$0xf]
      %v545 = vld [vmem:[%s435 + $0x1a4] sm:$0xf]
      %v546 = vld [vmem:[%s435 + $0x1a8] sm:$0xf]
      %v547 = vld [vmem:[%s435 + $0x1ac] sm:$0xf]
      %v548 = vld [vmem:[%s435 + $0x1b0] sm:$0xf]
      %v549 = vld [vmem:[%s435 + $0x1b4] sm:$0xf]
      %v550 = vld [vmem:[%s435 + $0x1b8] sm:$0xf]
      %v551 = vld [vmem:[%s435 + $0x1bc] sm:$0xf]
      %v552 = vld [vmem:[%s435 + $0x1c0] sm:$0xf]
      %v553 = vld [vmem:[%s435 + $0x1c4] sm:$0xf]
      %v554 = vld [vmem:[%s435 + $0x1c8] sm:$0xf]
      %v555 = vld [vmem:[%s435 + $0x1cc] sm:$0xf]
      %v556 = vld [vmem:[%s435 + $0x1d0] sm:$0xf]
      %v557 = vld [vmem:[%s435 + $0x1d4] sm:$0xf]
      %v558 = vld [vmem:[%s435 + $0x1d8] sm:$0xf]
      %v559 = vld [vmem:[%s435 + $0x1dc] sm:$0xf]
      %v560 = vld [vmem:[%s435 + $0x1e0] sm:$0xf]
      %v561 = vld [vmem:[%s435 + $0x1e4] sm:$0xf]
      %v562 = vld [vmem:[%s435 + $0x1e8] sm:$0xf]
      %v563 = vld [vmem:[%s435 + $0x1ec] sm:$0xf]
      %v564 = vld [vmem:[%s435 + $0x1f0] sm:$0xf]
      %v565 = vld [vmem:[%s435 + $0x1f4] sm:$0xf]
      %v566 = vld [vmem:[%s435 + $0x1f8] sm:$0xf]
      %v567 = vld [vmem:[%s435 + $0x1fc] sm:$0xf]
      %v568 = vld [vmem:[%s1] sm:$0xf]
      %v569 = vld [vmem:[%s1 + $0x4] sm:$0x1]
      %v570 = vld [vmem:[%s2] sm:$0x1]
      %v571 = vlaneseq
      %v572 = vshrl.u32 %v571, 7
      %v573 = vsub.s32 0, %v572
      %v574 = vrot.slane %v570, %v573
      %v703 = vunpack.c.l.b16 %v440
      %v704 = vunpack.c.l.b16 %v441
      %v705 = vunpack.c.l.b16 %v442
      %v706 = vunpack.c.l.b16 %v443
      %v707 = vunpack.c.l.b16 %v444
      %v708 = vunpack.c.l.b16 %v445
      %v709 = vunpack.c.l.b16 %v446
      %v710 = vunpack.c.l.b16 %v447
      %v711 = vunpack.c.l.b16 %v448
      %v712 = vunpack.c.l.b16 %v449
      %v713 = vunpack.c.l.b16 %v450
      %v714 = vunpack.c.l.b16 %v451
      %v715 = vunpack.c.l.b16 %v452
      %v716 = vunpack.c.l.b16 %v453
      %v717 = vunpack.c.l.b16 %v454
      %v718 = vunpack.c.l.b16 %v455
      %v719 = vunpack.c.l.b16 %v456
      %v720 = vunpack.c.l.b16 %v457
      %v721 = vunpack.c.l.b16 %v458
      %v722 = vunpack.c.l.b16 %v459
      %v723 = vunpack.c.l.b16 %v460
      %v724 = vunpack.c.l.b16 %v461
      %v725 = vunpack.c.l.b16 %v462
      %v726 = vunpack.c.l.b16 %v463
      %v727 = vunpack.c.l.b16 %v464
      %v728 = vunpack.c.l.b16 %v465
      %v729 = vunpack.c.l.b16 %v466
      %v730 = vunpack.c.l.b16 %v467
      %v731 = vunpack.c.l.b16 %v468
      %v732 = vunpack.c.l.b16 %v469
      %v733 = vunpack.c.l.b16 %v470
      %v734 = vunpack.c.l.b16 %v471
      %v735 = vunpack.c.l.b16 %v472
      %v736 = vunpack.c.l.b16 %v473
      %v737 = vunpack.c.l.b16 %v474
      %v738 = vunpack.c.l.b16 %v475
      %v739 = vunpack.c.l.b16 %v476
      %v740 = vunpack.c.l.b16 %v477
      %v741 = vunpack.c.l.b16 %v478
      %v742 = vunpack.c.l.b16 %v479
      %v743 = vunpack.c.l.b16 %v480
      %v744 = vunpack.c.l.b16 %v481
      %v745 = vunpack.c.l.b16 %v482
      %v746 = vunpack.c.l.b16 %v483
      %v747 = vunpack.c.l.b16 %v484
      %v748 = vunpack.c.l.b16 %v485
      %v749 = vunpack.c.l.b16 %v486
      %v750 = vunpack.c.l.b16 %v487
      %v751 = vunpack.c.l.b16 %v488
      %v752 = vunpack.c.l.b16 %v489
      %v753 = vunpack.c.l.b16 %v490
      %v754 = vunpack.c.l.b16 %v491
      %v755 = vunpack.c.l.b16 %v492
      %v756 = vunpack.c.l.b16 %v493
      %v757 = vunpack.c.l.b16 %v494
      %v758 = vunpack.c.l.b16 %v495
      %v759 = vunpack.c.l.b16 %v496
      %v760 = vunpack.c.l.b16 %v497
      %v761 = vunpack.c.l.b16 %v498
      %v762 = vunpack.c.l.b16 %v499
      %v763 = vunpack.c.l.b16 %v500
      %v764 = vunpack.c.l.b16 %v501
      %v765 = vunpack.c.l.b16 %v502
      %v766 = vunpack.c.l.b16 %v503
      %v767 = vunpack.c.l.b16 %v504
      %v768 = vunpack.c.l.b16 %v505
      %v769 = vunpack.c.l.b16 %v506
      %v770 = vunpack.c.l.b16 %v507
      %v771 = vunpack.c.l.b16 %v508
      %v772 = vunpack.c.l.b16 %v509
      %v773 = vunpack.c.l.b16 %v510
      %v774 = vunpack.c.l.b16 %v511
      %v775 = vunpack.c.l.b16 %v512
      %v776 = vunpack.c.l.b16 %v513
      %v777 = vunpack.c.l.b16 %v514
      %v778 = vunpack.c.l.b16 %v515
      %v779 = vunpack.c.l.b16 %v516
      %v780 = vunpack.c.l.b16 %v517
      %v781 = vunpack.c.l.b16 %v518
      %v782 = vunpack.c.l.b16 %v519
      %v783 = vunpack.c.l.b16 %v520
      %v784 = vunpack.c.l.b16 %v521
      %v785 = vunpack.c.l.b16 %v522
      %v786 = vunpack.c.l.b16 %v523
      %v787 = vunpack.c.l.b16 %v524
      %v788 = vunpack.c.l.b16 %v525
      %v789 = vunpack.c.l.b16 %v526
      %v790 = vunpack.c.l.b16 %v527
      %v791 = vunpack.c.l.b16 %v528
      %v792 = vunpack.c.l.b16 %v529
      %v793 = vunpack.c.l.b16 %v530
      %v794 = vunpack.c.l.b16 %v531
      %v795 = vunpack.c.l.b16 %v532
      %v796 = vunpack.c.l.b16 %v533
      %v797 = vunpack.c.l.b16 %v534
      %v798 = vunpack.c.l.b16 %v535
      %v799 = vunpack.c.l.b16 %v536
      %v800 = vunpack.c.l.b16 %v537
      %v801 = vunpack.c.l.b16 %v538
      %v802 = vunpack.c.l.b16 %v539
      %v803 = vunpack.c.l.b16 %v540
      %v804 = vunpack.c.l.b16 %v541
      %v805 = vunpack.c.l.b16 %v542
      %v806 = vunpack.c.l.b16 %v543
      %v807 = vunpack.c.l.b16 %v544
      %v808 = vunpack.c.l.b16 %v545
      %v809 = vunpack.c.l.b16 %v546
      %v810 = vunpack.c.l.b16 %v547
      %v811 = vunpack.c.l.b16 %v548
      %v812 = vunpack.c.l.b16 %v549
      %v813 = vunpack.c.l.b16 %v550
      %v814 = vunpack.c.l.b16 %v551
      %v815 = vunpack.c.l.b16 %v552
      %v816 = vunpack.c.l.b16 %v553
      %v817 = vunpack.c.l.b16 %v554
      %v818 = vunpack.c.l.b16 %v555
      %v819 = vunpack.c.l.b16 %v556
      %v820 = vunpack.c.l.b16 %v557
      %v821 = vunpack.c.l.b16 %v558
      %v822 = vunpack.c.l.b16 %v559
      %v823 = vunpack.c.l.b16 %v560
      %v824 = vunpack.c.l.b16 %v561
      %v825 = vunpack.c.l.b16 %v562
      %v826 = vunpack.c.l.b16 %v563
      %v827 = vunpack.c.l.b16 %v564
      %v828 = vunpack.c.l.b16 %v565
      %v829 = vunpack.c.l.b16 %v566
      %v830 = vunpack.c.l.b16 %v567
      %v831 = vpack.c.b16 %v704, %v703
      %v832 = vpack.c.b16 %v706, %v705
      %v833 = vpack.c.b16 %v708, %v707
      %v834 = vpack.c.b16 %v710, %v709
      %v835 = vpack.c.b16 %v712, %v711
      %v836 = vpack.c.b16 %v714, %v713
      %v837 = vpack.c.b16 %v716, %v715
      %v838 = vpack.c.b16 %v718, %v717
      %v839 = vpack.c.b16 %v720, %v719
      %v840 = vpack.c.b16 %v722, %v721
      %v841 = vpack.c.b16 %v724, %v723
      %v842 = vpack.c.b16 %v726, %v725
      %v843 = vpack.c.b16 %v728, %v727
      %v844 = vpack.c.b16 %v730, %v729
      %v845 = vpack.c.b16 %v732, %v731
      %v846 = vpack.c.b16 %v734, %v733
      %v847 = vpack.c.b16 %v736, %v735
      %v848 = vpack.c.b16 %v738, %v737
      %v849 = vpack.c.b16 %v740, %v739
      %v850 = vpack.c.b16 %v742, %v741
      %v851 = vpack.c.b16 %v744, %v743
      %v852 = vpack.c.b16 %v746, %v745
      %v853 = vpack.c.b16 %v748, %v747
      %v854 = vpack.c.b16 %v750, %v749
      %v855 = vpack.c.b16 %v752, %v751
      %v856 = vpack.c.b16 %v754, %v753
      %v857 = vpack.c.b16 %v756, %v755
      %v858 = vpack.c.b16 %v758, %v757
      %v859 = vpack.c.b16 %v760, %v759
      %v860 = vpack.c.b16 %v762, %v761
      %v861 = vpack.c.b16 %v764, %v763
      %v862 = vpack.c.b16 %v766, %v765
      %v863 = vpack.c.b16 %v768, %v767
      %v864 = vpack.c.b16 %v770, %v769
      %v865 = vpack.c.b16 %v772, %v771
      %v866 = vpack.c.b16 %v774, %v773
      %v867 = vpack.c.b16 %v776, %v775
      %v868 = vpack.c.b16 %v778, %v777
      %v869 = vpack.c.b16 %v780, %v779
      %v870 = vpack.c.b16 %v782, %v781
      %v871 = vpack.c.b16 %v784, %v783
      %v872 = vpack.c.b16 %v786, %v785
      %v873 = vpack.c.b16 %v788, %v787
      %v874 = vpack.c.b16 %v790, %v789
      %v875 = vpack.c.b16 %v792, %v791
      %v876 = vpack.c.b16 %v794, %v793
      %v877 = vpack.c.b16 %v796, %v795
      %v878 = vpack.c.b16 %v798, %v797
      %v879 = vpack.c.b16 %v800, %v799
      %v880 = vpack.c.b16 %v802, %v801
      %v881 = vpack.c.b16 %v804, %v803
      %v882 = vpack.c.b16 %v806, %v805
      %v883 = vpack.c.b16 %v808, %v807
      %v884 = vpack.c.b16 %v810, %v809
      %v885 = vpack.c.b16 %v812, %v811
      %v886 = vpack.c.b16 %v814, %v813
      %v887 = vpack.c.b16 %v816, %v815
      %v888 = vpack.c.b16 %v818, %v817
      %v889 = vpack.c.b16 %v820, %v819
      %v890 = vpack.c.b16 %v822, %v821
      %v891 = vpack.c.b16 %v824, %v823
      %v892 = vpack.c.b16 %v826, %v825
      %v893 = vpack.c.b16 %v828, %v827
      %v894 = vpack.c.b16 %v830, %v829
      %v897 = vunpack.c.l.b16 %v568
      %v898 = vunpack.c.l.b16 %v569
      %v899 = vpack.c.b16 %v898, %v897
      %vm900 = vcmask 72704
      %v902 = vsel %vm900, %v831, 0
      %v905 = vsel %vm900, %v832, 0
      %v908 = vsel %vm900, %v833, 0
      %v911 = vsel %vm900, %v834, 0
      %v914 = vsel %vm900, %v835, 0
      %v917 = vsel %vm900, %v836, 0
      %v920 = vsel %vm900, %v837, 0
      %v923 = vsel %vm900, %v838, 0
      %v926 = vsel %vm900, %v839, 0
      %v929 = vsel %vm900, %v840, 0
      %v932 = vsel %vm900, %v841, 0
      %v935 = vsel %vm900, %v842, 0
      %v938 = vsel %vm900, %v843, 0
      %v941 = vsel %vm900, %v844, 0
      %v944 = vsel %vm900, %v845, 0
      %v947 = vsel %vm900, %v846, 0
      %v950 = vsel %vm900, %v847, 0
      %v953 = vsel %vm900, %v848, 0
      %v956 = vsel %vm900, %v849, 0
      %v959 = vsel %vm900, %v850, 0
      %v962 = vsel %vm900, %v851, 0
      %v965 = vsel %vm900, %v852, 0
      %v968 = vsel %vm900, %v853, 0
      %v971 = vsel %vm900, %v854, 0
      %v974 = vsel %vm900, %v855, 0
      %v977 = vsel %vm900, %v856, 0
      %v980 = vsel %vm900, %v857, 0
      %v983 = vsel %vm900, %v858, 0
      %v986 = vsel %vm900, %v859, 0
      %v989 = vsel %vm900, %v860, 0
      %v992 = vsel %vm900, %v861, 0
      %v995 = vsel %vm900, %v862, 0
      %v998 = vsel %vm900, %v863, 0
      %v1001 = vsel %vm900, %v864, 0
      %v1004 = vsel %vm900, %v865, 0
      %v1007 = vsel %vm900, %v866, 0
      %v1010 = vsel %vm900, %v867, 0
      %v1013 = vsel %vm900, %v868, 0
      %v1016 = vsel %vm900, %v869, 0
      %v1019 = vsel %vm900, %v870, 0
      %v1022 = vsel %vm900, %v871, 0
      %v1025 = vsel %vm900, %v872, 0
      %v1028 = vsel %vm900, %v873, 0
      %v1031 = vsel %vm900, %v874, 0
      %v1034 = vsel %vm900, %v875, 0
      %v1037 = vsel %vm900, %v876, 0
      %v1040 = vsel %vm900, %v877, 0
      %v1043 = vsel %vm900, %v878, 0
      %v1046 = vsel %vm900, %v879, 0
      %v1049 = vsel %vm900, %v880, 0
      %v1052 = vsel %vm900, %v881, 0
      %v1055 = vsel %vm900, %v882, 0
      %v1058 = vsel %vm900, %v883, 0
      %v1061 = vsel %vm900, %v884, 0
      %v1064 = vsel %vm900, %v885, 0
      %v1067 = vsel %vm900, %v886, 0
      %v1070 = vsel %vm900, %v887, 0
      %v1073 = vsel %vm900, %v888, 0
      %v1076 = vsel %vm900, %v889, 0
      %v1079 = vsel %vm900, %v890, 0
      %v1082 = vsel %vm900, %v891, 0
      %v1085 = vsel %vm900, %v892, 0
      %v1088 = vsel %vm900, %v893, 0
      %v1091 = vsel %vm900, %v894, 0
      %vm1093 = vcmask 1043456
      %vm1094 = vcmask 1044480
      %v1095 = vsel %vm1093, 4294967295, 65535
      %v1096 = vsel %vm1094, %v1095, 0
      %v1098 = vand.u32 %v899, %v1096
      %1100 = vmatprep.subr.bf16.mxu0 0
      %1101 = vmatpush1.bf16.msra.mxu0 0
      %1102 = vmatprep.subr.bf16.mxu0 0
      %1103 = vmatpush1.bf16.msra.mxu0 0
      %1104 = vmatprep.subr.bf16.mxu0 0
      %1105 = vmatpush1.bf16.msra.mxu0 0
      %1106 = vmatprep.subr.bf16.mxu0 0
      %1107 = vmatpush1.bf16.msra.mxu0 0
      %1108 = vmatprep.subr.bf16.mxu0 0
      %1109 = vmatpush1.bf16.msra.mxu0 0
      %1110 = vmatprep.subr.bf16.mxu0 0
      %1111 = vmatpush1.bf16.msra.mxu0 0
      %1112 = vmatprep.subr.bf16.mxu0 0
      %1113 = vmatpush1.bf16.msra.mxu0 0
      %1114 = vmatprep.subr.bf16.mxu0 0
      %1115 = vmatpush1.bf16.msra.mxu0 %v1098
      %1116 = vmatprep.subr.bf16.mxu0 0
      %1117 = vmatpush2.bf16.msra.mxu0 0
      %1118 = vmatprep.subr.bf16.mxu0 0
      %1119 = vmatpush2.bf16.msra.mxu0 0
      %1120 = vmatprep.subr.bf16.mxu0 0
      %1121 = vmatpush2.bf16.msra.mxu0 0
      %1122 = vmatprep.subr.bf16.mxu0 0
      %1123 = vmatpush2.bf16.msra.mxu0 0
      %1124 = vmatprep.subr.bf16.mxu0 0
      %1125 = vmatpush2.bf16.msra.mxu0 0
      %1126 = vmatprep.subr.bf16.mxu0 0
      %1127 = vmatpush2.bf16.msra.mxu0 0
      %1128 = vmatprep.subr.bf16.mxu0 0
      %1129 = vmatpush2.bf16.msra.mxu0 0
      %1130 = vmatprep.subr.bf16.mxu0 0
      %1131 = vmatpush2.bf16.msra.mxu0 0
      %1132 = vmatprep.mubr.bf16.mxu0 0
      %1133 = vmatmul.mubr.bf16.gmra.mxu0 %v902
      %v1134 = vpop.f32.mrf.mxu0
      %v1135 = vadd.f32 %v574, %v1134
      %v1136 = vpop.f32.mrf.mxu0
      %v1137 = vpop.f32.mrf.mxu0
      %v1138 = vadd.f32 %v574, %v1137
      %v1139 = vpop.f32.mrf.mxu0
      %1140 = vmatprep.mubr.bf16.mxu0 0
      %1141 = vmatmul.mubr.bf16.gmra.mxu0 %v905
      %v1142 = vpop.f32.mrf.mxu0
      %v1143 = vadd.f32 %v574, %v1142
      %v1144 = vpop.f32.mrf.mxu0
      %v1145 = vpop.f32.mrf.mxu0
      %v1146 = vadd.f32 %v574, %v1145
      %v1147 = vpop.f32.mrf.mxu0
      %1148 = vmatprep.mubr.bf16.mxu0 0
      %1149 = vmatmul.mubr.bf16.gmra.mxu0 %v908
      %v1150 = vpop.f32.mrf.mxu0
      %v1151 = vadd.f32 %v574, %v1150
      %v1152 = vpop.f32.mrf.mxu0
      %v1153 = vpop.f32.mrf.mxu0
      %v1154 = vadd.f32 %v574, %v1153
      %v1155 = vpop.f32.mrf.mxu0
      %1156 = vmatprep.mubr.bf16.mxu0 0
      %1157 = vmatmul.mubr.bf16.gmra.mxu0 %v911
      %v1158 = vpop.f32.mrf.mxu0
      %v1159 = vadd.f32 %v574, %v1158
      %v1160 = vpop.f32.mrf.mxu0
      %v1161 = vpop.f32.mrf.mxu0
      %v1162 = vadd.f32 %v574, %v1161
      %v1163 = vpop.f32.mrf.mxu0
      %1164 = vmatprep.mubr.bf16.mxu0 0
      %1165 = vmatmul.mubr.bf16.gmra.mxu0 %v914
      %v1166 = vpop.f32.mrf.mxu0
      %v1167 = vadd.f32 %v574, %v1166
      %v1168 = vpop.f32.mrf.mxu0
      %v1169 = vpop.f32.mrf.mxu0
      %v1170 = vadd.f32 %v574, %v1169
      %v1171 = vpop.f32.mrf.mxu0
      %1172 = vmatprep.mubr.bf16.mxu0 0
      %1173 = vmatmul.mubr.bf16.gmra.mxu0 %v917
      %v1174 = vpop.f32.mrf.mxu0
      %v1175 = vadd.f32 %v574, %v1174
      %v1176 = vpop.f32.mrf.mxu0
      %v1177 = vpop.f32.mrf.mxu0
      %v1178 = vadd.f32 %v574, %v1177
      %v1179 = vpop.f32.mrf.mxu0
      %1180 = vmatprep.mubr.bf16.mxu0 0
      %1181 = vmatmul.mubr.bf16.gmra.mxu0 %v920
      %v1182 = vpop.f32.mrf.mxu0
      %v1183 = vadd.f32 %v574, %v1182
      %v1184 = vpop.f32.mrf.mxu0
      %v1185 = vpop.f32.mrf.mxu0
      %v1186 = vadd.f32 %v574, %v1185
      %v1187 = vpop.f32.mrf.mxu0
      %1188 = vmatprep.mubr.bf16.mxu0 0
      %1189 = vmatmul.mubr.bf16.gmra.mxu0 %v923
      %v1190 = vpop.f32.mrf.mxu0
      %v1191 = vadd.f32 %v574, %v1190
      %v1192 = vpop.f32.mrf.mxu0
      %v1193 = vpop.f32.mrf.mxu0
      %v1194 = vadd.f32 %v574, %v1193
      %v1195 = vpop.f32.mrf.mxu0
      %1196 = vmatprep.mubr.bf16.mxu0 0
      %1197 = vmatmul.mubr.bf16.gmra.mxu0 %v926
      %v1198 = vpop.f32.mrf.mxu0
      %v1199 = vadd.f32 %v574, %v1198
      %v1200 = vpop.f32.mrf.mxu0
      %v1201 = vpop.f32.mrf.mxu0
      %v1202 = vadd.f32 %v574, %v1201
      %v1203 = vpop.f32.mrf.mxu0
      %1204 = vmatprep.mubr.bf16.mxu0 0
      %1205 = vmatmul.mubr.bf16.gmra.mxu0 %v929
      %v1206 = vpop.f32.mrf.mxu0
      %v1207 = vadd.f32 %v574, %v1206
      %v1208 = vpop.f32.mrf.mxu0
      %v1209 = vpop.f32.mrf.mxu0
      %v1210 = vadd.f32 %v574, %v1209
      %v1211 = vpop.f32.mrf.mxu0
      %1212 = vmatprep.mubr.bf16.mxu0 0
      %1213 = vmatmul.mubr.bf16.gmra.mxu0 %v932
      %v1214 = vpop.f32.mrf.mxu0
      %v1215 = vadd.f32 %v574, %v1214
      %v1216 = vpop.f32.mrf.mxu0
      %v1217 = vpop.f32.mrf.mxu0
      %v1218 = vadd.f32 %v574, %v1217
      %v1219 = vpop.f32.mrf.mxu0
      %1220 = vmatprep.mubr.bf16.mxu0 0
      %1221 = vmatmul.mubr.bf16.gmra.mxu0 %v935
      %v1222 = vpop.f32.mrf.mxu0
      %v1223 = vadd.f32 %v574, %v1222
      %v1224 = vpop.f32.mrf.mxu0
      %v1225 = vpop.f32.mrf.mxu0
      %v1226 = vadd.f32 %v574, %v1225
      %v1227 = vpop.f32.mrf.mxu0
      %1228 = vmatprep.mubr.bf16.mxu0 0
      %1229 = vmatmul.mubr.bf16.gmra.mxu0 %v938
      %v1230 = vpop.f32.mrf.mxu0
      %v1231 = vadd.f32 %v574, %v1230
      %v1232 = vpop.f32.mrf.mxu0
      %v1233 = vpop.f32.mrf.mxu0
      %v1234 = vadd.f32 %v574, %v1233
      %v1235 = vpop.f32.mrf.mxu0
      %1236 = vmatprep.mubr.bf16.mxu0 0
      %1237 = vmatmul.mubr.bf16.gmra.mxu0 %v941
      %v1238 = vpop.f32.mrf.mxu0
      %v1239 = vadd.f32 %v574, %v1238
      %v1240 = vpop.f32.mrf.mxu0
      %v1241 = vpop.f32.mrf.mxu0
      %v1242 = vadd.f32 %v574, %v1241
      %v1243 = vpop.f32.mrf.mxu0
      %1244 = vmatprep.mubr.bf16.mxu0 0
      %1245 = vmatmul.mubr.bf16.gmra.mxu0 %v944
      %v1246 = vpop.f32.mrf.mxu0
      %v1247 = vadd.f32 %v574, %v1246
      %v1248 = vpop.f32.mrf.mxu0
      %v1249 = vpop.f32.mrf.mxu0
      %v1250 = vadd.f32 %v574, %v1249
      %v1251 = vpop.f32.mrf.mxu0
      %1252 = vmatprep.mubr.bf16.mxu0 0
      %1253 = vmatmul.mubr.bf16.gmra.mxu0 %v947
      %v1254 = vpop.f32.mrf.mxu0
      %v1255 = vadd.f32 %v574, %v1254
      %v1256 = vpop.f32.mrf.mxu0
      %v1257 = vpop.f32.mrf.mxu0
      %v1258 = vadd.f32 %v574, %v1257
      %v1259 = vpop.f32.mrf.mxu0
      %1260 = vmatprep.mubr.bf16.mxu0 0
      %1261 = vmatmul.mubr.bf16.gmra.mxu0 %v950
      %v1262 = vpop.f32.mrf.mxu0
      %v1263 = vadd.f32 %v574, %v1262
      %v1264 = vpop.f32.mrf.mxu0
      %v1265 = vpop.f32.mrf.mxu0
      %v1266 = vadd.f32 %v574, %v1265
      %v1267 = vpop.f32.mrf.mxu0
      %1268 = vmatprep.mubr.bf16.mxu0 0
      %1269 = vmatmul.mubr.bf16.gmra.mxu0 %v953
      %v1270 = vpop.f32.mrf.mxu0
      %v1271 = vadd.f32 %v574, %v1270
      %v1272 = vpop.f32.mrf.mxu0
      %v1273 = vpop.f32.mrf.mxu0
      %v1274 = vadd.f32 %v574, %v1273
      %v1275 = vpop.f32.mrf.mxu0
      %1276 = vmatprep.mubr.bf16.mxu0 0
      %1277 = vmatmul.mubr.bf16.gmra.mxu0 %v956
      %v1278 = vpop.f32.mrf.mxu0
      %v1279 = vadd.f32 %v574, %v1278
      %v1280 = vpop.f32.mrf.mxu0
      %v1281 = vpop.f32.mrf.mxu0
      %v1282 = vadd.f32 %v574, %v1281
      %v1283 = vpop.f32.mrf.mxu0
      %1284 = vmatprep.mubr.bf16.mxu0 0
      %1285 = vmatmul.mubr.bf16.gmra.mxu0 %v959
      %v1286 = vpop.f32.mrf.mxu0
      %v1287 = vadd.f32 %v574, %v1286
      %v1288 = vpop.f32.mrf.mxu0
      %v1289 = vpop.f32.mrf.mxu0
      %v1290 = vadd.f32 %v574, %v1289
      %v1291 = vpop.f32.mrf.mxu0
      %1292 = vmatprep.mubr.bf16.mxu0 0
      %1293 = vmatmul.mubr.bf16.gmra.mxu0 %v962
      %v1294 = vpop.f32.mrf.mxu0
      %v1295 = vadd.f32 %v574, %v1294
      %v1296 = vpop.f32.mrf.mxu0
      %v1297 = vpop.f32.mrf.mxu0
      %v1298 = vadd.f32 %v574, %v1297
      %v1299 = vpop.f32.mrf.mxu0
      %1300 = vmatprep.mubr.bf16.mxu0 0
      %1301 = vmatmul.mubr.bf16.gmra.mxu0 %v965
      %v1302 = vpop.f32.mrf.mxu0
      %v1303 = vadd.f32 %v574, %v1302
      %v1304 = vpop.f32.mrf.mxu0
      %v1305 = vpop.f32.mrf.mxu0
      %v1306 = vadd.f32 %v574, %v1305
      %v1307 = vpop.f32.mrf.mxu0
      %1308 = vmatprep.mubr.bf16.mxu0 0
      %1309 = vmatmul.mubr.bf16.gmra.mxu0 %v968
      %v1310 = vpop.f32.mrf.mxu0
      %v1311 = vadd.f32 %v574, %v1310
      %v1312 = vpop.f32.mrf.mxu0
      %v1313 = vpop.f32.mrf.mxu0
      %v1314 = vadd.f32 %v574, %v1313
      %v1315 = vpop.f32.mrf.mxu0
      %1316 = vmatprep.mubr.bf16.mxu0 0
      %1317 = vmatmul.mubr.bf16.gmra.mxu0 %v971
      %v1318 = vpop.f32.mrf.mxu0
      %v1319 = vadd.f32 %v574, %v1318
      %v1320 = vpop.f32.mrf.mxu0
      %v1321 = vpop.f32.mrf.mxu0
      %v1322 = vadd.f32 %v574, %v1321
      %v1323 = vpop.f32.mrf.mxu0
      %1324 = vmatprep.mubr.bf16.mxu0 0
      %1325 = vmatmul.mubr.bf16.gmra.mxu0 %v974
      %v1326 = vpop.f32.mrf.mxu0
      %v1327 = vadd.f32 %v574, %v1326
      %v1328 = vpop.f32.mrf.mxu0
      %v1329 = vpop.f32.mrf.mxu0
      %v1330 = vadd.f32 %v574, %v1329
      %v1331 = vpop.f32.mrf.mxu0
      %1332 = vmatprep.mubr.bf16.mxu0 0
      %1333 = vmatmul.mubr.bf16.gmra.mxu0 %v977
      %v1334 = vpop.f32.mrf.mxu0
      %v1335 = vadd.f32 %v574, %v1334
      %v1336 = vpop.f32.mrf.mxu0
      %v1337 = vpop.f32.mrf.mxu0
      %v1338 = vadd.f32 %v574, %v1337
      %v1339 = vpop.f32.mrf.mxu0
      %1340 = vmatprep.mubr.bf16.mxu0 0
      %1341 = vmatmul.mubr.bf16.gmra.mxu0 %v980
      %v1342 = vpop.f32.mrf.mxu0
      %v1343 = vadd.f32 %v574, %v1342
      %v1344 = vpop.f32.mrf.mxu0
      %v1345 = vpop.f32.mrf.mxu0
      %v1346 = vadd.f32 %v574, %v1345
      %v1347 = vpop.f32.mrf.mxu0
      %1348 = vmatprep.mubr.bf16.mxu0 0
      %1349 = vmatmul.mubr.bf16.gmra.mxu0 %v983
      %v1350 = vpop.f32.mrf.mxu0
      %v1351 = vadd.f32 %v574, %v1350
      %v1352 = vpop.f32.mrf.mxu0
      %v1353 = vpop.f32.mrf.mxu0
      %v1354 = vadd.f32 %v574, %v1353
      %v1355 = vpop.f32.mrf.mxu0
      %1356 = vmatprep.mubr.bf16.mxu0 0
      %1357 = vmatmul.mubr.bf16.gmra.mxu0 %v986
      %v1358 = vpop.f32.mrf.mxu0
      %v1359 = vadd.f32 %v574, %v1358
      %v1360 = vpop.f32.mrf.mxu0
      %v1361 = vpop.f32.mrf.mxu0
      %v1362 = vadd.f32 %v574, %v1361
      %v1363 = vpop.f32.mrf.mxu0
      %1364 = vmatprep.mubr.bf16.mxu0 0
      %1365 = vmatmul.mubr.bf16.gmra.mxu0 %v989
      %v1366 = vpop.f32.mrf.mxu0
      %v1367 = vadd.f32 %v574, %v1366
      %v1368 = vpop.f32.mrf.mxu0
      %v1369 = vpop.f32.mrf.mxu0
      %v1370 = vadd.f32 %v574, %v1369
      %v1371 = vpop.f32.mrf.mxu0
      %1372 = vmatprep.mubr.bf16.mxu0 0
      %1373 = vmatmul.mubr.bf16.gmra.mxu0 %v992
      %v1374 = vpop.f32.mrf.mxu0
      %v1375 = vadd.f32 %v574, %v1374
      %v1376 = vpop.f32.mrf.mxu0
      %v1377 = vpop.f32.mrf.mxu0
      %v1378 = vadd.f32 %v574, %v1377
      %v1379 = vpop.f32.mrf.mxu0
      %1380 = vmatprep.mubr.bf16.mxu0 0
      %1381 = vmatmul.mubr.bf16.gmra.mxu0 %v995
      %v1382 = vpop.f32.mrf.mxu0
      %v1383 = vadd.f32 %v574, %v1382
      %v1384 = vpop.f32.mrf.mxu0
      %v1385 = vpop.f32.mrf.mxu0
      %v1386 = vadd.f32 %v574, %v1385
      %v1387 = vpop.f32.mrf.mxu0
      %1388 = vmatprep.mubr.bf16.mxu0 0
      %1389 = vmatmul.mubr.bf16.gmra.mxu0 %v998
      %v1390 = vpop.f32.mrf.mxu0
      %v1391 = vadd.f32 %v574, %v1390
      %v1392 = vpop.f32.mrf.mxu0
      %v1393 = vpop.f32.mrf.mxu0
      %v1394 = vadd.f32 %v574, %v1393
      %v1395 = vpop.f32.mrf.mxu0
      %1396 = vmatprep.mubr.bf16.mxu0 0
      %1397 = vmatmul.mubr.bf16.gmra.mxu0 %v1001
      %v1398 = vpop.f32.mrf.mxu0
      %v1399 = vadd.f32 %v574, %v1398
      %v1400 = vpop.f32.mrf.mxu0
      %v1401 = vpop.f32.mrf.mxu0
      %v1402 = vadd.f32 %v574, %v1401
      %v1403 = vpop.f32.mrf.mxu0
      %1404 = vmatprep.mubr.bf16.mxu0 0
      %1405 = vmatmul.mubr.bf16.gmra.mxu0 %v1004
      %v1406 = vpop.f32.mrf.mxu0
      %v1407 = vadd.f32 %v574, %v1406
      %v1408 = vpop.f32.mrf.mxu0
      %v1409 = vpop.f32.mrf.mxu0
      %v1410 = vadd.f32 %v574, %v1409
      %v1411 = vpop.f32.mrf.mxu0
      %1412 = vmatprep.mubr.bf16.mxu0 0
      %1413 = vmatmul.mubr.bf16.gmra.mxu0 %v1007
      %v1414 = vpop.f32.mrf.mxu0
      %v1415 = vadd.f32 %v574, %v1414
      %v1416 = vpop.f32.mrf.mxu0
      %v1417 = vpop.f32.mrf.mxu0
      %v1418 = vadd.f32 %v574, %v1417
      %v1419 = vpop.f32.mrf.mxu0
      %1420 = vmatprep.mubr.bf16.mxu0 0
      %1421 = vmatmul.mubr.bf16.gmra.mxu0 %v1010
      %v1422 = vpop.f32.mrf.mxu0
      %v1423 = vadd.f32 %v574, %v1422
      %v1424 = vpop.f32.mrf.mxu0
      %v1425 = vpop.f32.mrf.mxu0
      %v1426 = vadd.f32 %v574, %v1425
      %v1427 = vpop.f32.mrf.mxu0
      %1428 = vmatprep.mubr.bf16.mxu0 0
      %1429 = vmatmul.mubr.bf16.gmra.mxu0 %v1013
      %v1430 = vpop.f32.mrf.mxu0
      %v1431 = vadd.f32 %v574, %v1430
      %v1432 = vpop.f32.mrf.mxu0
      %v1433 = vpop.f32.mrf.mxu0
      %v1434 = vadd.f32 %v574, %v1433
      %v1435 = vpop.f32.mrf.mxu0
      %1436 = vmatprep.mubr.bf16.mxu0 0
      %1437 = vmatmul.mubr.bf16.gmra.mxu0 %v1016
      %v1438 = vpop.f32.mrf.mxu0
      %v1439 = vadd.f32 %v574, %v1438
      %v1440 = vpop.f32.mrf.mxu0
      %v1441 = vpop.f32.mrf.mxu0
      %v1442 = vadd.f32 %v574, %v1441
      %v1443 = vpop.f32.mrf.mxu0
      %1444 = vmatprep.mubr.bf16.mxu0 0
      %1445 = vmatmul.mubr.bf16.gmra.mxu0 %v1019
      %v1446 = vpop.f32.mrf.mxu0
      %v1447 = vadd.f32 %v574, %v1446
      %v1448 = vpop.f32.mrf.mxu0
      %v1449 = vpop.f32.mrf.mxu0
      %v1450 = vadd.f32 %v574, %v1449
      %v1451 = vpop.f32.mrf.mxu0
      %1452 = vmatprep.mubr.bf16.mxu0 0
      %1453 = vmatmul.mubr.bf16.gmra.mxu0 %v1022
      %v1454 = vpop.f32.mrf.mxu0
      %v1455 = vadd.f32 %v574, %v1454
      %v1456 = vpop.f32.mrf.mxu0
      %v1457 = vpop.f32.mrf.mxu0
      %v1458 = vadd.f32 %v574, %v1457
      %v1459 = vpop.f32.mrf.mxu0
      %1460 = vmatprep.mubr.bf16.mxu0 0
      %1461 = vmatmul.mubr.bf16.gmra.mxu0 %v1025
      %v1462 = vpop.f32.mrf.mxu0
      %v1463 = vadd.f32 %v574, %v1462
      %v1464 = vpop.f32.mrf.mxu0
      %v1465 = vpop.f32.mrf.mxu0
      %v1466 = vadd.f32 %v574, %v1465
      %v1467 = vpop.f32.mrf.mxu0
      %1468 = vmatprep.mubr.bf16.mxu0 0
      %1469 = vmatmul.mubr.bf16.gmra.mxu0 %v1028
      %v1470 = vpop.f32.mrf.mxu0
      %v1471 = vadd.f32 %v574, %v1470
      %v1472 = vpop.f32.mrf.mxu0
      %v1473 = vpop.f32.mrf.mxu0
      %v1474 = vadd.f32 %v574, %v1473
      %v1475 = vpop.f32.mrf.mxu0
      %1476 = vmatprep.mubr.bf16.mxu0 0
      %1477 = vmatmul.mubr.bf16.gmra.mxu0 %v1031
      %v1478 = vpop.f32.mrf.mxu0
      %v1479 = vadd.f32 %v574, %v1478
      %v1480 = vpop.f32.mrf.mxu0
      %v1481 = vpop.f32.mrf.mxu0
      %v1482 = vadd.f32 %v574, %v1481
      %v1483 = vpop.f32.mrf.mxu0
      %1484 = vmatprep.mubr.bf16.mxu0 0
      %1485 = vmatmul.mubr.bf16.gmra.mxu0 %v1034
      %v1486 = vpop.f32.mrf.mxu0
      %v1487 = vadd.f32 %v574, %v1486
      %v1488 = vpop.f32.mrf.mxu0
      %v1489 = vpop.f32.mrf.mxu0
      %v1490 = vadd.f32 %v574, %v1489
      %v1491 = vpop.f32.mrf.mxu0
      %1492 = vmatprep.mubr.bf16.mxu0 0
      %1493 = vmatmul.mubr.bf16.gmra.mxu0 %v1037
      %v1494 = vpop.f32.mrf.mxu0
      %v1495 = vadd.f32 %v574, %v1494
      %v1496 = vpop.f32.mrf.mxu0
      %v1497 = vpop.f32.mrf.mxu0
      %v1498 = vadd.f32 %v574, %v1497
      %v1499 = vpop.f32.mrf.mxu0
      %1500 = vmatprep.mubr.bf16.mxu0 0
      %1501 = vmatmul.mubr.bf16.gmra.mxu0 %v1040
      %v1502 = vpop.f32.mrf.mxu0
      %v1503 = vadd.f32 %v574, %v1502
      %v1504 = vpop.f32.mrf.mxu0
      %v1505 = vpop.f32.mrf.mxu0
      %v1506 = vadd.f32 %v574, %v1505
      %v1507 = vpop.f32.mrf.mxu0
      %1508 = vmatprep.mubr.bf16.mxu0 0
      %1509 = vmatmul.mubr.bf16.gmra.mxu0 %v1043
      %v1510 = vpop.f32.mrf.mxu0
      %v1511 = vadd.f32 %v574, %v1510
      %v1512 = vpop.f32.mrf.mxu0
      %v1513 = vpop.f32.mrf.mxu0
      %v1514 = vadd.f32 %v574, %v1513
      %v1515 = vpop.f32.mrf.mxu0
      %1516 = vmatprep.mubr.bf16.mxu0 0
      %1517 = vmatmul.mubr.bf16.gmra.mxu0 %v1046
      %v1518 = vpop.f32.mrf.mxu0
      %v1519 = vadd.f32 %v574, %v1518
      %v1520 = vpop.f32.mrf.mxu0
      %v1521 = vpop.f32.mrf.mxu0
      %v1522 = vadd.f32 %v574, %v1521
      %v1523 = vpop.f32.mrf.mxu0
      %1524 = vmatprep.mubr.bf16.mxu0 0
      %1525 = vmatmul.mubr.bf16.gmra.mxu0 %v1049
      %v1526 = vpop.f32.mrf.mxu0
      %v1527 = vadd.f32 %v574, %v1526
      %v1528 = vpop.f32.mrf.mxu0
      %v1529 = vpop.f32.mrf.mxu0
      %v1530 = vadd.f32 %v574, %v1529
      %v1531 = vpop.f32.mrf.mxu0
      %1532 = vmatprep.mubr.bf16.mxu0 0
      %1533 = vmatmul.mubr.bf16.gmra.mxu0 %v1052
      %v1534 = vpop.f32.mrf.mxu0
      %v1535 = vadd.f32 %v574, %v1534
      %v1536 = vpop.f32.mrf.mxu0
      %v1537 = vpop.f32.mrf.mxu0
      %v1538 = vadd.f32 %v574, %v1537
      %v1539 = vpop.f32.mrf.mxu0
      %1540 = vmatprep.mubr.bf16.mxu0 0
      %1541 = vmatmul.mubr.bf16.gmra.mxu0 %v1055
      %v1542 = vpop.f32.mrf.mxu0
      %v1543 = vadd.f32 %v574, %v1542
      %v1544 = vpop.f32.mrf.mxu0
      %v1545 = vpop.f32.mrf.mxu0
      %v1546 = vadd.f32 %v574, %v1545
      %v1547 = vpop.f32.mrf.mxu0
      %1548 = vmatprep.mubr.bf16.mxu0 0
      %1549 = vmatmul.mubr.bf16.gmra.mxu0 %v1058
      %v1550 = vpop.f32.mrf.mxu0
      %v1551 = vadd.f32 %v574, %v1550
      %v1552 = vpop.f32.mrf.mxu0
      %v1553 = vpop.f32.mrf.mxu0
      %v1554 = vadd.f32 %v574, %v1553
      %v1555 = vpop.f32.mrf.mxu0
      %1556 = vmatprep.mubr.bf16.mxu0 0
      %1557 = vmatmul.mubr.bf16.gmra.mxu0 %v1061
      %v1558 = vpop.f32.mrf.mxu0
      %v1559 = vadd.f32 %v574, %v1558
      %v1560 = vpop.f32.mrf.mxu0
      %v1561 = vpop.f32.mrf.mxu0
      %v1562 = vadd.f32 %v574, %v1561
      %v1563 = vpop.f32.mrf.mxu0
      %1564 = vmatprep.mubr.bf16.mxu0 0
      %1565 = vmatmul.mubr.bf16.gmra.mxu0 %v1064
      %v1566 = vpop.f32.mrf.mxu0
      %v1567 = vadd.f32 %v574, %v1566
      %v1568 = vpop.f32.mrf.mxu0
      %v1569 = vpop.f32.mrf.mxu0
      %v1570 = vadd.f32 %v574, %v1569
      %v1571 = vpop.f32.mrf.mxu0
      %1572 = vmatprep.mubr.bf16.mxu0 0
      %1573 = vmatmul.mubr.bf16.gmra.mxu0 %v1067
      %v1574 = vpop.f32.mrf.mxu0
      %v1575 = vadd.f32 %v574, %v1574
      %v1576 = vpop.f32.mrf.mxu0
      %v1577 = vpop.f32.mrf.mxu0
      %v1578 = vadd.f32 %v574, %v1577
      %v1579 = vpop.f32.mrf.mxu0
      %1580 = vmatprep.mubr.bf16.mxu0 0
      %1581 = vmatmul.mubr.bf16.gmra.mxu0 %v1070
      %v1582 = vpop.f32.mrf.mxu0
      %v1583 = vadd.f32 %v574, %v1582
      %v1584 = vpop.f32.mrf.mxu0
      %v1585 = vpop.f32.mrf.mxu0
      %v1586 = vadd.f32 %v574, %v1585
      %v1587 = vpop.f32.mrf.mxu0
      %1588 = vmatprep.mubr.bf16.mxu0 0
      %1589 = vmatmul.mubr.bf16.gmra.mxu0 %v1073
      %v1590 = vpop.f32.mrf.mxu0
      %v1591 = vadd.f32 %v574, %v1590
      %v1592 = vpop.f32.mrf.mxu0
      %v1593 = vpop.f32.mrf.mxu0
      %v1594 = vadd.f32 %v574, %v1593
      %v1595 = vpop.f32.mrf.mxu0
      %1596 = vmatprep.mubr.bf16.mxu0 0
      %1597 = vmatmul.mubr.bf16.gmra.mxu0 %v1076
      %v1598 = vpop.f32.mrf.mxu0
      %v1599 = vadd.f32 %v574, %v1598
      %v1600 = vpop.f32.mrf.mxu0
      %v1601 = vpop.f32.mrf.mxu0
      %v1602 = vadd.f32 %v574, %v1601
      %v1603 = vpop.f32.mrf.mxu0
      %1604 = vmatprep.mubr.bf16.mxu0 0
      %1605 = vmatmul.mubr.bf16.gmra.mxu0 %v1079
      %v1606 = vpop.f32.mrf.mxu0
      %v1607 = vadd.f32 %v574, %v1606
      %v1608 = vpop.f32.mrf.mxu0
      %v1609 = vpop.f32.mrf.mxu0
      %v1610 = vadd.f32 %v574, %v1609
      %v1611 = vpop.f32.mrf.mxu0
      %1612 = vmatprep.mubr.bf16.mxu0 0
      %1613 = vmatmul.mubr.bf16.gmra.mxu0 %v1082
      %v1614 = vpop.f32.mrf.mxu0
      %v1615 = vadd.f32 %v574, %v1614
      %v1616 = vpop.f32.mrf.mxu0
      %v1617 = vpop.f32.mrf.mxu0
      %v1618 = vadd.f32 %v574, %v1617
      %v1619 = vpop.f32.mrf.mxu0
      %1620 = vmatprep.mubr.bf16.mxu0 0
      %1621 = vmatmul.mubr.bf16.gmra.mxu0 %v1085
      %v1622 = vpop.f32.mrf.mxu0
      %v1623 = vadd.f32 %v574, %v1622
      %v1624 = vpop.f32.mrf.mxu0
      %v1625 = vpop.f32.mrf.mxu0
      %v1626 = vadd.f32 %v574, %v1625
      %v1627 = vpop.f32.mrf.mxu0
      %1628 = vmatprep.mubr.bf16.mxu0 0
      %1629 = vmatmul.mubr.bf16.gmra.mxu0 %v1088
      %v1630 = vpop.f32.mrf.mxu0
      %v1631 = vadd.f32 %v574, %v1630
      %v1632 = vpop.f32.mrf.mxu0
      %v1633 = vpop.f32.mrf.mxu0
      %v1634 = vadd.f32 %v574, %v1633
      %v1635 = vpop.f32.mrf.mxu0
      %1636 = vmatprep.mubr.bf16.mxu0 0
      %1637 = vmatmul.mubr.bf16.gmra.mxu0 %v1091
      %v1638 = vpop.f32.mrf.mxu0
      %v1639 = vadd.f32 %v574, %v1638
      %v1640 = vpop.f32.mrf.mxu0
      %v1641 = vpop.f32.mrf.mxu0
      %v1642 = vadd.f32 %v574, %v1641
      %v1643 = vpop.f32.mrf.mxu0
      %1644 = vdwg.mxu0
      %v1645 = vmax.f32 %v1135, 0.0
      %v1646 = vmax.f32 %v1138, 0.0
      %v1647 = vmax.f32 %v1143, 0.0
      %v1648 = vmax.f32 %v1146, 0.0
      %v1649 = vmax.f32 %v1151, 0.0
      %v1650 = vmax.f32 %v1154, 0.0
      %v1651 = vmax.f32 %v1159, 0.0
      %v1652 = vmax.f32 %v1162, 0.0
      %v1653 = vmax.f32 %v1167, 0.0
      %v1654 = vmax.f32 %v1170, 0.0
      %v1655 = vmax.f32 %v1175, 0.0
      %v1656 = vmax.f32 %v1178, 0.0
      %v1657 = vmax.f32 %v1183, 0.0
      %v1658 = vmax.f32 %v1186, 0.0
      %v1659 = vmax.f32 %v1191, 0.0
      %v1660 = vmax.f32 %v1194, 0.0
      %v1661 = vmax.f32 %v1199, 0.0
      %v1662 = vmax.f32 %v1202, 0.0
      %v1663 = vmax.f32 %v1207, 0.0
      %v1664 = vmax.f32 %v1210, 0.0
      %v1665 = vmax.f32 %v1215, 0.0
      %v1666 = vmax.f32 %v1218, 0.0
      %v1667 = vmax.f32 %v1223, 0.0
      %v1668 = vmax.f32 %v1226, 0.0
      %v1669 = vmax.f32 %v1231, 0.0
      %v1670 = vmax.f32 %v1234, 0.0
      %v1671 = vmax.f32 %v1239, 0.0
      %v1672 = vmax.f32 %v1242, 0.0
      %v1673 = vmax.f32 %v1247, 0.0
      %v1674 = vmax.f32 %v1250, 0.0
      %v1675 = vmax.f32 %v1255, 0.0
      %v1676 = vmax.f32 %v1258, 0.0
      %v1677 = vmax.f32 %v1263, 0.0
      %v1678 = vmax.f32 %v1266, 0.0
      %v1679 = vmax.f32 %v1271, 0.0
      %v1680 = vmax.f32 %v1274, 0.0
      %v1681 = vmax.f32 %v1279, 0.0
      %v1682 = vmax.f32 %v1282, 0.0
      %v1683 = vmax.f32 %v1287, 0.0
      %v1684 = vmax.f32 %v1290, 0.0
      %v1685 = vmax.f32 %v1295, 0.0
      %v1686 = vmax.f32 %v1298, 0.0
      %v1687 = vmax.f32 %v1303, 0.0
      %v1688 = vmax.f32 %v1306, 0.0
      %v1689 = vmax.f32 %v1311, 0.0
      %v1690 = vmax.f32 %v1314, 0.0
      %v1691 = vmax.f32 %v1319, 0.0
      %v1692 = vmax.f32 %v1322, 0.0
      %v1693 = vmax.f32 %v1327, 0.0
      %v1694 = vmax.f32 %v1330, 0.0
      %v1695 = vmax.f32 %v1335, 0.0
      %v1696 = vmax.f32 %v1338, 0.0
      %v1697 = vmax.f32 %v1343, 0.0
      %v1698 = vmax.f32 %v1346, 0.0
      %v1699 = vmax.f32 %v1351, 0.0
      %v1700 = vmax.f32 %v1354, 0.0
      %v1701 = vmax.f32 %v1359, 0.0
      %v1702 = vmax.f32 %v1362, 0.0
      %v1703 = vmax.f32 %v1367, 0.0
      %v1704 = vmax.f32 %v1370, 0.0
      %v1705 = vmax.f32 %v1375, 0.0
      %v1706 = vmax.f32 %v1378, 0.0
      %v1707 = vmax.f32 %v1383, 0.0
      %v1708 = vmax.f32 %v1386, 0.0
      %v1709 = vmax.f32 %v1391, 0.0
      %v1710 = vmax.f32 %v1394, 0.0
      %v1711 = vmax.f32 %v1399, 0.0
      %v1712 = vmax.f32 %v1402, 0.0
      %v1713 = vmax.f32 %v1407, 0.0
      %v1714 = vmax.f32 %v1410, 0.0
      %v1715 = vmax.f32 %v1415, 0.0
      %v1716 = vmax.f32 %v1418, 0.0
      %v1717 = vmax.f32 %v1423, 0.0
      %v1718 = vmax.f32 %v1426, 0.0
      %v1719 = vmax.f32 %v1431, 0.0
      %v1720 = vmax.f32 %v1434, 0.0
      %v1721 = vmax.f32 %v1439, 0.0
      %v1722 = vmax.f32 %v1442, 0.0
      %v1723 = vmax.f32 %v1447, 0.0
      %v1724 = vmax.f32 %v1450, 0.0
      %v1725 = vmax.f32 %v1455, 0.0
      %v1726 = vmax.f32 %v1458, 0.0
      %v1727 = vmax.f32 %v1463, 0.0
      %v1728 = vmax.f32 %v1466, 0.0
      %v1729 = vmax.f32 %v1471, 0.0
      %v1730 = vmax.f32 %v1474, 0.0
      %v1731 = vmax.f32 %v1479, 0.0
      %v1732 = vmax.f32 %v1482, 0.0
      %v1733 = vmax.f32 %v1487, 0.0
      %v1734 = vmax.f32 %v1490, 0.0
      %v1735 = vmax.f32 %v1495, 0.0
      %v1736 = vmax.f32 %v1498, 0.0
      %v1737 = vmax.f32 %v1503, 0.0
      %v1738 = vmax.f32 %v1506, 0.0
      %v1739 = vmax.f32 %v1511, 0.0
      %v1740 = vmax.f32 %v1514, 0.0
      %v1741 = vmax.f32 %v1519, 0.0
      %v1742 = vmax.f32 %v1522, 0.0
      %v1743 = vmax.f32 %v1527, 0.0
      %v1744 = vmax.f32 %v1530, 0.0
      %v1745 = vmax.f32 %v1535, 0.0
      %v1746 = vmax.f32 %v1538, 0.0
      %v1747 = vmax.f32 %v1543, 0.0
      %v1748 = vmax.f32 %v1546, 0.0
      %v1749 = vmax.f32 %v1551, 0.0
      %v1750 = vmax.f32 %v1554, 0.0
      %v1751 = vmax.f32 %v1559, 0.0
      %v1752 = vmax.f32 %v1562, 0.0
      %v1753 = vmax.f32 %v1567, 0.0
      %v1754 = vmax.f32 %v1570, 0.0
      %v1755 = vmax.f32 %v1575, 0.0
      %v1756 = vmax.f32 %v1578, 0.0
      %v1757 = vmax.f32 %v1583, 0.0
      %v1758 = vmax.f32 %v1586, 0.0
      %v1759 = vmax.f32 %v1591, 0.0
      %v1760 = vmax.f32 %v1594, 0.0
      %v1761 = vmax.f32 %v1599, 0.0
      %v1762 = vmax.f32 %v1602, 0.0
      %v1763 = vmax.f32 %v1607, 0.0
      %v1764 = vmax.f32 %v1610, 0.0
      %v1765 = vmax.f32 %v1615, 0.0
      %v1766 = vmax.f32 %v1618, 0.0
      %v1767 = vmax.f32 %v1623, 0.0
      %v1768 = vmax.f32 %v1626, 0.0
      %v1769 = vmax.f32 %v1631, 0.0
      %v1770 = vmax.f32 %v1634, 0.0
      %v1771 = vmax.f32 %v1639, 0.0
      %v1772 = vmax.f32 %v1642, 0.0
      %v1773 = vld [vmem:[%s2 + $0x1] sm:$0x1]
      %v1774 = vlaneseq
      %v1775 = vshrl.u32 %v1774, 7
      %v1776 = vsub.s32 0, %v1775
      %v1777 = vrot.slane %v1773, %v1776
      %v1778 = vmul.f32 %v1645, %v1777
      %v1779 = vmul.f32 %v1646, %v1777
      %v1780 = vmul.f32 %v1647, %v1777
      %v1781 = vmul.f32 %v1648, %v1777
      %v1782 = vmul.f32 %v1649, %v1777
      %v1783 = vmul.f32 %v1650, %v1777
      %v1784 = vmul.f32 %v1651, %v1777
      %v1785 = vmul.f32 %v1652, %v1777
      %v1786 = vmul.f32 %v1653, %v1777
      %v1787 = vmul.f32 %v1654, %v1777
      %v1788 = vmul.f32 %v1655, %v1777
      %v1789 = vmul.f32 %v1656, %v1777
      %v1790 = vmul.f32 %v1657, %v1777
      %v1791 = vmul.f32 %v1658, %v1777
      %v1792 = vmul.f32 %v1659, %v1777
      %v1793 = vmul.f32 %v1660, %v1777
      %v1794 = vmul.f32 %v1661, %v1777
      %v1795 = vmul.f32 %v1662, %v1777
      %v1796 = vmul.f32 %v1663, %v1777
      %v1797 = vmul.f32 %v1664, %v1777
      %v1798 = vmul.f32 %v1665, %v1777
      %v1799 = vmul.f32 %v1666, %v1777
      %v1800 = vmul.f32 %v1667, %v1777
      %v1801 = vmul.f32 %v1668, %v1777
      %v1802 = vmul.f32 %v1669, %v1777
      %v1803 = vmul.f32 %v1670, %v1777
      %v1804 = vmul.f32 %v1671, %v1777
      %v1805 = vmul.f32 %v1672, %v1777
      %v1806 = vmul.f32 %v1673, %v1777
      %v1807 = vmul.f32 %v1674, %v1777
      %v1808 = vmul.f32 %v1675, %v1777
      %v1809 = vmul.f32 %v1676, %v1777
      %v1810 = vmul.f32 %v1677, %v1777
      %v1811 = vmul.f32 %v1678, %v1777
      %v1812 = vmul.f32 %v1679, %v1777
      %v1813 = vmul.f32 %v1680, %v1777
      %v1814 = vmul.f32 %v1681, %v1777
      %v1815 = vmul.f32 %v1682, %v1777
      %v1816 = vmul.f32 %v1683, %v1777
      %v1817 = vmul.f32 %v1684, %v1777
      %v1818 = vmul.f32 %v1685, %v1777
      %v1819 = vmul.f32 %v1686, %v1777
      %v1820 = vmul.f32 %v1687, %v1777
      %v1821 = vmul.f32 %v1688, %v1777
      %v1822 = vmul.f32 %v1689, %v1777
      %v1823 = vmul.f32 %v1690, %v1777
      %v1824 = vmul.f32 %v1691, %v1777
      %v1825 = vmul.f32 %v1692, %v1777
      %v1826 = vmul.f32 %v1693, %v1777
      %v1827 = vmul.f32 %v1694, %v1777
      %v1828 = vmul.f32 %v1695, %v1777
      %v1829 = vmul.f32 %v1696, %v1777
      %v1830 = vmul.f32 %v1697, %v1777
      %v1831 = vmul.f32 %v1698, %v1777
      %v1832 = vmul.f32 %v1699, %v1777
      %v1833 = vmul.f32 %v1700, %v1777
      %v1834 = vmul.f32 %v1701, %v1777
      %v1835 = vmul.f32 %v1702, %v1777
      %v1836 = vmul.f32 %v1703, %v1777
      %v1837 = vmul.f32 %v1704, %v1777
      %v1838 = vmul.f32 %v1705, %v1777
      %v1839 = vmul.f32 %v1706, %v1777
      %v1840 = vmul.f32 %v1707, %v1777
      %v1841 = vmul.f32 %v1708, %v1777
      %v1842 = vmul.f32 %v1709, %v1777
      %v1843 = vmul.f32 %v1710, %v1777
      %v1844 = vmul.f32 %v1711, %v1777
      %v1845 = vmul.f32 %v1712, %v1777
      %v1846 = vmul.f32 %v1713, %v1777
      %v1847 = vmul.f32 %v1714, %v1777
      %v1848 = vmul.f32 %v1715, %v1777
      %v1849 = vmul.f32 %v1716, %v1777
      %v1850 = vmul.f32 %v1717, %v1777
      %v1851 = vmul.f32 %v1718, %v1777
      %v1852 = vmul.f32 %v1719, %v1777
      %v1853 = vmul.f32 %v1720, %v1777
      %v1854 = vmul.f32 %v1721, %v1777
      %v1855 = vmul.f32 %v1722, %v1777
      %v1856 = vmul.f32 %v1723, %v1777
      %v1857 = vmul.f32 %v1724, %v1777
      %v1858 = vmul.f32 %v1725, %v1777
      %v1859 = vmul.f32 %v1726, %v1777
      %v1860 = vmul.f32 %v1727, %v1777
      %v1861 = vmul.f32 %v1728, %v1777
      %v1862 = vmul.f32 %v1729, %v1777
      %v1863 = vmul.f32 %v1730, %v1777
      %v1864 = vmul.f32 %v1731, %v1777
      %v1865 = vmul.f32 %v1732, %v1777
      %v1866 = vmul.f32 %v1733, %v1777
      %v1867 = vmul.f32 %v1734, %v1777
      %v1868 = vmul.f32 %v1735, %v1777
      %v1869 = vmul.f32 %v1736, %v1777
      %v1870 = vmul.f32 %v1737, %v1777
      %v1871 = vmul.f32 %v1738, %v1777
      %v1872 = vmul.f32 %v1739, %v1777
      %v1873 = vmul.f32 %v1740, %v1777
      %v1874 = vmul.f32 %v1741, %v1777
      %v1875 = vmul.f32 %v1742, %v1777
      %v1876 = vmul.f32 %v1743, %v1777
      %v1877 = vmul.f32 %v1744, %v1777
      %v1878 = vmul.f32 %v1745, %v1777
      %v1879 = vmul.f32 %v1746, %v1777
      %v1880 = vmul.f32 %v1747, %v1777
      %v1881 = vmul.f32 %v1748, %v1777
      %v1882 = vmul.f32 %v1749, %v1777
      %v1883 = vmul.f32 %v1750, %v1777
      %v1884 = vmul.f32 %v1751, %v1777
      %v1885 = vmul.f32 %v1752, %v1777
      %v1886 = vmul.f32 %v1753, %v1777
      %v1887 = vmul.f32 %v1754, %v1777
      %v1888 = vmul.f32 %v1755, %v1777
      %v1889 = vmul.f32 %v1756, %v1777
      %v1890 = vmul.f32 %v1757, %v1777
      %v1891 = vmul.f32 %v1758, %v1777
      %v1892 = vmul.f32 %v1759, %v1777
      %v1893 = vmul.f32 %v1760, %v1777
      %v1894 = vmul.f32 %v1761, %v1777
      %v1895 = vmul.f32 %v1762, %v1777
      %v1896 = vmul.f32 %v1763, %v1777
      %v1897 = vmul.f32 %v1764, %v1777
      %v1898 = vmul.f32 %v1765, %v1777
      %v1899 = vmul.f32 %v1766, %v1777
      %v1900 = vmul.f32 %v1767, %v1777
      %v1901 = vmul.f32 %v1768, %v1777
      %v1902 = vmul.f32 %v1769, %v1777
      %v1903 = vmul.f32 %v1770, %v1777
      %v1904 = vmul.f32 %v1771, %v1777
      %v1905 = vmul.f32 %v1772, %v1777
      %v1906 = vld [vmem:[%s2 + $0x2] sm:$0x1]
      %v1907 = vlaneseq
      %v1908 = vshrl.u32 %v1907, 7
      %v1909 = vsub.s32 0, %v1908
      %v1910 = vrot.slane %v1906, %v1909
      %v1911 = vadd.f32 %v1778, %v1910
      %v1912 = vadd.f32 %v1779, %v1910
      %v1913 = vadd.f32 %v1780, %v1910
      %v1914 = vadd.f32 %v1781, %v1910
      %v1915 = vadd.f32 %v1782, %v1910
      %v1916 = vadd.f32 %v1783, %v1910
      %v1917 = vadd.f32 %v1784, %v1910
      %v1918 = vadd.f32 %v1785, %v1910
      %v1919 = vadd.f32 %v1786, %v1910
      %v1920 = vadd.f32 %v1787, %v1910
      %v1921 = vadd.f32 %v1788, %v1910
      %v1922 = vadd.f32 %v1789, %v1910
      %v1923 = vadd.f32 %v1790, %v1910
      %v1924 = vadd.f32 %v1791, %v1910
      %v1925 = vadd.f32 %v1792, %v1910
      %v1926 = vadd.f32 %v1793, %v1910
      %v1927 = vadd.f32 %v1794, %v1910
      %v1928 = vadd.f32 %v1795, %v1910
      %v1929 = vadd.f32 %v1796, %v1910
      %v1930 = vadd.f32 %v1797, %v1910
      %v1931 = vadd.f32 %v1798, %v1910
      %v1932 = vadd.f32 %v1799, %v1910
      %v1933 = vadd.f32 %v1800, %v1910
      %v1934 = vadd.f32 %v1801, %v1910
      %v1935 = vadd.f32 %v1802, %v1910
      %v1936 = vadd.f32 %v1803, %v1910
      %v1937 = vadd.f32 %v1804, %v1910
      %v1938 = vadd.f32 %v1805, %v1910
      %v1939 = vadd.f32 %v1806, %v1910
      %v1940 = vadd.f32 %v1807, %v1910
      %v1941 = vadd.f32 %v1808, %v1910
      %v1942 = vadd.f32 %v1809, %v1910
      %v1943 = vadd.f32 %v1810, %v1910
      %v1944 = vadd.f32 %v1811, %v1910
      %v1945 = vadd.f32 %v1812, %v1910
      %v1946 = vadd.f32 %v1813, %v1910
      %v1947 = vadd.f32 %v1814, %v1910
      %v1948 = vadd.f32 %v1815, %v1910
      %v1949 = vadd.f32 %v1816, %v1910
      %v1950 = vadd.f32 %v1817, %v1910
      %v1951 = vadd.f32 %v1818, %v1910
      %v1952 = vadd.f32 %v1819, %v1910
      %v1953 = vadd.f32 %v1820, %v1910
      %v1954 = vadd.f32 %v1821, %v1910
      %v1955 = vadd.f32 %v1822, %v1910
      %v1956 = vadd.f32 %v1823, %v1910
      %v1957 = vadd.f32 %v1824, %v1910
      %v1958 = vadd.f32 %v1825, %v1910
      %v1959 = vadd.f32 %v1826, %v1910
      %v1960 = vadd.f32 %v1827, %v1910
      %v1961 = vadd.f32 %v1828, %v1910
      %v1962 = vadd.f32 %v1829, %v1910
      %v1963 = vadd.f32 %v1830, %v1910
      %v1964 = vadd.f32 %v1831, %v1910
      %v1965 = vadd.f32 %v1832, %v1910
      %v1966 = vadd.f32 %v1833, %v1910
      %v1967 = vadd.f32 %v1834, %v1910
      %v1968 = vadd.f32 %v1835, %v1910
      %v1969 = vadd.f32 %v1836, %v1910
      %v1970 = vadd.f32 %v1837, %v1910
      %v1971 = vadd.f32 %v1838, %v1910
      %v1972 = vadd.f32 %v1839, %v1910
      %v1973 = vadd.f32 %v1840, %v1910
      %v1974 = vadd.f32 %v1841, %v1910
      %v1975 = vadd.f32 %v1842, %v1910
      %v1976 = vadd.f32 %v1843, %v1910
      %v1977 = vadd.f32 %v1844, %v1910
      %v1978 = vadd.f32 %v1845, %v1910
      %v1979 = vadd.f32 %v1846, %v1910
      %v1980 = vadd.f32 %v1847, %v1910
      %v1981 = vadd.f32 %v1848, %v1910
      %v1982 = vadd.f32 %v1849, %v1910
      %v1983 = vadd.f32 %v1850, %v1910
      %v1984 = vadd.f32 %v1851, %v1910
      %v1985 = vadd.f32 %v1852, %v1910
      %v1986 = vadd.f32 %v1853, %v1910
      %v1987 = vadd.f32 %v1854, %v1910
      %v1988 = vadd.f32 %v1855, %v1910
      %v1989 = vadd.f32 %v1856, %v1910
      %v1990 = vadd.f32 %v1857, %v1910
      %v1991 = vadd.f32 %v1858, %v1910
      %v1992 = vadd.f32 %v1859, %v1910
      %v1993 = vadd.f32 %v1860, %v1910
      %v1994 = vadd.f32 %v1861, %v1910
      %v1995 = vadd.f32 %v1862, %v1910
      %v1996 = vadd.f32 %v1863, %v1910
      %v1997 = vadd.f32 %v1864, %v1910
      %v1998 = vadd.f32 %v1865, %v1910
      %v1999 = vadd.f32 %v1866, %v1910
      %v2000 = vadd.f32 %v1867, %v1910
      %v2001 = vadd.f32 %v1868, %v1910
      %v2002 = vadd.f32 %v1869, %v1910
      %v2003 = vadd.f32 %v1870, %v1910
      %v2004 = vadd.f32 %v1871, %v1910
      %v2005 = vadd.f32 %v1872, %v1910
      %v2006 = vadd.f32 %v1873, %v1910
      %v2007 = vadd.f32 %v1874, %v1910
      %v2008 = vadd.f32 %v1875, %v1910
      %v2009 = vadd.f32 %v1876, %v1910
      %v2010 = vadd.f32 %v1877, %v1910
      %v2011 = vadd.f32 %v1878, %v1910
      %v2012 = vadd.f32 %v1879, %v1910
      %v2013 = vadd.f32 %v1880, %v1910
      %v2014 = vadd.f32 %v1881, %v1910
      %v2015 = vadd.f32 %v1882, %v1910
      %v2016 = vadd.f32 %v1883, %v1910
      %v2017 = vadd.f32 %v1884, %v1910
      %v2018 = vadd.f32 %v1885, %v1910
      %v2019 = vadd.f32 %v1886, %v1910
      %v2020 = vadd.f32 %v1887, %v1910
      %v2021 = vadd.f32 %v1888, %v1910
      %v2022 = vadd.f32 %v1889, %v1910
      %v2023 = vadd.f32 %v1890, %v1910
      %v2024 = vadd.f32 %v1891, %v1910
      %v2025 = vadd.f32 %v1892, %v1910
      %v2026 = vadd.f32 %v1893, %v1910
      %v2027 = vadd.f32 %v1894, %v1910
      %v2028 = vadd.f32 %v1895, %v1910
      %v2029 = vadd.f32 %v1896, %v1910
      %v2030 = vadd.f32 %v1897, %v1910
      %v2031 = vadd.f32 %v1898, %v1910
      %v2032 = vadd.f32 %v1899, %v1910
      %v2033 = vadd.f32 %v1900, %v1910
      %v2034 = vadd.f32 %v1901, %v1910
      %v2035 = vadd.f32 %v1902, %v1910
      %v2036 = vadd.f32 %v1903, %v1910
      %v2037 = vadd.f32 %v1904, %v1910
      %v2038 = vadd.f32 %v1905, %v1910
      %vm2039 = vcmask 261120
      %2040 = vst.msk [vmem:[#allocation2] sm:$0xff] %vm2039, %v1911
      %2041 = vst.msk [vmem:[#allocation2 + $0x8] sm:$0xff] %vm2039, %v1912
      %2042 = vst.msk [vmem:[#allocation2 + $0x10] sm:$0xff] %vm2039, %v1913
      %2043 = vst.msk [vmem:[#allocation2 + $0x18] sm:$0xff] %vm2039, %v1914
      %2044 = vst.msk [vmem:[#allocation2 + $0x20] sm:$0xff] %vm2039, %v1915
      %2045 = vst.msk [vmem:[#allocation2 + $0x28] sm:$0xff] %vm2039, %v1916
      %2046 = vst.msk [vmem:[#allocation2 + $0x30] sm:$0xff] %vm2039, %v1917
      %2047 = vst.msk [vmem:[#allocation2 + $0x38] sm:$0xff] %vm2039, %v1918
      %2048 = vst.msk [vmem:[#allocation2 + $0x40] sm:$0xff] %vm2039, %v1919
      %2049 = vst.msk [vmem:[#allocation2 + $0x48] sm:$0xff] %vm2039, %v1920
      %2050 = vst.msk [vmem:[#allocation2 + $0x50] sm:$0xff] %vm2039, %v1921
      %2051 = vst.msk [vmem:[#allocation2 + $0x58] sm:$0xff] %vm2039, %v1922
      %2052 = vst.msk [vmem:[#allocation2 + $0x60] sm:$0xff] %vm2039, %v1923
      %2053 = vst.msk [vmem:[#allocation2 + $0x68] sm:$0xff] %vm2039, %v1924
      %2054 = vst.msk [vmem:[#allocation2 + $0x70] sm:$0xff] %vm2039, %v1925
      %2055 = vst.msk [vmem:[#allocation2 + $0x78] sm:$0xff] %vm2039, %v1926
      %2056 = vst.msk [vmem:[#allocation2 + $0x80] sm:$0xff] %vm2039, %v1927
      %2057 = vst.msk [vmem:[#allocation2 + $0x88] sm:$0xff] %vm2039, %v1928
      %2058 = vst.msk [vmem:[#allocation2 + $0x90] sm:$0xff] %vm2039, %v1929
      %2059 = vst.msk [vmem:[#allocation2 + $0x98] sm:$0xff] %vm2039, %v1930
      %2060 = vst.msk [vmem:[#allocation2 + $0xa0] sm:$0xff] %vm2039, %v1931
      %2061 = vst.msk [vmem:[#allocation2 + $0xa8] sm:$0xff] %vm2039, %v1932
      %2062 = vst.msk [vmem:[#allocation2 + $0xb0] sm:$0xff] %vm2039, %v1933
      %2063 = vst.msk [vmem:[#allocation2 + $0xb8] sm:$0xff] %vm2039, %v1934
      %2064 = vst.msk [vmem:[#allocation2 + $0xc0] sm:$0xff] %vm2039, %v1935
      %2065 = vst.msk [vmem:[#allocation2 + $0xc8] sm:$0xff] %vm2039, %v1936
      %2066 = vst.msk [vmem:[#allocation2 + $0xd0] sm:$0xff] %vm2039, %v1937
      %2067 = vst.msk [vmem:[#allocation2 + $0xd8] sm:$0xff] %vm2039, %v1938
      %2068 = vst.msk [vmem:[#allocation2 + $0xe0] sm:$0xff] %vm2039, %v1939
      %2069 = vst.msk [vmem:[#allocation2 + $0xe8] sm:$0xff] %vm2039, %v1940
      %2070 = vst.msk [vmem:[#allocation2 + $0xf0] sm:$0xff] %vm2039, %v1941
      %2071 = vst.msk [vmem:[#allocation2 + $0xf8] sm:$0xff] %vm2039, %v1942
      %2072 = vst.msk [vmem:[#allocation2 + $0x100] sm:$0xff] %vm2039, %v1943
      %2073 = vst.msk [vmem:[#allocation2 + $0x108] sm:$0xff] %vm2039, %v1944
      %2074 = vst.msk [vmem:[#allocation2 + $0x110] sm:$0xff] %vm2039, %v1945
      %2075 = vst.msk [vmem:[#allocation2 + $0x118] sm:$0xff] %vm2039, %v1946
      %2076 = vst.msk [vmem:[#allocation2 + $0x120] sm:$0xff] %vm2039, %v1947
      %2077 = vst.msk [vmem:[#allocation2 + $0x128] sm:$0xff] %vm2039, %v1948
      %2078 = vst.msk [vmem:[#allocation2 + $0x130] sm:$0xff] %vm2039, %v1949
      %2079 = vst.msk [vmem:[#allocation2 + $0x138] sm:$0xff] %vm2039, %v1950
      %2080 = vst.msk [vmem:[#allocation2 + $0x140] sm:$0xff] %vm2039, %v1951
      %2081 = vst.msk [vmem:[#allocation2 + $0x148] sm:$0xff] %vm2039, %v1952
      %2082 = vst.msk [vmem:[#allocation2 + $0x150] sm:$0xff] %vm2039, %v1953
      %2083 = vst.msk [vmem:[#allocation2 + $0x158] sm:$0xff] %vm2039, %v1954
      %2084 = vst.msk [vmem:[#allocation2 + $0x160] sm:$0xff] %vm2039, %v1955
      %2085 = vst.msk [vmem:[#allocation2 + $0x168] sm:$0xff] %vm2039, %v1956
      %2086 = vst.msk [vmem:[#allocation2 + $0x170] sm:$0xff] %vm2039, %v1957
      %2087 = vst.msk [vmem:[#allocation2 + $0x178] sm:$0xff] %vm2039, %v1958
      %2088 = vst.msk [vmem:[#allocation2 + $0x180] sm:$0xff] %vm2039, %v1959
      %2089 = vst.msk [vmem:[#allocation2 + $0x188] sm:$0xff] %vm2039, %v1960
      %2090 = vst.msk [vmem:[#allocation2 + $0x190] sm:$0xff] %vm2039, %v1961
      %2091 = vst.msk [vmem:[#allocation2 + $0x198] sm:$0xff] %vm2039, %v1962
      %2092 = vst.msk [vmem:[#allocation2 + $0x1a0] sm:$0xff] %vm2039, %v1963
      %2093 = vst.msk [vmem:[#allocation2 + $0x1a8] sm:$0xff] %vm2039, %v1964
      %2094 = vst.msk [vmem:[#allocation2 + $0x1b0] sm:$0xff] %vm2039, %v1965
      %2095 = vst.msk [vmem:[#allocation2 + $0x1b8] sm:$0xff] %vm2039, %v1966
      %2096 = vst.msk [vmem:[#allocation2 + $0x1c0] sm:$0xff] %vm2039, %v1967
      %2097 = vst.msk [vmem:[#allocation2 + $0x1c8] sm:$0xff] %vm2039, %v1968
      %2098 = vst.msk [vmem:[#allocation2 + $0x1d0] sm:$0xff] %vm2039, %v1969
      %2099 = vst.msk [vmem:[#allocation2 + $0x1d8] sm:$0xff] %vm2039, %v1970
      %2100 = vst.msk [vmem:[#allocation2 + $0x1e0] sm:$0xff] %vm2039, %v1971
      %2101 = vst.msk [vmem:[#allocation2 + $0x1e8] sm:$0xff] %vm2039, %v1972
      %2102 = vst.msk [vmem:[#allocation2 + $0x1f0] sm:$0xff] %vm2039, %v1973
      %2103 = vst.msk [vmem:[#allocation2 + $0x1f8] sm:$0xff] %vm2039, %v1974
      %2104 = vst.msk [vmem:[#allocation2 + $0x200] sm:$0xff] %vm2039, %v1975
      %2105 = vst.msk [vmem:[#allocation2 + $0x208] sm:$0xff] %vm2039, %v1976
      %2106 = vst.msk [vmem:[#allocation2 + $0x210] sm:$0xff] %vm2039, %v1977
      %2107 = vst.msk [vmem:[#allocation2 + $0x218] sm:$0xff] %vm2039, %v1978
      %2108 = vst.msk [vmem:[#allocation2 + $0x220] sm:$0xff] %vm2039, %v1979
      %2109 = vst.msk [vmem:[#allocation2 + $0x228] sm:$0xff] %vm2039, %v1980
      %2110 = vst.msk [vmem:[#allocation2 + $0x230] sm:$0xff] %vm2039, %v1981
      %2111 = vst.msk [vmem:[#allocation2 + $0x238] sm:$0xff] %vm2039, %v1982
      %2112 = vst.msk [vmem:[#allocation2 + $0x240] sm:$0xff] %vm2039, %v1983
      %2113 = vst.msk [vmem:[#allocation2 + $0x248] sm:$0xff] %vm2039, %v1984
      %2114 = vst.msk [vmem:[#allocation2 + $0x250] sm:$0xff] %vm2039, %v1985
      %2115 = vst.msk [vmem:[#allocation2 + $0x258] sm:$0xff] %vm2039, %v1986
      %2116 = vst.msk [vmem:[#allocation2 + $0x260] sm:$0xff] %vm2039, %v1987
      %2117 = vst.msk [vmem:[#allocation2 + $0x268] sm:$0xff] %vm2039, %v1988
      %2118 = vst.msk [vmem:[#allocation2 + $0x270] sm:$0xff] %vm2039, %v1989
      %2119 = vst.msk [vmem:[#allocation2 + $0x278] sm:$0xff] %vm2039, %v1990
      %2120 = vst.msk [vmem:[#allocation2 + $0x280] sm:$0xff] %vm2039, %v1991
      %2121 = vst.msk [vmem:[#allocation2 + $0x288] sm:$0xff] %vm2039, %v1992
      %2122 = vst.msk [vmem:[#allocation2 + $0x290] sm:$0xff] %vm2039, %v1993
      %2123 = vst.msk [vmem:[#allocation2 + $0x298] sm:$0xff] %vm2039, %v1994
      %2124 = vst.msk [vmem:[#allocation2 + $0x2a0] sm:$0xff] %vm2039, %v1995
      %2125 = vst.msk [vmem:[#allocation2 + $0x2a8] sm:$0xff] %vm2039, %v1996
      %2126 = vst.msk [vmem:[#allocation2 + $0x2b0] sm:$0xff] %vm2039, %v1997
      %2127 = vst.msk [vmem:[#allocation2 + $0x2b8] sm:$0xff] %vm2039, %v1998
      %2128 = vst.msk [vmem:[#allocation2 + $0x2c0] sm:$0xff] %vm2039, %v1999
      %2129 = vst.msk [vmem:[#allocation2 + $0x2c8] sm:$0xff] %vm2039, %v2000
      %2130 = vst.msk [vmem:[#allocation2 + $0x2d0] sm:$0xff] %vm2039, %v2001
      %2131 = vst.msk [vmem:[#allocation2 + $0x2d8] sm:$0xff] %vm2039, %v2002
      %2132 = vst.msk [vmem:[#allocation2 + $0x2e0] sm:$0xff] %vm2039, %v2003
      %2133 = vst.msk [vmem:[#allocation2 + $0x2e8] sm:$0xff] %vm2039, %v2004
      %2134 = vst.msk [vmem:[#allocation2 + $0x2f0] sm:$0xff] %vm2039, %v2005
      %2135 = vst.msk [vmem:[#allocation2 + $0x2f8] sm:$0xff] %vm2039, %v2006
      %2136 = vst.msk [vmem:[#allocation2 + $0x300] sm:$0xff] %vm2039, %v2007
      %2137 = vst.msk [vmem:[#allocation2 + $0x308] sm:$0xff] %vm2039, %v2008
      %2138 = vst.msk [vmem:[#allocation2 + $0x310] sm:$0xff] %vm2039, %v2009
      %2139 = vst.msk [vmem:[#allocation2 + $0x318] sm:$0xff] %vm2039, %v2010
      %2140 = vst.msk [vmem:[#allocation2 + $0x320] sm:$0xff] %vm2039, %v2011
      %2141 = vst.msk [vmem:[#allocation2 + $0x328] sm:$0xff] %vm2039, %v2012
      %2142 = vst.msk [vmem:[#allocation2 + $0x330] sm:$0xff] %vm2039, %v2013
      %2143 = vst.msk [vmem:[#allocation2 + $0x338] sm:$0xff] %vm2039, %v2014
      %2144 = vst.msk [vmem:[#allocation2 + $0x340] sm:$0xff] %vm2039, %v2015
      %2145 = vst.msk [vmem:[#allocation2 + $0x348] sm:$0xff] %vm2039, %v2016
      %2146 = vst.msk [vmem:[#allocation2 + $0x350] sm:$0xff] %vm2039, %v2017
      %2147 = vst.msk [vmem:[#allocation2 + $0x358] sm:$0xff] %vm2039, %v2018
      %2148 = vst.msk [vmem:[#allocation2 + $0x360] sm:$0xff] %vm2039, %v2019
      %2149 = vst.msk [vmem:[#allocation2 + $0x368] sm:$0xff] %vm2039, %v2020
      %2150 = vst.msk [vmem:[#allocation2 + $0x370] sm:$0xff] %vm2039, %v2021
      %2151 = vst.msk [vmem:[#allocation2 + $0x378] sm:$0xff] %vm2039, %v2022
      %2152 = vst.msk [vmem:[#allocation2 + $0x380] sm:$0xff] %vm2039, %v2023
      %2153 = vst.msk [vmem:[#allocation2 + $0x388] sm:$0xff] %vm2039, %v2024
      %2154 = vst.msk [vmem:[#allocation2 + $0x390] sm:$0xff] %vm2039, %v2025
      %2155 = vst.msk [vmem:[#allocation2 + $0x398] sm:$0xff] %vm2039, %v2026
      %2156 = vst.msk [vmem:[#allocation2 + $0x3a0] sm:$0xff] %vm2039, %v2027
      %2157 = vst.msk [vmem:[#allocation2 + $0x3a8] sm:$0xff] %vm2039, %v2028
      %2158 = vst.msk [vmem:[#allocation2 + $0x3b0] sm:$0xff] %vm2039, %v2029
      %2159 = vst.msk [vmem:[#allocation2 + $0x3b8] sm:$0xff] %vm2039, %v2030
      %2160 = vst.msk [vmem:[#allocation2 + $0x3c0] sm:$0xff] %vm2039, %v2031
      %2161 = vst.msk [vmem:[#allocation2 + $0x3c8] sm:$0xff] %vm2039, %v2032
      %2162 = vst.msk [vmem:[#allocation2 + $0x3d0] sm:$0xff] %vm2039, %v2033
      %2163 = vst.msk [vmem:[#allocation2 + $0x3d8] sm:$0xff] %vm2039, %v2034
      %2164 = vst.msk [vmem:[#allocation2 + $0x3e0] sm:$0xff] %vm2039, %v2035
      %2165 = vst.msk [vmem:[#allocation2 + $0x3e8] sm:$0xff] %vm2039, %v2036
      %2166 = vst.msk [vmem:[#allocation2 + $0x3f0] sm:$0xff] %vm2039, %v2037
      %2167 = vst.msk [vmem:[#allocation2 + $0x3f8] sm:$0xff] %vm2039, %v2038
      %2168 = vst.msk [vmem:[#allocation4] sm:$0xff] %vm2039, 0.0
      %2169 = vst.msk [vmem:[#allocation4 + $0x8] sm:$0xff] %vm2039, 0.0
      %2170 = vst.msk [vmem:[#allocation4 + $0x10] sm:$0xff] %vm2039, 0.0
      %2171 = vst.msk [vmem:[#allocation4 + $0x18] sm:$0xff] %vm2039, 0.0
      %2172 = vst.msk [vmem:[#allocation4 + $0x20] sm:$0xff] %vm2039, 0.0
      %2173 = vst.msk [vmem:[#allocation4 + $0x28] sm:$0xff] %vm2039, 0.0
      %2174 = vst.msk [vmem:[#allocation4 + $0x30] sm:$0xff] %vm2039, 0.0
      %2175 = vst.msk [vmem:[#allocation4 + $0x38] sm:$0xff] %vm2039, 0.0
      %2176 = vst.msk [vmem:[#allocation4 + $0x40] sm:$0xff] %vm2039, 0.0
      %2177 = vst.msk [vmem:[#allocation4 + $0x48] sm:$0xff] %vm2039, 0.0
      %2178 = vst.msk [vmem:[#allocation4 + $0x50] sm:$0xff] %vm2039, 0.0
      %2179 = vst.msk [vmem:[#allocation4 + $0x58] sm:$0xff] %vm2039, 0.0
      %2180 = vst.msk [vmem:[#allocation4 + $0x60] sm:$0xff] %vm2039, 0.0
      %2181 = vst.msk [vmem:[#allocation4 + $0x68] sm:$0xff] %vm2039, 0.0
      %2182 = vst.msk [vmem:[#allocation4 + $0x70] sm:$0xff] %vm2039, 0.0
      %2183 = vst.msk [vmem:[#allocation4 + $0x78] sm:$0xff] %vm2039, 0.0
      %2184 = vst.msk [vmem:[#allocation4 + $0x80] sm:$0xff] %vm2039, 0.0
      %2185 = vst.msk [vmem:[#allocation4 + $0x88] sm:$0xff] %vm2039, 0.0
      %2186 = vst.msk [vmem:[#allocation4 + $0x90] sm:$0xff] %vm2039, 0.0
      %2187 = vst.msk [vmem:[#allocation4 + $0x98] sm:$0xff] %vm2039, 0.0
      %2188 = vst.msk [vmem:[#allocation4 + $0xa0] sm:$0xff] %vm2039, 0.0
      %2189 = vst.msk [vmem:[#allocation4 + $0xa8] sm:$0xff] %vm2039, 0.0
      %2190 = vst.msk [vmem:[#allocation4 + $0xb0] sm:$0xff] %vm2039, 0.0
      %2191 = vst.msk [vmem:[#allocation4 + $0xb8] sm:$0xff] %vm2039, 0.0
      %2192 = vst.msk [vmem:[#allocation4 + $0xc0] sm:$0xff] %vm2039, 0.0
      %2193 = vst.msk [vmem:[#allocation4 + $0xc8] sm:$0xff] %vm2039, 0.0
      %2194 = vst.msk [vmem:[#allocation4 + $0xd0] sm:$0xff] %vm2039, 0.0
      %2195 = vst.msk [vmem:[#allocation4 + $0xd8] sm:$0xff] %vm2039, 0.0
      %2196 = vst.msk [vmem:[#allocation4 + $0xe0] sm:$0xff] %vm2039, 0.0
      %2197 = vst.msk [vmem:[#allocation4 + $0xe8] sm:$0xff] %vm2039, 0.0
      %2198 = vst.msk [vmem:[#allocation4 + $0xf0] sm:$0xff] %vm2039, 0.0
      %2199 = vst.msk [vmem:[#allocation4 + $0xf8] sm:$0xff] %vm2039, 0.0
      %2200 = vst.msk [vmem:[#allocation4 + $0x100] sm:$0xff] %vm2039, 0.0
      %2201 = vst.msk [vmem:[#allocation4 + $0x108] sm:$0xff] %vm2039, 0.0
      %2202 = vst.msk [vmem:[#allocation4 + $0x110] sm:$0xff] %vm2039, 0.0
      %2203 = vst.msk [vmem:[#allocation4 + $0x118] sm:$0xff] %vm2039, 0.0
      %2204 = vst.msk [vmem:[#allocation4 + $0x120] sm:$0xff] %vm2039, 0.0
      %2205 = vst.msk [vmem:[#allocation4 + $0x128] sm:$0xff] %vm2039, 0.0
      %v2206 = vld [vmem:[#allocation2] ss:$2 sm:$0xff]
      %s2207 = scalar_lea.vmem [#allocation2], 16
      %v2208 = vld [vmem:[%s2207] ss:$2 sm:$0xff]
      %s2209 = scalar_lea.vmem [#allocation2], 32
      %v2210 = vld [vmem:[%s2209] ss:$2 sm:$0xff]
      %s2211 = scalar_lea.vmem [#allocation2], 48
      %v2212 = vld [vmem:[%s2211] ss:$2 sm:$0xff]
      %s2213 = scalar_lea.vmem [#allocation2], 64
      %v2214 = vld [vmem:[%s2213] ss:$2 sm:$0xff]
      %s2215 = scalar_lea.vmem [#allocation2], 80
      %v2216 = vld [vmem:[%s2215] ss:$2 sm:$0xff]
      %s2217 = scalar_lea.vmem [#allocation2], 96
      %v2218 = vld [vmem:[%s2217] ss:$2 sm:$0xff]
      %s2219 = scalar_lea.vmem [#allocation2], 112
      %v2220 = vld [vmem:[%s2219] ss:$2 sm:$0xff]
      %s2221 = scalar_lea.vmem [#allocation2], 128
      %v2222 = vld [vmem:[%s2221] ss:$2 sm:$0xff]
      %s2223 = scalar_lea.vmem [#allocation2], 144
      %v2224 = vld [vmem:[%s2223] ss:$2 sm:$0xff]
      %s2225 = scalar_lea.vmem [#allocation2], 160
      %v2226 = vld [vmem:[%s2225] ss:$2 sm:$0xff]
      %s2227 = scalar_lea.vmem [#allocation2], 176
      %v2228 = vld [vmem:[%s2227] ss:$2 sm:$0xff]
      %s2229 = scalar_lea.vmem [#allocation2], 192
      %v2230 = vld [vmem:[%s2229] ss:$2 sm:$0xff]
      %s2231 = scalar_lea.vmem [#allocation2], 208
      %v2232 = vld [vmem:[%s2231] ss:$2 sm:$0xff]
      %s2233 = scalar_lea.vmem [#allocation2], 224
      %v2234 = vld [vmem:[%s2233] ss:$2 sm:$0xff]
      %s2235 = scalar_lea.vmem [#allocation2], 240
      %v2236 = vld [vmem:[%s2235] ss:$2 sm:$0xff]
      %s2237 = scalar_lea.vmem [#allocation2], 256
      %v2238 = vld [vmem:[%s2237] ss:$2 sm:$0xff]
      %s2239 = scalar_lea.vmem [#allocation2], 272
      %v2240 = vld [vmem:[%s2239] ss:$2 sm:$0xff]
      %s2241 = scalar_lea.vmem [#allocation2], 288
      %v2242 = vld [vmem:[%s2241] ss:$2 sm:$0xff]
      %s2243 = scalar_lea.vmem [#allocation2], 304
      %v2244 = vld [vmem:[%s2243] ss:$2 sm:$0xff]
      %s2245 = scalar_lea.vmem [#allocation2], 320
      %v2246 = vld [vmem:[%s2245] ss:$2 sm:$0xff]
      %s2247 = scalar_lea.vmem [#allocation2], 336
      %v2248 = vld [vmem:[%s2247] ss:$2 sm:$0xff]
      %s2249 = scalar_lea.vmem [#allocation2], 352
      %v2250 = vld [vmem:[%s2249] ss:$2 sm:$0xff]
      %s2251 = scalar_lea.vmem [#allocation2], 368
      %v2252 = vld [vmem:[%s2251] ss:$2 sm:$0xff]
      %s2253 = scalar_lea.vmem [#allocation2], 384
      %v2254 = vld [vmem:[%s2253] ss:$2 sm:$0xff]
      %s2255 = scalar_lea.vmem [#allocation2], 400
      %v2256 = vld [vmem:[%s2255] ss:$2 sm:$0xff]
      %s2257 = scalar_lea.vmem [#allocation2], 416
      %v2258 = vld [vmem:[%s2257] ss:$2 sm:$0xff]
      %s2259 = scalar_lea.vmem [#allocation2], 432
      %v2260 = vld [vmem:[%s2259] ss:$2 sm:$0xff]
      %s2261 = scalar_lea.vmem [#allocation2], 448
      %v2262 = vld [vmem:[%s2261] ss:$2 sm:$0xff]
      %s2263 = scalar_lea.vmem [#allocation2], 464
      %v2264 = vld [vmem:[%s2263] ss:$2 sm:$0xff]
      %s2265 = scalar_lea.vmem [#allocation2], 480
      %v2266 = vld [vmem:[%s2265] ss:$2 sm:$0xff]
      %s2267 = scalar_lea.vmem [#allocation2], 496
      %v2268 = vld [vmem:[%s2267] ss:$2 sm:$0xff]
      %s2269 = scalar_lea.vmem [#allocation2], 512
      %v2270 = vld [vmem:[%s2269] ss:$2 sm:$0xff]
      %s2271 = scalar_lea.vmem [#allocation2], 528
      %v2272 = vld [vmem:[%s2271] ss:$2 sm:$0xff]
      %s2273 = scalar_lea.vmem [#allocation2], 544
      %v2274 = vld [vmem:[%s2273] ss:$2 sm:$0xff]
      %s2275 = scalar_lea.vmem [#allocation2], 560
      %v2276 = vld [vmem:[%s2275] ss:$2 sm:$0xff]
      %s2277 = scalar_lea.vmem [#allocation2], 576
      %v2278 = vld [vmem:[%s2277] ss:$2 sm:$0xff]
      %s2279 = scalar_lea.vmem [#allocation2], 592
      %v2280 = vld [vmem:[%s2279] ss:$2 sm:$0xff]
      %s2281 = scalar_lea.vmem [#allocation2], 608
      %v2282 = vld [vmem:[%s2281] ss:$2 sm:$0xff]
      %s2283 = scalar_lea.vmem [#allocation2], 624
      %v2284 = vld [vmem:[%s2283] ss:$2 sm:$0xff]
      %s2285 = scalar_lea.vmem [#allocation2], 640
      %v2286 = vld [vmem:[%s2285] ss:$2 sm:$0xff]
      %s2287 = scalar_lea.vmem [#allocation2], 656
      %v2288 = vld [vmem:[%s2287] ss:$2 sm:$0xff]
      %s2289 = scalar_lea.vmem [#allocation2], 672
      %v2290 = vld [vmem:[%s2289] ss:$2 sm:$0xff]
      %s2291 = scalar_lea.vmem [#allocation2], 688
      %v2292 = vld [vmem:[%s2291] ss:$2 sm:$0xff]
      %s2293 = scalar_lea.vmem [#allocation2], 704
      %v2294 = vld [vmem:[%s2293] ss:$2 sm:$0xff]
      %s2295 = scalar_lea.vmem [#allocation2], 720
      %v2296 = vld [vmem:[%s2295] ss:$2 sm:$0xff]
      %s2297 = scalar_lea.vmem [#allocation2], 736
      %v2298 = vld [vmem:[%s2297] ss:$2 sm:$0xff]
      %s2299 = scalar_lea.vmem [#allocation2], 752
      %v2300 = vld [vmem:[%s2299] ss:$2 sm:$0xff]
      %s2301 = scalar_lea.vmem [#allocation2], 768
      %v2302 = vld [vmem:[%s2301] ss:$2 sm:$0xff]
      %s2303 = scalar_lea.vmem [#allocation2], 784
      %v2304 = vld [vmem:[%s2303] ss:$2 sm:$0xff]
      %s2305 = scalar_lea.vmem [#allocation2], 800
      %v2306 = vld [vmem:[%s2305] ss:$2 sm:$0xff]
      %s2307 = scalar_lea.vmem [#allocation2], 816
      %v2308 = vld [vmem:[%s2307] ss:$2 sm:$0xff]
      %s2309 = scalar_lea.vmem [#allocation2], 832
      %v2310 = vld [vmem:[%s2309] ss:$2 sm:$0xff]
      %s2311 = scalar_lea.vmem [#allocation2], 848
      %v2312 = vld [vmem:[%s2311] ss:$2 sm:$0xff]
      %s2313 = scalar_lea.vmem [#allocation2], 864
      %v2314 = vld [vmem:[%s2313] ss:$2 sm:$0xff]
      %s2315 = scalar_lea.vmem [#allocation2], 880
      %v2316 = vld [vmem:[%s2315] ss:$2 sm:$0xff]
      %s2317 = scalar_lea.vmem [#allocation2], 896
      %v2318 = vld [vmem:[%s2317] ss:$2 sm:$0xff]
      %s2319 = scalar_lea.vmem [#allocation2], 912
      %v2320 = vld [vmem:[%s2319] ss:$2 sm:$0xff]
      %s2321 = scalar_lea.vmem [#allocation2], 928
      %v2322 = vld [vmem:[%s2321] ss:$2 sm:$0xff]
      %s2323 = scalar_lea.vmem [#allocation2], 944
      %v2324 = vld [vmem:[%s2323] ss:$2 sm:$0xff]
      %s2325 = scalar_lea.vmem [#allocation2], 960
      %v2326 = vld [vmem:[%s2325] ss:$2 sm:$0xff]
      %s2327 = scalar_lea.vmem [#allocation2], 976
      %v2328 = vld [vmem:[%s2327] ss:$2 sm:$0xff]
      %s2329 = scalar_lea.vmem [#allocation2], 992
      %v2330 = vld [vmem:[%s2329] ss:$2 sm:$0xff]
      %s2331 = scalar_lea.vmem [#allocation2], 1008
      %v2332 = vld [vmem:[%s2331] ss:$2 sm:$0xff]
      %s2333 = scalar_lea.vmem [#allocation2], 1
      %v2334 = vld [vmem:[%s2333] ss:$2 sm:$0xff]
      %s2335 = scalar_lea.vmem [#allocation2], 17
      %v2336 = vld [vmem:[%s2335] ss:$2 sm:$0xff]
      %s2337 = scalar_lea.vmem [#allocation2], 33
      %v2338 = vld [vmem:[%s2337] ss:$2 sm:$0xff]
      %s2339 = scalar_lea.vmem [#allocation2], 49
      %v2340 = vld [vmem:[%s2339] ss:$2 sm:$0xff]
      %s2341 = scalar_lea.vmem [#allocation2], 65
      %v2342 = vld [vmem:[%s2341] ss:$2 sm:$0xff]
      %s2343 = scalar_lea.vmem [#allocation2], 81
      %v2344 = vld [vmem:[%s2343] ss:$2 sm:$0xff]
      %s2345 = scalar_lea.vmem [#allocation2], 97
      %v2346 = vld [vmem:[%s2345] ss:$2 sm:$0xff]
      %s2347 = scalar_lea.vmem [#allocation2], 113
      %v2348 = vld [vmem:[%s2347] ss:$2 sm:$0xff]
      %s2349 = scalar_lea.vmem [#allocation2], 129
      %v2350 = vld [vmem:[%s2349] ss:$2 sm:$0xff]
      %s2351 = scalar_lea.vmem [#allocation2], 145
      %v2352 = vld [vmem:[%s2351] ss:$2 sm:$0xff]
      %s2353 = scalar_lea.vmem [#allocation2], 161
      %v2354 = vld [vmem:[%s2353] ss:$2 sm:$0xff]
      %s2355 = scalar_lea.vmem [#allocation2], 177
      %v2356 = vld [vmem:[%s2355] ss:$2 sm:$0xff]
      %s2357 = scalar_lea.vmem [#allocation2], 193
      %v2358 = vld [vmem:[%s2357] ss:$2 sm:$0xff]
      %s2359 = scalar_lea.vmem [#allocation2], 209
      %v2360 = vld [vmem:[%s2359] ss:$2 sm:$0xff]
      %s2361 = scalar_lea.vmem [#allocation2], 225
      %v2362 = vld [vmem:[%s2361] ss:$2 sm:$0xff]
      %s2363 = scalar_lea.vmem [#allocation2], 241
      %v2364 = vld [vmem:[%s2363] ss:$2 sm:$0xff]
      %s2365 = scalar_lea.vmem [#allocation2], 257
      %v2366 = vld [vmem:[%s2365] ss:$2 sm:$0xff]
      %s2367 = scalar_lea.vmem [#allocation2], 273
      %v2368 = vld [vmem:[%s2367] ss:$2 sm:$0xff]
      %s2369 = scalar_lea.vmem [#allocation2], 289
      %v2370 = vld [vmem:[%s2369] ss:$2 sm:$0xff]
      %s2371 = scalar_lea.vmem [#allocation2], 305
      %v2372 = vld [vmem:[%s2371] ss:$2 sm:$0xff]
      %s2373 = scalar_lea.vmem [#allocation2], 321
      %v2374 = vld [vmem:[%s2373] ss:$2 sm:$0xff]
      %s2375 = scalar_lea.vmem [#allocation2], 337
      %v2376 = vld [vmem:[%s2375] ss:$2 sm:$0xff]
      %s2377 = scalar_lea.vmem [#allocation2], 353
      %v2378 = vld [vmem:[%s2377] ss:$2 sm:$0xff]
      %s2379 = scalar_lea.vmem [#allocation2], 369
      %v2380 = vld [vmem:[%s2379] ss:$2 sm:$0xff]
      %s2381 = scalar_lea.vmem [#allocation2], 385
      %v2382 = vld [vmem:[%s2381] ss:$2 sm:$0xff]
      %s2383 = scalar_lea.vmem [#allocation2], 401
      %v2384 = vld [vmem:[%s2383] ss:$2 sm:$0xff]
      %s2385 = scalar_lea.vmem [#allocation2], 417
      %v2386 = vld [vmem:[%s2385] ss:$2 sm:$0xff]
      %s2387 = scalar_lea.vmem [#allocation2], 433
      %v2388 = vld [vmem:[%s2387] ss:$2 sm:$0xff]
      %s2389 = scalar_lea.vmem [#allocation2], 449
      %v2390 = vld [vmem:[%s2389] ss:$2 sm:$0xff]
      %s2391 = scalar_lea.vmem [#allocation2], 465
      %v2392 = vld [vmem:[%s2391] ss:$2 sm:$0xff]
      %s2393 = scalar_lea.vmem [#allocation2], 481
      %v2394 = vld [vmem:[%s2393] ss:$2 sm:$0xff]
      %s2395 = scalar_lea.vmem [#allocation2], 497
      %v2396 = vld [vmem:[%s2395] ss:$2 sm:$0xff]
      %s2397 = scalar_lea.vmem [#allocation2], 513
      %v2398 = vld [vmem:[%s2397] ss:$2 sm:$0xff]
      %s2399 = scalar_lea.vmem [#allocation2], 529
      %v2400 = vld [vmem:[%s2399] ss:$2 sm:$0xff]
      %s2401 = scalar_lea.vmem [#allocation2], 545
      %v2402 = vld [vmem:[%s2401] ss:$2 sm:$0xff]
      %s2403 = scalar_lea.vmem [#allocation2], 561
      %v2404 = vld [vmem:[%s2403] ss:$2 sm:$0xff]
      %s2405 = scalar_lea.vmem [#allocation2], 577
      %v2406 = vld [vmem:[%s2405] ss:$2 sm:$0xff]
      %s2407 = scalar_lea.vmem [#allocation2], 593
      %v2408 = vld [vmem:[%s2407] ss:$2 sm:$0xff]
      %s2409 = scalar_lea.vmem [#allocation2], 609
      %v2410 = vld [vmem:[%s2409] ss:$2 sm:$0xff]
      %s2411 = scalar_lea.vmem [#allocation2], 625
      %v2412 = vld [vmem:[%s2411] ss:$2 sm:$0xff]
      %s2413 = scalar_lea.vmem [#allocation2], 641
      %v2414 = vld [vmem:[%s2413] ss:$2 sm:$0xff]
      %s2415 = scalar_lea.vmem [#allocation2], 657
      %v2416 = vld [vmem:[%s2415] ss:$2 sm:$0xff]
      %s2417 = scalar_lea.vmem [#allocation2], 673
      %v2418 = vld [vmem:[%s2417] ss:$2 sm:$0xff]
      %s2419 = scalar_lea.vmem [#allocation2], 689
      %v2420 = vld [vmem:[%s2419] ss:$2 sm:$0xff]
      %s2421 = scalar_lea.vmem [#allocation2], 705
      %v2422 = vld [vmem:[%s2421] ss:$2 sm:$0xff]
      %s2423 = scalar_lea.vmem [#allocation2], 721
      %v2424 = vld [vmem:[%s2423] ss:$2 sm:$0xff]
      %s2425 = scalar_lea.vmem [#allocation2], 737
      %v2426 = vld [vmem:[%s2425] ss:$2 sm:$0xff]
      %s2427 = scalar_lea.vmem [#allocation2], 753
      %v2428 = vld [vmem:[%s2427] ss:$2 sm:$0xff]
      %s2429 = scalar_lea.vmem [#allocation2], 769
      %v2430 = vld [vmem:[%s2429] ss:$2 sm:$0xff]
      %s2431 = scalar_lea.vmem [#allocation2], 785
      %v2432 = vld [vmem:[%s2431] ss:$2 sm:$0xff]
      %s2433 = scalar_lea.vmem [#allocation2], 801
      %v2434 = vld [vmem:[%s2433] ss:$2 sm:$0xff]
      %s2435 = scalar_lea.vmem [#allocation2], 817
      %v2436 = vld [vmem:[%s2435] ss:$2 sm:$0xff]
      %s2437 = scalar_lea.vmem [#allocation2], 833
      %v2438 = vld [vmem:[%s2437] ss:$2 sm:$0xff]
      %s2439 = scalar_lea.vmem [#allocation2], 849
      %v2440 = vld [vmem:[%s2439] ss:$2 sm:$0xff]
      %s2441 = scalar_lea.vmem [#allocation2], 865
      %v2442 = vld [vmem:[%s2441] ss:$2 sm:$0xff]
      %s2443 = scalar_lea.vmem [#allocation2], 881
      %v2444 = vld [vmem:[%s2443] ss:$2 sm:$0xff]
      %s2445 = scalar_lea.vmem [#allocation2], 897
      %v2446 = vld [vmem:[%s2445] ss:$2 sm:$0xff]
      %s2447 = scalar_lea.vmem [#allocation2], 913
      %v2448 = vld [vmem:[%s2447] ss:$2 sm:$0xff]
      %s2449 = scalar_lea.vmem [#allocation2], 929
      %v2450 = vld [vmem:[%s2449] ss:$2 sm:$0xff]
      %s2451 = scalar_lea.vmem [#allocation2], 945
      %v2452 = vld [vmem:[%s2451] ss:$2 sm:$0xff]
      %s2453 = scalar_lea.vmem [#allocation2], 961
      %v2454 = vld [vmem:[%s2453] ss:$2 sm:$0xff]
      %s2455 = scalar_lea.vmem [#allocation2], 977
      %v2456 = vld [vmem:[%s2455] ss:$2 sm:$0xff]
      %s2457 = scalar_lea.vmem [#allocation2], 993
      %v2458 = vld [vmem:[%s2457] ss:$2 sm:$0xff]
      %s2459 = scalar_lea.vmem [#allocation2], 1009
      %v2460 = vld [vmem:[%s2459] ss:$2 sm:$0xff]
      %v2461 = vmax.f32 %v2206, %v2334
      %v2462 = vmax.f32 %v2208, %v2336
      %v2463 = vmax.f32 %v2210, %v2338
      %v2464 = vmax.f32 %v2212, %v2340
      %v2465 = vmax.f32 %v2214, %v2342
      %v2466 = vmax.f32 %v2216, %v2344
      %v2467 = vmax.f32 %v2218, %v2346
      %v2468 = vmax.f32 %v2220, %v2348
      %v2469 = vmax.f32 %v2222, %v2350
      %v2470 = vmax.f32 %v2224, %v2352
      %v2471 = vmax.f32 %v2226, %v2354
      %v2472 = vmax.f32 %v2228, %v2356
      %v2473 = vmax.f32 %v2230, %v2358
      %v2474 = vmax.f32 %v2232, %v2360
      %v2475 = vmax.f32 %v2234, %v2362
      %v2476 = vmax.f32 %v2236, %v2364
      %v2477 = vmax.f32 %v2238, %v2366
      %v2478 = vmax.f32 %v2240, %v2368
      %v2479 = vmax.f32 %v2242, %v2370
      %v2480 = vmax.f32 %v2244, %v2372
      %v2481 = vmax.f32 %v2246, %v2374
      %v2482 = vmax.f32 %v2248, %v2376
      %v2483 = vmax.f32 %v2250, %v2378
      %v2484 = vmax.f32 %v2252, %v2380
      %v2485 = vmax.f32 %v2254, %v2382
      %v2486 = vmax.f32 %v2256, %v2384
      %v2487 = vmax.f32 %v2258, %v2386
      %v2488 = vmax.f32 %v2260, %v2388
      %v2489 = vmax.f32 %v2262, %v2390
      %v2490 = vmax.f32 %v2264, %v2392
      %v2491 = vmax.f32 %v2266, %v2394
      %v2492 = vmax.f32 %v2268, %v2396
      %v2493 = vmax.f32 %v2270, %v2398
      %v2494 = vmax.f32 %v2272, %v2400
      %v2495 = vmax.f32 %v2274, %v2402
      %v2496 = vmax.f32 %v2276, %v2404
      %v2497 = vmax.f32 %v2278, %v2406
      %v2498 = vmax.f32 %v2280, %v2408
      %v2499 = vmax.f32 %v2282, %v2410
      %v2500 = vmax.f32 %v2284, %v2412
      %v2501 = vmax.f32 %v2286, %v2414
      %v2502 = vmax.f32 %v2288, %v2416
      %v2503 = vmax.f32 %v2290, %v2418
      %v2504 = vmax.f32 %v2292, %v2420
      %v2505 = vmax.f32 %v2294, %v2422
      %v2506 = vmax.f32 %v2296, %v2424
      %v2507 = vmax.f32 %v2298, %v2426
      %v2508 = vmax.f32 %v2300, %v2428
      %v2509 = vmax.f32 %v2302, %v2430
      %v2510 = vmax.f32 %v2304, %v2432
      %v2511 = vmax.f32 %v2306, %v2434
      %v2512 = vmax.f32 %v2308, %v2436
      %v2513 = vmax.f32 %v2310, %v2438
      %v2514 = vmax.f32 %v2312, %v2440
      %v2515 = vmax.f32 %v2314, %v2442
      %v2516 = vmax.f32 %v2316, %v2444
      %v2517 = vmax.f32 %v2318, %v2446
      %v2518 = vmax.f32 %v2320, %v2448
      %v2519 = vmax.f32 %v2322, %v2450
      %v2520 = vmax.f32 %v2324, %v2452
      %v2521 = vmax.f32 %v2326, %v2454
      %v2522 = vmax.f32 %v2328, %v2456
      %v2523 = vmax.f32 %v2330, %v2458
      %v2524 = vmax.f32 %v2332, %v2460
      %2525 = vst.msk [vmem:[#allocation3] sm:$0xff] %vm2039, %v2461
      %2526 = vst.msk [vmem:[#allocation3 + $0x8] sm:$0xff] %vm2039, %v2462
      %2527 = vst.msk [vmem:[#allocation3 + $0x10] sm:$0xff] %vm2039, %v2463
      %2528 = vst.msk [vmem:[#allocation3 + $0x18] sm:$0xff] %vm2039, %v2464
      %2529 = vst.msk [vmem:[#allocation3 + $0x20] sm:$0xff] %vm2039, %v2465
      %2530 = vst.msk [vmem:[#allocation3 + $0x28] sm:$0xff] %vm2039, %v2466
      %2531 = vst.msk [vmem:[#allocation3 + $0x30] sm:$0xff] %vm2039, %v2467
      %2532 = vst.msk [vmem:[#allocation3 + $0x38] sm:$0xff] %vm2039, %v2468
      %2533 = vst.msk [vmem:[#allocation3 + $0x40] sm:$0xff] %vm2039, %v2469
      %2534 = vst.msk [vmem:[#allocation3 + $0x48] sm:$0xff] %vm2039, %v2470
      %2535 = vst.msk [vmem:[#allocation3 + $0x50] sm:$0xff] %vm2039, %v2471
      %2536 = vst.msk [vmem:[#allocation3 + $0x58] sm:$0xff] %vm2039, %v2472
      %2537 = vst.msk [vmem:[#allocation3 + $0x60] sm:$0xff] %vm2039, %v2473
      %2538 = vst.msk [vmem:[#allocation3 + $0x68] sm:$0xff] %vm2039, %v2474
      %2539 = vst.msk [vmem:[#allocation3 + $0x70] sm:$0xff] %vm2039, %v2475
      %2540 = vst.msk [vmem:[#allocation3 + $0x78] sm:$0xff] %vm2039, %v2476
      %2541 = vst.msk [vmem:[#allocation3 + $0x80] sm:$0xff] %vm2039, %v2477
      %2542 = vst.msk [vmem:[#allocation3 + $0x88] sm:$0xff] %vm2039, %v2478
      %2543 = vst.msk [vmem:[#allocation3 + $0x90] sm:$0xff] %vm2039, %v2479
      %2544 = vst.msk [vmem:[#allocation3 + $0x98] sm:$0xff] %vm2039, %v2480
      %2545 = vst.msk [vmem:[#allocation3 + $0xa0] sm:$0xff] %vm2039, %v2481
      %2546 = vst.msk [vmem:[#allocation3 + $0xa8] sm:$0xff] %vm2039, %v2482
      %2547 = vst.msk [vmem:[#allocation3 + $0xb0] sm:$0xff] %vm2039, %v2483
      %2548 = vst.msk [vmem:[#allocation3 + $0xb8] sm:$0xff] %vm2039, %v2484
      %2549 = vst.msk [vmem:[#allocation3 + $0xc0] sm:$0xff] %vm2039, %v2485
      %2550 = vst.msk [vmem:[#allocation3 + $0xc8] sm:$0xff] %vm2039, %v2486
      %2551 = vst.msk [vmem:[#allocation3 + $0xd0] sm:$0xff] %vm2039, %v2487
      %2552 = vst.msk [vmem:[#allocation3 + $0xd8] sm:$0xff] %vm2039, %v2488
      %2553 = vst.msk [vmem:[#allocation3 + $0xe0] sm:$0xff] %vm2039, %v2489
      %2554 = vst.msk [vmem:[#allocation3 + $0xe8] sm:$0xff] %vm2039, %v2490
      %2555 = vst.msk [vmem:[#allocation3 + $0xf0] sm:$0xff] %vm2039, %v2491
      %2556 = vst.msk [vmem:[#allocation3 + $0xf8] sm:$0xff] %vm2039, %v2492
      %2557 = vst.msk [vmem:[#allocation3 + $0x100] sm:$0xff] %vm2039, %v2493
      %2558 = vst.msk [vmem:[#allocation3 + $0x108] sm:$0xff] %vm2039, %v2494
      %2559 = vst.msk [vmem:[#allocation3 + $0x110] sm:$0xff] %vm2039, %v2495
      %2560 = vst.msk [vmem:[#allocation3 + $0x118] sm:$0xff] %vm2039, %v2496
      %2561 = vst.msk [vmem:[#allocation3 + $0x120] sm:$0xff] %vm2039, %v2497
      %2562 = vst.msk [vmem:[#allocation3 + $0x128] sm:$0xff] %vm2039, %v2498
      %2563 = vst.msk [vmem:[#allocation3 + $0x130] sm:$0xff] %vm2039, %v2499
      %2564 = vst.msk [vmem:[#allocation3 + $0x138] sm:$0xff] %vm2039, %v2500
      %2565 = vst.msk [vmem:[#allocation3 + $0x140] sm:$0xff] %vm2039, %v2501
      %2566 = vst.msk [vmem:[#allocation3 + $0x148] sm:$0xff] %vm2039, %v2502
      %2567 = vst.msk [vmem:[#allocation3 + $0x150] sm:$0xff] %vm2039, %v2503
      %2568 = vst.msk [vmem:[#allocation3 + $0x158] sm:$0xff] %vm2039, %v2504
      %2569 = vst.msk [vmem:[#allocation3 + $0x160] sm:$0xff] %vm2039, %v2505
      %2570 = vst.msk [vmem:[#allocation3 + $0x168] sm:$0xff] %vm2039, %v2506
      %2571 = vst.msk [vmem:[#allocation3 + $0x170] sm:$0xff] %vm2039, %v2507
      %2572 = vst.msk [vmem:[#allocation3 + $0x178] sm:$0xff] %vm2039, %v2508
      %2573 = vst.msk [vmem:[#allocation3 + $0x180] sm:$0xff] %vm2039, %v2509
      %2574 = vst.msk [vmem:[#allocation3 + $0x188] sm:$0xff] %vm2039, %v2510
      %2575 = vst.msk [vmem:[#allocation3 + $0x190] sm:$0xff] %vm2039, %v2511
      %2576 = vst.msk [vmem:[#allocation3 + $0x198] sm:$0xff] %vm2039, %v2512
      %2577 = vst.msk [vmem:[#allocation3 + $0x1a0] sm:$0xff] %vm2039, %v2513
      %2578 = vst.msk [vmem:[#allocation3 + $0x1a8] sm:$0xff] %vm2039, %v2514
      %2579 = vst.msk [vmem:[#allocation3 + $0x1b0] sm:$0xff] %vm2039, %v2515
      %2580 = vst.msk [vmem:[#allocation3 + $0x1b8] sm:$0xff] %vm2039, %v2516
      %2581 = vst.msk [vmem:[#allocation3 + $0x1c0] sm:$0xff] %vm2039, %v2517
      %2582 = vst.msk [vmem:[#allocation3 + $0x1c8] sm:$0xff] %vm2039, %v2518
      %2583 = vst.msk [vmem:[#allocation3 + $0x1d0] sm:$0xff] %vm2039, %v2519
      %2584 = vst.msk [vmem:[#allocation3 + $0x1d8] sm:$0xff] %vm2039, %v2520
      %2585 = vst.msk [vmem:[#allocation3 + $0x1e0] sm:$0xff] %vm2039, %v2521
      %2586 = vst.msk [vmem:[#allocation3 + $0x1e8] sm:$0xff] %vm2039, %v2522
      %2587 = vst.msk [vmem:[#allocation3 + $0x1f0] sm:$0xff] %vm2039, %v2523
      %2588 = vst.msk [vmem:[#allocation3 + $0x1f8] sm:$0xff] %vm2039, %v2524
      %v2589 = vld [vmem:[#allocation3] sm:$0xff]
      %v2590 = vld [vmem:[#allocation3 + $0x8] sm:$0xff]
      %v2591 = vld [vmem:[#allocation3 + $0x10] sm:$0xff]
      %v2592 = vld [vmem:[#allocation3 + $0x18] sm:$0xff]
      %v2593 = vmax.f32 %v2589, %v2591
      %v2594 = vmax.f32 %v2590, %v2592
      %2595 = vst.msk [vmem:[#allocation4 + $0x18] sm:$0xff] %vm2039, %v2593
      %2596 = vst.msk [vmem:[#allocation4 + $0x20] sm:$0xff] %vm2039, %v2594
      %v2597 = vld [vmem:[#allocation3 + $0x20] sm:$0xff]
      %v2598 = vld [vmem:[#allocation3 + $0x28] sm:$0xff]
      %v2599 = vld [vmem:[#allocation3 + $0x30] sm:$0xff]
      %v2600 = vld [vmem:[#allocation3 + $0x38] sm:$0xff]
      %v2601 = vmax.f32 %v2597, %v2599
      %v2602 = vmax.f32 %v2598, %v2600
      %2603 = vst.msk [vmem:[#allocation4 + $0x28] sm:$0xff] %vm2039, %v2601
      %2604 = vst.msk [vmem:[#allocation4 + $0x30] sm:$0xff] %vm2039, %v2602
      %v2605 = vld [vmem:[#allocation3 + $0x40] sm:$0xff]
      %v2606 = vld [vmem:[#allocation3 + $0x48] sm:$0xff]
      %v2607 = vld [vmem:[#allocation3 + $0x50] sm:$0xff]
      %v2608 = vld [vmem:[#allocation3 + $0x58] sm:$0xff]
      %v2609 = vmax.f32 %v2605, %v2607
      %v2610 = vmax.f32 %v2606, %v2608
      %2611 = vst.msk [vmem:[#allocation4 + $0x38] sm:$0xff] %vm2039, %v2609
      %2612 = vst.msk [vmem:[#allocation4 + $0x40] sm:$0xff] %vm2039, %v2610
      %v2613 = vld [vmem:[#allocation3 + $0x60] sm:$0xff]
      %v2614 = vld [vmem:[#allocation3 + $0x68] sm:$0xff]
      %v2615 = vld [vmem:[#allocation3 + $0x70] sm:$0xff]
      %v2616 = vld [vmem:[#allocation3 + $0x78] sm:$0xff]
      %v2617 = vmax.f32 %v2613, %v2615
      %v2618 = vmax.f32 %v2614, %v2616
      %2619 = vst.msk [vmem:[#allocation4 + $0x48] sm:$0xff] %vm2039, %v2617
      %2620 = vst.msk [vmem:[#allocation4 + $0x50] sm:$0xff] %vm2039, %v2618
      %v2621 = vld [vmem:[#allocation3 + $0x80] sm:$0xff]
      %v2622 = vld [vmem:[#allocation3 + $0x88] sm:$0xff]
      %v2623 = vld [vmem:[#allocation3 + $0x90] sm:$0xff]
      %v2624 = vld [vmem:[#allocation3 + $0x98] sm:$0xff]
      %v2625 = vmax.f32 %v2621, %v2623
      %v2626 = vmax.f32 %v2622, %v2624
      %2627 = vst.msk [vmem:[#allocation4 + $0x58] sm:$0xff] %vm2039, %v2625
      %2628 = vst.msk [vmem:[#allocation4 + $0x60] sm:$0xff] %vm2039, %v2626
      %v2629 = vld [vmem:[#allocation3 + $0xa0] sm:$0xff]
      %v2630 = vld [vmem:[#allocation3 + $0xa8] sm:$0xff]
      %v2631 = vld [vmem:[#allocation3 + $0xb0] sm:$0xff]
      %v2632 = vld [vmem:[#allocation3 + $0xb8] sm:$0xff]
      %v2633 = vmax.f32 %v2629, %v2631
      %v2634 = vmax.f32 %v2630, %v2632
      %2635 = vst.msk [vmem:[#allocation4 + $0x68] sm:$0xff] %vm2039, %v2633
      %2636 = vst.msk [vmem:[#allocation4 + $0x70] sm:$0xff] %vm2039, %v2634
      %v2637 = vld [vmem:[#allocation3 + $0xc0] sm:$0xff]
      %v2638 = vld [vmem:[#allocation3 + $0xc8] sm:$0xff]
      %v2639 = vld [vmem:[#allocation3 + $0xd0] sm:$0xff]
      %v2640 = vld [vmem:[#allocation3 + $0xd8] sm:$0xff]
      %v2641 = vmax.f32 %v2637, %v2639
      %v2642 = vmax.f32 %v2638, %v2640
      %2643 = vst.msk [vmem:[#allocation4 + $0x78] sm:$0xff] %vm2039, %v2641
      %2644 = vst.msk [vmem:[#allocation4 + $0x80] sm:$0xff] %vm2039, %v2642
      %v2645 = vld [vmem:[#allocation3 + $0xe0] sm:$0xff]
      %v2646 = vld [vmem:[#allocation3 + $0xe8] sm:$0xff]
      %v2647 = vld [vmem:[#allocation3 + $0xf0] sm:$0xff]
      %v2648 = vld [vmem:[#allocation3 + $0xf8] sm:$0xff]
      %v2649 = vmax.f32 %v2645, %v2647
      %v2650 = vmax.f32 %v2646, %v2648
      %2651 = vst.msk [vmem:[#allocation4 + $0x88] sm:$0xff] %vm2039, %v2649
      %2652 = vst.msk [vmem:[#allocation4 + $0x90] sm:$0xff] %vm2039, %v2650
      %v2653 = vld [vmem:[#allocation3 + $0x100] sm:$0xff]
      %v2654 = vld [vmem:[#allocation3 + $0x108] sm:$0xff]
      %v2655 = vld [vmem:[#allocation3 + $0x110] sm:$0xff]
      %v2656 = vld [vmem:[#allocation3 + $0x118] sm:$0xff]
      %v2657 = vmax.f32 %v2653, %v2655
      %v2658 = vmax.f32 %v2654, %v2656
      %2659 = vst.msk [vmem:[#allocation4 + $0x98] sm:$0xff] %vm2039, %v2657
      %2660 = vst.msk [vmem:[#allocation4 + $0xa0] sm:$0xff] %vm2039, %v2658
      %v2661 = vld [vmem:[#allocation3 + $0x120] sm:$0xff]
      %v2662 = vld [vmem:[#allocation3 + $0x128] sm:$0xff]
      %v2663 = vld [vmem:[#allocation3 + $0x130] sm:$0xff]
      %v2664 = vld [vmem:[#allocation3 + $0x138] sm:$0xff]
      %v2665 = vmax.f32 %v2661, %v2663
      %v2666 = vmax.f32 %v2662, %v2664
      %2667 = vst.msk [vmem:[#allocation4 + $0xa8] sm:$0xff] %vm2039, %v2665
      %2668 = vst.msk [vmem:[#allocation4 + $0xb0] sm:$0xff] %vm2039, %v2666
      %v2669 = vld [vmem:[#allocation3 + $0x140] sm:$0xff]
      %v2670 = vld [vmem:[#allocation3 + $0x148] sm:$0xff]
      %v2671 = vld [vmem:[#allocation3 + $0x150] sm:$0xff]
      %v2672 = vld [vmem:[#allocation3 + $0x158] sm:$0xff]
      %v2673 = vmax.f32 %v2669, %v2671
      %v2674 = vmax.f32 %v2670, %v2672
      %2675 = vst.msk [vmem:[#allocation4 + $0xb8] sm:$0xff] %vm2039, %v2673
      %2676 = vst.msk [vmem:[#allocation4 + $0xc0] sm:$0xff] %vm2039, %v2674
      %v2677 = vld [vmem:[#allocation3 + $0x160] sm:$0xff]
      %v2678 = vld [vmem:[#allocation3 + $0x168] sm:$0xff]
      %v2679 = vld [vmem:[#allocation3 + $0x170] sm:$0xff]
      %v2680 = vld [vmem:[#allocation3 + $0x178] sm:$0xff]
      %v2681 = vmax.f32 %v2677, %v2679
      %v2682 = vmax.f32 %v2678, %v2680
      %2683 = vst.msk [vmem:[#allocation4 + $0xc8] sm:$0xff] %vm2039, %v2681
      %2684 = vst.msk [vmem:[#allocation4 + $0xd0] sm:$0xff] %vm2039, %v2682
      %v2685 = vld [vmem:[#allocation3 + $0x180] sm:$0xff]
      %v2686 = vld [vmem:[#allocation3 + $0x188] sm:$0xff]
      %v2687 = vld [vmem:[#allocation3 + $0x190] sm:$0xff]
      %v2688 = vld [vmem:[#allocation3 + $0x198] sm:$0xff]
      %v2689 = vmax.f32 %v2685, %v2687
      %v2690 = vmax.f32 %v2686, %v2688
      %2691 = vst.msk [vmem:[#allocation4 + $0xd8] sm:$0xff] %vm2039, %v2689
      %2692 = vst.msk [vmem:[#allocation4 + $0xe0] sm:$0xff] %vm2039, %v2690
      %v2693 = vld [vmem:[#allocation3 + $0x1a0] sm:$0xff]
      %v2694 = vld [vmem:[#allocation3 + $0x1a8] sm:$0xff]
      %v2695 = vld [vmem:[#allocation3 + $0x1b0] sm:$0xff]
      %v2696 = vld [vmem:[#allocation3 + $0x1b8] sm:$0xff]
      %v2697 = vmax.f32 %v2693, %v2695
      %v2698 = vmax.f32 %v2694, %v2696
      %2699 = vst.msk [vmem:[#allocation4 + $0xe8] sm:$0xff] %vm2039, %v2697
      %2700 = vst.msk [vmem:[#allocation4 + $0xf0] sm:$0xff] %vm2039, %v2698
      %v2701 = vld [vmem:[#allocation3 + $0x1c0] sm:$0xff]
      %v2702 = vld [vmem:[#allocation3 + $0x1c8] sm:$0xff]
      %v2703 = vld [vmem:[#allocation3 + $0x1d0] sm:$0xff]
      %v2704 = vld [vmem:[#allocation3 + $0x1d8] sm:$0xff]
      %v2705 = vmax.f32 %v2701, %v2703
      %v2706 = vmax.f32 %v2702, %v2704
      %2707 = vst.msk [vmem:[#allocation4 + $0xf8] sm:$0xff] %vm2039, %v2705
      %2708 = vst.msk [vmem:[#allocation4 + $0x100] sm:$0xff] %vm2039, %v2706
      %v2709 = vld [vmem:[#allocation3 + $0x1e0] sm:$0xff]
      %v2710 = vld [vmem:[#allocation3 + $0x1e8] sm:$0xff]
      %v2711 = vld [vmem:[#allocation3 + $0x1f0] sm:$0xff]
      %v2712 = vld [vmem:[#allocation3 + $0x1f8] sm:$0xff]
      %v2713 = vmax.f32 %v2709, %v2711
      %v2714 = vmax.f32 %v2710, %v2712
      %2715 = vst.msk [vmem:[#allocation4 + $0x108] sm:$0xff] %vm2039, %v2713
      %2716 = vst.msk [vmem:[#allocation4 + $0x110] sm:$0xff] %vm2039, %v2714
      %v2717 = vlaneseq
      %v2718 = vshrl.u32 %v2717, 7
      %v2719 = vadd.s32 %v2718, 8
      %v2720 = vadd.s32 %v2718, 16
      %v2721 = vadd.s32 %v2718, 24
      %v2722 = vadd.s32 %v2718, 32
      %v2723 = vadd.s32 %v2718, 40
      %v2724 = vadd.s32 %v2718, 48
      %v2725 = vadd.s32 %v2718, 56
      %v2726 = vadd.s32 %v2718, 64
      %v2727 = vadd.s32 %v2718, 72
      %v2728 = vadd.s32 %v2718, 80
      %v2729 = vadd.s32 %v2718, 88
      %v2730 = vadd.s32 %v2718, 96
      %v2731 = vadd.s32 %v2718, 104
      %v2732 = vadd.s32 %v2718, 112
      %v2733 = vadd.s32 %v2718, 120
      %v2734 = vadd.s32 %v2718, 128
      %v2735 = vadd.s32 %v2718, 136
      %v2736 = vadd.s32 %v2718, 144
      %v2737 = vadd.s32 %v2718, 152
      %v2738 = vadd.s32 %v2718, 160
      %v2739 = vadd.s32 %v2718, 168
      %v2740 = vadd.s32 %v2718, 176
      %v2741 = vadd.s32 %v2718, 184
      %v2742 = vadd.s32 %v2718, 192
      %v2743 = vadd.s32 %v2718, 200
      %v2744 = vadd.s32 %v2718, 208
      %v2745 = vadd.s32 %v2718, 216
      %v2746 = vadd.s32 %v2718, 224
      %v2747 = vadd.s32 %v2718, 232
      %v2748 = vadd.s32 %v2718, 240
      %v2749 = vadd.s32 %v2718, 248
      %v2750 = vand.u32 %v2718, 15
      %v2751 = vand.u32 %v2719, 15
      %v2752 = vand.u32 %v2720, 15
      %v2753 = vand.u32 %v2721, 15
      %v2754 = vand.u32 %v2722, 15
      %v2755 = vand.u32 %v2723, 15
      %v2756 = vand.u32 %v2724, 15
      %v2757 = vand.u32 %v2725, 15
      %v2758 = vand.u32 %v2726, 15
      %v2759 = vand.u32 %v2727, 15
      %v2760 = vand.u32 %v2728, 15
      %v2761 = vand.u32 %v2729, 15
      %v2762 = vand.u32 %v2730, 15
      %v2763 = vand.u32 %v2731, 15
      %v2764 = vand.u32 %v2732, 15
      %v2765 = vand.u32 %v2733, 15
      %v2766 = vand.u32 %v2734, 15
      %v2767 = vand.u32 %v2735, 15
      %v2768 = vand.u32 %v2736, 15
      %v2769 = vand.u32 %v2737, 15
      %v2770 = vand.u32 %v2738, 15
      %v2771 = vand.u32 %v2739, 15
      %v2772 = vand.u32 %v2740, 15
      %v2773 = vand.u32 %v2741, 15
      %v2774 = vand.u32 %v2742, 15
      %v2775 = vand.u32 %v2743, 15
      %v2776 = vand.u32 %v2744, 15
      %v2777 = vand.u32 %v2745, 15
      %v2778 = vand.u32 %v2746, 15
      %v2779 = vand.u32 %v2747, 15
      %v2780 = vand.u32 %v2748, 15
      %v2781 = vand.u32 %v2749, 15
      %v2782 = vld [vmem:[#allocation4 + $0x7] sm:$0xff]
      %v2783 = vld [vmem:[#allocation4 + $0xf] sm:$0xff]
      %v2784 = vld [vmem:[#allocation4 + $0x17] sm:$0xff]
      %v2785 = vld [vmem:[#allocation4 + $0x1f] sm:$0xff]
      %v2786 = vld [vmem:[#allocation4 + $0x27] sm:$0xff]
      %v2787 = vld [vmem:[#allocation4 + $0x2f] sm:$0xff]
      %v2788 = vld [vmem:[#allocation4 + $0x37] sm:$0xff]
      %v2789 = vld [vmem:[#allocation4 + $0x3f] sm:$0xff]
      %v2790 = vld [vmem:[#allocation4 + $0x47] sm:$0xff]
      %v2791 = vld [vmem:[#allocation4 + $0x4f] sm:$0xff]
      %v2792 = vld [vmem:[#allocation4 + $0x57] sm:$0xff]
      %v2793 = vld [vmem:[#allocation4 + $0x5f] sm:$0xff]
      %v2794 = vld [vmem:[#allocation4 + $0x67] sm:$0xff]
      %v2795 = vld [vmem:[#allocation4 + $0x6f] sm:$0xff]
      %v2796 = vld [vmem:[#allocation4 + $0x77] sm:$0xff]
      %v2797 = vld [vmem:[#allocation4 + $0x7f] sm:$0xff]
      %v2798 = vld [vmem:[#allocation4 + $0x87] sm:$0xff]
      %v2799 = vld [vmem:[#allocation4 + $0x8f] sm:$0xff]
      %v2800 = vld [vmem:[#allocation4 + $0x97] sm:$0xff]
      %v2801 = vld [vmem:[#allocation4 + $0x9f] sm:$0xff]
      %v2802 = vld [vmem:[#allocation4 + $0xa7] sm:$0xff]
      %v2803 = vld [vmem:[#allocation4 + $0xaf] sm:$0xff]
      %v2804 = vld [vmem:[#allocation4 + $0xb7] sm:$0xff]
      %v2805 = vld [vmem:[#allocation4 + $0xbf] sm:$0xff]
      %v2806 = vld [vmem:[#allocation4 + $0xc7] sm:$0xff]
      %v2807 = vld [vmem:[#allocation4 + $0xcf] sm:$0xff]
      %v2808 = vld [vmem:[#allocation4 + $0xd7] sm:$0xff]
      %v2809 = vld [vmem:[#allocation4 + $0xdf] sm:$0xff]
      %v2810 = vld [vmem:[#allocation4 + $0xe7] sm:$0xff]
      %v2811 = vld [vmem:[#allocation4 + $0xef] sm:$0xff]
      %v2812 = vld [vmem:[#allocation4 + $0xf7] sm:$0xff]
      %v2813 = vld [vmem:[#allocation4 + $0xff] sm:$0xff]
      %vm2814 = vcmp.ge.s32.totalorder %v2750, 1
      %vm2815 = vcmp.ge.s32.totalorder %v2751, 1
      %vm2816 = vcmp.ge.s32.totalorder %v2752, 1
      %vm2817 = vcmp.ge.s32.totalorder %v2753, 1
      %vm2818 = vcmp.ge.s32.totalorder %v2754, 1
      %vm2819 = vcmp.ge.s32.totalorder %v2755, 1
      %vm2820 = vcmp.ge.s32.totalorder %v2756, 1
      %vm2821 = vcmp.ge.s32.totalorder %v2757, 1
      %vm2822 = vcmp.ge.s32.totalorder %v2758, 1
      %vm2823 = vcmp.ge.s32.totalorder %v2759, 1
      %vm2824 = vcmp.ge.s32.totalorder %v2760, 1
      %vm2825 = vcmp.ge.s32.totalorder %v2761, 1
      %vm2826 = vcmp.ge.s32.totalorder %v2762, 1
      %vm2827 = vcmp.ge.s32.totalorder %v2763, 1
      %vm2828 = vcmp.ge.s32.totalorder %v2764, 1
      %vm2829 = vcmp.ge.s32.totalorder %v2765, 1
      %vm2830 = vcmp.ge.s32.totalorder %v2766, 1
      %vm2831 = vcmp.ge.s32.totalorder %v2767, 1
      %vm2832 = vcmp.ge.s32.totalorder %v2768, 1
      %vm2833 = vcmp.ge.s32.totalorder %v2769, 1
      %vm2834 = vcmp.ge.s32.totalorder %v2770, 1
      %vm2835 = vcmp.ge.s32.totalorder %v2771, 1
      %vm2836 = vcmp.ge.s32.totalorder %v2772, 1
      %vm2837 = vcmp.ge.s32.totalorder %v2773, 1
      %vm2838 = vcmp.ge.s32.totalorder %v2774, 1
      %vm2839 = vcmp.ge.s32.totalorder %v2775, 1
      %vm2840 = vcmp.ge.s32.totalorder %v2776, 1
      %vm2841 = vcmp.ge.s32.totalorder %v2777, 1
      %vm2842 = vcmp.ge.s32.totalorder %v2778, 1
      %vm2843 = vcmp.ge.s32.totalorder %v2779, 1
      %vm2844 = vcmp.ge.s32.totalorder %v2780, 1
      %vm2845 = vcmp.ge.s32.totalorder %v2781, 1
      %v2846 = vsel %vm2814, %v2782, 0.0
      %v2847 = vsel %vm2815, %v2783, 0.0
      %v2848 = vsel %vm2816, %v2784, 0.0
      %v2849 = vsel %vm2817, %v2785, 0.0
      %v2850 = vsel %vm2818, %v2786, 0.0
      %v2851 = vsel %vm2819, %v2787, 0.0
      %v2852 = vsel %vm2820, %v2788, 0.0
      %v2853 = vsel %vm2821, %v2789, 0.0
      %v2854 = vsel %vm2822, %v2790, 0.0
      %v2855 = vsel %vm2823, %v2791, 0.0
      %v2856 = vsel %vm2824, %v2792, 0.0
      %v2857 = vsel %vm2825, %v2793, 0.0
      %v2858 = vsel %vm2826, %v2794, 0.0
      %v2859 = vsel %vm2827, %v2795, 0.0
      %v2860 = vsel %vm2828, %v2796, 0.0
      %v2861 = vsel %vm2829, %v2797, 0.0
      %v2862 = vsel %vm2830, %v2798, 0.0
      %v2863 = vsel %vm2831, %v2799, 0.0
      %v2864 = vsel %vm2832, %v2800, 0.0
      %v2865 = vsel %vm2833, %v2801, 0.0
      %v2866 = vsel %vm2834, %v2802, 0.0
      %v2867 = vsel %vm2835, %v2803, 0.0
      %v2868 = vsel %vm2836, %v2804, 0.0
      %v2869 = vsel %vm2837, %v2805, 0.0
      %v2870 = vsel %vm2838, %v2806, 0.0
      %v2871 = vsel %vm2839, %v2807, 0.0
      %v2872 = vsel %vm2840, %v2808, 0.0
      %v2873 = vsel %vm2841, %v2809, 0.0
      %v2874 = vsel %vm2842, %v2810, 0.0
      %v2875 = vsel %vm2843, %v2811, 0.0
      %v2876 = vsel %vm2844, %v2812, 0.0
      %v2877 = vsel %vm2845, %v2813, 0.0
      %v2878 = vpack.c.bf16 %v2847, %v2846
      %v2879 = vpack.c.bf16 %v2849, %v2848
      %v2880 = vpack.c.bf16 %v2851, %v2850
      %v2881 = vpack.c.bf16 %v2853, %v2852
      %v2882 = vpack.c.bf16 %v2855, %v2854
      %v2883 = vpack.c.bf16 %v2857, %v2856
      %v2884 = vpack.c.bf16 %v2859, %v2858
      %v2885 = vpack.c.bf16 %v2861, %v2860
      %v2886 = vpack.c.bf16 %v2863, %v2862
      %v2887 = vpack.c.bf16 %v2865, %v2864
      %v2888 = vpack.c.bf16 %v2867, %v2866
      %v2889 = vpack.c.bf16 %v2869, %v2868
      %v2890 = vpack.c.bf16 %v2871, %v2870
      %v2891 = vpack.c.bf16 %v2873, %v2872
      %v2892 = vpack.c.bf16 %v2875, %v2874
      %v2893 = vpack.c.bf16 %v2877, %v2876
      %v2910 = vunpack.c.l.b16 %v2878
      %v2911 = vunpack.c.h.b16 %v2878
      %v2912 = vunpack.c.l.b16 %v2879
      %v2913 = vunpack.c.h.b16 %v2879
      %v2914 = vunpack.c.l.b16 %v2880
      %v2915 = vunpack.c.h.b16 %v2880
      %v2916 = vunpack.c.l.b16 %v2881
      %v2917 = vunpack.c.h.b16 %v2881
      %v2918 = vunpack.c.l.b16 %v2882
      %v2919 = vunpack.c.h.b16 %v2882
      %v2920 = vunpack.c.l.b16 %v2883
      %v2921 = vunpack.c.h.b16 %v2883
      %v2922 = vunpack.c.l.b16 %v2884
      %v2923 = vunpack.c.h.b16 %v2884
      %v2924 = vunpack.c.l.b16 %v2885
      %v2925 = vunpack.c.h.b16 %v2885
      %v2926 = vunpack.c.l.b16 %v2886
      %v2927 = vunpack.c.h.b16 %v2886
      %v2928 = vunpack.c.l.b16 %v2887
      %v2929 = vunpack.c.h.b16 %v2887
      %v2930 = vunpack.c.l.b16 %v2888
      %v2931 = vunpack.c.h.b16 %v2888
      %v2932 = vunpack.c.l.b16 %v2889
      %v2933 = vunpack.c.h.b16 %v2889
      %v2934 = vunpack.c.l.b16 %v2890
      %v2935 = vunpack.c.h.b16 %v2890
      %v2936 = vunpack.c.l.b16 %v2891
      %v2937 = vunpack.c.h.b16 %v2891
      %v2938 = vunpack.c.l.b16 %v2892
      %v2939 = vunpack.c.h.b16 %v2892
      %v2940 = vunpack.c.l.b16 %v2893
      %v2941 = vunpack.c.h.b16 %v2893
      %v2942 = vpack.c.b16 %v2910, %v2910
      %v2943 = vpack.c.b16 %v2911, %v2911
      %v2944 = vpack.c.b16 %v2912, %v2912
      %v2945 = vpack.c.b16 %v2913, %v2913
      %v2946 = vpack.c.b16 %v2914, %v2914
      %v2947 = vpack.c.b16 %v2915, %v2915
      %v2948 = vpack.c.b16 %v2916, %v2916
      %v2949 = vpack.c.b16 %v2917, %v2917
      %v2950 = vpack.c.b16 %v2918, %v2918
      %v2951 = vpack.c.b16 %v2919, %v2919
      %v2952 = vpack.c.b16 %v2920, %v2920
      %v2953 = vpack.c.b16 %v2921, %v2921
      %v2954 = vpack.c.b16 %v2922, %v2922
      %v2955 = vpack.c.b16 %v2923, %v2923
      %v2956 = vpack.c.b16 %v2924, %v2924
      %v2957 = vpack.c.b16 %v2925, %v2925
      %v2958 = vpack.c.b16 %v2926, %v2926
      %v2959 = vpack.c.b16 %v2927, %v2927
      %v2960 = vpack.c.b16 %v2928, %v2928
      %v2961 = vpack.c.b16 %v2929, %v2929
      %v2962 = vpack.c.b16 %v2930, %v2930
      %v2963 = vpack.c.b16 %v2931, %v2931
      %v2964 = vpack.c.b16 %v2932, %v2932
      %v2965 = vpack.c.b16 %v2933, %v2933
      %v2966 = vpack.c.b16 %v2934, %v2934
      %v2967 = vpack.c.b16 %v2935, %v2935
      %v2968 = vpack.c.b16 %v2936, %v2936
      %v2969 = vpack.c.b16 %v2937, %v2937
      %v2970 = vpack.c.b16 %v2938, %v2938
      %v2971 = vpack.c.b16 %v2939, %v2939
      %v2972 = vpack.c.b16 %v2940, %v2940
      %v2973 = vpack.c.b16 %v2941, %v2941
      %vm3006 = vcmask 257024
      %3007 = vst.msk [vmem:[#allocation5] sm:$0xf] %vm3006, %v2942
      %3008 = vst.msk [vmem:[#allocation5 + $0xc] sm:$0xf] %vm3006, %v2943
      %3009 = vst.msk [vmem:[#allocation5 + $0x18] sm:$0xf] %vm3006, %v2944
      %3010 = vst.msk [vmem:[#allocation5 + $0x24] sm:$0xf] %vm3006, %v2945
      %3011 = vst.msk [vmem:[#allocation5 + $0x30] sm:$0xf] %vm3006, %v2946
      %3012 = vst.msk [vmem:[#allocation5 + $0x3c] sm:$0xf] %vm3006, %v2947
      %3013 = vst.msk [vmem:[#allocation5 + $0x48] sm:$0xf] %vm3006, %v2948
      %3014 = vst.msk [vmem:[#allocation5 + $0x54] sm:$0xf] %vm3006, %v2949
      %3015 = vst.msk [vmem:[#allocation5 + $0x60] sm:$0xf] %vm3006, %v2950
      %3016 = vst.msk [vmem:[#allocation5 + $0x6c] sm:$0xf] %vm3006, %v2951
      %3017 = vst.msk [vmem:[#allocation5 + $0x78] sm:$0xf] %vm3006, %v2952
      %3018 = vst.msk [vmem:[#allocation5 + $0x84] sm:$0xf] %vm3006, %v2953
      %3019 = vst.msk [vmem:[#allocation5 + $0x90] sm:$0xf] %vm3006, %v2954
      %3020 = vst.msk [vmem:[#allocation5 + $0x9c] sm:$0xf] %vm3006, %v2955
      %3021 = vst.msk [vmem:[#allocation5 + $0xa8] sm:$0xf] %vm3006, %v2956
      %3022 = vst.msk [vmem:[#allocation5 + $0xb4] sm:$0xf] %vm3006, %v2957
      %3023 = vst.msk [vmem:[#allocation5 + $0xc0] sm:$0xf] %vm3006, %v2958
      %3024 = vst.msk [vmem:[#allocation5 + $0xcc] sm:$0xf] %vm3006, %v2959
      %3025 = vst.msk [vmem:[#allocation5 + $0xd8] sm:$0xf] %vm3006, %v2960
      %3026 = vst.msk [vmem:[#allocation5 + $0xe4] sm:$0xf] %vm3006, %v2961
      %3027 = vst.msk [vmem:[#allocation5 + $0xf0] sm:$0xf] %vm3006, %v2962
      %3028 = vst.msk [vmem:[#allocation5 + $0xfc] sm:$0xf] %vm3006, %v2963
      %3029 = vst.msk [vmem:[#allocation5 + $0x108] sm:$0xf] %vm3006, %v2964
      %3030 = vst.msk [vmem:[#allocation5 + $0x114] sm:$0xf] %vm3006, %v2965
      %3031 = vst.msk [vmem:[#allocation5 + $0x120] sm:$0xf] %vm3006, %v2966
      %3032 = vst.msk [vmem:[#allocation5 + $0x12c] sm:$0xf] %vm3006, %v2967
      %3033 = vst.msk [vmem:[#allocation5 + $0x138] sm:$0xf] %vm3006, %v2968
      %3034 = vst.msk [vmem:[#allocation5 + $0x144] sm:$0xf] %vm3006, %v2969
      %3035 = vst.msk [vmem:[#allocation5 + $0x150] sm:$0xf] %vm3006, %v2970
      %3036 = vst.msk [vmem:[#allocation5 + $0x15c] sm:$0xf] %vm3006, %v2971
      %3037 = vst.msk [vmem:[#allocation5 + $0x168] sm:$0xf] %vm3006, %v2972
      %3038 = vst.msk [vmem:[#allocation5 + $0x174] sm:$0xf] %vm3006, %v2973
      %v3039 = vld [vmem:[#allocation4 + $0x8] sm:$0xff]
      %v3040 = vld [vmem:[#allocation4 + $0x10] sm:$0xff]
      %v3041 = vld [vmem:[#allocation4 + $0x18] sm:$0xff]
      %v3042 = vld [vmem:[#allocation4 + $0x20] sm:$0xff]
      %v3043 = vld [vmem:[#allocation4 + $0x28] sm:$0xff]
      %v3044 = vld [vmem:[#allocation4 + $0x30] sm:$0xff]
      %v3045 = vld [vmem:[#allocation4 + $0x38] sm:$0xff]
      %v3046 = vld [vmem:[#allocation4 + $0x40] sm:$0xff]
      %v3047 = vld [vmem:[#allocation4 + $0x48] sm:$0xff]
      %v3048 = vld [vmem:[#allocation4 + $0x50] sm:$0xff]
      %v3049 = vld [vmem:[#allocation4 + $0x58] sm:$0xff]
      %v3050 = vld [vmem:[#allocation4 + $0x60] sm:$0xff]
      %v3051 = vld [vmem:[#allocation4 + $0x68] sm:$0xff]
      %v3052 = vld [vmem:[#allocation4 + $0x70] sm:$0xff]
      %v3053 = vld [vmem:[#allocation4 + $0x78] sm:$0xff]
      %v3054 = vld [vmem:[#allocation4 + $0x80] sm:$0xff]
      %v3055 = vld [vmem:[#allocation4 + $0x88] sm:$0xff]
      %v3056 = vld [vmem:[#allocation4 + $0x90] sm:$0xff]
      %v3057 = vld [vmem:[#allocation4 + $0x98] sm:$0xff]
      %v3058 = vld [vmem:[#allocation4 + $0xa0] sm:$0xff]
      %v3059 = vld [vmem:[#allocation4 + $0xa8] sm:$0xff]
      %v3060 = vld [vmem:[#allocation4 + $0xb0] sm:$0xff]
      %v3061 = vld [vmem:[#allocation4 + $0xb8] sm:$0xff]
      %v3062 = vld [vmem:[#allocation4 + $0xc0] sm:$0xff]
      %v3063 = vld [vmem:[#allocation4 + $0xc8] sm:$0xff]
      %v3064 = vld [vmem:[#allocation4 + $0xd0] sm:$0xff]
      %v3065 = vld [vmem:[#allocation4 + $0xd8] sm:$0xff]
      %v3066 = vld [vmem:[#allocation4 + $0xe0] sm:$0xff]
      %v3067 = vld [vmem:[#allocation4 + $0xe8] sm:$0xff]
      %v3068 = vld [vmem:[#allocation4 + $0xf0] sm:$0xff]
      %v3069 = vld [vmem:[#allocation4 + $0xf8] sm:$0xff]
      %v3070 = vld [vmem:[#allocation4 + $0x100] sm:$0xff]
      %v3071 = vpack.c.bf16 %v3040, %v3039
      %v3072 = vpack.c.bf16 %v3042, %v3041
      %v3073 = vpack.c.bf16 %v3044, %v3043
      %v3074 = vpack.c.bf16 %v3046, %v3045
      %v3075 = vpack.c.bf16 %v3048, %v3047
      %v3076 = vpack.c.bf16 %v3050, %v3049
      %v3077 = vpack.c.bf16 %v3052, %v3051
      %v3078 = vpack.c.bf16 %v3054, %v3053
      %v3079 = vpack.c.bf16 %v3056, %v3055
      %v3080 = vpack.c.bf16 %v3058, %v3057
      %v3081 = vpack.c.bf16 %v3060, %v3059
      %v3082 = vpack.c.bf16 %v3062, %v3061
      %v3083 = vpack.c.bf16 %v3064, %v3063
      %v3084 = vpack.c.bf16 %v3066, %v3065
      %v3085 = vpack.c.bf16 %v3068, %v3067
      %v3086 = vpack.c.bf16 %v3070, %v3069
      %v3103 = vunpack.c.l.b16 %v3071
      %v3104 = vunpack.c.h.b16 %v3071
      %v3105 = vunpack.c.l.b16 %v3072
      %v3106 = vunpack.c.h.b16 %v3072
      %v3107 = vunpack.c.l.b16 %v3073
      %v3108 = vunpack.c.h.b16 %v3073
      %v3109 = vunpack.c.l.b16 %v3074
      %v3110 = vunpack.c.h.b16 %v3074
      %v3111 = vunpack.c.l.b16 %v3075
      %v3112 = vunpack.c.h.b16 %v3075
      %v3113 = vunpack.c.l.b16 %v3076
      %v3114 = vunpack.c.h.b16 %v3076
      %v3115 = vunpack.c.l.b16 %v3077
      %v3116 = vunpack.c.h.b16 %v3077
      %v3117 = vunpack.c.l.b16 %v3078
      %v3118 = vunpack.c.h.b16 %v3078
      %v3119 = vunpack.c.l.b16 %v3079
      %v3120 = vunpack.c.h.b16 %v3079
      %v3121 = vunpack.c.l.b16 %v3080
      %v3122 = vunpack.c.h.b16 %v3080
      %v3123 = vunpack.c.l.b16 %v3081
      %v3124 = vunpack.c.h.b16 %v3081
      %v3125 = vunpack.c.l.b16 %v3082
      %v3126 = vunpack.c.h.b16 %v3082
      %v3127 = vunpack.c.l.b16 %v3083
      %v3128 = vunpack.c.h.b16 %v3083
      %v3129 = vunpack.c.l.b16 %v3084
      %v3130 = vunpack.c.h.b16 %v3084
      %v3131 = vunpack.c.l.b16 %v3085
      %v3132 = vunpack.c.h.b16 %v3085
      %v3133 = vunpack.c.l.b16 %v3086
      %v3134 = vunpack.c.h.b16 %v3086
      %v3135 = vpack.c.b16 %v3103, %v3103
      %v3136 = vpack.c.b16 %v3104, %v3104
      %v3137 = vpack.c.b16 %v3105, %v3105
      %v3138 = vpack.c.b16 %v3106, %v3106
      %v3139 = vpack.c.b16 %v3107, %v3107
      %v3140 = vpack.c.b16 %v3108, %v3108
      %v3141 = vpack.c.b16 %v3109, %v3109
      %v3142 = vpack.c.b16 %v3110, %v3110
      %v3143 = vpack.c.b16 %v3111, %v3111
      %v3144 = vpack.c.b16 %v3112, %v3112
      %v3145 = vpack.c.b16 %v3113, %v3113
      %v3146 = vpack.c.b16 %v3114, %v3114
      %v3147 = vpack.c.b16 %v3115, %v3115
      %v3148 = vpack.c.b16 %v3116, %v3116
      %v3149 = vpack.c.b16 %v3117, %v3117
      %v3150 = vpack.c.b16 %v3118, %v3118
      %v3151 = vpack.c.b16 %v3119, %v3119
      %v3152 = vpack.c.b16 %v3120, %v3120
      %v3153 = vpack.c.b16 %v3121, %v3121
      %v3154 = vpack.c.b16 %v3122, %v3122
      %v3155 = vpack.c.b16 %v3123, %v3123
      %v3156 = vpack.c.b16 %v3124, %v3124
      %v3157 = vpack.c.b16 %v3125, %v3125
      %v3158 = vpack.c.b16 %v3126, %v3126
      %v3159 = vpack.c.b16 %v3127, %v3127
      %v3160 = vpack.c.b16 %v3128, %v3128
      %v3161 = vpack.c.b16 %v3129, %v3129
      %v3162 = vpack.c.b16 %v3130, %v3130
      %v3163 = vpack.c.b16 %v3131, %v3131
      %v3164 = vpack.c.b16 %v3132, %v3132
      %v3165 = vpack.c.b16 %v3133, %v3133
      %v3166 = vpack.c.b16 %v3134, %v3134
      %3167 = vrot.lane.b32.xlu0 %v3135, 32
      %v3168 = vpop.permute.xlu0 %3167
      %3169 = vrot.lane.b32.xlu0 %v3136, 32
      %v3170 = vpop.permute.xlu0 %3169
      %3171 = vrot.lane.b32.xlu0 %v3137, 32
      %v3172 = vpop.permute.xlu0 %3171
      %3173 = vrot.lane.b32.xlu0 %v3138, 32
      %v3174 = vpop.permute.xlu0 %3173
      %3175 = vrot.lane.b32.xlu0 %v3139, 32
      %v3176 = vpop.permute.xlu0 %3175
      %3177 = vrot.lane.b32.xlu0 %v3140, 32
      %v3178 = vpop.permute.xlu0 %3177
      %3179 = vrot.lane.b32.xlu0 %v3141, 32
      %v3180 = vpop.permute.xlu0 %3179
      %3181 = vrot.lane.b32.xlu0 %v3142, 32
      %v3182 = vpop.permute.xlu0 %3181
      %3183 = vrot.lane.b32.xlu0 %v3143, 32
      %v3184 = vpop.permute.xlu0 %3183
      %3185 = vrot.lane.b32.xlu0 %v3144, 32
      %v3186 = vpop.permute.xlu0 %3185
      %3187 = vrot.lane.b32.xlu0 %v3145, 32
      %v3188 = vpop.permute.xlu0 %3187
      %3189 = vrot.lane.b32.xlu0 %v3146, 32
      %v3190 = vpop.permute.xlu0 %3189
      %3191 = vrot.lane.b32.xlu0 %v3147, 32
      %v3192 = vpop.permute.xlu0 %3191
      %3193 = vrot.lane.b32.xlu0 %v3148, 32
      %v3194 = vpop.permute.xlu0 %3193
      %3195 = vrot.lane.b32.xlu0 %v3149, 32
      %v3196 = vpop.permute.xlu0 %3195
      %3197 = vrot.lane.b32.xlu0 %v3150, 32
      %v3198 = vpop.permute.xlu0 %3197
      %3199 = vrot.lane.b32.xlu0 %v3151, 32
      %v3200 = vpop.permute.xlu0 %3199
      %3201 = vrot.lane.b32.xlu0 %v3152, 32
      %v3202 = vpop.permute.xlu0 %3201
      %3203 = vrot.lane.b32.xlu0 %v3153, 32
      %v3204 = vpop.permute.xlu0 %3203
      %3205 = vrot.lane.b32.xlu0 %v3154, 32
      %v3206 = vpop.permute.xlu0 %3205
      %3207 = vrot.lane.b32.xlu0 %v3155, 32
      %v3208 = vpop.permute.xlu0 %3207
      %3209 = vrot.lane.b32.xlu0 %v3156, 32
      %v3210 = vpop.permute.xlu0 %3209
      %3211 = vrot.lane.b32.xlu0 %v3157, 32
      %v3212 = vpop.permute.xlu0 %3211
      %3213 = vrot.lane.b32.xlu0 %v3158, 32
      %v3214 = vpop.permute.xlu0 %3213
      %3215 = vrot.lane.b32.xlu0 %v3159, 32
      %v3216 = vpop.permute.xlu0 %3215
      %3217 = vrot.lane.b32.xlu0 %v3160, 32
      %v3218 = vpop.permute.xlu0 %3217
      %3219 = vrot.lane.b32.xlu0 %v3161, 32
      %v3220 = vpop.permute.xlu0 %3219
      %3221 = vrot.lane.b32.xlu0 %v3162, 32
      %v3222 = vpop.permute.xlu0 %3221
      %3223 = vrot.lane.b32.xlu0 %v3163, 32
      %v3224 = vpop.permute.xlu0 %3223
      %3225 = vrot.lane.b32.xlu0 %v3164, 32
      %v3226 = vpop.permute.xlu0 %3225
      %3227 = vrot.lane.b32.xlu0 %v3165, 32
      %v3228 = vpop.permute.xlu0 %3227
      %3229 = vrot.lane.b32.xlu0 %v3166, 32
      %v3230 = vpop.permute.xlu0 %3229
      %vm3263 = vcmask 519424
      %3264 = vst.msk [vmem:[#allocation5] sm:$0xf] %vm3263, %v3168
      %3265 = vst.msk [vmem:[#allocation5 + $0xc] sm:$0xf] %vm3263, %v3170
      %3266 = vst.msk [vmem:[#allocation5 + $0x18] sm:$0xf] %vm3263, %v3172
      %3267 = vst.msk [vmem:[#allocation5 + $0x24] sm:$0xf] %vm3263, %v3174
      %3268 = vst.msk [vmem:[#allocation5 + $0x30] sm:$0xf] %vm3263, %v3176
      %3269 = vst.msk [vmem:[#allocation5 + $0x3c] sm:$0xf] %vm3263, %v3178
      %3270 = vst.msk [vmem:[#allocation5 + $0x48] sm:$0xf] %vm3263, %v3180
      %3271 = vst.msk [vmem:[#allocation5 + $0x54] sm:$0xf] %vm3263, %v3182
      %3272 = vst.msk [vmem:[#allocation5 + $0x60] sm:$0xf] %vm3263, %v3184
      %3273 = vst.msk [vmem:[#allocation5 + $0x6c] sm:$0xf] %vm3263, %v3186
      %3274 = vst.msk [vmem:[#allocation5 + $0x78] sm:$0xf] %vm3263, %v3188
      %3275 = vst.msk [vmem:[#allocation5 + $0x84] sm:$0xf] %vm3263, %v3190
      %3276 = vst.msk [vmem:[#allocation5 + $0x90] sm:$0xf] %vm3263, %v3192
      %3277 = vst.msk [vmem:[#allocation5 + $0x9c] sm:$0xf] %vm3263, %v3194
      %3278 = vst.msk [vmem:[#allocation5 + $0xa8] sm:$0xf] %vm3263, %v3196
      %3279 = vst.msk [vmem:[#allocation5 + $0xb4] sm:$0xf] %vm3263, %v3198
      %3280 = vst.msk [vmem:[#allocation5 + $0xc0] sm:$0xf] %vm3263, %v3200
      %3281 = vst.msk [vmem:[#allocation5 + $0xcc] sm:$0xf] %vm3263, %v3202
      %3282 = vst.msk [vmem:[#allocation5 + $0xd8] sm:$0xf] %vm3263, %v3204
      %3283 = vst.msk [vmem:[#allocation5 + $0xe4] sm:$0xf] %vm3263, %v3206
      %3284 = vst.msk [vmem:[#allocation5 + $0xf0] sm:$0xf] %vm3263, %v3208
      %3285 = vst.msk [vmem:[#allocation5 + $0xfc] sm:$0xf] %vm3263, %v3210
      %3286 = vst.msk [vmem:[#allocation5 + $0x108] sm:$0xf] %vm3263, %v3212
      %3287 = vst.msk [vmem:[#allocation5 + $0x114] sm:$0xf] %vm3263, %v3214
      %3288 = vst.msk [vmem:[#allocation5 + $0x120] sm:$0xf] %vm3263, %v3216
      %3289 = vst.msk [vmem:[#allocation5 + $0x12c] sm:$0xf] %vm3263, %v3218
      %3290 = vst.msk [vmem:[#allocation5 + $0x138] sm:$0xf] %vm3263, %v3220
      %3291 = vst.msk [vmem:[#allocation5 + $0x144] sm:$0xf] %vm3263, %v3222
      %3292 = vst.msk [vmem:[#allocation5 + $0x150] sm:$0xf] %vm3263, %v3224
      %3293 = vst.msk [vmem:[#allocation5 + $0x15c] sm:$0xf] %vm3263, %v3226
      %3294 = vst.msk [vmem:[#allocation5 + $0x168] sm:$0xf] %vm3263, %v3228
      %3295 = vst.msk [vmem:[#allocation5 + $0x174] sm:$0xf] %vm3263, %v3230
      %v3296 = vld [vmem:[#allocation4 + $0x9] sm:$0xff]
      %v3297 = vld [vmem:[#allocation4 + $0x11] sm:$0xff]
      %v3298 = vld [vmem:[#allocation4 + $0x19] sm:$0xff]
      %v3299 = vld [vmem:[#allocation4 + $0x21] sm:$0xff]
      %v3300 = vld [vmem:[#allocation4 + $0x29] sm:$0xff]
      %v3301 = vld [vmem:[#allocation4 + $0x31] sm:$0xff]
      %v3302 = vld [vmem:[#allocation4 + $0x39] sm:$0xff]
      %v3303 = vld [vmem:[#allocation4 + $0x41] sm:$0xff]
      %v3304 = vld [vmem:[#allocation4 + $0x49] sm:$0xff]
      %v3305 = vld [vmem:[#allocation4 + $0x51] sm:$0xff]
      %v3306 = vld [vmem:[#allocation4 + $0x59] sm:$0xff]
      %v3307 = vld [vmem:[#allocation4 + $0x61] sm:$0xff]
      %v3308 = vld [vmem:[#allocation4 + $0x69] sm:$0xff]
      %v3309 = vld [vmem:[#allocation4 + $0x71] sm:$0xff]
      %v3310 = vld [vmem:[#allocation4 + $0x79] sm:$0xff]
      %v3311 = vld [vmem:[#allocation4 + $0x81] sm:$0xff]
      %v3312 = vld [vmem:[#allocation4 + $0x89] sm:$0xff]
      %v3313 = vld [vmem:[#allocation4 + $0x91] sm:$0xff]
      %v3314 = vld [vmem:[#allocation4 + $0x99] sm:$0xff]
      %v3315 = vld [vmem:[#allocation4 + $0xa1] sm:$0xff]
      %v3316 = vld [vmem:[#allocation4 + $0xa9] sm:$0xff]
      %v3317 = vld [vmem:[#allocation4 + $0xb1] sm:$0xff]
      %v3318 = vld [vmem:[#allocation4 + $0xb9] sm:$0xff]
      %v3319 = vld [vmem:[#allocation4 + $0xc1] sm:$0xff]
      %v3320 = vld [vmem:[#allocation4 + $0xc9] sm:$0xff]
      %v3321 = vld [vmem:[#allocation4 + $0xd1] sm:$0xff]
      %v3322 = vld [vmem:[#allocation4 + $0xd9] sm:$0xff]
      %v3323 = vld [vmem:[#allocation4 + $0xe1] sm:$0xff]
      %v3324 = vld [vmem:[#allocation4 + $0xe9] sm:$0xff]
      %v3325 = vld [vmem:[#allocation4 + $0xf1] sm:$0xff]
      %v3326 = vld [vmem:[#allocation4 + $0xf9] sm:$0xff]
      %v3327 = vld [vmem:[#allocation4 + $0x101] sm:$0xff]
      %vm3328 = vcmp.le.s32.totalorder %v2750, 14
      %vm3329 = vcmp.le.s32.totalorder %v2751, 14
      %vm3330 = vcmp.le.s32.totalorder %v2752, 14
      %vm3331 = vcmp.le.s32.totalorder %v2753, 14
      %vm3332 = vcmp.le.s32.totalorder %v2754, 14
      %vm3333 = vcmp.le.s32.totalorder %v2755, 14
      %vm3334 = vcmp.le.s32.totalorder %v2756, 14
      %vm3335 = vcmp.le.s32.totalorder %v2757, 14
      %vm3336 = vcmp.le.s32.totalorder %v2758, 14
      %vm3337 = vcmp.le.s32.totalorder %v2759, 14
      %vm3338 = vcmp.le.s32.totalorder %v2760, 14
      %vm3339 = vcmp.le.s32.totalorder %v2761, 14
      %vm3340 = vcmp.le.s32.totalorder %v2762, 14
      %vm3341 = vcmp.le.s32.totalorder %v2763, 14
      %vm3342 = vcmp.le.s32.totalorder %v2764, 14
      %vm3343 = vcmp.le.s32.totalorder %v2765, 14
      %vm3344 = vcmp.le.s32.totalorder %v2766, 14
      %vm3345 = vcmp.le.s32.totalorder %v2767, 14
      %vm3346 = vcmp.le.s32.totalorder %v2768, 14
      %vm3347 = vcmp.le.s32.totalorder %v2769, 14
      %vm3348 = vcmp.le.s32.totalorder %v2770, 14
      %vm3349 = vcmp.le.s32.totalorder %v2771, 14
      %vm3350 = vcmp.le.s32.totalorder %v2772, 14
      %vm3351 = vcmp.le.s32.totalorder %v2773, 14
      %vm3352 = vcmp.le.s32.totalorder %v2774, 14
      %vm3353 = vcmp.le.s32.totalorder %v2775, 14
      %vm3354 = vcmp.le.s32.totalorder %v2776, 14
      %vm3355 = vcmp.le.s32.totalorder %v2777, 14
      %vm3356 = vcmp.le.s32.totalorder %v2778, 14
      %vm3357 = vcmp.le.s32.totalorder %v2779, 14
      %vm3358 = vcmp.le.s32.totalorder %v2780, 14
      %vm3359 = vcmp.le.s32.totalorder %v2781, 14
      %v3360 = vsel %vm3328, %v3296, 0.0
      %v3361 = vsel %vm3329, %v3297, 0.0
      %v3362 = vsel %vm3330, %v3298, 0.0
      %v3363 = vsel %vm3331, %v3299, 0.0
      %v3364 = vsel %vm3332, %v3300, 0.0
      %v3365 = vsel %vm3333, %v3301, 0.0
      %v3366 = vsel %vm3334, %v3302, 0.0
      %v3367 = vsel %vm3335, %v3303, 0.0
      %v3368 = vsel %vm3336, %v3304, 0.0
      %v3369 = vsel %vm3337, %v3305, 0.0
      %v3370 = vsel %vm3338, %v3306, 0.0
      %v3371 = vsel %vm3339, %v3307, 0.0
      %v3372 = vsel %vm3340, %v3308, 0.0
      %v3373 = vsel %vm3341, %v3309, 0.0
      %v3374 = vsel %vm3342, %v3310, 0.0
      %v3375 = vsel %vm3343, %v3311, 0.0
      %v3376 = vsel %vm3344, %v3312, 0.0
      %v3377 = vsel %vm3345, %v3313, 0.0
      %v3378 = vsel %vm3346, %v3314, 0.0
      %v3379 = vsel %vm3347, %v3315, 0.0
      %v3380 = vsel %vm3348, %v3316, 0.0
      %v3381 = vsel %vm3349, %v3317, 0.0
      %v3382 = vsel %vm3350, %v3318, 0.0
      %v3383 = vsel %vm3351, %v3319, 0.0
      %v3384 = vsel %vm3352, %v3320, 0.0
      %v3385 = vsel %vm3353, %v3321, 0.0
      %v3386 = vsel %vm3354, %v3322, 0.0
      %v3387 = vsel %vm3355, %v3323, 0.0
      %v3388 = vsel %vm3356, %v3324, 0.0
      %v3389 = vsel %vm3357, %v3325, 0.0
      %v3390 = vsel %vm3358, %v3326, 0.0
      %v3391 = vsel %vm3359, %v3327, 0.0
      %v3392 = vpack.c.bf16 %v3361, %v3360
      %v3393 = vpack.c.bf16 %v3363, %v3362
      %v3394 = vpack.c.bf16 %v3365, %v3364
      %v3395 = vpack.c.bf16 %v3367, %v3366
      %v3396 = vpack.c.bf16 %v3369, %v3368
      %v3397 = vpack.c.bf16 %v3371, %v3370
      %v3398 = vpack.c.bf16 %v3373, %v3372
      %v3399 = vpack.c.bf16 %v3375, %v3374
      %v3400 = vpack.c.bf16 %v3377, %v3376
      %v3401 = vpack.c.bf16 %v3379, %v3378
      %v3402 = vpack.c.bf16 %v3381, %v3380
      %v3403 = vpack.c.bf16 %v3383, %v3382
      %v3404 = vpack.c.bf16 %v3385, %v3384
      %v3405 = vpack.c.bf16 %v3387, %v3386
      %v3406 = vpack.c.bf16 %v3389, %v3388
      %v3407 = vpack.c.bf16 %v3391, %v3390
      %v3424 = vunpack.c.l.b16 %v3392
      %v3425 = vunpack.c.h.b16 %v3392
      %v3426 = vunpack.c.l.b16 %v3393
      %v3427 = vunpack.c.h.b16 %v3393
      %v3428 = vunpack.c.l.b16 %v3394
      %v3429 = vunpack.c.h.b16 %v3394
      %v3430 = vunpack.c.l.b16 %v3395
      %v3431 = vunpack.c.h.b16 %v3395
      %v3432 = vunpack.c.l.b16 %v3396
      %v3433 = vunpack.c.h.b16 %v3396
      %v3434 = vunpack.c.l.b16 %v3397
      %v3435 = vunpack.c.h.b16 %v3397
      %v3436 = vunpack.c.l.b16 %v3398
      %v3437 = vunpack.c.h.b16 %v3398
      %v3438 = vunpack.c.l.b16 %v3399
      %v3439 = vunpack.c.h.b16 %v3399
      %v3440 = vunpack.c.l.b16 %v3400
      %v3441 = vunpack.c.h.b16 %v3400
      %v3442 = vunpack.c.l.b16 %v3401
      %v3443 = vunpack.c.h.b16 %v3401
      %v3444 = vunpack.c.l.b16 %v3402
      %v3445 = vunpack.c.h.b16 %v3402
      %v3446 = vunpack.c.l.b16 %v3403
      %v3447 = vunpack.c.h.b16 %v3403
      %v3448 = vunpack.c.l.b16 %v3404
      %v3449 = vunpack.c.h.b16 %v3404
      %v3450 = vunpack.c.l.b16 %v3405
      %v3451 = vunpack.c.h.b16 %v3405
      %v3452 = vunpack.c.l.b16 %v3406
      %v3453 = vunpack.c.h.b16 %v3406
      %v3454 = vunpack.c.l.b16 %v3407
      %v3455 = vunpack.c.h.b16 %v3407
      %v3456 = vpack.c.b16 %v3424, %v3424
      %v3457 = vpack.c.b16 %v3425, %v3425
      %v3458 = vpack.c.b16 %v3426, %v3426
      %v3459 = vpack.c.b16 %v3427, %v3427
      %v3460 = vpack.c.b16 %v3428, %v3428
      %v3461 = vpack.c.b16 %v3429, %v3429
      %v3462 = vpack.c.b16 %v3430, %v3430
      %v3463 = vpack.c.b16 %v3431, %v3431
      %v3464 = vpack.c.b16 %v3432, %v3432
      %v3465 = vpack.c.b16 %v3433, %v3433
      %v3466 = vpack.c.b16 %v3434, %v3434
      %v3467 = vpack.c.b16 %v3435, %v3435
      %v3468 = vpack.c.b16 %v3436, %v3436
      %v3469 = vpack.c.b16 %v3437, %v3437
      %v3470 = vpack.c.b16 %v3438, %v3438
      %v3471 = vpack.c.b16 %v3439, %v3439
      %v3472 = vpack.c.b16 %v3440, %v3440
      %v3473 = vpack.c.b16 %v3441, %v3441
      %v3474 = vpack.c.b16 %v3442, %v3442
      %v3475 = vpack.c.b16 %v3443, %v3443
      %v3476 = vpack.c.b16 %v3444, %v3444
      %v3477 = vpack.c.b16 %v3445, %v3445
      %v3478 = vpack.c.b16 %v3446, %v3446
      %v3479 = vpack.c.b16 %v3447, %v3447
      %v3480 = vpack.c.b16 %v3448, %v3448
      %v3481 = vpack.c.b16 %v3449, %v3449
      %v3482 = vpack.c.b16 %v3450, %v3450
      %v3483 = vpack.c.b16 %v3451, %v3451
      %v3484 = vpack.c.b16 %v3452, %v3452
      %v3485 = vpack.c.b16 %v3453, %v3453
      %v3486 = vpack.c.b16 %v3454, %v3454
      %v3487 = vpack.c.b16 %v3455, %v3455
      %3488 = vrot.lane.b32.xlu0 %v3456, 64
      %v3489 = vpop.permute.xlu0 %3488
      %3490 = vrot.lane.b32.xlu0 %v3457, 64
      %v3491 = vpop.permute.xlu0 %3490
      %3492 = vrot.lane.b32.xlu0 %v3458, 64
      %v3493 = vpop.permute.xlu0 %3492
      %3494 = vrot.lane.b32.xlu0 %v3459, 64
      %v3495 = vpop.permute.xlu0 %3494
      %3496 = vrot.lane.b32.xlu0 %v3460, 64
      %v3497 = vpop.permute.xlu0 %3496
      %3498 = vrot.lane.b32.xlu0 %v3461, 64
      %v3499 = vpop.permute.xlu0 %3498
      %3500 = vrot.lane.b32.xlu0 %v3462, 64
      %v3501 = vpop.permute.xlu0 %3500
      %3502 = vrot.lane.b32.xlu0 %v3463, 64
      %v3503 = vpop.permute.xlu0 %3502
      %3504 = vrot.lane.b32.xlu0 %v3464, 64
      %v3505 = vpop.permute.xlu0 %3504
      %3506 = vrot.lane.b32.xlu0 %v3465, 64
      %v3507 = vpop.permute.xlu0 %3506
      %3508 = vrot.lane.b32.xlu0 %v3466, 64
      %v3509 = vpop.permute.xlu0 %3508
      %3510 = vrot.lane.b32.xlu0 %v3467, 64
      %v3511 = vpop.permute.xlu0 %3510
      %3512 = vrot.lane.b32.xlu0 %v3468, 64
      %v3513 = vpop.permute.xlu0 %3512
      %3514 = vrot.lane.b32.xlu0 %v3469, 64
      %v3515 = vpop.permute.xlu0 %3514
      %3516 = vrot.lane.b32.xlu0 %v3470, 64
      %v3517 = vpop.permute.xlu0 %3516
      %3518 = vrot.lane.b32.xlu0 %v3471, 64
      %v3519 = vpop.permute.xlu0 %3518
      %3520 = vrot.lane.b32.xlu0 %v3472, 64
      %v3521 = vpop.permute.xlu0 %3520
      %3522 = vrot.lane.b32.xlu0 %v3473, 64
      %v3523 = vpop.permute.xlu0 %3522
      %3524 = vrot.lane.b32.xlu0 %v3474, 64
      %v3525 = vpop.permute.xlu0 %3524
      %3526 = vrot.lane.b32.xlu0 %v3475, 64
      %v3527 = vpop.permute.xlu0 %3526
      %3528 = vrot.lane.b32.xlu0 %v3476, 64
      %v3529 = vpop.permute.xlu0 %3528
      %3530 = vrot.lane.b32.xlu0 %v3477, 64
      %v3531 = vpop.permute.xlu0 %3530
      %3532 = vrot.lane.b32.xlu0 %v3478, 64
      %v3533 = vpop.permute.xlu0 %3532
      %3534 = vrot.lane.b32.xlu0 %v3479, 64
      %v3535 = vpop.permute.xlu0 %3534
      %3536 = vrot.lane.b32.xlu0 %v3480, 64
      %v3537 = vpop.permute.xlu0 %3536
      %3538 = vrot.lane.b32.xlu0 %v3481, 64
      %v3539 = vpop.permute.xlu0 %3538
      %3540 = vrot.lane.b32.xlu0 %v3482, 64
      %v3541 = vpop.permute.xlu0 %3540
      %3542 = vrot.lane.b32.xlu0 %v3483, 64
      %v3543 = vpop.permute.xlu0 %3542
      %3544 = vrot.lane.b32.xlu0 %v3484, 64
      %v3545 = vpop.permute.xlu0 %3544
      %3546 = vrot.lane.b32.xlu0 %v3485, 64
      %v3547 = vpop.permute.xlu0 %3546
      %3548 = vrot.lane.b32.xlu0 %v3486, 64
      %v3549 = vpop.permute.xlu0 %3548
      %3550 = vrot.lane.b32.xlu0 %v3487, 64
      %v3551 = vpop.permute.xlu0 %3550
      %vm3584 = vcmask 781824
      %3585 = vst.msk [vmem:[#allocation5] sm:$0xf] %vm3584, %v3489
      %3586 = vst.msk [vmem:[#allocation5 + $0xc] sm:$0xf] %vm3584, %v3491
      %3587 = vst.msk [vmem:[#allocation5 + $0x18] sm:$0xf] %vm3584, %v3493
      %3588 = vst.msk [vmem:[#allocation5 + $0x24] sm:$0xf] %vm3584, %v3495
      %3589 = vst.msk [vmem:[#allocation5 + $0x30] sm:$0xf] %vm3584, %v3497
      %3590 = vst.msk [vmem:[#allocation5 + $0x3c] sm:$0xf] %vm3584, %v3499
      %3591 = vst.msk [vmem:[#allocation5 + $0x48] sm:$0xf] %vm3584, %v3501
      %3592 = vst.msk [vmem:[#allocation5 + $0x54] sm:$0xf] %vm3584, %v3503
      %3593 = vst.msk [vmem:[#allocation5 + $0x60] sm:$0xf] %vm3584, %v3505
      %3594 = vst.msk [vmem:[#allocation5 + $0x6c] sm:$0xf] %vm3584, %v3507
      %3595 = vst.msk [vmem:[#allocation5 + $0x78] sm:$0xf] %vm3584, %v3509
      %3596 = vst.msk [vmem:[#allocation5 + $0x84] sm:$0xf] %vm3584, %v3511
      %3597 = vst.msk [vmem:[#allocation5 + $0x90] sm:$0xf] %vm3584, %v3513
      %3598 = vst.msk [vmem:[#allocation5 + $0x9c] sm:$0xf] %vm3584, %v3515
      %3599 = vst.msk [vmem:[#allocation5 + $0xa8] sm:$0xf] %vm3584, %v3517
      %3600 = vst.msk [vmem:[#allocation5 + $0xb4] sm:$0xf] %vm3584, %v3519
      %3601 = vst.msk [vmem:[#allocation5 + $0xc0] sm:$0xf] %vm3584, %v3521
      %3602 = vst.msk [vmem:[#allocation5 + $0xcc] sm:$0xf] %vm3584, %v3523
      %3603 = vst.msk [vmem:[#allocation5 + $0xd8] sm:$0xf] %vm3584, %v3525
      %3604 = vst.msk [vmem:[#allocation5 + $0xe4] sm:$0xf] %vm3584, %v3527
      %3605 = vst.msk [vmem:[#allocation5 + $0xf0] sm:$0xf] %vm3584, %v3529
      %3606 = vst.msk [vmem:[#allocation5 + $0xfc] sm:$0xf] %vm3584, %v3531
      %3607 = vst.msk [vmem:[#allocation5 + $0x108] sm:$0xf] %vm3584, %v3533
      %3608 = vst.msk [vmem:[#allocation5 + $0x114] sm:$0xf] %vm3584, %v3535
      %3609 = vst.msk [vmem:[#allocation5 + $0x120] sm:$0xf] %vm3584, %v3537
      %3610 = vst.msk [vmem:[#allocation5 + $0x12c] sm:$0xf] %vm3584, %v3539
      %3611 = vst.msk [vmem:[#allocation5 + $0x138] sm:$0xf] %vm3584, %v3541
      %3612 = vst.msk [vmem:[#allocation5 + $0x144] sm:$0xf] %vm3584, %v3543
      %3613 = vst.msk [vmem:[#allocation5 + $0x150] sm:$0xf] %vm3584, %v3545
      %3614 = vst.msk [vmem:[#allocation5 + $0x15c] sm:$0xf] %vm3584, %v3547
      %3615 = vst.msk [vmem:[#allocation5 + $0x168] sm:$0xf] %vm3584, %v3549
      %3616 = vst.msk [vmem:[#allocation5 + $0x174] sm:$0xf] %vm3584, %v3551
      %v3617 = vld [vmem:[#allocation4 + $0x17] sm:$0xff]
      %v3618 = vld [vmem:[#allocation4 + $0x1f] sm:$0xff]
      %v3619 = vld [vmem:[#allocation4 + $0x27] sm:$0xff]
      %v3620 = vld [vmem:[#allocation4 + $0x2f] sm:$0xff]
      %v3621 = vld [vmem:[#allocation4 + $0x37] sm:$0xff]
      %v3622 = vld [vmem:[#allocation4 + $0x3f] sm:$0xff]
      %v3623 = vld [vmem:[#allocation4 + $0x47] sm:$0xff]
      %v3624 = vld [vmem:[#allocation4 + $0x4f] sm:$0xff]
      %v3625 = vld [vmem:[#allocation4 + $0x57] sm:$0xff]
      %v3626 = vld [vmem:[#allocation4 + $0x5f] sm:$0xff]
      %v3627 = vld [vmem:[#allocation4 + $0x67] sm:$0xff]
      %v3628 = vld [vmem:[#allocation4 + $0x6f] sm:$0xff]
      %v3629 = vld [vmem:[#allocation4 + $0x77] sm:$0xff]
      %v3630 = vld [vmem:[#allocation4 + $0x7f] sm:$0xff]
      %v3631 = vld [vmem:[#allocation4 + $0x87] sm:$0xff]
      %v3632 = vld [vmem:[#allocation4 + $0x8f] sm:$0xff]
      %v3633 = vld [vmem:[#allocation4 + $0x97] sm:$0xff]
      %v3634 = vld [vmem:[#allocation4 + $0x9f] sm:$0xff]
      %v3635 = vld [vmem:[#allocation4 + $0xa7] sm:$0xff]
      %v3636 = vld [vmem:[#allocation4 + $0xaf] sm:$0xff]
      %v3637 = vld [vmem:[#allocation4 + $0xb7] sm:$0xff]
      %v3638 = vld [vmem:[#allocation4 + $0xbf] sm:$0xff]
      %v3639 = vld [vmem:[#allocation4 + $0xc7] sm:$0xff]
      %v3640 = vld [vmem:[#allocation4 + $0xcf] sm:$0xff]
      %v3641 = vld [vmem:[#allocation4 + $0xd7] sm:$0xff]
      %v3642 = vld [vmem:[#allocation4 + $0xdf] sm:$0xff]
      %v3643 = vld [vmem:[#allocation4 + $0xe7] sm:$0xff]
      %v3644 = vld [vmem:[#allocation4 + $0xef] sm:$0xff]
      %v3645 = vld [vmem:[#allocation4 + $0xf7] sm:$0xff]
      %v3646 = vld [vmem:[#allocation4 + $0xff] sm:$0xff]
      %v3647 = vld [vmem:[#allocation4 + $0x107] sm:$0xff]
      %v3648 = vld [vmem:[#allocation4 + $0x10f] sm:$0xff]
      %v3649 = vsel %vm2814, %v3617, 0.0
      %v3650 = vsel %vm2815, %v3618, 0.0
      %v3651 = vsel %vm2816, %v3619, 0.0
      %v3652 = vsel %vm2817, %v3620, 0.0
      %v3653 = vsel %vm2818, %v3621, 0.0
      %v3654 = vsel %vm2819, %v3622, 0.0
      %v3655 = vsel %vm2820, %v3623, 0.0
      %v3656 = vsel %vm2821, %v3624, 0.0
      %v3657 = vsel %vm2822, %v3625, 0.0
      %v3658 = vsel %vm2823, %v3626, 0.0
      %v3659 = vsel %vm2824, %v3627, 0.0
      %v3660 = vsel %vm2825, %v3628, 0.0
      %v3661 = vsel %vm2826, %v3629, 0.0
      %v3662 = vsel %vm2827, %v3630, 0.0
      %v3663 = vsel %vm2828, %v3631, 0.0
      %v3664 = vsel %vm2829, %v3632, 0.0
      %v3665 = vsel %vm2830, %v3633, 0.0
      %v3666 = vsel %vm2831, %v3634, 0.0
      %v3667 = vsel %vm2832, %v3635, 0.0
      %v3668 = vsel %vm2833, %v3636, 0.0
      %v3669 = vsel %vm2834, %v3637, 0.0
      %v3670 = vsel %vm2835, %v3638, 0.0
      %v3671 = vsel %vm2836, %v3639, 0.0
      %v3672 = vsel %vm2837, %v3640, 0.0
      %v3673 = vsel %vm2838, %v3641, 0.0
      %v3674 = vsel %vm2839, %v3642, 0.0
      %v3675 = vsel %vm2840, %v3643, 0.0
      %v3676 = vsel %vm2841, %v3644, 0.0
      %v3677 = vsel %vm2842, %v3645, 0.0
      %v3678 = vsel %vm2843, %v3646, 0.0
      %v3679 = vsel %vm2844, %v3647, 0.0
      %v3680 = vsel %vm2845, %v3648, 0.0
      %v3681 = vpack.c.bf16 %v3650, %v3649
      %v3682 = vpack.c.bf16 %v3652, %v3651
      %v3683 = vpack.c.bf16 %v3654, %v3653
      %v3684 = vpack.c.bf16 %v3656, %v3655
      %v3685 = vpack.c.bf16 %v3658, %v3657
      %v3686 = vpack.c.bf16 %v3660, %v3659
      %v3687 = vpack.c.bf16 %v3662, %v3661
      %v3688 = vpack.c.bf16 %v3664, %v3663
      %v3689 = vpack.c.bf16 %v3666, %v3665
      %v3690 = vpack.c.bf16 %v3668, %v3667
      %v3691 = vpack.c.bf16 %v3670, %v3669
      %v3692 = vpack.c.bf16 %v3672, %v3671
      %v3693 = vpack.c.bf16 %v3674, %v3673
      %v3694 = vpack.c.bf16 %v3676, %v3675
      %v3695 = vpack.c.bf16 %v3678, %v3677
      %v3696 = vpack.c.bf16 %v3680, %v3679
      %v3713 = vunpack.c.l.b16 %v3681
      %v3714 = vunpack.c.h.b16 %v3681
      %v3715 = vunpack.c.l.b16 %v3682
      %v3716 = vunpack.c.h.b16 %v3682
      %v3717 = vunpack.c.l.b16 %v3683
      %v3718 = vunpack.c.h.b16 %v3683
      %v3719 = vunpack.c.l.b16 %v3684
      %v3720 = vunpack.c.h.b16 %v3684
      %v3721 = vunpack.c.l.b16 %v3685
      %v3722 = vunpack.c.h.b16 %v3685
      %v3723 = vunpack.c.l.b16 %v3686
      %v3724 = vunpack.c.h.b16 %v3686
      %v3725 = vunpack.c.l.b16 %v3687
      %v3726 = vunpack.c.h.b16 %v3687
      %v3727 = vunpack.c.l.b16 %v3688
      %v3728 = vunpack.c.h.b16 %v3688
      %v3729 = vunpack.c.l.b16 %v3689
      %v3730 = vunpack.c.h.b16 %v3689
      %v3731 = vunpack.c.l.b16 %v3690
      %v3732 = vunpack.c.h.b16 %v3690
      %v3733 = vunpack.c.l.b16 %v3691
      %v3734 = vunpack.c.h.b16 %v3691
      %v3735 = vunpack.c.l.b16 %v3692
      %v3736 = vunpack.c.h.b16 %v3692
      %v3737 = vunpack.c.l.b16 %v3693
      %v3738 = vunpack.c.h.b16 %v3693
      %v3739 = vunpack.c.l.b16 %v3694
      %v3740 = vunpack.c.h.b16 %v3694
      %v3741 = vunpack.c.l.b16 %v3695
      %v3742 = vunpack.c.h.b16 %v3695
      %v3743 = vunpack.c.l.b16 %v3696
      %v3744 = vunpack.c.h.b16 %v3696
      %v3745 = vpack.c.b16 %v3713, %v3713
      %v3746 = vpack.c.b16 %v3714, %v3714
      %v3747 = vpack.c.b16 %v3715, %v3715
      %v3748 = vpack.c.b16 %v3716, %v3716
      %v3749 = vpack.c.b16 %v3717, %v3717
      %v3750 = vpack.c.b16 %v3718, %v3718
      %v3751 = vpack.c.b16 %v3719, %v3719
      %v3752 = vpack.c.b16 %v3720, %v3720
      %v3753 = vpack.c.b16 %v3721, %v3721
      %v3754 = vpack.c.b16 %v3722, %v3722
      %v3755 = vpack.c.b16 %v3723, %v3723
      %v3756 = vpack.c.b16 %v3724, %v3724
      %v3757 = vpack.c.b16 %v3725, %v3725
      %v3758 = vpack.c.b16 %v3726, %v3726
      %v3759 = vpack.c.b16 %v3727, %v3727
      %v3760 = vpack.c.b16 %v3728, %v3728
      %v3761 = vpack.c.b16 %v3729, %v3729
      %v3762 = vpack.c.b16 %v3730, %v3730
      %v3763 = vpack.c.b16 %v3731, %v3731
      %v3764 = vpack.c.b16 %v3732, %v3732
      %v3765 = vpack.c.b16 %v3733, %v3733
      %v3766 = vpack.c.b16 %v3734, %v3734
      %v3767 = vpack.c.b16 %v3735, %v3735
      %v3768 = vpack.c.b16 %v3736, %v3736
      %v3769 = vpack.c.b16 %v3737, %v3737
      %v3770 = vpack.c.b16 %v3738, %v3738
      %v3771 = vpack.c.b16 %v3739, %v3739
      %v3772 = vpack.c.b16 %v3740, %v3740
      %v3773 = vpack.c.b16 %v3741, %v3741
      %v3774 = vpack.c.b16 %v3742, %v3742
      %v3775 = vpack.c.b16 %v3743, %v3743
      %v3776 = vpack.c.b16 %v3744, %v3744
      %3777 = vrot.lane.b32.xlu0 %v3745, 96
      %v3778 = vpop.permute.xlu0 %3777
      %3779 = vrot.lane.b32.xlu0 %v3746, 96
      %v3780 = vpop.permute.xlu0 %3779
      %3781 = vrot.lane.b32.xlu0 %v3747, 96
      %v3782 = vpop.permute.xlu0 %3781
      %3783 = vrot.lane.b32.xlu0 %v3748, 96
      %v3784 = vpop.permute.xlu0 %3783
      %3785 = vrot.lane.b32.xlu0 %v3749, 96
      %v3786 = vpop.permute.xlu0 %3785
      %3787 = vrot.lane.b32.xlu0 %v3750, 96
      %v3788 = vpop.permute.xlu0 %3787
      %3789 = vrot.lane.b32.xlu0 %v3751, 96
      %v3790 = vpop.permute.xlu0 %3789
      %3791 = vrot.lane.b32.xlu0 %v3752, 96
      %v3792 = vpop.permute.xlu0 %3791
      %3793 = vrot.lane.b32.xlu0 %v3753, 96
      %v3794 = vpop.permute.xlu0 %3793
      %3795 = vrot.lane.b32.xlu0 %v3754, 96
      %v3796 = vpop.permute.xlu0 %3795
      %3797 = vrot.lane.b32.xlu0 %v3755, 96
      %v3798 = vpop.permute.xlu0 %3797
      %3799 = vrot.lane.b32.xlu0 %v3756, 96
      %v3800 = vpop.permute.xlu0 %3799
      %3801 = vrot.lane.b32.xlu0 %v3757, 96
      %v3802 = vpop.permute.xlu0 %3801
      %3803 = vrot.lane.b32.xlu0 %v3758, 96
      %v3804 = vpop.permute.xlu0 %3803
      %3805 = vrot.lane.b32.xlu0 %v3759, 96
      %v3806 = vpop.permute.xlu0 %3805
      %3807 = vrot.lane.b32.xlu0 %v3760, 96
      %v3808 = vpop.permute.xlu0 %3807
      %3809 = vrot.lane.b32.xlu0 %v3761, 96
      %v3810 = vpop.permute.xlu0 %3809
      %3811 = vrot.lane.b32.xlu0 %v3762, 96
      %v3812 = vpop.permute.xlu0 %3811
      %3813 = vrot.lane.b32.xlu0 %v3763, 96
      %v3814 = vpop.permute.xlu0 %3813
      %3815 = vrot.lane.b32.xlu0 %v3764, 96
      %v3816 = vpop.permute.xlu0 %3815
      %3817 = vrot.lane.b32.xlu0 %v3765, 96
      %v3818 = vpop.permute.xlu0 %3817
      %3819 = vrot.lane.b32.xlu0 %v3766, 96
      %v3820 = vpop.permute.xlu0 %3819
      %3821 = vrot.lane.b32.xlu0 %v3767, 96
      %v3822 = vpop.permute.xlu0 %3821
      %3823 = vrot.lane.b32.xlu0 %v3768, 96
      %v3824 = vpop.permute.xlu0 %3823
      %3825 = vrot.lane.b32.xlu0 %v3769, 96
      %v3826 = vpop.permute.xlu0 %3825
      %3827 = vrot.lane.b32.xlu0 %v3770, 96
      %v3828 = vpop.permute.xlu0 %3827
      %3829 = vrot.lane.b32.xlu0 %v3771, 96
      %v3830 = vpop.permute.xlu0 %3829
      %3831 = vrot.lane.b32.xlu0 %v3772, 96
      %v3832 = vpop.permute.xlu0 %3831
      %3833 = vrot.lane.b32.xlu0 %v3773, 96
      %v3834 = vpop.permute.xlu0 %3833
      %3835 = vrot.lane.b32.xlu0 %v3774, 96
      %v3836 = vpop.permute.xlu0 %3835
      %3837 = vrot.lane.b32.xlu0 %v3775, 96
      %v3838 = vpop.permute.xlu0 %3837
      %3839 = vrot.lane.b32.xlu0 %v3776, 96
      %v3840 = vpop.permute.xlu0 %3839
      %vm3873 = vcmask 1044224
      %3874 = vst.msk [vmem:[#allocation5] sm:$0xf] %vm3873, %v3778
      %3875 = vst.msk [vmem:[#allocation5 + $0xc] sm:$0xf] %vm3873, %v3780
      %3876 = vst.msk [vmem:[#allocation5 + $0x18] sm:$0xf] %vm3873, %v3782
      %3877 = vst.msk [vmem:[#allocation5 + $0x24] sm:$0xf] %vm3873, %v3784
      %3878 = vst.msk [vmem:[#allocation5 + $0x30] sm:$0xf] %vm3873, %v3786
      %3879 = vst.msk [vmem:[#allocation5 + $0x3c] sm:$0xf] %vm3873, %v3788
      %3880 = vst.msk [vmem:[#allocation5 + $0x48] sm:$0xf] %vm3873, %v3790
      %3881 = vst.msk [vmem:[#allocation5 + $0x54] sm:$0xf] %vm3873, %v3792
      %3882 = vst.msk [vmem:[#allocation5 + $0x60] sm:$0xf] %vm3873, %v3794
      %3883 = vst.msk [vmem:[#allocation5 + $0x6c] sm:$0xf] %vm3873, %v3796
      %3884 = vst.msk [vmem:[#allocation5 + $0x78] sm:$0xf] %vm3873, %v3798
      %3885 = vst.msk [vmem:[#allocation5 + $0x84] sm:$0xf] %vm3873, %v3800
      %3886 = vst.msk [vmem:[#allocation5 + $0x90] sm:$0xf] %vm3873, %v3802
      %3887 = vst.msk [vmem:[#allocation5 + $0x9c] sm:$0xf] %vm3873, %v3804
      %3888 = vst.msk [vmem:[#allocation5 + $0xa8] sm:$0xf] %vm3873, %v3806
      %3889 = vst.msk [vmem:[#allocation5 + $0xb4] sm:$0xf] %vm3873, %v3808
      %3890 = vst.msk [vmem:[#allocation5 + $0xc0] sm:$0xf] %vm3873, %v3810
      %3891 = vst.msk [vmem:[#allocation5 + $0xcc] sm:$0xf] %vm3873, %v3812
      %3892 = vst.msk [vmem:[#allocation5 + $0xd8] sm:$0xf] %vm3873, %v3814
      %3893 = vst.msk [vmem:[#allocation5 + $0xe4] sm:$0xf] %vm3873, %v3816
      %3894 = vst.msk [vmem:[#allocation5 + $0xf0] sm:$0xf] %vm3873, %v3818
      %3895 = vst.msk [vmem:[#allocation5 + $0xfc] sm:$0xf] %vm3873, %v3820
      %3896 = vst.msk [vmem:[#allocation5 + $0x108] sm:$0xf] %vm3873, %v3822
      %3897 = vst.msk [vmem:[#allocation5 + $0x114] sm:$0xf] %vm3873, %v3824
      %3898 = vst.msk [vmem:[#allocation5 + $0x120] sm:$0xf] %vm3873, %v3826
      %3899 = vst.msk [vmem:[#allocation5 + $0x12c] sm:$0xf] %vm3873, %v3828
      %3900 = vst.msk [vmem:[#allocation5 + $0x138] sm:$0xf] %vm3873, %v3830
      %3901 = vst.msk [vmem:[#allocation5 + $0x144] sm:$0xf] %vm3873, %v3832
      %3902 = vst.msk [vmem:[#allocation5 + $0x150] sm:$0xf] %vm3873, %v3834
      %3903 = vst.msk [vmem:[#allocation5 + $0x15c] sm:$0xf] %vm3873, %v3836
      %3904 = vst.msk [vmem:[#allocation5 + $0x168] sm:$0xf] %vm3873, %v3838
      %3905 = vst.msk [vmem:[#allocation5 + $0x174] sm:$0xf] %vm3873, %v3840
      %v3906 = vld [vmem:[#allocation4 + $0x18] sm:$0xff]
      %v3907 = vld [vmem:[#allocation4 + $0x20] sm:$0xff]
      %v3908 = vld [vmem:[#allocation4 + $0x28] sm:$0xff]
      %v3909 = vld [vmem:[#allocation4 + $0x30] sm:$0xff]
      %v3910 = vld [vmem:[#allocation4 + $0x38] sm:$0xff]
      %v3911 = vld [vmem:[#allocation4 + $0x40] sm:$0xff]
      %v3912 = vld [vmem:[#allocation4 + $0x48] sm:$0xff]
      %v3913 = vld [vmem:[#allocation4 + $0x50] sm:$0xff]
      %v3914 = vld [vmem:[#allocation4 + $0x58] sm:$0xff]
      %v3915 = vld [vmem:[#allocation4 + $0x60] sm:$0xff]
      %v3916 = vld [vmem:[#allocation4 + $0x68] sm:$0xff]
      %v3917 = vld [vmem:[#allocation4 + $0x70] sm:$0xff]
      %v3918 = vld [vmem:[#allocation4 + $0x78] sm:$0xff]
      %v3919 = vld [vmem:[#allocation4 + $0x80] sm:$0xff]
      %v3920 = vld [vmem:[#allocation4 + $0x88] sm:$0xff]
      %v3921 = vld [vmem:[#allocation4 + $0x90] sm:$0xff]
      %v3922 = vld [vmem:[#allocation4 + $0x98] sm:$0xff]
      %v3923 = vld [vmem:[#allocation4 + $0xa0] sm:$0xff]
      %v3924 = vld [vmem:[#allocation4 + $0xa8] sm:$0xff]
      %v3925 = vld [vmem:[#allocation4 + $0xb0] sm:$0xff]
      %v3926 = vld [vmem:[#allocation4 + $0xb8] sm:$0xff]
      %v3927 = vld [vmem:[#allocation4 + $0xc0] sm:$0xff]
      %v3928 = vld [vmem:[#allocation4 + $0xc8] sm:$0xff]
      %v3929 = vld [vmem:[#allocation4 + $0xd0] sm:$0xff]
      %v3930 = vld [vmem:[#allocation4 + $0xd8] sm:$0xff]
      %v3931 = vld [vmem:[#allocation4 + $0xe0] sm:$0xff]
      %v3932 = vld [vmem:[#allocation4 + $0xe8] sm:$0xff]
      %v3933 = vld [vmem:[#allocation4 + $0xf0] sm:$0xff]
      %v3934 = vld [vmem:[#allocation4 + $0xf8] sm:$0xff]
      %v3935 = vld [vmem:[#allocation4 + $0x100] sm:$0xff]
      %v3936 = vld [vmem:[#allocation4 + $0x108] sm:$0xff]
      %v3937 = vld [vmem:[#allocation4 + $0x110] sm:$0xff]
      %v3938 = vpack.c.bf16 %v3907, %v3906
      %v3939 = vpack.c.bf16 %v3909, %v3908
      %v3940 = vpack.c.bf16 %v3911, %v3910
      %v3941 = vpack.c.bf16 %v3913, %v3912
      %v3942 = vpack.c.bf16 %v3915, %v3914
      %v3943 = vpack.c.bf16 %v3917, %v3916
      %v3944 = vpack.c.bf16 %v3919, %v3918
      %v3945 = vpack.c.bf16 %v3921, %v3920
      %v3946 = vpack.c.bf16 %v3923, %v3922
      %v3947 = vpack.c.bf16 %v3925, %v3924
      %v3948 = vpack.c.bf16 %v3927, %v3926
      %v3949 = vpack.c.bf16 %v3929, %v3928
      %v3950 = vpack.c.bf16 %v3931, %v3930
      %v3951 = vpack.c.bf16 %v3933, %v3932
      %v3952 = vpack.c.bf16 %v3935, %v3934
      %v3953 = vpack.c.bf16 %v3937, %v3936
      %v3970 = vunpack.c.l.b16 %v3938
      %v3971 = vunpack.c.h.b16 %v3938
      %v3972 = vunpack.c.l.b16 %v3939
      %v3973 = vunpack.c.h.b16 %v3939
      %v3974 = vunpack.c.l.b16 %v3940
      %v3975 = vunpack.c.h.b16 %v3940
      %v3976 = vunpack.c.l.b16 %v3941
      %v3977 = vunpack.c.h.b16 %v3941
      %v3978 = vunpack.c.l.b16 %v3942
      %v3979 = vunpack.c.h.b16 %v3942
      %v3980 = vunpack.c.l.b16 %v3943
      %v3981 = vunpack.c.h.b16 %v3943
      %v3982 = vunpack.c.l.b16 %v3944
      %v3983 = vunpack.c.h.b16 %v3944
      %v3984 = vunpack.c.l.b16 %v3945
      %v3985 = vunpack.c.h.b16 %v3945
      %v3986 = vunpack.c.l.b16 %v3946
      %v3987 = vunpack.c.h.b16 %v3946
      %v3988 = vunpack.c.l.b16 %v3947
      %v3989 = vunpack.c.h.b16 %v3947
      %v3990 = vunpack.c.l.b16 %v3948
      %v3991 = vunpack.c.h.b16 %v3948
      %v3992 = vunpack.c.l.b16 %v3949
      %v3993 = vunpack.c.h.b16 %v3949
      %v3994 = vunpack.c.l.b16 %v3950
      %v3995 = vunpack.c.h.b16 %v3950
      %v3996 = vunpack.c.l.b16 %v3951
      %v3997 = vunpack.c.h.b16 %v3951
      %v3998 = vunpack.c.l.b16 %v3952
      %v3999 = vunpack.c.h.b16 %v3952
      %v4000 = vunpack.c.l.b16 %v3953
      %v4001 = vunpack.c.h.b16 %v3953
      %v4002 = vpack.c.b16 %v3970, %v3970
      %v4003 = vpack.c.b16 %v3971, %v3971
      %v4004 = vpack.c.b16 %v3972, %v3972
      %v4005 = vpack.c.b16 %v3973, %v3973
      %v4006 = vpack.c.b16 %v3974, %v3974
      %v4007 = vpack.c.b16 %v3975, %v3975
      %v4008 = vpack.c.b16 %v3976, %v3976
      %v4009 = vpack.c.b16 %v3977, %v3977
      %v4010 = vpack.c.b16 %v3978, %v3978
      %v4011 = vpack.c.b16 %v3979, %v3979
      %v4012 = vpack.c.b16 %v3980, %v3980
      %v4013 = vpack.c.b16 %v3981, %v3981
      %v4014 = vpack.c.b16 %v3982, %v3982
      %v4015 = vpack.c.b16 %v3983, %v3983
      %v4016 = vpack.c.b16 %v3984, %v3984
      %v4017 = vpack.c.b16 %v3985, %v3985
      %v4018 = vpack.c.b16 %v3986, %v3986
      %v4019 = vpack.c.b16 %v3987, %v3987
      %v4020 = vpack.c.b16 %v3988, %v3988
      %v4021 = vpack.c.b16 %v3989, %v3989
      %v4022 = vpack.c.b16 %v3990, %v3990
      %v4023 = vpack.c.b16 %v3991, %v3991
      %v4024 = vpack.c.b16 %v3992, %v3992
      %v4025 = vpack.c.b16 %v3993, %v3993
      %v4026 = vpack.c.b16 %v3994, %v3994
      %v4027 = vpack.c.b16 %v3995, %v3995
      %v4028 = vpack.c.b16 %v3996, %v3996
      %v4029 = vpack.c.b16 %v3997, %v3997
      %v4030 = vpack.c.b16 %v3998, %v3998
      %v4031 = vpack.c.b16 %v3999, %v3999
      %v4032 = vpack.c.b16 %v4000, %v4000
      %v4033 = vpack.c.b16 %v4001, %v4001
      %4066 = vst.msk [vmem:[#allocation5 + $0x4] sm:$0xf] %vm3006, %v4002
      %4067 = vst.msk [vmem:[#allocation5 + $0x10] sm:$0xf] %vm3006, %v4003
      %4068 = vst.msk [vmem:[#allocation5 + $0x1c] sm:$0xf] %vm3006, %v4004
      %4069 = vst.msk [vmem:[#allocation5 + $0x28] sm:$0xf] %vm3006, %v4005
      %4070 = vst.msk [vmem:[#allocation5 + $0x34] sm:$0xf] %vm3006, %v4006
      %4071 = vst.msk [vmem:[#allocation5 + $0x40] sm:$0xf] %vm3006, %v4007
      %4072 = vst.msk [vmem:[#allocation5 + $0x4c] sm:$0xf] %vm3006, %v4008
      %4073 = vst.msk [vmem:[#allocation5 + $0x58] sm:$0xf] %vm3006, %v4009
      %4074 = vst.msk [vmem:[#allocation5 + $0x64] sm:$0xf] %vm3006, %v4010
      %4075 = vst.msk [vmem:[#allocation5 + $0x70] sm:$0xf] %vm3006, %v4011
      %4076 = vst.msk [vmem:[#allocation5 + $0x7c] sm:$0xf] %vm3006, %v4012
      %4077 = vst.msk [vmem:[#allocation5 + $0x88] sm:$0xf] %vm3006, %v4013
      %4078 = vst.msk [vmem:[#allocation5 + $0x94] sm:$0xf] %vm3006, %v4014
      %4079 = vst.msk [vmem:[#allocation5 + $0xa0] sm:$0xf] %vm3006, %v4015
      %4080 = vst.msk [vmem:[#allocation5 + $0xac] sm:$0xf] %vm3006, %v4016
      %4081 = vst.msk [vmem:[#allocation5 + $0xb8] sm:$0xf] %vm3006, %v4017
      %4082 = vst.msk [vmem:[#allocation5 + $0xc4] sm:$0xf] %vm3006, %v4018
      %4083 = vst.msk [vmem:[#allocation5 + $0xd0] sm:$0xf] %vm3006, %v4019
      %4084 = vst.msk [vmem:[#allocation5 + $0xdc] sm:$0xf] %vm3006, %v4020
      %4085 = vst.msk [vmem:[#allocation5 + $0xe8] sm:$0xf] %vm3006, %v4021
      %4086 = vst.msk [vmem:[#allocation5 + $0xf4] sm:$0xf] %vm3006, %v4022
      %4087 = vst.msk [vmem:[#allocation5 + $0x100] sm:$0xf] %vm3006, %v4023
      %4088 = vst.msk [vmem:[#allocation5 + $0x10c] sm:$0xf] %vm3006, %v4024
      %4089 = vst.msk [vmem:[#allocation5 + $0x118] sm:$0xf] %vm3006, %v4025
      %4090 = vst.msk [vmem:[#allocation5 + $0x124] sm:$0xf] %vm3006, %v4026
      %4091 = vst.msk [vmem:[#allocation5 + $0x130] sm:$0xf] %vm3006, %v4027
      %4092 = vst.msk [vmem:[#allocation5 + $0x13c] sm:$0xf] %vm3006, %v4028
      %4093 = vst.msk [vmem:[#allocation5 + $0x148] sm:$0xf] %vm3006, %v4029
      %4094 = vst.msk [vmem:[#allocation5 + $0x154] sm:$0xf] %vm3006, %v4030
      %4095 = vst.msk [vmem:[#allocation5 + $0x160] sm:$0xf] %vm3006, %v4031
      %4096 = vst.msk [vmem:[#allocation5 + $0x16c] sm:$0xf] %vm3006, %v4032
      %4097 = vst.msk [vmem:[#allocation5 + $0x178] sm:$0xf] %vm3006, %v4033
      %v4098 = vld [vmem:[#allocation4 + $0x19] sm:$0xff]
      %v4099 = vld [vmem:[#allocation4 + $0x21] sm:$0xff]
      %v4100 = vld [vmem:[#allocation4 + $0x29] sm:$0xff]
      %v4101 = vld [vmem:[#allocation4 + $0x31] sm:$0xff]
      %v4102 = vld [vmem:[#allocation4 + $0x39] sm:$0xff]
      %v4103 = vld [vmem:[#allocation4 + $0x41] sm:$0xff]
      %v4104 = vld [vmem:[#allocation4 + $0x49] sm:$0xff]
      %v4105 = vld [vmem:[#allocation4 + $0x51] sm:$0xff]
      %v4106 = vld [vmem:[#allocation4 + $0x59] sm:$0xff]
      %v4107 = vld [vmem:[#allocation4 + $0x61] sm:$0xff]
      %v4108 = vld [vmem:[#allocation4 + $0x69] sm:$0xff]
      %v4109 = vld [vmem:[#allocation4 + $0x71] sm:$0xff]
      %v4110 = vld [vmem:[#allocation4 + $0x79] sm:$0xff]
      %v4111 = vld [vmem:[#allocation4 + $0x81] sm:$0xff]
      %v4112 = vld [vmem:[#allocation4 + $0x89] sm:$0xff]
      %v4113 = vld [vmem:[#allocation4 + $0x91] sm:$0xff]
      %v4114 = vld [vmem:[#allocation4 + $0x99] sm:$0xff]
      %v4115 = vld [vmem:[#allocation4 + $0xa1] sm:$0xff]
      %v4116 = vld [vmem:[#allocation4 + $0xa9] sm:$0xff]
      %v4117 = vld [vmem:[#allocation4 + $0xb1] sm:$0xff]
      %v4118 = vld [vmem:[#allocation4 + $0xb9] sm:$0xff]
      %v4119 = vld [vmem:[#allocation4 + $0xc1] sm:$0xff]
      %v4120 = vld [vmem:[#allocation4 + $0xc9] sm:$0xff]
      %v4121 = vld [vmem:[#allocation4 + $0xd1] sm:$0xff]
      %v4122 = vld [vmem:[#allocation4 + $0xd9] sm:$0xff]
      %v4123 = vld [vmem:[#allocation4 + $0xe1] sm:$0xff]
      %v4124 = vld [vmem:[#allocation4 + $0xe9] sm:$0xff]
      %v4125 = vld [vmem:[#allocation4 + $0xf1] sm:$0xff]
      %v4126 = vld [vmem:[#allocation4 + $0xf9] sm:$0xff]
      %v4127 = vld [vmem:[#allocation4 + $0x101] sm:$0xff]
      %v4128 = vld [vmem:[#allocation4 + $0x109] sm:$0xff]
      %v4129 = vld [vmem:[#allocation4 + $0x111] sm:$0xff]
      %v4130 = vsel %vm3328, %v4098, 0.0
      %v4131 = vsel %vm3329, %v4099, 0.0
      %v4132 = vsel %vm3330, %v4100, 0.0
      %v4133 = vsel %vm3331, %v4101, 0.0
      %v4134 = vsel %vm3332, %v4102, 0.0
      %v4135 = vsel %vm3333, %v4103, 0.0
      %v4136 = vsel %vm3334, %v4104, 0.0
      %v4137 = vsel %vm3335, %v4105, 0.0
      %v4138 = vsel %vm3336, %v4106, 0.0
      %v4139 = vsel %vm3337, %v4107, 0.0
      %v4140 = vsel %vm3338, %v4108, 0.0
      %v4141 = vsel %vm3339, %v4109, 0.0
      %v4142 = vsel %vm3340, %v4110, 0.0
      %v4143 = vsel %vm3341, %v4111, 0.0
      %v4144 = vsel %vm3342, %v4112, 0.0
      %v4145 = vsel %vm3343, %v4113, 0.0
      %v4146 = vsel %vm3344, %v4114, 0.0
      %v4147 = vsel %vm3345, %v4115, 0.0
      %v4148 = vsel %vm3346, %v4116, 0.0
      %v4149 = vsel %vm3347, %v4117, 0.0
      %v4150 = vsel %vm3348, %v4118, 0.0
      %v4151 = vsel %vm3349, %v4119, 0.0
      %v4152 = vsel %vm3350, %v4120, 0.0
      %v4153 = vsel %vm3351, %v4121, 0.0
      %v4154 = vsel %vm3352, %v4122, 0.0
      %v4155 = vsel %vm3353, %v4123, 0.0
      %v4156 = vsel %vm3354, %v4124, 0.0
      %v4157 = vsel %vm3355, %v4125, 0.0
      %v4158 = vsel %vm3356, %v4126, 0.0
      %v4159 = vsel %vm3357, %v4127, 0.0
      %v4160 = vsel %vm3358, %v4128, 0.0
      %v4161 = vsel %vm3359, %v4129, 0.0
      %v4162 = vpack.c.bf16 %v4131, %v4130
      %v4163 = vpack.c.bf16 %v4133, %v4132
      %v4164 = vpack.c.bf16 %v4135, %v4134
      %v4165 = vpack.c.bf16 %v4137, %v4136
      %v4166 = vpack.c.bf16 %v4139, %v4138
      %v4167 = vpack.c.bf16 %v4141, %v4140
      %v4168 = vpack.c.bf16 %v4143, %v4142
      %v4169 = vpack.c.bf16 %v4145, %v4144
      %v4170 = vpack.c.bf16 %v4147, %v4146
      %v4171 = vpack.c.bf16 %v4149, %v4148
      %v4172 = vpack.c.bf16 %v4151, %v4150
      %v4173 = vpack.c.bf16 %v4153, %v4152
      %v4174 = vpack.c.bf16 %v4155, %v4154
      %v4175 = vpack.c.bf16 %v4157, %v4156
      %v4176 = vpack.c.bf16 %v4159, %v4158
      %v4177 = vpack.c.bf16 %v4161, %v4160
      %v4194 = vunpack.c.l.b16 %v4162
      %v4195 = vunpack.c.h.b16 %v4162
      %v4196 = vunpack.c.l.b16 %v4163
      %v4197 = vunpack.c.h.b16 %v4163
      %v4198 = vunpack.c.l.b16 %v4164
      %v4199 = vunpack.c.h.b16 %v4164
      %v4200 = vunpack.c.l.b16 %v4165
      %v4201 = vunpack.c.h.b16 %v4165
      %v4202 = vunpack.c.l.b16 %v4166
      %v4203 = vunpack.c.h.b16 %v4166
      %v4204 = vunpack.c.l.b16 %v4167
      %v4205 = vunpack.c.h.b16 %v4167
      %v4206 = vunpack.c.l.b16 %v4168
      %v4207 = vunpack.c.h.b16 %v4168
      %v4208 = vunpack.c.l.b16 %v4169
      %v4209 = vunpack.c.h.b16 %v4169
      %v4210 = vunpack.c.l.b16 %v4170
      %v4211 = vunpack.c.h.b16 %v4170
      %v4212 = vunpack.c.l.b16 %v4171
      %v4213 = vunpack.c.h.b16 %v4171
      %v4214 = vunpack.c.l.b16 %v4172
      %v4215 = vunpack.c.h.b16 %v4172
      %v4216 = vunpack.c.l.b16 %v4173
      %v4217 = vunpack.c.h.b16 %v4173
      %v4218 = vunpack.c.l.b16 %v4174
      %v4219 = vunpack.c.h.b16 %v4174
      %v4220 = vunpack.c.l.b16 %v4175
      %v4221 = vunpack.c.h.b16 %v4175
      %v4222 = vunpack.c.l.b16 %v4176
      %v4223 = vunpack.c.h.b16 %v4176
      %v4224 = vunpack.c.l.b16 %v4177
      %v4225 = vunpack.c.h.b16 %v4177
      %v4226 = vpack.c.b16 %v4194, %v4194
      %v4227 = vpack.c.b16 %v4195, %v4195
      %v4228 = vpack.c.b16 %v4196, %v4196
      %v4229 = vpack.c.b16 %v4197, %v4197
      %v4230 = vpack.c.b16 %v4198, %v4198
      %v4231 = vpack.c.b16 %v4199, %v4199
      %v4232 = vpack.c.b16 %v4200, %v4200
      %v4233 = vpack.c.b16 %v4201, %v4201
      %v4234 = vpack.c.b16 %v4202, %v4202
      %v4235 = vpack.c.b16 %v4203, %v4203
      %v4236 = vpack.c.b16 %v4204, %v4204
      %v4237 = vpack.c.b16 %v4205, %v4205
      %v4238 = vpack.c.b16 %v4206, %v4206
      %v4239 = vpack.c.b16 %v4207, %v4207
      %v4240 = vpack.c.b16 %v4208, %v4208
      %v4241 = vpack.c.b16 %v4209, %v4209
      %v4242 = vpack.c.b16 %v4210, %v4210
      %v4243 = vpack.c.b16 %v4211, %v4211
      %v4244 = vpack.c.b16 %v4212, %v4212
      %v4245 = vpack.c.b16 %v4213, %v4213
      %v4246 = vpack.c.b16 %v4214, %v4214
      %v4247 = vpack.c.b16 %v4215, %v4215
      %v4248 = vpack.c.b16 %v4216, %v4216
      %v4249 = vpack.c.b16 %v4217, %v4217
      %v4250 = vpack.c.b16 %v4218, %v4218
      %v4251 = vpack.c.b16 %v4219, %v4219
      %v4252 = vpack.c.b16 %v4220, %v4220
      %v4253 = vpack.c.b16 %v4221, %v4221
      %v4254 = vpack.c.b16 %v4222, %v4222
      %v4255 = vpack.c.b16 %v4223, %v4223
      %v4256 = vpack.c.b16 %v4224, %v4224
      %v4257 = vpack.c.b16 %v4225, %v4225
      %4258 = vrot.lane.b32.xlu0 %v4226, 32
      %v4259 = vpop.permute.xlu0 %4258
      %4260 = vrot.lane.b32.xlu0 %v4227, 32
      %v4261 = vpop.permute.xlu0 %4260
      %4262 = vrot.lane.b32.xlu0 %v4228, 32
      %v4263 = vpop.permute.xlu0 %4262
      %4264 = vrot.lane.b32.xlu0 %v4229, 32
      %v4265 = vpop.permute.xlu0 %4264
      %4266 = vrot.lane.b32.xlu0 %v4230, 32
      %v4267 = vpop.permute.xlu0 %4266
      %4268 = vrot.lane.b32.xlu0 %v4231, 32
      %v4269 = vpop.permute.xlu0 %4268
      %4270 = vrot.lane.b32.xlu0 %v4232, 32
      %v4271 = vpop.permute.xlu0 %4270
      %4272 = vrot.lane.b32.xlu0 %v4233, 32
      %v4273 = vpop.permute.xlu0 %4272
      %4274 = vrot.lane.b32.xlu0 %v4234, 32
      %v4275 = vpop.permute.xlu0 %4274
      %4276 = vrot.lane.b32.xlu0 %v4235, 32
      %v4277 = vpop.permute.xlu0 %4276
      %4278 = vrot.lane.b32.xlu0 %v4236, 32
      %v4279 = vpop.permute.xlu0 %4278
      %4280 = vrot.lane.b32.xlu0 %v4237, 32
      %v4281 = vpop.permute.xlu0 %4280
      %4282 = vrot.lane.b32.xlu0 %v4238, 32
      %v4283 = vpop.permute.xlu0 %4282
      %4284 = vrot.lane.b32.xlu0 %v4239, 32
      %v4285 = vpop.permute.xlu0 %4284
      %4286 = vrot.lane.b32.xlu0 %v4240, 32
      %v4287 = vpop.permute.xlu0 %4286
      %4288 = vrot.lane.b32.xlu0 %v4241, 32
      %v4289 = vpop.permute.xlu0 %4288
      %4290 = vrot.lane.b32.xlu0 %v4242, 32
      %v4291 = vpop.permute.xlu0 %4290
      %4292 = vrot.lane.b32.xlu0 %v4243, 32
      %v4293 = vpop.permute.xlu0 %4292
      %4294 = vrot.lane.b32.xlu0 %v4244, 32
      %v4295 = vpop.permute.xlu0 %4294
      %4296 = vrot.lane.b32.xlu0 %v4245, 32
      %v4297 = vpop.permute.xlu0 %4296
      %4298 = vrot.lane.b32.xlu0 %v4246, 32
      %v4299 = vpop.permute.xlu0 %4298
      %4300 = vrot.lane.b32.xlu0 %v4247, 32
      %v4301 = vpop.permute.xlu0 %4300
      %4302 = vrot.lane.b32.xlu0 %v4248, 32
      %v4303 = vpop.permute.xlu0 %4302
      %4304 = vrot.lane.b32.xlu0 %v4249, 32
      %v4305 = vpop.permute.xlu0 %4304
      %4306 = vrot.lane.b32.xlu0 %v4250, 32
      %v4307 = vpop.permute.xlu0 %4306
      %4308 = vrot.lane.b32.xlu0 %v4251, 32
      %v4309 = vpop.permute.xlu0 %4308
      %4310 = vrot.lane.b32.xlu0 %v4252, 32
      %v4311 = vpop.permute.xlu0 %4310
      %4312 = vrot.lane.b32.xlu0 %v4253, 32
      %v4313 = vpop.permute.xlu0 %4312
      %4314 = vrot.lane.b32.xlu0 %v4254, 32
      %v4315 = vpop.permute.xlu0 %4314
      %4316 = vrot.lane.b32.xlu0 %v4255, 32
      %v4317 = vpop.permute.xlu0 %4316
      %4318 = vrot.lane.b32.xlu0 %v4256, 32
      %v4319 = vpop.permute.xlu0 %4318
      %4320 = vrot.lane.b32.xlu0 %v4257, 32
      %v4321 = vpop.permute.xlu0 %4320
      %4354 = vst.msk [vmem:[#allocation5 + $0x4] sm:$0xf] %vm3263, %v4259
      %4355 = vst.msk [vmem:[#allocation5 + $0x10] sm:$0xf] %vm3263, %v4261
      %4356 = vst.msk [vmem:[#allocation5 + $0x1c] sm:$0xf] %vm3263, %v4263
      %4357 = vst.msk [vmem:[#allocation5 + $0x28] sm:$0xf] %vm3263, %v4265
      %4358 = vst.msk [vmem:[#allocation5 + $0x34] sm:$0xf] %vm3263, %v4267
      %4359 = vst.msk [vmem:[#allocation5 + $0x40] sm:$0xf] %vm3263, %v4269
      %4360 = vst.msk [vmem:[#allocation5 + $0x4c] sm:$0xf] %vm3263, %v4271
      %4361 = vst.msk [vmem:[#allocation5 + $0x58] sm:$0xf] %vm3263, %v4273
      %4362 = vst.msk [vmem:[#allocation5 + $0x64] sm:$0xf] %vm3263, %v4275
      %4363 = vst.msk [vmem:[#allocation5 + $0x70] sm:$0xf] %vm3263, %v4277
      %4364 = vst.msk [vmem:[#allocation5 + $0x7c] sm:$0xf] %vm3263, %v4279
      %4365 = vst.msk [vmem:[#allocation5 + $0x88] sm:$0xf] %vm3263, %v4281
      %4366 = vst.msk [vmem:[#allocation5 + $0x94] sm:$0xf] %vm3263, %v4283
      %4367 = vst.msk [vmem:[#allocation5 + $0xa0] sm:$0xf] %vm3263, %v4285
      %4368 = vst.msk [vmem:[#allocation5 + $0xac] sm:$0xf] %vm3263, %v4287
      %4369 = vst.msk [vmem:[#allocation5 + $0xb8] sm:$0xf] %vm3263, %v4289
      %4370 = vst.msk [vmem:[#allocation5 + $0xc4] sm:$0xf] %vm3263, %v4291
      %4371 = vst.msk [vmem:[#allocation5 + $0xd0] sm:$0xf] %vm3263, %v4293
      %4372 = vst.msk [vmem:[#allocation5 + $0xdc] sm:$0xf] %vm3263, %v4295
      %4373 = vst.msk [vmem:[#allocation5 + $0xe8] sm:$0xf] %vm3263, %v4297
      %4374 = vst.msk [vmem:[#allocation5 + $0xf4] sm:$0xf] %vm3263, %v4299
      %4375 = vst.msk [vmem:[#allocation5 + $0x100] sm:$0xf] %vm3263, %v4301
      %4376 = vst.msk [vmem:[#allocation5 + $0x10c] sm:$0xf] %vm3263, %v4303
      %4377 = vst.msk [vmem:[#allocation5 + $0x118] sm:$0xf] %vm3263, %v4305
      %4378 = vst.msk [vmem:[#allocation5 + $0x124] sm:$0xf] %vm3263, %v4307
      %4379 = vst.msk [vmem:[#allocation5 + $0x130] sm:$0xf] %vm3263, %v4309
      %4380 = vst.msk [vmem:[#allocation5 + $0x13c] sm:$0xf] %vm3263, %v4311
      %4381 = vst.msk [vmem:[#allocation5 + $0x148] sm:$0xf] %vm3263, %v4313
      %4382 = vst.msk [vmem:[#allocation5 + $0x154] sm:$0xf] %vm3263, %v4315
      %4383 = vst.msk [vmem:[#allocation5 + $0x160] sm:$0xf] %vm3263, %v4317
      %4384 = vst.msk [vmem:[#allocation5 + $0x16c] sm:$0xf] %vm3263, %v4319
      %4385 = vst.msk [vmem:[#allocation5 + $0x178] sm:$0xf] %vm3263, %v4321
      %v4386 = vld [vmem:[#allocation4 + $0x27] sm:$0xff]
      %v4387 = vld [vmem:[#allocation4 + $0x2f] sm:$0xff]
      %v4388 = vld [vmem:[#allocation4 + $0x37] sm:$0xff]
      %v4389 = vld [vmem:[#allocation4 + $0x3f] sm:$0xff]
      %v4390 = vld [vmem:[#allocation4 + $0x47] sm:$0xff]
      %v4391 = vld [vmem:[#allocation4 + $0x4f] sm:$0xff]
      %v4392 = vld [vmem:[#allocation4 + $0x57] sm:$0xff]
      %v4393 = vld [vmem:[#allocation4 + $0x5f] sm:$0xff]
      %v4394 = vld [vmem:[#allocation4 + $0x67] sm:$0xff]
      %v4395 = vld [vmem:[#allocation4 + $0x6f] sm:$0xff]
      %v4396 = vld [vmem:[#allocation4 + $0x77] sm:$0xff]
      %v4397 = vld [vmem:[#allocation4 + $0x7f] sm:$0xff]
      %v4398 = vld [vmem:[#allocation4 + $0x87] sm:$0xff]
      %v4399 = vld [vmem:[#allocation4 + $0x8f] sm:$0xff]
      %v4400 = vld [vmem:[#allocation4 + $0x97] sm:$0xff]
      %v4401 = vld [vmem:[#allocation4 + $0x9f] sm:$0xff]
      %v4402 = vld [vmem:[#allocation4 + $0xa7] sm:$0xff]
      %v4403 = vld [vmem:[#allocation4 + $0xaf] sm:$0xff]
      %v4404 = vld [vmem:[#allocation4 + $0xb7] sm:$0xff]
      %v4405 = vld [vmem:[#allocation4 + $0xbf] sm:$0xff]
      %v4406 = vld [vmem:[#allocation4 + $0xc7] sm:$0xff]
      %v4407 = vld [vmem:[#allocation4 + $0xcf] sm:$0xff]
      %v4408 = vld [vmem:[#allocation4 + $0xd7] sm:$0xff]
      %v4409 = vld [vmem:[#allocation4 + $0xdf] sm:$0xff]
      %v4410 = vld [vmem:[#allocation4 + $0xe7] sm:$0xff]
      %v4411 = vld [vmem:[#allocation4 + $0xef] sm:$0xff]
      %v4412 = vld [vmem:[#allocation4 + $0xf7] sm:$0xff]
      %v4413 = vld [vmem:[#allocation4 + $0xff] sm:$0xff]
      %v4414 = vld [vmem:[#allocation4 + $0x107] sm:$0xff]
      %v4415 = vld [vmem:[#allocation4 + $0x10f] sm:$0xff]
      %v4416 = vld [vmem:[#allocation4 + $0x117] sm:$0xff]
      %v4417 = vld [vmem:[#allocation4 + $0x11f] sm:$0xff]
      %v4418 = vsel %vm2814, %v4386, 0.0
      %v4419 = vsel %vm2815, %v4387, 0.0
      %v4420 = vsel %vm2816, %v4388, 0.0
      %v4421 = vsel %vm2817, %v4389, 0.0
      %v4422 = vsel %vm2818, %v4390, 0.0
      %v4423 = vsel %vm2819, %v4391, 0.0
      %v4424 = vsel %vm2820, %v4392, 0.0
      %v4425 = vsel %vm2821, %v4393, 0.0
      %v4426 = vsel %vm2822, %v4394, 0.0
      %v4427 = vsel %vm2823, %v4395, 0.0
      %v4428 = vsel %vm2824, %v4396, 0.0
      %v4429 = vsel %vm2825, %v4397, 0.0
      %v4430 = vsel %vm2826, %v4398, 0.0
      %v4431 = vsel %vm2827, %v4399, 0.0
      %v4432 = vsel %vm2828, %v4400, 0.0
      %v4433 = vsel %vm2829, %v4401, 0.0
      %v4434 = vsel %vm2830, %v4402, 0.0
      %v4435 = vsel %vm2831, %v4403, 0.0
      %v4436 = vsel %vm2832, %v4404, 0.0
      %v4437 = vsel %vm2833, %v4405, 0.0
      %v4438 = vsel %vm2834, %v4406, 0.0
      %v4439 = vsel %vm2835, %v4407, 0.0
      %v4440 = vsel %vm2836, %v4408, 0.0
      %v4441 = vsel %vm2837, %v4409, 0.0
      %v4442 = vsel %vm2838, %v4410, 0.0
      %v4443 = vsel %vm2839, %v4411, 0.0
      %v4444 = vsel %vm2840, %v4412, 0.0
      %v4445 = vsel %vm2841, %v4413, 0.0
      %v4446 = vsel %vm2842, %v4414, 0.0
      %v4447 = vsel %vm2843, %v4415, 0.0
      %v4448 = vsel %vm2844, %v4416, 0.0
      %v4449 = vsel %vm2845, %v4417, 0.0
      %v4450 = vpack.c.bf16 %v4419, %v4418
      %v4451 = vpack.c.bf16 %v4421, %v4420
      %v4452 = vpack.c.bf16 %v4423, %v4422
      %v4453 = vpack.c.bf16 %v4425, %v4424
      %v4454 = vpack.c.bf16 %v4427, %v4426
      %v4455 = vpack.c.bf16 %v4429, %v4428
      %v4456 = vpack.c.bf16 %v4431, %v4430
      %v4457 = vpack.c.bf16 %v4433, %v4432
      %v4458 = vpack.c.bf16 %v4435, %v4434
      %v4459 = vpack.c.bf16 %v4437, %v4436
      %v4460 = vpack.c.bf16 %v4439, %v4438
      %v4461 = vpack.c.bf16 %v4441, %v4440
      %v4462 = vpack.c.bf16 %v4443, %v4442
      %v4463 = vpack.c.bf16 %v4445, %v4444
      %v4464 = vpack.c.bf16 %v4447, %v4446
      %v4465 = vpack.c.bf16 %v4449, %v4448
      %v4482 = vunpack.c.l.b16 %v4450
      %v4483 = vunpack.c.h.b16 %v4450
      %v4484 = vunpack.c.l.b16 %v4451
      %v4485 = vunpack.c.h.b16 %v4451
      %v4486 = vunpack.c.l.b16 %v4452
      %v4487 = vunpack.c.h.b16 %v4452
      %v4488 = vunpack.c.l.b16 %v4453
      %v4489 = vunpack.c.h.b16 %v4453
      %v4490 = vunpack.c.l.b16 %v4454
      %v4491 = vunpack.c.h.b16 %v4454
      %v4492 = vunpack.c.l.b16 %v4455
      %v4493 = vunpack.c.h.b16 %v4455
      %v4494 = vunpack.c.l.b16 %v4456
      %v4495 = vunpack.c.h.b16 %v4456
      %v4496 = vunpack.c.l.b16 %v4457
      %v4497 = vunpack.c.h.b16 %v4457
      %v4498 = vunpack.c.l.b16 %v4458
      %v4499 = vunpack.c.h.b16 %v4458
      %v4500 = vunpack.c.l.b16 %v4459
      %v4501 = vunpack.c.h.b16 %v4459
      %v4502 = vunpack.c.l.b16 %v4460
      %v4503 = vunpack.c.h.b16 %v4460
      %v4504 = vunpack.c.l.b16 %v4461
      %v4505 = vunpack.c.h.b16 %v4461
      %v4506 = vunpack.c.l.b16 %v4462
      %v4507 = vunpack.c.h.b16 %v4462
      %v4508 = vunpack.c.l.b16 %v4463
      %v4509 = vunpack.c.h.b16 %v4463
      %v4510 = vunpack.c.l.b16 %v4464
      %v4511 = vunpack.c.h.b16 %v4464
      %v4512 = vunpack.c.l.b16 %v4465
      %v4513 = vunpack.c.h.b16 %v4465
      %v4514 = vpack.c.b16 %v4482, %v4482
      %v4515 = vpack.c.b16 %v4483, %v4483
      %v4516 = vpack.c.b16 %v4484, %v4484
      %v4517 = vpack.c.b16 %v4485, %v4485
      %v4518 = vpack.c.b16 %v4486, %v4486
      %v4519 = vpack.c.b16 %v4487, %v4487
      %v4520 = vpack.c.b16 %v4488, %v4488
      %v4521 = vpack.c.b16 %v4489, %v4489
      %v4522 = vpack.c.b16 %v4490, %v4490
      %v4523 = vpack.c.b16 %v4491, %v4491
      %v4524 = vpack.c.b16 %v4492, %v4492
      %v4525 = vpack.c.b16 %v4493, %v4493
      %v4526 = vpack.c.b16 %v4494, %v4494
      %v4527 = vpack.c.b16 %v4495, %v4495
      %v4528 = vpack.c.b16 %v4496, %v4496
      %v4529 = vpack.c.b16 %v4497, %v4497
      %v4530 = vpack.c.b16 %v4498, %v4498
      %v4531 = vpack.c.b16 %v4499, %v4499
      %v4532 = vpack.c.b16 %v4500, %v4500
      %v4533 = vpack.c.b16 %v4501, %v4501
      %v4534 = vpack.c.b16 %v4502, %v4502
      %v4535 = vpack.c.b16 %v4503, %v4503
      %v4536 = vpack.c.b16 %v4504, %v4504
      %v4537 = vpack.c.b16 %v4505, %v4505
      %v4538 = vpack.c.b16 %v4506, %v4506
      %v4539 = vpack.c.b16 %v4507, %v4507
      %v4540 = vpack.c.b16 %v4508, %v4508
      %v4541 = vpack.c.b16 %v4509, %v4509
      %v4542 = vpack.c.b16 %v4510, %v4510
      %v4543 = vpack.c.b16 %v4511, %v4511
      %v4544 = vpack.c.b16 %v4512, %v4512
      %v4545 = vpack.c.b16 %v4513, %v4513
      %4546 = vrot.lane.b32.xlu0 %v4514, 64
      %v4547 = vpop.permute.xlu0 %4546
      %4548 = vrot.lane.b32.xlu0 %v4515, 64
      %v4549 = vpop.permute.xlu0 %4548
      %4550 = vrot.lane.b32.xlu0 %v4516, 64
      %v4551 = vpop.permute.xlu0 %4550
      %4552 = vrot.lane.b32.xlu0 %v4517, 64
      %v4553 = vpop.permute.xlu0 %4552
      %4554 = vrot.lane.b32.xlu0 %v4518, 64
      %v4555 = vpop.permute.xlu0 %4554
      %4556 = vrot.lane.b32.xlu0 %v4519, 64
      %v4557 = vpop.permute.xlu0 %4556
      %4558 = vrot.lane.b32.xlu0 %v4520, 64
      %v4559 = vpop.permute.xlu0 %4558
      %4560 = vrot.lane.b32.xlu0 %v4521, 64
      %v4561 = vpop.permute.xlu0 %4560
      %4562 = vrot.lane.b32.xlu0 %v4522, 64
      %v4563 = vpop.permute.xlu0 %4562
      %4564 = vrot.lane.b32.xlu0 %v4523, 64
      %v4565 = vpop.permute.xlu0 %4564
      %4566 = vrot.lane.b32.xlu0 %v4524, 64
      %v4567 = vpop.permute.xlu0 %4566
      %4568 = vrot.lane.b32.xlu0 %v4525, 64
      %v4569 = vpop.permute.xlu0 %4568
      %4570 = vrot.lane.b32.xlu0 %v4526, 64
      %v4571 = vpop.permute.xlu0 %4570
      %4572 = vrot.lane.b32.xlu0 %v4527, 64
      %v4573 = vpop.permute.xlu0 %4572
      %4574 = vrot.lane.b32.xlu0 %v4528, 64
      %v4575 = vpop.permute.xlu0 %4574
      %4576 = vrot.lane.b32.xlu0 %v4529, 64
      %v4577 = vpop.permute.xlu0 %4576
      %4578 = vrot.lane.b32.xlu0 %v4530, 64
      %v4579 = vpop.permute.xlu0 %4578
      %4580 = vrot.lane.b32.xlu0 %v4531, 64
      %v4581 = vpop.permute.xlu0 %4580
      %4582 = vrot.lane.b32.xlu0 %v4532, 64
      %v4583 = vpop.permute.xlu0 %4582
      %4584 = vrot.lane.b32.xlu0 %v4533, 64
      %v4585 = vpop.permute.xlu0 %4584
      %4586 = vrot.lane.b32.xlu0 %v4534, 64
      %v4587 = vpop.permute.xlu0 %4586
      %4588 = vrot.lane.b32.xlu0 %v4535, 64
      %v4589 = vpop.permute.xlu0 %4588
      %4590 = vrot.lane.b32.xlu0 %v4536, 64
      %v4591 = vpop.permute.xlu0 %4590
      %4592 = vrot.lane.b32.xlu0 %v4537, 64
      %v4593 = vpop.permute.xlu0 %4592
      %4594 = vrot.lane.b32.xlu0 %v4538, 64
      %v4595 = vpop.permute.xlu0 %4594
      %4596 = vrot.lane.b32.xlu0 %v4539, 64
      %v4597 = vpop.permute.xlu0 %4596
      %4598 = vrot.lane.b32.xlu0 %v4540, 64
      %v4599 = vpop.permute.xlu0 %4598
      %4600 = vrot.lane.b32.xlu0 %v4541, 64
      %v4601 = vpop.permute.xlu0 %4600
      %4602 = vrot.lane.b32.xlu0 %v4542, 64
      %v4603 = vpop.permute.xlu0 %4602
      %4604 = vrot.lane.b32.xlu0 %v4543, 64
      %v4605 = vpop.permute.xlu0 %4604
      %4606 = vrot.lane.b32.xlu0 %v4544, 64
      %v4607 = vpop.permute.xlu0 %4606
      %4608 = vrot.lane.b32.xlu0 %v4545, 64
      %v4609 = vpop.permute.xlu0 %4608
      %4642 = vst.msk [vmem:[#allocation5 + $0x4] sm:$0xf] %vm3584, %v4547
      %4643 = vst.msk [vmem:[#allocation5 + $0x10] sm:$0xf] %vm3584, %v4549
      %4644 = vst.msk [vmem:[#allocation5 + $0x1c] sm:$0xf] %vm3584, %v4551
      %4645 = vst.msk [vmem:[#allocation5 + $0x28] sm:$0xf] %vm3584, %v4553
      %4646 = vst.msk [vmem:[#allocation5 + $0x34] sm:$0xf] %vm3584, %v4555
      %4647 = vst.msk [vmem:[#allocation5 + $0x40] sm:$0xf] %vm3584, %v4557
      %4648 = vst.msk [vmem:[#allocation5 + $0x4c] sm:$0xf] %vm3584, %v4559
      %4649 = vst.msk [vmem:[#allocation5 + $0x58] sm:$0xf] %vm3584, %v4561
      %4650 = vst.msk [vmem:[#allocation5 + $0x64] sm:$0xf] %vm3584, %v4563
      %4651 = vst.msk [vmem:[#allocation5 + $0x70] sm:$0xf] %vm3584, %v4565
      %4652 = vst.msk [vmem:[#allocation5 + $0x7c] sm:$0xf] %vm3584, %v4567
      %4653 = vst.msk [vmem:[#allocation5 + $0x88] sm:$0xf] %vm3584, %v4569
      %4654 = vst.msk [vmem:[#allocation5 + $0x94] sm:$0xf] %vm3584, %v4571
      %4655 = vst.msk [vmem:[#allocation5 + $0xa0] sm:$0xf] %vm3584, %v4573
      %4656 = vst.msk [vmem:[#allocation5 + $0xac] sm:$0xf] %vm3584, %v4575
      %4657 = vst.msk [vmem:[#allocation5 + $0xb8] sm:$0xf] %vm3584, %v4577
      %4658 = vst.msk [vmem:[#allocation5 + $0xc4] sm:$0xf] %vm3584, %v4579
      %4659 = vst.msk [vmem:[#allocation5 + $0xd0] sm:$0xf] %vm3584, %v4581
      %4660 = vst.msk [vmem:[#allocation5 + $0xdc] sm:$0xf] %vm3584, %v4583
      %4661 = vst.msk [vmem:[#allocation5 + $0xe8] sm:$0xf] %vm3584, %v4585
      %4662 = vst.msk [vmem:[#allocation5 + $0xf4] sm:$0xf] %vm3584, %v4587
      %4663 = vst.msk [vmem:[#allocation5 + $0x100] sm:$0xf] %vm3584, %v4589
      %4664 = vst.msk [vmem:[#allocation5 + $0x10c] sm:$0xf] %vm3584, %v4591
      %4665 = vst.msk [vmem:[#allocation5 + $0x118] sm:$0xf] %vm3584, %v4593
      %4666 = vst.msk [vmem:[#allocation5 + $0x124] sm:$0xf] %vm3584, %v4595
      %4667 = vst.msk [vmem:[#allocation5 + $0x130] sm:$0xf] %vm3584, %v4597
      %4668 = vst.msk [vmem:[#allocation5 + $0x13c] sm:$0xf] %vm3584, %v4599
      %4669 = vst.msk [vmem:[#allocation5 + $0x148] sm:$0xf] %vm3584, %v4601
      %4670 = vst.msk [vmem:[#allocation5 + $0x154] sm:$0xf] %vm3584, %v4603
      %4671 = vst.msk [vmem:[#allocation5 + $0x160] sm:$0xf] %vm3584, %v4605
      %4672 = vst.msk [vmem:[#allocation5 + $0x16c] sm:$0xf] %vm3584, %v4607
      %4673 = vst.msk [vmem:[#allocation5 + $0x178] sm:$0xf] %vm3584, %v4609
      %v4674 = vld [vmem:[#allocation4 + $0x28] sm:$0xff]
      %v4675 = vld [vmem:[#allocation4 + $0x30] sm:$0xff]
      %v4676 = vld [vmem:[#allocation4 + $0x38] sm:$0xff]
      %v4677 = vld [vmem:[#allocation4 + $0x40] sm:$0xff]
      %v4678 = vld [vmem:[#allocation4 + $0x48] sm:$0xff]
      %v4679 = vld [vmem:[#allocation4 + $0x50] sm:$0xff]
      %v4680 = vld [vmem:[#allocation4 + $0x58] sm:$0xff]
      %v4681 = vld [vmem:[#allocation4 + $0x60] sm:$0xff]
      %v4682 = vld [vmem:[#allocation4 + $0x68] sm:$0xff]
      %v4683 = vld [vmem:[#allocation4 + $0x70] sm:$0xff]
      %v4684 = vld [vmem:[#allocation4 + $0x78] sm:$0xff]
      %v4685 = vld [vmem:[#allocation4 + $0x80] sm:$0xff]
      %v4686 = vld [vmem:[#allocation4 + $0x88] sm:$0xff]
      %v4687 = vld [vmem:[#allocation4 + $0x90] sm:$0xff]
      %v4688 = vld [vmem:[#allocation4 + $0x98] sm:$0xff]
      %v4689 = vld [vmem:[#allocation4 + $0xa0] sm:$0xff]
      %v4690 = vld [vmem:[#allocation4 + $0xa8] sm:$0xff]
      %v4691 = vld [vmem:[#allocation4 + $0xb0] sm:$0xff]
      %v4692 = vld [vmem:[#allocation4 + $0xb8] sm:$0xff]
      %v4693 = vld [vmem:[#allocation4 + $0xc0] sm:$0xff]
      %v4694 = vld [vmem:[#allocation4 + $0xc8] sm:$0xff]
      %v4695 = vld [vmem:[#allocation4 + $0xd0] sm:$0xff]
      %v4696 = vld [vmem:[#allocation4 + $0xd8] sm:$0xff]
      %v4697 = vld [vmem:[#allocation4 + $0xe0] sm:$0xff]
      %v4698 = vld [vmem:[#allocation4 + $0xe8] sm:$0xff]
      %v4699 = vld [vmem:[#allocation4 + $0xf0] sm:$0xff]
      %v4700 = vld [vmem:[#allocation4 + $0xf8] sm:$0xff]
      %v4701 = vld [vmem:[#allocation4 + $0x100] sm:$0xff]
      %v4702 = vld [vmem:[#allocation4 + $0x108] sm:$0xff]
      %v4703 = vld [vmem:[#allocation4 + $0x110] sm:$0xff]
      %v4704 = vld [vmem:[#allocation4 + $0x118] sm:$0xff]
      %v4705 = vld [vmem:[#allocation4 + $0x120] sm:$0xff]
      %v4706 = vpack.c.bf16 %v4675, %v4674
      %v4707 = vpack.c.bf16 %v4677, %v4676
      %v4708 = vpack.c.bf16 %v4679, %v4678
      %v4709 = vpack.c.bf16 %v4681, %v4680
      %v4710 = vpack.c.bf16 %v4683, %v4682
      %v4711 = vpack.c.bf16 %v4685, %v4684
      %v4712 = vpack.c.bf16 %v4687, %v4686
      %v4713 = vpack.c.bf16 %v4689, %v4688
      %v4714 = vpack.c.bf16 %v4691, %v4690
      %v4715 = vpack.c.bf16 %v4693, %v4692
      %v4716 = vpack.c.bf16 %v4695, %v4694
      %v4717 = vpack.c.bf16 %v4697, %v4696
      %v4718 = vpack.c.bf16 %v4699, %v4698
      %v4719 = vpack.c.bf16 %v4701, %v4700
      %v4720 = vpack.c.bf16 %v4703, %v4702
      %v4721 = vpack.c.bf16 %v4705, %v4704
      %v4738 = vunpack.c.l.b16 %v4706
      %v4739 = vunpack.c.h.b16 %v4706
      %v4740 = vunpack.c.l.b16 %v4707
      %v4741 = vunpack.c.h.b16 %v4707
      %v4742 = vunpack.c.l.b16 %v4708
      %v4743 = vunpack.c.h.b16 %v4708
      %v4744 = vunpack.c.l.b16 %v4709
      %v4745 = vunpack.c.h.b16 %v4709
      %v4746 = vunpack.c.l.b16 %v4710
      %v4747 = vunpack.c.h.b16 %v4710
      %v4748 = vunpack.c.l.b16 %v4711
      %v4749 = vunpack.c.h.b16 %v4711
      %v4750 = vunpack.c.l.b16 %v4712
      %v4751 = vunpack.c.h.b16 %v4712
      %v4752 = vunpack.c.l.b16 %v4713
      %v4753 = vunpack.c.h.b16 %v4713
      %v4754 = vunpack.c.l.b16 %v4714
      %v4755 = vunpack.c.h.b16 %v4714
      %v4756 = vunpack.c.l.b16 %v4715
      %v4757 = vunpack.c.h.b16 %v4715
      %v4758 = vunpack.c.l.b16 %v4716
      %v4759 = vunpack.c.h.b16 %v4716
      %v4760 = vunpack.c.l.b16 %v4717
      %v4761 = vunpack.c.h.b16 %v4717
      %v4762 = vunpack.c.l.b16 %v4718
      %v4763 = vunpack.c.h.b16 %v4718
      %v4764 = vunpack.c.l.b16 %v4719
      %v4765 = vunpack.c.h.b16 %v4719
      %v4766 = vunpack.c.l.b16 %v4720
      %v4767 = vunpack.c.h.b16 %v4720
      %v4768 = vunpack.c.l.b16 %v4721
      %v4769 = vunpack.c.h.b16 %v4721
      %v4770 = vpack.c.b16 %v4738, %v4738
      %v4771 = vpack.c.b16 %v4739, %v4739
      %v4772 = vpack.c.b16 %v4740, %v4740
      %v4773 = vpack.c.b16 %v4741, %v4741
      %v4774 = vpack.c.b16 %v4742, %v4742
      %v4775 = vpack.c.b16 %v4743, %v4743
      %v4776 = vpack.c.b16 %v4744, %v4744
      %v4777 = vpack.c.b16 %v4745, %v4745
      %v4778 = vpack.c.b16 %v4746, %v4746
      %v4779 = vpack.c.b16 %v4747, %v4747
      %v4780 = vpack.c.b16 %v4748, %v4748
      %v4781 = vpack.c.b16 %v4749, %v4749
      %v4782 = vpack.c.b16 %v4750, %v4750
      %v4783 = vpack.c.b16 %v4751, %v4751
      %v4784 = vpack.c.b16 %v4752, %v4752
      %v4785 = vpack.c.b16 %v4753, %v4753
      %v4786 = vpack.c.b16 %v4754, %v4754
      %v4787 = vpack.c.b16 %v4755, %v4755
      %v4788 = vpack.c.b16 %v4756, %v4756
      %v4789 = vpack.c.b16 %v4757, %v4757
      %v4790 = vpack.c.b16 %v4758, %v4758
      %v4791 = vpack.c.b16 %v4759, %v4759
      %v4792 = vpack.c.b16 %v4760, %v4760
      %v4793 = vpack.c.b16 %v4761, %v4761
      %v4794 = vpack.c.b16 %v4762, %v4762
      %v4795 = vpack.c.b16 %v4763, %v4763
      %v4796 = vpack.c.b16 %v4764, %v4764
      %v4797 = vpack.c.b16 %v4765, %v4765
      %v4798 = vpack.c.b16 %v4766, %v4766
      %v4799 = vpack.c.b16 %v4767, %v4767
      %v4800 = vpack.c.b16 %v4768, %v4768
      %v4801 = vpack.c.b16 %v4769, %v4769
      %4802 = vrot.lane.b32.xlu0 %v4770, 96
      %v4803 = vpop.permute.xlu0 %4802
      %4804 = vrot.lane.b32.xlu0 %v4771, 96
      %v4805 = vpop.permute.xlu0 %4804
      %4806 = vrot.lane.b32.xlu0 %v4772, 96
      %v4807 = vpop.permute.xlu0 %4806
      %4808 = vrot.lane.b32.xlu0 %v4773, 96
      %v4809 = vpop.permute.xlu0 %4808
      %4810 = vrot.lane.b32.xlu0 %v4774, 96
      %v4811 = vpop.permute.xlu0 %4810
      %4812 = vrot.lane.b32.xlu0 %v4775, 96
      %v4813 = vpop.permute.xlu0 %4812
      %4814 = vrot.lane.b32.xlu0 %v4776, 96
      %v4815 = vpop.permute.xlu0 %4814
      %4816 = vrot.lane.b32.xlu0 %v4777, 96
      %v4817 = vpop.permute.xlu0 %4816
      %4818 = vrot.lane.b32.xlu0 %v4778, 96
      %v4819 = vpop.permute.xlu0 %4818
      %4820 = vrot.lane.b32.xlu0 %v4779, 96
      %v4821 = vpop.permute.xlu0 %4820
      %4822 = vrot.lane.b32.xlu0 %v4780, 96
      %v4823 = vpop.permute.xlu0 %4822
      %4824 = vrot.lane.b32.xlu0 %v4781, 96
      %v4825 = vpop.permute.xlu0 %4824
      %4826 = vrot.lane.b32.xlu0 %v4782, 96
      %v4827 = vpop.permute.xlu0 %4826
      %4828 = vrot.lane.b32.xlu0 %v4783, 96
      %v4829 = vpop.permute.xlu0 %4828
      %4830 = vrot.lane.b32.xlu0 %v4784, 96
      %v4831 = vpop.permute.xlu0 %4830
      %4832 = vrot.lane.b32.xlu0 %v4785, 96
      %v4833 = vpop.permute.xlu0 %4832
      %4834 = vrot.lane.b32.xlu0 %v4786, 96
      %v4835 = vpop.permute.xlu0 %4834
      %4836 = vrot.lane.b32.xlu0 %v4787, 96
      %v4837 = vpop.permute.xlu0 %4836
      %4838 = vrot.lane.b32.xlu0 %v4788, 96
      %v4839 = vpop.permute.xlu0 %4838
      %4840 = vrot.lane.b32.xlu0 %v4789, 96
      %v4841 = vpop.permute.xlu0 %4840
      %4842 = vrot.lane.b32.xlu0 %v4790, 96
      %v4843 = vpop.permute.xlu0 %4842
      %4844 = vrot.lane.b32.xlu0 %v4791, 96
      %v4845 = vpop.permute.xlu0 %4844
      %4846 = vrot.lane.b32.xlu0 %v4792, 96
      %v4847 = vpop.permute.xlu0 %4846
      %4848 = vrot.lane.b32.xlu0 %v4793, 96
      %v4849 = vpop.permute.xlu0 %4848
      %4850 = vrot.lane.b32.xlu0 %v4794, 96
      %v4851 = vpop.permute.xlu0 %4850
      %4852 = vrot.lane.b32.xlu0 %v4795, 96
      %v4853 = vpop.permute.xlu0 %4852
      %4854 = vrot.lane.b32.xlu0 %v4796, 96
      %v4855 = vpop.permute.xlu0 %4854
      %4856 = vrot.lane.b32.xlu0 %v4797, 96
      %v4857 = vpop.permute.xlu0 %4856
      %4858 = vrot.lane.b32.xlu0 %v4798, 96
      %v4859 = vpop.permute.xlu0 %4858
      %4860 = vrot.lane.b32.xlu0 %v4799, 96
      %v4861 = vpop.permute.xlu0 %4860
      %4862 = vrot.lane.b32.xlu0 %v4800, 96
      %v4863 = vpop.permute.xlu0 %4862
      %4864 = vrot.lane.b32.xlu0 %v4801, 96
      %v4865 = vpop.permute.xlu0 %4864
      %4898 = vst.msk [vmem:[#allocation5 + $0x4] sm:$0xf] %vm3873, %v4803
      %4899 = vst.msk [vmem:[#allocation5 + $0x10] sm:$0xf] %vm3873, %v4805
      %4900 = vst.msk [vmem:[#allocation5 + $0x1c] sm:$0xf] %vm3873, %v4807
      %4901 = vst.msk [vmem:[#allocation5 + $0x28] sm:$0xf] %vm3873, %v4809
      %4902 = vst.msk [vmem:[#allocation5 + $0x34] sm:$0xf] %vm3873, %v4811
      %4903 = vst.msk [vmem:[#allocation5 + $0x40] sm:$0xf] %vm3873, %v4813
      %4904 = vst.msk [vmem:[#allocation5 + $0x4c] sm:$0xf] %vm3873, %v4815
      %4905 = vst.msk [vmem:[#allocation5 + $0x58] sm:$0xf] %vm3873, %v4817
      %4906 = vst.msk [vmem:[#allocation5 + $0x64] sm:$0xf] %vm3873, %v4819
      %4907 = vst.msk [vmem:[#allocation5 + $0x70] sm:$0xf] %vm3873, %v4821
      %4908 = vst.msk [vmem:[#allocation5 + $0x7c] sm:$0xf] %vm3873, %v4823
      %4909 = vst.msk [vmem:[#allocation5 + $0x88] sm:$0xf] %vm3873, %v4825
      %4910 = vst.msk [vmem:[#allocation5 + $0x94] sm:$0xf] %vm3873, %v4827
      %4911 = vst.msk [vmem:[#allocation5 + $0xa0] sm:$0xf] %vm3873, %v4829
      %4912 = vst.msk [vmem:[#allocation5 + $0xac] sm:$0xf] %vm3873, %v4831
      %4913 = vst.msk [vmem:[#allocation5 + $0xb8] sm:$0xf] %vm3873, %v4833
      %4914 = vst.msk [vmem:[#allocation5 + $0xc4] sm:$0xf] %vm3873, %v4835
      %4915 = vst.msk [vmem:[#allocation5 + $0xd0] sm:$0xf] %vm3873, %v4837
      %4916 = vst.msk [vmem:[#allocation5 + $0xdc] sm:$0xf] %vm3873, %v4839
      %4917 = vst.msk [vmem:[#allocation5 + $0xe8] sm:$0xf] %vm3873, %v4841
      %4918 = vst.msk [vmem:[#allocation5 + $0xf4] sm:$0xf] %vm3873, %v4843
      %4919 = vst.msk [vmem:[#allocation5 + $0x100] sm:$0xf] %vm3873, %v4845
      %4920 = vst.msk [vmem:[#allocation5 + $0x10c] sm:$0xf] %vm3873, %v4847
      %4921 = vst.msk [vmem:[#allocation5 + $0x118] sm:$0xf] %vm3873, %v4849
      %4922 = vst.msk [vmem:[#allocation5 + $0x124] sm:$0xf] %vm3873, %v4851
      %4923 = vst.msk [vmem:[#allocation5 + $0x130] sm:$0xf] %vm3873, %v4853
      %4924 = vst.msk [vmem:[#allocation5 + $0x13c] sm:$0xf] %vm3873, %v4855
      %4925 = vst.msk [vmem:[#allocation5 + $0x148] sm:$0xf] %vm3873, %v4857
      %4926 = vst.msk [vmem:[#allocation5 + $0x154] sm:$0xf] %vm3873, %v4859
      %4927 = vst.msk [vmem:[#allocation5 + $0x160] sm:$0xf] %vm3873, %v4861
      %4928 = vst.msk [vmem:[#allocation5 + $0x16c] sm:$0xf] %vm3873, %v4863
      %4929 = vst.msk [vmem:[#allocation5 + $0x178] sm:$0xf] %vm3873, %v4865
      %v4930 = vld [vmem:[#allocation4 + $0x29] sm:$0xff]
      %v4931 = vld [vmem:[#allocation4 + $0x31] sm:$0xff]
      %v4932 = vld [vmem:[#allocation4 + $0x39] sm:$0xff]
      %v4933 = vld [vmem:[#allocation4 + $0x41] sm:$0xff]
      %v4934 = vld [vmem:[#allocation4 + $0x49] sm:$0xff]
      %v4935 = vld [vmem:[#allocation4 + $0x51] sm:$0xff]
      %v4936 = vld [vmem:[#allocation4 + $0x59] sm:$0xff]
      %v4937 = vld [vmem:[#allocation4 + $0x61] sm:$0xff]
      %v4938 = vld [vmem:[#allocation4 + $0x69] sm:$0xff]
      %v4939 = vld [vmem:[#allocation4 + $0x71] sm:$0xff]
      %v4940 = vld [vmem:[#allocation4 + $0x79] sm:$0xff]
      %v4941 = vld [vmem:[#allocation4 + $0x81] sm:$0xff]
      %v4942 = vld [vmem:[#allocation4 + $0x89] sm:$0xff]
      %v4943 = vld [vmem:[#allocation4 + $0x91] sm:$0xff]
      %v4944 = vld [vmem:[#allocation4 + $0x99] sm:$0xff]
      %v4945 = vld [vmem:[#allocation4 + $0xa1] sm:$0xff]
      %v4946 = vld [vmem:[#allocation4 + $0xa9] sm:$0xff]
      %v4947 = vld [vmem:[#allocation4 + $0xb1] sm:$0xff]
      %v4948 = vld [vmem:[#allocation4 + $0xb9] sm:$0xff]
      %v4949 = vld [vmem:[#allocation4 + $0xc1] sm:$0xff]
      %v4950 = vld [vmem:[#allocation4 + $0xc9] sm:$0xff]
      %v4951 = vld [vmem:[#allocation4 + $0xd1] sm:$0xff]
      %v4952 = vld [vmem:[#allocation4 + $0xd9] sm:$0xff]
      %v4953 = vld [vmem:[#allocation4 + $0xe1] sm:$0xff]
      %v4954 = vld [vmem:[#allocation4 + $0xe9] sm:$0xff]
      %v4955 = vld [vmem:[#allocation4 + $0xf1] sm:$0xff]
      %v4956 = vld [vmem:[#allocation4 + $0xf9] sm:$0xff]
      %v4957 = vld [vmem:[#allocation4 + $0x101] sm:$0xff]
      %v4958 = vld [vmem:[#allocation4 + $0x109] sm:$0xff]
      %v4959 = vld [vmem:[#allocation4 + $0x111] sm:$0xff]
      %v4960 = vld [vmem:[#allocation4 + $0x119] sm:$0xff]
      %v4961 = vld [vmem:[#allocation4 + $0x121] sm:$0xff]
      %v4962 = vsel %vm3328, %v4930, 0.0
      %v4963 = vsel %vm3329, %v4931, 0.0
      %v4964 = vsel %vm3330, %v4932, 0.0
      %v4965 = vsel %vm3331, %v4933, 0.0
      %v4966 = vsel %vm3332, %v4934, 0.0
      %v4967 = vsel %vm3333, %v4935, 0.0
      %v4968 = vsel %vm3334, %v4936, 0.0
      %v4969 = vsel %vm3335, %v4937, 0.0
      %v4970 = vsel %vm3336, %v4938, 0.0
      %v4971 = vsel %vm3337, %v4939, 0.0
      %v4972 = vsel %vm3338, %v4940, 0.0
      %v4973 = vsel %vm3339, %v4941, 0.0
      %v4974 = vsel %vm3340, %v4942, 0.0
      %v4975 = vsel %vm3341, %v4943, 0.0
      %v4976 = vsel %vm3342, %v4944, 0.0
      %v4977 = vsel %vm3343, %v4945, 0.0
      %v4978 = vsel %vm3344, %v4946, 0.0
      %v4979 = vsel %vm3345, %v4947, 0.0
      %v4980 = vsel %vm3346, %v4948, 0.0
      %v4981 = vsel %vm3347, %v4949, 0.0
      %v4982 = vsel %vm3348, %v4950, 0.0
      %v4983 = vsel %vm3349, %v4951, 0.0
      %v4984 = vsel %vm3350, %v4952, 0.0
      %v4985 = vsel %vm3351, %v4953, 0.0
      %v4986 = vsel %vm3352, %v4954, 0.0
      %v4987 = vsel %vm3353, %v4955, 0.0
      %v4988 = vsel %vm3354, %v4956, 0.0
      %v4989 = vsel %vm3355, %v4957, 0.0
      %v4990 = vsel %vm3356, %v4958, 0.0
      %v4991 = vsel %vm3357, %v4959, 0.0
      %v4992 = vsel %vm3358, %v4960, 0.0
      %v4993 = vsel %vm3359, %v4961, 0.0
      %v4994 = vpack.c.bf16 %v4963, %v4962
      %v4995 = vpack.c.bf16 %v4965, %v4964
      %v4996 = vpack.c.bf16 %v4967, %v4966
      %v4997 = vpack.c.bf16 %v4969, %v4968
      %v4998 = vpack.c.bf16 %v4971, %v4970
      %v4999 = vpack.c.bf16 %v4973, %v4972
      %v5000 = vpack.c.bf16 %v4975, %v4974
      %v5001 = vpack.c.bf16 %v4977, %v4976
      %v5002 = vpack.c.bf16 %v4979, %v4978
      %v5003 = vpack.c.bf16 %v4981, %v4980
      %v5004 = vpack.c.bf16 %v4983, %v4982
      %v5005 = vpack.c.bf16 %v4985, %v4984
      %v5006 = vpack.c.bf16 %v4987, %v4986
      %v5007 = vpack.c.bf16 %v4989, %v4988
      %v5008 = vpack.c.bf16 %v4991, %v4990
      %v5009 = vpack.c.bf16 %v4993, %v4992
      %v5026 = vunpack.c.l.b16 %v4994
      %v5027 = vunpack.c.h.b16 %v4994
      %v5028 = vunpack.c.l.b16 %v4995
      %v5029 = vunpack.c.h.b16 %v4995
      %v5030 = vunpack.c.l.b16 %v4996
      %v5031 = vunpack.c.h.b16 %v4996
      %v5032 = vunpack.c.l.b16 %v4997
      %v5033 = vunpack.c.h.b16 %v4997
      %v5034 = vunpack.c.l.b16 %v4998
      %v5035 = vunpack.c.h.b16 %v4998
      %v5036 = vunpack.c.l.b16 %v4999
      %v5037 = vunpack.c.h.b16 %v4999
      %v5038 = vunpack.c.l.b16 %v5000
      %v5039 = vunpack.c.h.b16 %v5000
      %v5040 = vunpack.c.l.b16 %v5001
      %v5041 = vunpack.c.h.b16 %v5001
      %v5042 = vunpack.c.l.b16 %v5002
      %v5043 = vunpack.c.h.b16 %v5002
      %v5044 = vunpack.c.l.b16 %v5003
      %v5045 = vunpack.c.h.b16 %v5003
      %v5046 = vunpack.c.l.b16 %v5004
      %v5047 = vunpack.c.h.b16 %v5004
      %v5048 = vunpack.c.l.b16 %v5005
      %v5049 = vunpack.c.h.b16 %v5005
      %v5050 = vunpack.c.l.b16 %v5006
      %v5051 = vunpack.c.h.b16 %v5006
      %v5052 = vunpack.c.l.b16 %v5007
      %v5053 = vunpack.c.h.b16 %v5007
      %v5054 = vunpack.c.l.b16 %v5008
      %v5055 = vunpack.c.h.b16 %v5008
      %v5056 = vunpack.c.l.b16 %v5009
      %v5057 = vunpack.c.h.b16 %v5009
      %v5058 = vpack.c.b16 %v5026, %v5026
      %v5059 = vpack.c.b16 %v5027, %v5027
      %v5060 = vpack.c.b16 %v5028, %v5028
      %v5061 = vpack.c.b16 %v5029, %v5029
      %v5062 = vpack.c.b16 %v5030, %v5030
      %v5063 = vpack.c.b16 %v5031, %v5031
      %v5064 = vpack.c.b16 %v5032, %v5032
      %v5065 = vpack.c.b16 %v5033, %v5033
      %v5066 = vpack.c.b16 %v5034, %v5034
      %v5067 = vpack.c.b16 %v5035, %v5035
      %v5068 = vpack.c.b16 %v5036, %v5036
      %v5069 = vpack.c.b16 %v5037, %v5037
      %v5070 = vpack.c.b16 %v5038, %v5038
      %v5071 = vpack.c.b16 %v5039, %v5039
      %v5072 = vpack.c.b16 %v5040, %v5040
      %v5073 = vpack.c.b16 %v5041, %v5041
      %v5074 = vpack.c.b16 %v5042, %v5042
      %v5075 = vpack.c.b16 %v5043, %v5043
      %v5076 = vpack.c.b16 %v5044, %v5044
      %v5077 = vpack.c.b16 %v5045, %v5045
      %v5078 = vpack.c.b16 %v5046, %v5046
      %v5079 = vpack.c.b16 %v5047, %v5047
      %v5080 = vpack.c.b16 %v5048, %v5048
      %v5081 = vpack.c.b16 %v5049, %v5049
      %v5082 = vpack.c.b16 %v5050, %v5050
      %v5083 = vpack.c.b16 %v5051, %v5051
      %v5084 = vpack.c.b16 %v5052, %v5052
      %v5085 = vpack.c.b16 %v5053, %v5053
      %v5086 = vpack.c.b16 %v5054, %v5054
      %v5087 = vpack.c.b16 %v5055, %v5055
      %v5088 = vpack.c.b16 %v5056, %v5056
      %v5089 = vpack.c.b16 %v5057, %v5057
      %5122 = vst.msk [vmem:[#allocation5 + $0x8] sm:$0xf] %vm3006, %v5058
      %5123 = vst.msk [vmem:[#allocation5 + $0x14] sm:$0xf] %vm3006, %v5059
      %5124 = vst.msk [vmem:[#allocation5 + $0x20] sm:$0xf] %vm3006, %v5060
      %5125 = vst.msk [vmem:[#allocation5 + $0x2c] sm:$0xf] %vm3006, %v5061
      %5126 = vst.msk [vmem:[#allocation5 + $0x38] sm:$0xf] %vm3006, %v5062
      %5127 = vst.msk [vmem:[#allocation5 + $0x44] sm:$0xf] %vm3006, %v5063
      %5128 = vst.msk [vmem:[#allocation5 + $0x50] sm:$0xf] %vm3006, %v5064
      %5129 = vst.msk [vmem:[#allocation5 + $0x5c] sm:$0xf] %vm3006, %v5065
      %5130 = vst.msk [vmem:[#allocation5 + $0x68] sm:$0xf] %vm3006, %v5066
      %5131 = vst.msk [vmem:[#allocation5 + $0x74] sm:$0xf] %vm3006, %v5067
      %5132 = vst.msk [vmem:[#allocation5 + $0x80] sm:$0xf] %vm3006, %v5068
      %5133 = vst.msk [vmem:[#allocation5 + $0x8c] sm:$0xf] %vm3006, %v5069
      %5134 = vst.msk [vmem:[#allocation5 + $0x98] sm:$0xf] %vm3006, %v5070
      %5135 = vst.msk [vmem:[#allocation5 + $0xa4] sm:$0xf] %vm3006, %v5071
      %5136 = vst.msk [vmem:[#allocation5 + $0xb0] sm:$0xf] %vm3006, %v5072
      %5137 = vst.msk [vmem:[#allocation5 + $0xbc] sm:$0xf] %vm3006, %v5073
      %5138 = vst.msk [vmem:[#allocation5 + $0xc8] sm:$0xf] %vm3006, %v5074
      %5139 = vst.msk [vmem:[#allocation5 + $0xd4] sm:$0xf] %vm3006, %v5075
      %5140 = vst.msk [vmem:[#allocation5 + $0xe0] sm:$0xf] %vm3006, %v5076
      %5141 = vst.msk [vmem:[#allocation5 + $0xec] sm:$0xf] %vm3006, %v5077
      %5142 = vst.msk [vmem:[#allocation5 + $0xf8] sm:$0xf] %vm3006, %v5078
      %5143 = vst.msk [vmem:[#allocation5 + $0x104] sm:$0xf] %vm3006, %v5079
      %5144 = vst.msk [vmem:[#allocation5 + $0x110] sm:$0xf] %vm3006, %v5080
      %5145 = vst.msk [vmem:[#allocation5 + $0x11c] sm:$0xf] %vm3006, %v5081
      %5146 = vst.msk [vmem:[#allocation5 + $0x128] sm:$0xf] %vm3006, %v5082
      %5147 = vst.msk [vmem:[#allocation5 + $0x134] sm:$0xf] %vm3006, %v5083
      %5148 = vst.msk [vmem:[#allocation5 + $0x140] sm:$0xf] %vm3006, %v5084
      %5149 = vst.msk [vmem:[#allocation5 + $0x14c] sm:$0xf] %vm3006, %v5085
      %5150 = vst.msk [vmem:[#allocation5 + $0x158] sm:$0xf] %vm3006, %v5086
      %5151 = vst.msk [vmem:[#allocation5 + $0x164] sm:$0xf] %vm3006, %v5087
      %5152 = vst.msk [vmem:[#allocation5 + $0x170] sm:$0xf] %vm3006, %v5088
      %5153 = vst.msk [vmem:[#allocation5 + $0x17c] sm:$0xf] %vm3006, %v5089
      %v5154 = vld [vmem:[#allocation5] sm:$0xff]
      %v5155 = vld [vmem:[#allocation5 + $0x8] sm:$0xf]
      %v5156 = vld [vmem:[#allocation5 + $0xc] sm:$0xff]
      %v5157 = vld [vmem:[#allocation5 + $0x14] sm:$0xf]
      %v5158 = vld [vmem:[#allocation5 + $0x18] sm:$0xff]
      %v5159 = vld [vmem:[#allocation5 + $0x20] sm:$0xf]
      %v5160 = vld [vmem:[#allocation5 + $0x24] sm:$0xff]
      %v5161 = vld [vmem:[#allocation5 + $0x2c] sm:$0xf]
      %v5162 = vld [vmem:[#allocation5 + $0x30] sm:$0xff]
      %v5163 = vld [vmem:[#allocation5 + $0x38] sm:$0xf]
      %v5164 = vld [vmem:[#allocation5 + $0x3c] sm:$0xff]
      %v5165 = vld [vmem:[#allocation5 + $0x44] sm:$0xf]
      %v5166 = vld [vmem:[#allocation5 + $0x48] sm:$0xff]
      %v5167 = vld [vmem:[#allocation5 + $0x50] sm:$0xf]
      %v5168 = vld [vmem:[#allocation5 + $0x54] sm:$0xff]
      %v5169 = vld [vmem:[#allocation5 + $0x5c] sm:$0xf]
      %v5170 = vld [vmem:[#allocation5 + $0x60] sm:$0xff]
      %v5171 = vld [vmem:[#allocation5 + $0x68] sm:$0xf]
      %v5172 = vld [vmem:[#allocation5 + $0x6c] sm:$0xff]
      %v5173 = vld [vmem:[#allocation5 + $0x74] sm:$0xf]
      %v5174 = vld [vmem:[#allocation5 + $0x78] sm:$0xff]
      %v5175 = vld [vmem:[#allocation5 + $0x80] sm:$0xf]
      %v5176 = vld [vmem:[#allocation5 + $0x84] sm:$0xff]
      %v5177 = vld [vmem:[#allocation5 + $0x8c] sm:$0xf]
      %v5178 = vld [vmem:[#allocation5 + $0x90] sm:$0xff]
      %v5179 = vld [vmem:[#allocation5 + $0x98] sm:$0xf]
      %v5180 = vld [vmem:[#allocation5 + $0x9c] sm:$0xff]
      %v5181 = vld [vmem:[#allocation5 + $0xa4] sm:$0xf]
      %v5182 = vld [vmem:[#allocation5 + $0xa8] sm:$0xff]
      %v5183 = vld [vmem:[#allocation5 + $0xb0] sm:$0xf]
      %v5184 = vld [vmem:[#allocation5 + $0xb4] sm:$0xff]
      %v5185 = vld [vmem:[#allocation5 + $0xbc] sm:$0xf]
      %v5186 = vld [vmem:[#allocation5 + $0xc0] sm:$0xff]
      %v5187 = vld [vmem:[#allocation5 + $0xc8] sm:$0xf]
      %v5188 = vld [vmem:[#allocation5 + $0xcc] sm:$0xff]
      %v5189 = vld [vmem:[#allocation5 + $0xd4] sm:$0xf]
      %v5190 = vld [vmem:[#allocation5 + $0xd8] sm:$0xff]
      %v5191 = vld [vmem:[#allocation5 + $0xe0] sm:$0xf]
      %v5192 = vld [vmem:[#allocation5 + $0xe4] sm:$0xff]
      %v5193 = vld [vmem:[#allocation5 + $0xec] sm:$0xf]
      %v5194 = vld [vmem:[#allocation5 + $0xf0] sm:$0xff]
      %v5195 = vld [vmem:[#allocation5 + $0xf8] sm:$0xf]
      %v5196 = vld [vmem:[#allocation5 + $0xfc] sm:$0xff]
      %v5197 = vld [vmem:[#allocation5 + $0x104] sm:$0xf]
      %v5198 = vld [vmem:[#allocation5 + $0x108] sm:$0xff]
      %v5199 = vld [vmem:[#allocation5 + $0x110] sm:$0xf]
      %v5200 = vld [vmem:[#allocation5 + $0x114] sm:$0xff]
      %v5201 = vld [vmem:[#allocation5 + $0x11c] sm:$0xf]
      %v5202 = vld [vmem:[#allocation5 + $0x120] sm:$0xff]
      %v5203 = vld [vmem:[#allocation5 + $0x128] sm:$0xf]
      %v5204 = vld [vmem:[#allocation5 + $0x12c] sm:$0xff]
      %v5205 = vld [vmem:[#allocation5 + $0x134] sm:$0xf]
      %v5206 = vld [vmem:[#allocation5 + $0x138] sm:$0xff]
      %v5207 = vld [vmem:[#allocation5 + $0x140] sm:$0xf]
      %v5208 = vld [vmem:[#allocation5 + $0x144] sm:$0xff]
      %v5209 = vld [vmem:[#allocation5 + $0x14c] sm:$0xf]
      %v5210 = vld [vmem:[#allocation5 + $0x150] sm:$0xff]
      %v5211 = vld [vmem:[#allocation5 + $0x158] sm:$0xf]
      %v5212 = vld [vmem:[#allocation5 + $0x15c] sm:$0xff]
      %v5213 = vld [vmem:[#allocation5 + $0x164] sm:$0xf]
      %v5214 = vld [vmem:[#allocation5 + $0x168] sm:$0xff]
      %v5215 = vld [vmem:[#allocation5 + $0x170] sm:$0xf]
      %v5216 = vld [vmem:[#allocation5 + $0x174] sm:$0xff]
      %v5217 = vld [vmem:[#allocation5 + $0x17c] sm:$0xf]
      %v5218 = vld [vmem:[%s3] sm:$0xf]
      %v5219 = vld [vmem:[%s3 + $0x4] sm:$0xf]
      %v5220 = vld [vmem:[%s3 + $0x8] sm:$0xf]
      %v5221 = vld [vmem:[%s3 + $0xc] sm:$0xf]
      %v5222 = vld [vmem:[%s3 + $0x10] sm:$0xf]
      %v5223 = vld [vmem:[%s3 + $0x14] sm:$0xf]
      %v5224 = vld [vmem:[%s3 + $0x18] sm:$0xf]
      %v5225 = vld [vmem:[%s3 + $0x1c] sm:$0xf]
      %v5226 = vld [vmem:[%s3 + $0x20] sm:$0xf]
      %v5227 = vld [vmem:[%s3 + $0x24] sm:$0xf]
      %v5228 = vld [vmem:[%s3 + $0x28] sm:$0xf]
      %v5229 = vld [vmem:[%s3 + $0x2c] sm:$0xf]
      %v5230 = vld [vmem:[%s3 + $0x30] sm:$0xf]
      %v5231 = vld [vmem:[%s3 + $0x34] sm:$0xf]
      %v5232 = vld [vmem:[%s3 + $0x38] sm:$0xf]
      %v5233 = vld [vmem:[%s3 + $0x3c] sm:$0xf]
      %v5234 = vld [vmem:[%s3 + $0x40] sm:$0xf]
      %v5235 = vld [vmem:[%s3 + $0x44] sm:$0xf]
      %v5236 = vld [vmem:[%s3 + $0x48] sm:$0xf]
      %v5237 = vld [vmem:[%s3 + $0x4c] sm:$0xf]
      %v5238 = vld [vmem:[%s3 + $0x50] sm:$0xf]
      %v5239 = vld [vmem:[%s3 + $0x54] sm:$0xf]
      %v5240 = vld [vmem:[%s3 + $0x58] sm:$0xf]
      %v5241 = vld [vmem:[%s3 + $0x5c] sm:$0xf]
      %v5242 = vld [vmem:[%s3 + $0x60] sm:$0xf]
      %v5243 = vld [vmem:[%s3 + $0x64] sm:$0xf]
      %v5244 = vld [vmem:[%s3 + $0x68] sm:$0xf]
      %v5245 = vld [vmem:[%s3 + $0x6c] sm:$0xf]
      %v5246 = vld [vmem:[%s3 + $0x70] sm:$0xf]
      %v5247 = vld [vmem:[%s3 + $0x74] sm:$0xf]
      %v5248 = vld [vmem:[%s3 + $0x78] sm:$0xf]
      %v5249 = vld [vmem:[%s3 + $0x7c] sm:$0xf]
      %v5250 = vld [vmem:[%s3 + $0x80] sm:$0xf]
      %v5251 = vld [vmem:[%s3 + $0x84] sm:$0xf]
      %v5252 = vld [vmem:[%s3 + $0x88] sm:$0xf]
      %v5253 = vld [vmem:[%s3 + $0x8c] sm:$0xf]
      %v5254 = vld [vmem:[%s4] sm:$0x1]
      %v5255 = vlaneseq
      %v5256 = vshrl.u32 %v5255, 7
      %v5257 = vsub.s32 0, %v5256
      %v5258 = vrot.slane %v5254, %v5257
      %v5323 = vunpack.c.l.b16 %v5154
      %v5324 = vunpack.c.h.b16 %v5154
      %v5325 = vunpack.c.l.b16 %v5155
      %v5326 = vunpack.c.l.b16 %v5156
      %v5327 = vunpack.c.h.b16 %v5156
      %v5328 = vunpack.c.l.b16 %v5157
      %v5329 = vunpack.c.l.b16 %v5158
      %v5330 = vunpack.c.h.b16 %v5158
      %v5331 = vunpack.c.l.b16 %v5159
      %v5332 = vunpack.c.l.b16 %v5160
      %v5333 = vunpack.c.h.b16 %v5160
      %v5334 = vunpack.c.l.b16 %v5161
      %v5335 = vunpack.c.l.b16 %v5162
      %v5336 = vunpack.c.h.b16 %v5162
      %v5337 = vunpack.c.l.b16 %v5163
      %v5338 = vunpack.c.l.b16 %v5164
      %v5339 = vunpack.c.h.b16 %v5164
      %v5340 = vunpack.c.l.b16 %v5165
      %v5341 = vunpack.c.l.b16 %v5166
      %v5342 = vunpack.c.h.b16 %v5166
      %v5343 = vunpack.c.l.b16 %v5167
      %v5344 = vunpack.c.l.b16 %v5168
      %v5345 = vunpack.c.h.b16 %v5168
      %v5346 = vunpack.c.l.b16 %v5169
      %v5347 = vunpack.c.l.b16 %v5170
      %v5348 = vunpack.c.h.b16 %v5170
      %v5349 = vunpack.c.l.b16 %v5171
      %v5350 = vunpack.c.l.b16 %v5172
      %v5351 = vunpack.c.h.b16 %v5172
      %v5352 = vunpack.c.l.b16 %v5173
      %v5353 = vunpack.c.l.b16 %v5174
      %v5354 = vunpack.c.h.b16 %v5174
      %v5355 = vunpack.c.l.b16 %v5175
      %v5356 = vunpack.c.l.b16 %v5176
      %v5357 = vunpack.c.h.b16 %v5176
      %v5358 = vunpack.c.l.b16 %v5177
      %v5359 = vunpack.c.l.b16 %v5178
      %v5360 = vunpack.c.h.b16 %v5178
      %v5361 = vunpack.c.l.b16 %v5179
      %v5362 = vunpack.c.l.b16 %v5180
      %v5363 = vunpack.c.h.b16 %v5180
      %v5364 = vunpack.c.l.b16 %v5181
      %v5365 = vunpack.c.l.b16 %v5182
      %v5366 = vunpack.c.h.b16 %v5182
      %v5367 = vunpack.c.l.b16 %v5183
      %v5368 = vunpack.c.l.b16 %v5184
      %v5369 = vunpack.c.h.b16 %v5184
      %v5370 = vunpack.c.l.b16 %v5185
      %v5371 = vunpack.c.l.b16 %v5186
      %v5372 = vunpack.c.h.b16 %v5186
      %v5373 = vunpack.c.l.b16 %v5187
      %v5374 = vunpack.c.l.b16 %v5188
      %v5375 = vunpack.c.h.b16 %v5188
      %v5376 = vunpack.c.l.b16 %v5189
      %v5377 = vunpack.c.l.b16 %v5190
      %v5378 = vunpack.c.h.b16 %v5190
      %v5379 = vunpack.c.l.b16 %v5191
      %v5380 = vunpack.c.l.b16 %v5192
      %v5381 = vunpack.c.h.b16 %v5192
      %v5382 = vunpack.c.l.b16 %v5193
      %v5383 = vunpack.c.l.b16 %v5194
      %v5384 = vunpack.c.h.b16 %v5194
      %v5385 = vunpack.c.l.b16 %v5195
      %v5386 = vunpack.c.l.b16 %v5196
      %v5387 = vunpack.c.h.b16 %v5196
      %v5388 = vunpack.c.l.b16 %v5197
      %v5389 = vunpack.c.l.b16 %v5198
      %v5390 = vunpack.c.h.b16 %v5198
      %v5391 = vunpack.c.l.b16 %v5199
      %v5392 = vunpack.c.l.b16 %v5200
      %v5393 = vunpack.c.h.b16 %v5200
      %v5394 = vunpack.c.l.b16 %v5201
      %v5395 = vunpack.c.l.b16 %v5202
      %v5396 = vunpack.c.h.b16 %v5202
      %v5397 = vunpack.c.l.b16 %v5203
      %v5398 = vunpack.c.l.b16 %v5204
      %v5399 = vunpack.c.h.b16 %v5204
      %v5400 = vunpack.c.l.b16 %v5205
      %v5401 = vunpack.c.l.b16 %v5206
      %v5402 = vunpack.c.h.b16 %v5206
      %v5403 = vunpack.c.l.b16 %v5207
      %v5404 = vunpack.c.l.b16 %v5208
      %v5405 = vunpack.c.h.b16 %v5208
      %v5406 = vunpack.c.l.b16 %v5209
      %v5407 = vunpack.c.l.b16 %v5210
      %v5408 = vunpack.c.h.b16 %v5210
      %v5409 = vunpack.c.l.b16 %v5211
      %v5410 = vunpack.c.l.b16 %v5212
      %v5411 = vunpack.c.h.b16 %v5212
      %v5412 = vunpack.c.l.b16 %v5213
      %v5413 = vunpack.c.l.b16 %v5214
      %v5414 = vunpack.c.h.b16 %v5214
      %v5415 = vunpack.c.l.b16 %v5215
      %v5416 = vunpack.c.l.b16 %v5216
      %v5417 = vunpack.c.h.b16 %v5216
      %v5418 = vunpack.c.l.b16 %v5217
      %v5419 = vpack.c.b16 %v5326, %v5323
      %v5420 = vpack.c.b16 %v5327, %v5324
      %v5421 = vpack.c.b16 %v5328, %v5325
      %v5422 = vpack.c.b16 %v5332, %v5329
      %v5423 = vpack.c.b16 %v5333, %v5330
      %v5424 = vpack.c.b16 %v5334, %v5331
      %v5425 = vpack.c.b16 %v5338, %v5335
      %v5426 = vpack.c.b16 %v5339, %v5336
      %v5427 = vpack.c.b16 %v5340, %v5337
      %v5428 = vpack.c.b16 %v5344, %v5341
      %v5429 = vpack.c.b16 %v5345, %v5342
      %v5430 = vpack.c.b16 %v5346, %v5343
      %v5431 = vpack.c.b16 %v5350, %v5347
      %v5432 = vpack.c.b16 %v5351, %v5348
      %v5433 = vpack.c.b16 %v5352, %v5349
      %v5434 = vpack.c.b16 %v5356, %v5353
      %v5435 = vpack.c.b16 %v5357, %v5354
      %v5436 = vpack.c.b16 %v5358, %v5355
      %v5437 = vpack.c.b16 %v5362, %v5359
      %v5438 = vpack.c.b16 %v5363, %v5360
      %v5439 = vpack.c.b16 %v5364, %v5361
      %v5440 = vpack.c.b16 %v5368, %v5365
      %v5441 = vpack.c.b16 %v5369, %v5366
      %v5442 = vpack.c.b16 %v5370, %v5367
      %v5443 = vpack.c.b16 %v5374, %v5371
      %v5444 = vpack.c.b16 %v5375, %v5372
      %v5445 = vpack.c.b16 %v5376, %v5373
      %v5446 = vpack.c.b16 %v5380, %v5377
      %v5447 = vpack.c.b16 %v5381, %v5378
      %v5448 = vpack.c.b16 %v5382, %v5379
      %v5449 = vpack.c.b16 %v5386, %v5383
      %v5450 = vpack.c.b16 %v5387, %v5384
      %v5451 = vpack.c.b16 %v5388, %v5385
      %v5452 = vpack.c.b16 %v5392, %v5389
      %v5453 = vpack.c.b16 %v5393, %v5390
      %v5454 = vpack.c.b16 %v5394, %v5391
      %v5455 = vpack.c.b16 %v5398, %v5395
      %v5456 = vpack.c.b16 %v5399, %v5396
      %v5457 = vpack.c.b16 %v5400, %v5397
      %v5458 = vpack.c.b16 %v5404, %v5401
      %v5459 = vpack.c.b16 %v5405, %v5402
      %v5460 = vpack.c.b16 %v5406, %v5403
      %v5461 = vpack.c.b16 %v5410, %v5407
      %v5462 = vpack.c.b16 %v5411, %v5408
      %v5463 = vpack.c.b16 %v5412, %v5409
      %v5464 = vpack.c.b16 %v5416, %v5413
      %v5465 = vpack.c.b16 %v5417, %v5414
      %v5466 = vpack.c.b16 %v5418, %v5415
      %v5535 = vunpack.c.l.b16 %v5218
      %v5536 = vunpack.c.l.b16 %v5219
      %v5537 = vunpack.c.l.b16 %v5220
      %v5538 = vunpack.c.l.b16 %v5221
      %v5539 = vunpack.c.l.b16 %v5222
      %v5540 = vunpack.c.l.b16 %v5223
      %v5541 = vunpack.c.l.b16 %v5224
      %v5542 = vunpack.c.l.b16 %v5225
      %v5543 = vunpack.c.l.b16 %v5226
      %v5544 = vunpack.c.l.b16 %v5227
      %v5545 = vunpack.c.l.b16 %v5228
      %v5546 = vunpack.c.l.b16 %v5229
      %v5547 = vunpack.c.l.b16 %v5230
      %v5548 = vunpack.c.l.b16 %v5231
      %v5549 = vunpack.c.l.b16 %v5232
      %v5550 = vunpack.c.l.b16 %v5233
      %v5551 = vunpack.c.l.b16 %v5234
      %v5552 = vunpack.c.l.b16 %v5235
      %v5553 = vunpack.c.l.b16 %v5236
      %v5554 = vunpack.c.l.b16 %v5237
      %v5555 = vunpack.c.l.b16 %v5238
      %v5556 = vunpack.c.l.b16 %v5239
      %v5557 = vunpack.c.l.b16 %v5240
      %v5558 = vunpack.c.l.b16 %v5241
      %v5559 = vunpack.c.l.b16 %v5242
      %v5560 = vunpack.c.l.b16 %v5243
      %v5561 = vunpack.c.l.b16 %v5244
      %v5562 = vunpack.c.l.b16 %v5245
      %v5563 = vunpack.c.l.b16 %v5246
      %v5564 = vunpack.c.l.b16 %v5247
      %v5565 = vunpack.c.l.b16 %v5248
      %v5566 = vunpack.c.l.b16 %v5249
      %v5567 = vunpack.c.l.b16 %v5250
      %v5568 = vunpack.c.l.b16 %v5251
      %v5569 = vunpack.c.l.b16 %v5252
      %v5570 = vunpack.c.l.b16 %v5253
      %v5571 = vpack.c.b16 %v5536, %v5535
      %v5572 = vpack.c.b16 %v5538, %v5537
      %v5573 = vpack.c.b16 %v5540, %v5539
      %v5574 = vpack.c.b16 %v5542, %v5541
      %v5575 = vpack.c.b16 %v5544, %v5543
      %v5576 = vpack.c.b16 %v5546, %v5545
      %v5577 = vpack.c.b16 %v5548, %v5547
      %v5578 = vpack.c.b16 %v5550, %v5549
      %v5579 = vpack.c.b16 %v5552, %v5551
      %v5580 = vpack.c.b16 %v5554, %v5553
      %v5581 = vpack.c.b16 %v5556, %v5555
      %v5582 = vpack.c.b16 %v5558, %v5557
      %v5583 = vpack.c.b16 %v5560, %v5559
      %v5584 = vpack.c.b16 %v5562, %v5561
      %v5585 = vpack.c.b16 %v5564, %v5563
      %v5586 = vpack.c.b16 %v5566, %v5565
      %v5587 = vpack.c.b16 %v5568, %v5567
      %v5588 = vpack.c.b16 %v5570, %v5569
      %v5608 = vsel %vm2039, %v5421, 0
      %v5611 = vsel %vm2039, %v5424, 0
      %v5614 = vsel %vm2039, %v5427, 0
      %v5617 = vsel %vm2039, %v5430, 0
      %v5620 = vsel %vm2039, %v5433, 0
      %v5623 = vsel %vm2039, %v5436, 0
      %v5626 = vsel %vm2039, %v5439, 0
      %v5629 = vsel %vm2039, %v5442, 0
      %v5632 = vsel %vm2039, %v5445, 0
      %v5635 = vsel %vm2039, %v5448, 0
      %v5638 = vsel %vm2039, %v5451, 0
      %v5641 = vsel %vm2039, %v5454, 0
      %v5644 = vsel %vm2039, %v5457, 0
      %v5647 = vsel %vm2039, %v5460, 0
      %v5650 = vsel %vm2039, %v5463, 0
      %v5653 = vsel %vm2039, %v5466, 0
      %5655 = vmatprep.subr.bf16.mxu0 0
      %5656 = vmatpush1.bf16.msra.mxu0 %v5578
      %5657 = vmatprep.subr.bf16.mxu0 0
      %5658 = vmatpush1.bf16.msra.mxu0 %v5577
      %5659 = vmatprep.subr.bf16.mxu0 0
      %5660 = vmatpush1.bf16.msra.mxu0 %v5576
      %5661 = vmatprep.subr.bf16.mxu0 0
      %5662 = vmatpush1.bf16.msra.mxu0 %v5575
      %5663 = vmatprep.subr.bf16.mxu0 0
      %5664 = vmatpush1.bf16.msra.mxu0 %v5574
      %5665 = vmatprep.subr.bf16.mxu0 0
      %5666 = vmatpush1.bf16.msra.mxu0 %v5573
      %5667 = vmatprep.subr.bf16.mxu0 0
      %5668 = vmatpush1.bf16.msra.mxu0 %v5572
      %5669 = vmatprep.subr.bf16.mxu0 0
      %5670 = vmatpush1.bf16.msra.mxu0 %v5571
      %5671 = vmatprep.subr.bf16.mxu0 0
      %5672 = vmatpush2.bf16.msra.mxu0 %v5586
      %5673 = vmatprep.subr.bf16.mxu0 0
      %5674 = vmatpush2.bf16.msra.mxu0 %v5585
      %5675 = vmatprep.subr.bf16.mxu0 0
      %5676 = vmatpush2.bf16.msra.mxu0 %v5584
      %5677 = vmatprep.subr.bf16.mxu0 0
      %5678 = vmatpush2.bf16.msra.mxu0 %v5583
      %5679 = vmatprep.subr.bf16.mxu0 0
      %5680 = vmatpush2.bf16.msra.mxu0 %v5582
      %5681 = vmatprep.subr.bf16.mxu0 0
      %5682 = vmatpush2.bf16.msra.mxu0 %v5581
      %5683 = vmatprep.subr.bf16.mxu0 0
      %5684 = vmatpush2.bf16.msra.mxu0 %v5580
      %5685 = vmatprep.subr.bf16.mxu0 0
      %5686 = vmatpush2.bf16.msra.mxu0 %v5579
      %5687 = vmatprep.mubr.bf16.mxu0 %v5420
      %5688 = vmatmul.mubr.bf16.gmra.mxu0 %v5419
      %v5689 = vpop.f32.mrf.mxu0
      %v5690 = vadd.f32 %v5258, %v5689
      %v5691 = vpop.f32.mrf.mxu0
      %v5692 = vpop.f32.mrf.mxu0
      %v5693 = vadd.f32 %v5258, %v5692
      %v5694 = vpop.f32.mrf.mxu0
      %5695 = vmatprep.mubr.bf16.mxu0 %v5423
      %5696 = vmatmul.mubr.bf16.gmra.mxu0 %v5422
      %v5697 = vpop.f32.mrf.mxu0
      %v5698 = vadd.f32 %v5258, %v5697
      %v5699 = vpop.f32.mrf.mxu0
      %v5700 = vpop.f32.mrf.mxu0
      %v5701 = vadd.f32 %v5258, %v5700
      %v5702 = vpop.f32.mrf.mxu0
      %5703 = vmatprep.mubr.bf16.mxu0 %v5426
      %5704 = vmatmul.mubr.bf16.gmra.mxu0 %v5425
      %v5705 = vpop.f32.mrf.mxu0
      %v5706 = vadd.f32 %v5258, %v5705
      %v5707 = vpop.f32.mrf.mxu0
      %v5708 = vpop.f32.mrf.mxu0
      %v5709 = vadd.f32 %v5258, %v5708
      %v5710 = vpop.f32.mrf.mxu0
      %5711 = vmatprep.mubr.bf16.mxu0 %v5429
      %5712 = vmatmul.mubr.bf16.gmra.mxu0 %v5428
      %v5713 = vpop.f32.mrf.mxu0
      %v5714 = vadd.f32 %v5258, %v5713
      %v5715 = vpop.f32.mrf.mxu0
      %v5716 = vpop.f32.mrf.mxu0
      %v5717 = vadd.f32 %v5258, %v5716
      %v5718 = vpop.f32.mrf.mxu0
      %5719 = vmatprep.mubr.bf16.mxu0 %v5432
      %5720 = vmatmul.mubr.bf16.gmra.mxu0 %v5431
      %v5721 = vpop.f32.mrf.mxu0
      %v5722 = vadd.f32 %v5258, %v5721
      %v5723 = vpop.f32.mrf.mxu0
      %v5724 = vpop.f32.mrf.mxu0
      %v5725 = vadd.f32 %v5258, %v5724
      %v5726 = vpop.f32.mrf.mxu0
      %5727 = vmatprep.mubr.bf16.mxu0 %v5435
      %5728 = vmatmul.mubr.bf16.gmra.mxu0 %v5434
      %v5729 = vpop.f32.mrf.mxu0
      %v5730 = vadd.f32 %v5258, %v5729
      %v5731 = vpop.f32.mrf.mxu0
      %v5732 = vpop.f32.mrf.mxu0
      %v5733 = vadd.f32 %v5258, %v5732
      %v5734 = vpop.f32.mrf.mxu0
      %5735 = vmatprep.mubr.bf16.mxu0 %v5438
      %5736 = vmatmul.mubr.bf16.gmra.mxu0 %v5437
      %v5737 = vpop.f32.mrf.mxu0
      %v5738 = vadd.f32 %v5258, %v5737
      %v5739 = vpop.f32.mrf.mxu0
      %v5740 = vpop.f32.mrf.mxu0
      %v5741 = vadd.f32 %v5258, %v5740
      %v5742 = vpop.f32.mrf.mxu0
      %5743 = vmatprep.mubr.bf16.mxu0 %v5441
      %5744 = vmatmul.mubr.bf16.gmra.mxu0 %v5440
      %v5745 = vpop.f32.mrf.mxu0
      %v5746 = vadd.f32 %v5258, %v5745
      %v5747 = vpop.f32.mrf.mxu0
      %v5748 = vpop.f32.mrf.mxu0
      %v5749 = vadd.f32 %v5258, %v5748
      %v5750 = vpop.f32.mrf.mxu0
      %5751 = vmatprep.mubr.bf16.mxu0 %v5444
      %5752 = vmatmul.mubr.bf16.gmra.mxu0 %v5443
      %v5753 = vpop.f32.mrf.mxu0
      %v5754 = vadd.f32 %v5258, %v5753
      %v5755 = vpop.f32.mrf.mxu0
      %v5756 = vpop.f32.mrf.mxu0
      %v5757 = vadd.f32 %v5258, %v5756
      %v5758 = vpop.f32.mrf.mxu0
      %5759 = vmatprep.mubr.bf16.mxu0 %v5447
      %5760 = vmatmul.mubr.bf16.gmra.mxu0 %v5446
      %v5761 = vpop.f32.mrf.mxu0
      %v5762 = vadd.f32 %v5258, %v5761
      %v5763 = vpop.f32.mrf.mxu0
      %v5764 = vpop.f32.mrf.mxu0
      %v5765 = vadd.f32 %v5258, %v5764
      %v5766 = vpop.f32.mrf.mxu0
      %5767 = vmatprep.mubr.bf16.mxu0 %v5450
      %5768 = vmatmul.mubr.bf16.gmra.mxu0 %v5449
      %v5769 = vpop.f32.mrf.mxu0
      %v5770 = vadd.f32 %v5258, %v5769
      %v5771 = vpop.f32.mrf.mxu0
      %v5772 = vpop.f32.mrf.mxu0
      %v5773 = vadd.f32 %v5258, %v5772
      %v5774 = vpop.f32.mrf.mxu0
      %5775 = vmatprep.mubr.bf16.mxu0 %v5453
      %5776 = vmatmul.mubr.bf16.gmra.mxu0 %v5452
      %v5777 = vpop.f32.mrf.mxu0
      %v5778 = vadd.f32 %v5258, %v5777
      %v5779 = vpop.f32.mrf.mxu0
      %v5780 = vpop.f32.mrf.mxu0
      %v5781 = vadd.f32 %v5258, %v5780
      %v5782 = vpop.f32.mrf.mxu0
      %5783 = vmatprep.mubr.bf16.mxu0 %v5456
      %5784 = vmatmul.mubr.bf16.gmra.mxu0 %v5455
      %v5785 = vpop.f32.mrf.mxu0
      %v5786 = vadd.f32 %v5258, %v5785
      %v5787 = vpop.f32.mrf.mxu0
      %v5788 = vpop.f32.mrf.mxu0
      %v5789 = vadd.f32 %v5258, %v5788
      %v5790 = vpop.f32.mrf.mxu0
      %5791 = vmatprep.mubr.bf16.mxu0 %v5459
      %5792 = vmatmul.mubr.bf16.gmra.mxu0 %v5458
      %v5793 = vpop.f32.mrf.mxu0
      %v5794 = vadd.f32 %v5258, %v5793
      %v5795 = vpop.f32.mrf.mxu0
      %v5796 = vpop.f32.mrf.mxu0
      %v5797 = vadd.f32 %v5258, %v5796
      %v5798 = vpop.f32.mrf.mxu0
      %5799 = vmatprep.mubr.bf16.mxu0 %v5462
      %5800 = vmatmul.mubr.bf16.gmra.mxu0 %v5461
      %v5801 = vpop.f32.mrf.mxu0
      %v5802 = vadd.f32 %v5258, %v5801
      %v5803 = vpop.f32.mrf.mxu0
      %v5804 = vpop.f32.mrf.mxu0
      %v5805 = vadd.f32 %v5258, %v5804
      %v5806 = vpop.f32.mrf.mxu0
      %5807 = vmatprep.mubr.bf16.mxu0 %v5465
      %5808 = vmatmul.mubr.bf16.gmra.mxu0 %v5464
      %v5809 = vpop.f32.mrf.mxu0
      %v5810 = vadd.f32 %v5258, %v5809
      %v5811 = vpop.f32.mrf.mxu0
      %v5812 = vpop.f32.mrf.mxu0
      %v5813 = vadd.f32 %v5258, %v5812
      %v5814 = vpop.f32.mrf.mxu0
      %5815 = vdwg.mxu0
      %5816 = vmatprep.subr.bf16.mxu0 0
      %5817 = vmatpush1.bf16.msra.mxu0 0
      %5818 = vmatprep.subr.bf16.mxu0 0
      %5819 = vmatpush1.bf16.msra.mxu0 0
      %5820 = vmatprep.subr.bf16.mxu0 0
      %5821 = vmatpush1.bf16.msra.mxu0 0
      %5822 = vmatprep.subr.bf16.mxu0 0
      %5823 = vmatpush1.bf16.msra.mxu0 0
      %5824 = vmatprep.subr.bf16.mxu0 0
      %5825 = vmatpush1.bf16.msra.mxu0 0
      %5826 = vmatprep.subr.bf16.mxu0 0
      %5827 = vmatpush1.bf16.msra.mxu0 0
      %5828 = vmatprep.subr.bf16.mxu0 0
      %5829 = vmatpush1.bf16.msra.mxu0 %v5588
      %5830 = vmatprep.subr.bf16.mxu0 0
      %5831 = vmatpush1.bf16.msra.mxu0 %v5587
      %5832 = vmatprep.subr.bf16.mxu0 0
      %5833 = vmatpush2.bf16.msra.mxu0 0
      %5834 = vmatprep.subr.bf16.mxu0 0
      %5835 = vmatpush2.bf16.msra.mxu0 0
      %5836 = vmatprep.subr.bf16.mxu0 0
      %5837 = vmatpush2.bf16.msra.mxu0 0
      %5838 = vmatprep.subr.bf16.mxu0 0
      %5839 = vmatpush2.bf16.msra.mxu0 0
      %5840 = vmatprep.subr.bf16.mxu0 0
      %5841 = vmatpush2.bf16.msra.mxu0 0
      %5842 = vmatprep.subr.bf16.mxu0 0
      %5843 = vmatpush2.bf16.msra.mxu0 0
      %5844 = vmatprep.subr.bf16.mxu0 0
      %5845 = vmatpush2.bf16.msra.mxu0 0
      %5846 = vmatprep.subr.bf16.mxu0 0
      %5847 = vmatpush2.bf16.msra.mxu0 0
      %5848 = vmatprep.mubr.bf16.mxu0 0
      %5849 = vmatmul.mubr.bf16.gmra.mxu0 %v5608
      %v5850 = vpop.f32.mrf.mxu0
      %v5851 = vadd.f32 %v5690, %v5850
      %v5852 = vpop.f32.mrf.mxu0
      %v5853 = vpop.f32.mrf.mxu0
      %v5854 = vadd.f32 %v5693, %v5853
      %v5855 = vpop.f32.mrf.mxu0
      %5856 = vmatprep.mubr.bf16.mxu0 0
      %5857 = vmatmul.mubr.bf16.gmra.mxu0 %v5611
      %v5858 = vpop.f32.mrf.mxu0
      %v5859 = vadd.f32 %v5698, %v5858
      %v5860 = vpop.f32.mrf.mxu0
      %v5861 = vpop.f32.mrf.mxu0
      %v5862 = vadd.f32 %v5701, %v5861
      %v5863 = vpop.f32.mrf.mxu0
      %5864 = vmatprep.mubr.bf16.mxu0 0
      %5865 = vmatmul.mubr.bf16.gmra.mxu0 %v5614
      %v5866 = vpop.f32.mrf.mxu0
      %v5867 = vadd.f32 %v5706, %v5866
      %v5868 = vpop.f32.mrf.mxu0
      %v5869 = vpop.f32.mrf.mxu0
      %v5870 = vadd.f32 %v5709, %v5869
      %v5871 = vpop.f32.mrf.mxu0
      %5872 = vmatprep.mubr.bf16.mxu0 0
      %5873 = vmatmul.mubr.bf16.gmra.mxu0 %v5617
      %v5874 = vpop.f32.mrf.mxu0
      %v5875 = vadd.f32 %v5714, %v5874
      %v5876 = vpop.f32.mrf.mxu0
      %v5877 = vpop.f32.mrf.mxu0
      %v5878 = vadd.f32 %v5717, %v5877
      %v5879 = vpop.f32.mrf.mxu0
      %5880 = vmatprep.mubr.bf16.mxu0 0
      %5881 = vmatmul.mubr.bf16.gmra.mxu0 %v5620
      %v5882 = vpop.f32.mrf.mxu0
      %v5883 = vadd.f32 %v5722, %v5882
      %v5884 = vpop.f32.mrf.mxu0
      %v5885 = vpop.f32.mrf.mxu0
      %v5886 = vadd.f32 %v5725, %v5885
      %v5887 = vpop.f32.mrf.mxu0
      %5888 = vmatprep.mubr.bf16.mxu0 0
      %5889 = vmatmul.mubr.bf16.gmra.mxu0 %v5623
      %v5890 = vpop.f32.mrf.mxu0
      %v5891 = vadd.f32 %v5730, %v5890
      %v5892 = vpop.f32.mrf.mxu0
      %v5893 = vpop.f32.mrf.mxu0
      %v5894 = vadd.f32 %v5733, %v5893
      %v5895 = vpop.f32.mrf.mxu0
      %5896 = vmatprep.mubr.bf16.mxu0 0
      %5897 = vmatmul.mubr.bf16.gmra.mxu0 %v5626
      %v5898 = vpop.f32.mrf.mxu0
      %v5899 = vadd.f32 %v5738, %v5898
      %v5900 = vpop.f32.mrf.mxu0
      %v5901 = vpop.f32.mrf.mxu0
      %v5902 = vadd.f32 %v5741, %v5901
      %v5903 = vpop.f32.mrf.mxu0
      %5904 = vmatprep.mubr.bf16.mxu0 0
      %5905 = vmatmul.mubr.bf16.gmra.mxu0 %v5629
      %v5906 = vpop.f32.mrf.mxu0
      %v5907 = vadd.f32 %v5746, %v5906
      %v5908 = vpop.f32.mrf.mxu0
      %v5909 = vpop.f32.mrf.mxu0
      %v5910 = vadd.f32 %v5749, %v5909
      %v5911 = vpop.f32.mrf.mxu0
      %5912 = vmatprep.mubr.bf16.mxu0 0
      %5913 = vmatmul.mubr.bf16.gmra.mxu0 %v5632
      %v5914 = vpop.f32.mrf.mxu0
      %v5915 = vadd.f32 %v5754, %v5914
      %v5916 = vpop.f32.mrf.mxu0
      %v5917 = vpop.f32.mrf.mxu0
      %v5918 = vadd.f32 %v5757, %v5917
      %v5919 = vpop.f32.mrf.mxu0
      %5920 = vmatprep.mubr.bf16.mxu0 0
      %5921 = vmatmul.mubr.bf16.gmra.mxu0 %v5635
      %v5922 = vpop.f32.mrf.mxu0
      %v5923 = vadd.f32 %v5762, %v5922
      %v5924 = vpop.f32.mrf.mxu0
      %v5925 = vpop.f32.mrf.mxu0
      %v5926 = vadd.f32 %v5765, %v5925
      %v5927 = vpop.f32.mrf.mxu0
      %5928 = vmatprep.mubr.bf16.mxu0 0
      %5929 = vmatmul.mubr.bf16.gmra.mxu0 %v5638
      %v5930 = vpop.f32.mrf.mxu0
      %v5931 = vadd.f32 %v5770, %v5930
      %v5932 = vpop.f32.mrf.mxu0
      %v5933 = vpop.f32.mrf.mxu0
      %v5934 = vadd.f32 %v5773, %v5933
      %v5935 = vpop.f32.mrf.mxu0
      %5936 = vmatprep.mubr.bf16.mxu0 0
      %5937 = vmatmul.mubr.bf16.gmra.mxu0 %v5641
      %v5938 = vpop.f32.mrf.mxu0
      %v5939 = vadd.f32 %v5778, %v5938
      %v5940 = vpop.f32.mrf.mxu0
      %v5941 = vpop.f32.mrf.mxu0
      %v5942 = vadd.f32 %v5781, %v5941
      %v5943 = vpop.f32.mrf.mxu0
      %5944 = vmatprep.mubr.bf16.mxu0 0
      %5945 = vmatmul.mubr.bf16.gmra.mxu0 %v5644
      %v5946 = vpop.f32.mrf.mxu0
      %v5947 = vadd.f32 %v5786, %v5946
      %v5948 = vpop.f32.mrf.mxu0
      %v5949 = vpop.f32.mrf.mxu0
      %v5950 = vadd.f32 %v5789, %v5949
      %v5951 = vpop.f32.mrf.mxu0
      %5952 = vmatprep.mubr.bf16.mxu0 0
      %5953 = vmatmul.mubr.bf16.gmra.mxu0 %v5647
      %v5954 = vpop.f32.mrf.mxu0
      %v5955 = vadd.f32 %v5794, %v5954
      %v5956 = vpop.f32.mrf.mxu0
      %v5957 = vpop.f32.mrf.mxu0
      %v5958 = vadd.f32 %v5797, %v5957
      %v5959 = vpop.f32.mrf.mxu0
      %5960 = vmatprep.mubr.bf16.mxu0 0
      %5961 = vmatmul.mubr.bf16.gmra.mxu0 %v5650
      %v5962 = vpop.f32.mrf.mxu0
      %v5963 = vadd.f32 %v5802, %v5962
      %v5964 = vpop.f32.mrf.mxu0
      %v5965 = vpop.f32.mrf.mxu0
      %v5966 = vadd.f32 %v5805, %v5965
      %v5967 = vpop.f32.mrf.mxu0
      %5968 = vmatprep.mubr.bf16.mxu0 0
      %5969 = vmatmul.mubr.bf16.gmra.mxu0 %v5653
      %v5970 = vpop.f32.mrf.mxu0
      %v5971 = vadd.f32 %v5810, %v5970
      %v5972 = vpop.f32.mrf.mxu0
      %v5973 = vpop.f32.mrf.mxu0
      %v5974 = vadd.f32 %v5813, %v5973
      %v5975 = vpop.f32.mrf.mxu0
      %5976 = vdwg.mxu0
      %v5977 = vmax.f32 %v5851, 0.0
      %v5978 = vmax.f32 %v5854, 0.0
      %v5979 = vmax.f32 %v5859, 0.0
      %v5980 = vmax.f32 %v5862, 0.0
      %v5981 = vmax.f32 %v5867, 0.0
      %v5982 = vmax.f32 %v5870, 0.0
      %v5983 = vmax.f32 %v5875, 0.0
      %v5984 = vmax.f32 %v5878, 0.0
      %v5985 = vmax.f32 %v5883, 0.0
      %v5986 = vmax.f32 %v5886, 0.0
      %v5987 = vmax.f32 %v5891, 0.0
      %v5988 = vmax.f32 %v5894, 0.0
      %v5989 = vmax.f32 %v5899, 0.0
      %v5990 = vmax.f32 %v5902, 0.0
      %v5991 = vmax.f32 %v5907, 0.0
      %v5992 = vmax.f32 %v5910, 0.0
      %v5993 = vmax.f32 %v5915, 0.0
      %v5994 = vmax.f32 %v5918, 0.0
      %v5995 = vmax.f32 %v5923, 0.0
      %v5996 = vmax.f32 %v5926, 0.0
      %v5997 = vmax.f32 %v5931, 0.0
      %v5998 = vmax.f32 %v5934, 0.0
      %v5999 = vmax.f32 %v5939, 0.0
      %v6000 = vmax.f32 %v5942, 0.0
      %v6001 = vmax.f32 %v5947, 0.0
      %v6002 = vmax.f32 %v5950, 0.0
      %v6003 = vmax.f32 %v5955, 0.0
      %v6004 = vmax.f32 %v5958, 0.0
      %v6005 = vmax.f32 %v5963, 0.0
      %v6006 = vmax.f32 %v5966, 0.0
      %v6007 = vmax.f32 %v5971, 0.0
      %v6008 = vmax.f32 %v5974, 0.0
      %v6009 = vld [vmem:[%s4 + $0x1] sm:$0x1]
      %v6010 = vlaneseq
      %v6011 = vshrl.u32 %v6010, 7
      %v6012 = vsub.s32 0, %v6011
      %v6013 = vrot.slane %v6009, %v6012
      %v6014 = vmul.f32 %v5977, %v6013
      %v6015 = vmul.f32 %v5978, %v6013
      %v6016 = vmul.f32 %v5979, %v6013
      %v6017 = vmul.f32 %v5980, %v6013
      %v6018 = vmul.f32 %v5981, %v6013
      %v6019 = vmul.f32 %v5982, %v6013
      %v6020 = vmul.f32 %v5983, %v6013
      %v6021 = vmul.f32 %v5984, %v6013
      %v6022 = vmul.f32 %v5985, %v6013
      %v6023 = vmul.f32 %v5986, %v6013
      %v6024 = vmul.f32 %v5987, %v6013
      %v6025 = vmul.f32 %v5988, %v6013
      %v6026 = vmul.f32 %v5989, %v6013
      %v6027 = vmul.f32 %v5990, %v6013
      %v6028 = vmul.f32 %v5991, %v6013
      %v6029 = vmul.f32 %v5992, %v6013
      %v6030 = vmul.f32 %v5993, %v6013
      %v6031 = vmul.f32 %v5994, %v6013
      %v6032 = vmul.f32 %v5995, %v6013
      %v6033 = vmul.f32 %v5996, %v6013
      %v6034 = vmul.f32 %v5997, %v6013
      %v6035 = vmul.f32 %v5998, %v6013
      %v6036 = vmul.f32 %v5999, %v6013
      %v6037 = vmul.f32 %v6000, %v6013
      %v6038 = vmul.f32 %v6001, %v6013
      %v6039 = vmul.f32 %v6002, %v6013
      %v6040 = vmul.f32 %v6003, %v6013
      %v6041 = vmul.f32 %v6004, %v6013
      %v6042 = vmul.f32 %v6005, %v6013
      %v6043 = vmul.f32 %v6006, %v6013
      %v6044 = vmul.f32 %v6007, %v6013
      %v6045 = vmul.f32 %v6008, %v6013
      %v6046 = vld [vmem:[%s4 + $0x2] sm:$0x1]
      %v6047 = vlaneseq
      %v6048 = vshrl.u32 %v6047, 7
      %v6049 = vsub.s32 0, %v6048
      %v6050 = vrot.slane %v6046, %v6049
      %v6051 = vadd.f32 %v6014, %v6050
      %v6052 = vadd.f32 %v6015, %v6050
      %v6053 = vadd.f32 %v6016, %v6050
      %v6054 = vadd.f32 %v6017, %v6050
      %v6055 = vadd.f32 %v6018, %v6050
      %v6056 = vadd.f32 %v6019, %v6050
      %v6057 = vadd.f32 %v6020, %v6050
      %v6058 = vadd.f32 %v6021, %v6050
      %v6059 = vadd.f32 %v6022, %v6050
      %v6060 = vadd.f32 %v6023, %v6050
      %v6061 = vadd.f32 %v6024, %v6050
      %v6062 = vadd.f32 %v6025, %v6050
      %v6063 = vadd.f32 %v6026, %v6050
      %v6064 = vadd.f32 %v6027, %v6050
      %v6065 = vadd.f32 %v6028, %v6050
      %v6066 = vadd.f32 %v6029, %v6050
      %v6067 = vadd.f32 %v6030, %v6050
      %v6068 = vadd.f32 %v6031, %v6050
      %v6069 = vadd.f32 %v6032, %v6050
      %v6070 = vadd.f32 %v6033, %v6050
      %v6071 = vadd.f32 %v6034, %v6050
      %v6072 = vadd.f32 %v6035, %v6050
      %v6073 = vadd.f32 %v6036, %v6050
      %v6074 = vadd.f32 %v6037, %v6050
      %v6075 = vadd.f32 %v6038, %v6050
      %v6076 = vadd.f32 %v6039, %v6050
      %v6077 = vadd.f32 %v6040, %v6050
      %v6078 = vadd.f32 %v6041, %v6050
      %v6079 = vadd.f32 %v6042, %v6050
      %v6080 = vadd.f32 %v6043, %v6050
      %v6081 = vadd.f32 %v6044, %v6050
      %v6082 = vadd.f32 %v6045, %v6050
      %vm6083 = vcmask 523264
      %6084 = vst.msk [vmem:[#allocation6] sm:$0xff] %vm6083, %v6051
      %6085 = vst.msk [vmem:[#allocation6 + $0x8] sm:$0xff] %vm6083, %v6052
      %6086 = vst.msk [vmem:[#allocation6 + $0x10] sm:$0xff] %vm6083, %v6053
      %6087 = vst.msk [vmem:[#allocation6 + $0x18] sm:$0xff] %vm6083, %v6054
      %6088 = vst.msk [vmem:[#allocation6 + $0x20] sm:$0xff] %vm6083, %v6055
      %6089 = vst.msk [vmem:[#allocation6 + $0x28] sm:$0xff] %vm6083, %v6056
      %6090 = vst.msk [vmem:[#allocation6 + $0x30] sm:$0xff] %vm6083, %v6057
      %6091 = vst.msk [vmem:[#allocation6 + $0x38] sm:$0xff] %vm6083, %v6058
      %6092 = vst.msk [vmem:[#allocation6 + $0x40] sm:$0xff] %vm6083, %v6059
      %6093 = vst.msk [vmem:[#allocation6 + $0x48] sm:$0xff] %vm6083, %v6060
      %6094 = vst.msk [vmem:[#allocation6 + $0x50] sm:$0xff] %vm6083, %v6061
      %6095 = vst.msk [vmem:[#allocation6 + $0x58] sm:$0xff] %vm6083, %v6062
      %6096 = vst.msk [vmem:[#allocation6 + $0x60] sm:$0xff] %vm6083, %v6063
      %6097 = vst.msk [vmem:[#allocation6 + $0x68] sm:$0xff] %vm6083, %v6064
      %6098 = vst.msk [vmem:[#allocation6 + $0x70] sm:$0xff] %vm6083, %v6065
      %6099 = vst.msk [vmem:[#allocation6 + $0x78] sm:$0xff] %vm6083, %v6066
      %6100 = vst.msk [vmem:[#allocation6 + $0x80] sm:$0xff] %vm6083, %v6067
      %6101 = vst.msk [vmem:[#allocation6 + $0x88] sm:$0xff] %vm6083, %v6068
      %6102 = vst.msk [vmem:[#allocation6 + $0x90] sm:$0xff] %vm6083, %v6069
      %6103 = vst.msk [vmem:[#allocation6 + $0x98] sm:$0xff] %vm6083, %v6070
      %6104 = vst.msk [vmem:[#allocation6 + $0xa0] sm:$0xff] %vm6083, %v6071
      %6105 = vst.msk [vmem:[#allocation6 + $0xa8] sm:$0xff] %vm6083, %v6072
      %6106 = vst.msk [vmem:[#allocation6 + $0xb0] sm:$0xff] %vm6083, %v6073
      %6107 = vst.msk [vmem:[#allocation6 + $0xb8] sm:$0xff] %vm6083, %v6074
      %6108 = vst.msk [vmem:[#allocation6 + $0xc0] sm:$0xff] %vm6083, %v6075
      %6109 = vst.msk [vmem:[#allocation6 + $0xc8] sm:$0xff] %vm6083, %v6076
      %6110 = vst.msk [vmem:[#allocation6 + $0xd0] sm:$0xff] %vm6083, %v6077
      %6111 = vst.msk [vmem:[#allocation6 + $0xd8] sm:$0xff] %vm6083, %v6078
      %6112 = vst.msk [vmem:[#allocation6 + $0xe0] sm:$0xff] %vm6083, %v6079
      %6113 = vst.msk [vmem:[#allocation6 + $0xe8] sm:$0xff] %vm6083, %v6080
      %6114 = vst.msk [vmem:[#allocation6 + $0xf0] sm:$0xff] %vm6083, %v6081
      %6115 = vst.msk [vmem:[#allocation6 + $0xf8] sm:$0xff] %vm6083, %v6082
      %6116 = vst.msk [vmem:[#allocation8] sm:$0xff] %vm6083, 0.0
      %6117 = vst.msk [vmem:[#allocation8 + $0x8] sm:$0xff] %vm6083, 0.0
      %6118 = vst.msk [vmem:[#allocation8 + $0x10] sm:$0xff] %vm6083, 0.0
      %6119 = vst.msk [vmem:[#allocation8 + $0x18] sm:$0xff] %vm6083, 0.0
      %6120 = vst.msk [vmem:[#allocation8 + $0x20] sm:$0xff] %vm6083, 0.0
      %6121 = vst.msk [vmem:[#allocation8 + $0x28] sm:$0xff] %vm6083, 0.0
      %6122 = vst.msk [vmem:[#allocation8 + $0x30] sm:$0xff] %vm6083, 0.0
      %6123 = vst.msk [vmem:[#allocation8 + $0x38] sm:$0xff] %vm6083, 0.0
      %6124 = vst.msk [vmem:[#allocation8 + $0x40] sm:$0xff] %vm6083, 0.0
      %6125 = vst.msk [vmem:[#allocation8 + $0x48] sm:$0xff] %vm6083, 0.0
      %6126 = vst.msk [vmem:[#allocation8 + $0x50] sm:$0xff] %vm6083, 0.0
      %6127 = vst.msk [vmem:[#allocation8 + $0x58] sm:$0xff] %vm6083, 0.0
      %v6128 = vld [vmem:[#allocation6] ss:$2 sm:$0xff]
      %s6129 = scalar_lea.vmem [#allocation6], 16
      %v6130 = vld [vmem:[%s6129] ss:$2 sm:$0xff]
      %s6131 = scalar_lea.vmem [#allocation6], 32
      %v6132 = vld [vmem:[%s6131] ss:$2 sm:$0xff]
      %s6133 = scalar_lea.vmem [#allocation6], 48
      %v6134 = vld [vmem:[%s6133] ss:$2 sm:$0xff]
      %s6135 = scalar_lea.vmem [#allocation6], 64
      %v6136 = vld [vmem:[%s6135] ss:$2 sm:$0xff]
      %s6137 = scalar_lea.vmem [#allocation6], 80
      %v6138 = vld [vmem:[%s6137] ss:$2 sm:$0xff]
      %s6139 = scalar_lea.vmem [#allocation6], 96
      %v6140 = vld [vmem:[%s6139] ss:$2 sm:$0xff]
      %s6141 = scalar_lea.vmem [#allocation6], 112
      %v6142 = vld [vmem:[%s6141] ss:$2 sm:$0xff]
      %s6143 = scalar_lea.vmem [#allocation6], 128
      %v6144 = vld [vmem:[%s6143] ss:$2 sm:$0xff]
      %s6145 = scalar_lea.vmem [#allocation6], 144
      %v6146 = vld [vmem:[%s6145] ss:$2 sm:$0xff]
      %s6147 = scalar_lea.vmem [#allocation6], 160
      %v6148 = vld [vmem:[%s6147] ss:$2 sm:$0xff]
      %s6149 = scalar_lea.vmem [#allocation6], 176
      %v6150 = vld [vmem:[%s6149] ss:$2 sm:$0xff]
      %s6151 = scalar_lea.vmem [#allocation6], 192
      %v6152 = vld [vmem:[%s6151] ss:$2 sm:$0xff]
      %s6153 = scalar_lea.vmem [#allocation6], 208
      %v6154 = vld [vmem:[%s6153] ss:$2 sm:$0xff]
      %s6155 = scalar_lea.vmem [#allocation6], 224
      %v6156 = vld [vmem:[%s6155] ss:$2 sm:$0xff]
      %s6157 = scalar_lea.vmem [#allocation6], 240
      %v6158 = vld [vmem:[%s6157] ss:$2 sm:$0xff]
      %s6159 = scalar_lea.vmem [#allocation6], 1
      %v6160 = vld [vmem:[%s6159] ss:$2 sm:$0xff]
      %s6161 = scalar_lea.vmem [#allocation6], 17
      %v6162 = vld [vmem:[%s6161] ss:$2 sm:$0xff]
      %s6163 = scalar_lea.vmem [#allocation6], 33
      %v6164 = vld [vmem:[%s6163] ss:$2 sm:$0xff]
      %s6165 = scalar_lea.vmem [#allocation6], 49
      %v6166 = vld [vmem:[%s6165] ss:$2 sm:$0xff]
      %s6167 = scalar_lea.vmem [#allocation6], 65
      %v6168 = vld [vmem:[%s6167] ss:$2 sm:$0xff]
      %s6169 = scalar_lea.vmem [#allocation6], 81
      %v6170 = vld [vmem:[%s6169] ss:$2 sm:$0xff]
      %s6171 = scalar_lea.vmem [#allocation6], 97
      %v6172 = vld [vmem:[%s6171] ss:$2 sm:$0xff]
      %s6173 = scalar_lea.vmem [#allocation6], 113
      %v6174 = vld [vmem:[%s6173] ss:$2 sm:$0xff]
      %s6175 = scalar_lea.vmem [#allocation6], 129
      %v6176 = vld [vmem:[%s6175] ss:$2 sm:$0xff]
      %s6177 = scalar_lea.vmem [#allocation6], 145
      %v6178 = vld [vmem:[%s6177] ss:$2 sm:$0xff]
      %s6179 = scalar_lea.vmem [#allocation6], 161
      %v6180 = vld [vmem:[%s6179] ss:$2 sm:$0xff]
      %s6181 = scalar_lea.vmem [#allocation6], 177
      %v6182 = vld [vmem:[%s6181] ss:$2 sm:$0xff]
      %s6183 = scalar_lea.vmem [#allocation6], 193
      %v6184 = vld [vmem:[%s6183] ss:$2 sm:$0xff]
      %s6185 = scalar_lea.vmem [#allocation6], 209
      %v6186 = vld [vmem:[%s6185] ss:$2 sm:$0xff]
      %s6187 = scalar_lea.vmem [#allocation6], 225
      %v6188 = vld [vmem:[%s6187] ss:$2 sm:$0xff]
      %s6189 = scalar_lea.vmem [#allocation6], 241
      %v6190 = vld [vmem:[%s6189] ss:$2 sm:$0xff]
      %v6191 = vmax.f32 %v6128, %v6160
      %v6192 = vmax.f32 %v6130, %v6162
      %v6193 = vmax.f32 %v6132, %v6164
      %v6194 = vmax.f32 %v6134, %v6166
      %v6195 = vmax.f32 %v6136, %v6168
      %v6196 = vmax.f32 %v6138, %v6170
      %v6197 = vmax.f32 %v6140, %v6172
      %v6198 = vmax.f32 %v6142, %v6174
      %v6199 = vmax.f32 %v6144, %v6176
      %v6200 = vmax.f32 %v6146, %v6178
      %v6201 = vmax.f32 %v6148, %v6180
      %v6202 = vmax.f32 %v6150, %v6182
      %v6203 = vmax.f32 %v6152, %v6184
      %v6204 = vmax.f32 %v6154, %v6186
      %v6205 = vmax.f32 %v6156, %v6188
      %v6206 = vmax.f32 %v6158, %v6190
      %6207 = vst.msk [vmem:[#allocation7] sm:$0xff] %vm6083, %v6191
      %6208 = vst.msk [vmem:[#allocation7 + $0x8] sm:$0xff] %vm6083, %v6192
      %6209 = vst.msk [vmem:[#allocation7 + $0x10] sm:$0xff] %vm6083, %v6193
      %6210 = vst.msk [vmem:[#allocation7 + $0x18] sm:$0xff] %vm6083, %v6194
      %6211 = vst.msk [vmem:[#allocation7 + $0x20] sm:$0xff] %vm6083, %v6195
      %6212 = vst.msk [vmem:[#allocation7 + $0x28] sm:$0xff] %vm6083, %v6196
      %6213 = vst.msk [vmem:[#allocation7 + $0x30] sm:$0xff] %vm6083, %v6197
      %6214 = vst.msk [vmem:[#allocation7 + $0x38] sm:$0xff] %vm6083, %v6198
      %6215 = vst.msk [vmem:[#allocation7 + $0x40] sm:$0xff] %vm6083, %v6199
      %6216 = vst.msk [vmem:[#allocation7 + $0x48] sm:$0xff] %vm6083, %v6200
      %6217 = vst.msk [vmem:[#allocation7 + $0x50] sm:$0xff] %vm6083, %v6201
      %6218 = vst.msk [vmem:[#allocation7 + $0x58] sm:$0xff] %vm6083, %v6202
      %6219 = vst.msk [vmem:[#allocation7 + $0x60] sm:$0xff] %vm6083, %v6203
      %6220 = vst.msk [vmem:[#allocation7 + $0x68] sm:$0xff] %vm6083, %v6204
      %6221 = vst.msk [vmem:[#allocation7 + $0x70] sm:$0xff] %vm6083, %v6205
      %6222 = vst.msk [vmem:[#allocation7 + $0x78] sm:$0xff] %vm6083, %v6206
      %v6223 = vld [vmem:[#allocation7] sm:$0xff]
      %v6224 = vld [vmem:[#allocation7 + $0x8] sm:$0xff]
      %v6225 = vmax.f32 %v6223, %v6224
      %6226 = vst.msk [vmem:[#allocation8 + $0x10] sm:$0xff] %vm6083, %v6225
      %v6227 = vld [vmem:[#allocation7 + $0x10] sm:$0xff]
      %v6228 = vld [vmem:[#allocation7 + $0x18] sm:$0xff]
      %v6229 = vmax.f32 %v6227, %v6228
      %6230 = vst.msk [vmem:[#allocation8 + $0x18] sm:$0xff] %vm6083, %v6229
      %v6231 = vld [vmem:[#allocation7 + $0x20] sm:$0xff]
      %v6232 = vld [vmem:[#allocation7 + $0x28] sm:$0xff]
      %v6233 = vmax.f32 %v6231, %v6232
      %6234 = vst.msk [vmem:[#allocation8 + $0x20] sm:$0xff] %vm6083, %v6233
      %v6235 = vld [vmem:[#allocation7 + $0x30] sm:$0xff]
      %v6236 = vld [vmem:[#allocation7 + $0x38] sm:$0xff]
      %v6237 = vmax.f32 %v6235, %v6236
      %6238 = vst.msk [vmem:[#allocation8 + $0x28] sm:$0xff] %vm6083, %v6237
      %v6239 = vld [vmem:[#allocation7 + $0x40] sm:$0xff]
      %v6240 = vld [vmem:[#allocation7 + $0x48] sm:$0xff]
      %v6241 = vmax.f32 %v6239, %v6240
      %6242 = vst.msk [vmem:[#allocation8 + $0x30] sm:$0xff] %vm6083, %v6241
      %v6243 = vld [vmem:[#allocation7 + $0x50] sm:$0xff]
      %v6244 = vld [vmem:[#allocation7 + $0x58] sm:$0xff]
      %v6245 = vmax.f32 %v6243, %v6244
      %6246 = vst.msk [vmem:[#allocation8 + $0x38] sm:$0xff] %vm6083, %v6245
      %v6247 = vld [vmem:[#allocation7 + $0x60] sm:$0xff]
      %v6248 = vld [vmem:[#allocation7 + $0x68] sm:$0xff]
      %v6249 = vmax.f32 %v6247, %v6248
      %6250 = vst.msk [vmem:[#allocation8 + $0x40] sm:$0xff] %vm6083, %v6249
      %v6251 = vld [vmem:[#allocation7 + $0x70] sm:$0xff]
      %v6252 = vld [vmem:[#allocation7 + $0x78] sm:$0xff]
      %v6253 = vmax.f32 %v6251, %v6252
      %6254 = vst.msk [vmem:[#allocation8 + $0x48] sm:$0xff] %vm6083, %v6253
      %v6255 = vand.u32 %v2718, 7
      %v6256 = vand.u32 %v2719, 7
      %v6257 = vand.u32 %v2720, 7
      %v6258 = vand.u32 %v2721, 7
      %v6259 = vand.u32 %v2722, 7
      %v6260 = vand.u32 %v2723, 7
      %v6261 = vand.u32 %v2724, 7
      %v6262 = vand.u32 %v2725, 7
      %v6263 = vld [vmem:[#allocation8 + $0x7] sm:$0xff]
      %v6264 = vld [vmem:[#allocation8 + $0xf] sm:$0xff]
      %v6265 = vld [vmem:[#allocation8 + $0x17] sm:$0xff]
      %v6266 = vld [vmem:[#allocation8 + $0x1f] sm:$0xff]
      %v6267 = vld [vmem:[#allocation8 + $0x27] sm:$0xff]
      %v6268 = vld [vmem:[#allocation8 + $0x2f] sm:$0xff]
      %v6269 = vld [vmem:[#allocation8 + $0x37] sm:$0xff]
      %v6270 = vld [vmem:[#allocation8 + $0x3f] sm:$0xff]
      %vm6271 = vcmp.ge.s32.totalorder %v6255, 1
      %vm6272 = vcmp.ge.s32.totalorder %v6256, 1
      %vm6273 = vcmp.ge.s32.totalorder %v6257, 1
      %vm6274 = vcmp.ge.s32.totalorder %v6258, 1
      %vm6275 = vcmp.ge.s32.totalorder %v6259, 1
      %vm6276 = vcmp.ge.s32.totalorder %v6260, 1
      %vm6277 = vcmp.ge.s32.totalorder %v6261, 1
      %vm6278 = vcmp.ge.s32.totalorder %v6262, 1
      %v6279 = vsel %vm6271, %v6263, 0.0
      %v6280 = vsel %vm6272, %v6264, 0.0
      %v6281 = vsel %vm6273, %v6265, 0.0
      %v6282 = vsel %vm6274, %v6266, 0.0
      %v6283 = vsel %vm6275, %v6267, 0.0
      %v6284 = vsel %vm6276, %v6268, 0.0
      %v6285 = vsel %vm6277, %v6269, 0.0
      %v6286 = vsel %vm6278, %v6270, 0.0
      %v6287 = vpack.c.bf16 %v6280, %v6279
      %v6288 = vpack.c.bf16 %v6282, %v6281
      %v6289 = vpack.c.bf16 %v6284, %v6283
      %v6290 = vpack.c.bf16 %v6286, %v6285
      %v6295 = vunpack.c.l.b16 %v6287
      %v6296 = vunpack.c.h.b16 %v6287
      %v6297 = vunpack.c.l.b16 %v6288
      %v6298 = vunpack.c.h.b16 %v6288
      %v6299 = vunpack.c.l.b16 %v6289
      %v6300 = vunpack.c.h.b16 %v6289
      %v6301 = vunpack.c.l.b16 %v6290
      %v6302 = vunpack.c.h.b16 %v6290
      %v6303 = vpack.c.b16 %v6295, %v6295
      %v6304 = vpack.c.b16 %v6296, %v6296
      %v6305 = vpack.c.b16 %v6297, %v6297
      %v6306 = vpack.c.b16 %v6298, %v6298
      %v6307 = vpack.c.b16 %v6299, %v6299
      %v6308 = vpack.c.b16 %v6300, %v6300
      %v6309 = vpack.c.b16 %v6301, %v6301
      %v6310 = vpack.c.b16 %v6302, %v6302
      %vm6319 = vcmask 519168
      %6320 = vst.msk [vmem:[#allocation9] sm:$0xf] %vm6319, %v6303
      %6321 = vst.msk [vmem:[#allocation9 + $0x14] sm:$0xf] %vm6319, %v6304
      %6322 = vst.msk [vmem:[#allocation9 + $0x28] sm:$0xf] %vm6319, %v6305
      %6323 = vst.msk [vmem:[#allocation9 + $0x3c] sm:$0xf] %vm6319, %v6306
      %6324 = vst.msk [vmem:[#allocation9 + $0x50] sm:$0xf] %vm6319, %v6307
      %6325 = vst.msk [vmem:[#allocation9 + $0x64] sm:$0xf] %vm6319, %v6308
      %6326 = vst.msk [vmem:[#allocation9 + $0x78] sm:$0xf] %vm6319, %v6309
      %6327 = vst.msk [vmem:[#allocation9 + $0x8c] sm:$0xf] %vm6319, %v6310
      %v6328 = vld [vmem:[#allocation8 + $0x8] sm:$0xff]
      %v6329 = vld [vmem:[#allocation8 + $0x10] sm:$0xff]
      %v6330 = vld [vmem:[#allocation8 + $0x18] sm:$0xff]
      %v6331 = vld [vmem:[#allocation8 + $0x20] sm:$0xff]
      %v6332 = vld [vmem:[#allocation8 + $0x28] sm:$0xff]
      %v6333 = vld [vmem:[#allocation8 + $0x30] sm:$0xff]
      %v6334 = vld [vmem:[#allocation8 + $0x38] sm:$0xff]
      %v6335 = vld [vmem:[#allocation8 + $0x40] sm:$0xff]
      %v6336 = vpack.c.bf16 %v6329, %v6328
      %v6337 = vpack.c.bf16 %v6331, %v6330
      %v6338 = vpack.c.bf16 %v6333, %v6332
      %v6339 = vpack.c.bf16 %v6335, %v6334
      %v6344 = vunpack.c.l.b16 %v6336
      %v6345 = vunpack.c.h.b16 %v6336
      %v6346 = vunpack.c.l.b16 %v6337
      %v6347 = vunpack.c.h.b16 %v6337
      %v6348 = vunpack.c.l.b16 %v6338
      %v6349 = vunpack.c.h.b16 %v6338
      %v6350 = vunpack.c.l.b16 %v6339
      %v6351 = vunpack.c.h.b16 %v6339
      %v6352 = vpack.c.b16 %v6344, %v6344
      %v6353 = vpack.c.b16 %v6345, %v6345
      %v6354 = vpack.c.b16 %v6346, %v6346
      %v6355 = vpack.c.b16 %v6347, %v6347
      %v6356 = vpack.c.b16 %v6348, %v6348
      %v6357 = vpack.c.b16 %v6349, %v6349
      %v6358 = vpack.c.b16 %v6350, %v6350
      %v6359 = vpack.c.b16 %v6351, %v6351
      %6360 = vrot.lane.b32.xlu0 %v6352, 64
      %v6361 = vpop.permute.xlu0 %6360
      %6362 = vrot.lane.b32.xlu0 %v6353, 64
      %v6363 = vpop.permute.xlu0 %6362
      %6364 = vrot.lane.b32.xlu0 %v6354, 64
      %v6365 = vpop.permute.xlu0 %6364
      %6366 = vrot.lane.b32.xlu0 %v6355, 64
      %v6367 = vpop.permute.xlu0 %6366
      %6368 = vrot.lane.b32.xlu0 %v6356, 64
      %v6369 = vpop.permute.xlu0 %6368
      %6370 = vrot.lane.b32.xlu0 %v6357, 64
      %v6371 = vpop.permute.xlu0 %6370
      %6372 = vrot.lane.b32.xlu0 %v6358, 64
      %v6373 = vpop.permute.xlu0 %6372
      %6374 = vrot.lane.b32.xlu0 %v6359, 64
      %v6375 = vpop.permute.xlu0 %6374
      %vm6384 = vcmask 1043968
      %6385 = vst.msk [vmem:[#allocation9] sm:$0xf] %vm6384, %v6361
      %6386 = vst.msk [vmem:[#allocation9 + $0x14] sm:$0xf] %vm6384, %v6363
      %6387 = vst.msk [vmem:[#allocation9 + $0x28] sm:$0xf] %vm6384, %v6365
      %6388 = vst.msk [vmem:[#allocation9 + $0x3c] sm:$0xf] %vm6384, %v6367
      %6389 = vst.msk [vmem:[#allocation9 + $0x50] sm:$0xf] %vm6384, %v6369
      %6390 = vst.msk [vmem:[#allocation9 + $0x64] sm:$0xf] %vm6384, %v6371
      %6391 = vst.msk [vmem:[#allocation9 + $0x78] sm:$0xf] %vm6384, %v6373
      %6392 = vst.msk [vmem:[#allocation9 + $0x8c] sm:$0xf] %vm6384, %v6375
      %v6393 = vld [vmem:[#allocation8 + $0x9] sm:$0xff]
      %v6394 = vld [vmem:[#allocation8 + $0x11] sm:$0xff]
      %v6395 = vld [vmem:[#allocation8 + $0x19] sm:$0xff]
      %v6396 = vld [vmem:[#allocation8 + $0x21] sm:$0xff]
      %v6397 = vld [vmem:[#allocation8 + $0x29] sm:$0xff]
      %v6398 = vld [vmem:[#allocation8 + $0x31] sm:$0xff]
      %v6399 = vld [vmem:[#allocation8 + $0x39] sm:$0xff]
      %v6400 = vld [vmem:[#allocation8 + $0x41] sm:$0xff]
      %vm6401 = vcmp.le.s32.totalorder %v6255, 6
      %vm6402 = vcmp.le.s32.totalorder %v6256, 6
      %vm6403 = vcmp.le.s32.totalorder %v6257, 6
      %vm6404 = vcmp.le.s32.totalorder %v6258, 6
      %vm6405 = vcmp.le.s32.totalorder %v6259, 6
      %vm6406 = vcmp.le.s32.totalorder %v6260, 6
      %vm6407 = vcmp.le.s32.totalorder %v6261, 6
      %vm6408 = vcmp.le.s32.totalorder %v6262, 6
      %v6409 = vsel %vm6401, %v6393, 0.0
      %v6410 = vsel %vm6402, %v6394, 0.0
      %v6411 = vsel %vm6403, %v6395, 0.0
      %v6412 = vsel %vm6404, %v6396, 0.0
      %v6413 = vsel %vm6405, %v6397, 0.0
      %v6414 = vsel %vm6406, %v6398, 0.0
      %v6415 = vsel %vm6407, %v6399, 0.0
      %v6416 = vsel %vm6408, %v6400, 0.0
      %v6417 = vpack.c.bf16 %v6410, %v6409
      %v6418 = vpack.c.bf16 %v6412, %v6411
      %v6419 = vpack.c.bf16 %v6414, %v6413
      %v6420 = vpack.c.bf16 %v6416, %v6415
      %v6425 = vunpack.c.l.b16 %v6417
      %v6426 = vunpack.c.h.b16 %v6417
      %v6427 = vunpack.c.l.b16 %v6418
      %v6428 = vunpack.c.h.b16 %v6418
      %v6429 = vunpack.c.l.b16 %v6419
      %v6430 = vunpack.c.h.b16 %v6419
      %v6431 = vunpack.c.l.b16 %v6420
      %v6432 = vunpack.c.h.b16 %v6420
      %v6433 = vpack.c.b16 %v6425, %v6425
      %v6434 = vpack.c.b16 %v6426, %v6426
      %v6435 = vpack.c.b16 %v6427, %v6427
      %v6436 = vpack.c.b16 %v6428, %v6428
      %v6437 = vpack.c.b16 %v6429, %v6429
      %v6438 = vpack.c.b16 %v6430, %v6430
      %v6439 = vpack.c.b16 %v6431, %v6431
      %v6440 = vpack.c.b16 %v6432, %v6432
      %6449 = vst.msk [vmem:[#allocation9 + $0x4] sm:$0xf] %vm6319, %v6433
      %6450 = vst.msk [vmem:[#allocation9 + $0x18] sm:$0xf] %vm6319, %v6434
      %6451 = vst.msk [vmem:[#allocation9 + $0x2c] sm:$0xf] %vm6319, %v6435
      %6452 = vst.msk [vmem:[#allocation9 + $0x40] sm:$0xf] %vm6319, %v6436
      %6453 = vst.msk [vmem:[#allocation9 + $0x54] sm:$0xf] %vm6319, %v6437
      %6454 = vst.msk [vmem:[#allocation9 + $0x68] sm:$0xf] %vm6319, %v6438
      %6455 = vst.msk [vmem:[#allocation9 + $0x7c] sm:$0xf] %vm6319, %v6439
      %6456 = vst.msk [vmem:[#allocation9 + $0x90] sm:$0xf] %vm6319, %v6440
      %v6457 = vld [vmem:[#allocation8 + $0xf] sm:$0xff]
      %v6458 = vld [vmem:[#allocation8 + $0x17] sm:$0xff]
      %v6459 = vld [vmem:[#allocation8 + $0x1f] sm:$0xff]
      %v6460 = vld [vmem:[#allocation8 + $0x27] sm:$0xff]
      %v6461 = vld [vmem:[#allocation8 + $0x2f] sm:$0xff]
      %v6462 = vld [vmem:[#allocation8 + $0x37] sm:$0xff]
      %v6463 = vld [vmem:[#allocation8 + $0x3f] sm:$0xff]
      %v6464 = vld [vmem:[#allocation8 + $0x47] sm:$0xff]
      %v6465 = vsel %vm6271, %v6457, 0.0
      %v6466 = vsel %vm6272, %v6458, 0.0
      %v6467 = vsel %vm6273, %v6459, 0.0
      %v6468 = vsel %vm6274, %v6460, 0.0
      %v6469 = vsel %vm6275, %v6461, 0.0
      %v6470 = vsel %vm6276, %v6462, 0.0
      %v6471 = vsel %vm6277, %v6463, 0.0
      %v6472 = vsel %vm6278, %v6464, 0.0
      %v6473 = vpack.c.bf16 %v6466, %v6465
      %v6474 = vpack.c.bf16 %v6468, %v6467
      %v6475 = vpack.c.bf16 %v6470, %v6469
      %v6476 = vpack.c.bf16 %v6472, %v6471
      %v6481 = vunpack.c.l.b16 %v6473
      %v6482 = vunpack.c.h.b16 %v6473
      %v6483 = vunpack.c.l.b16 %v6474
      %v6484 = vunpack.c.h.b16 %v6474
      %v6485 = vunpack.c.l.b16 %v6475
      %v6486 = vunpack.c.h.b16 %v6475
      %v6487 = vunpack.c.l.b16 %v6476
      %v6488 = vunpack.c.h.b16 %v6476
      %v6489 = vpack.c.b16 %v6481, %v6481
      %v6490 = vpack.c.b16 %v6482, %v6482
      %v6491 = vpack.c.b16 %v6483, %v6483
      %v6492 = vpack.c.b16 %v6484, %v6484
      %v6493 = vpack.c.b16 %v6485, %v6485
      %v6494 = vpack.c.b16 %v6486, %v6486
      %v6495 = vpack.c.b16 %v6487, %v6487
      %v6496 = vpack.c.b16 %v6488, %v6488
      %6497 = vrot.lane.b32.xlu0 %v6489, 64
      %v6498 = vpop.permute.xlu0 %6497
      %6499 = vrot.lane.b32.xlu0 %v6490, 64
      %v6500 = vpop.permute.xlu0 %6499
      %6501 = vrot.lane.b32.xlu0 %v6491, 64
      %v6502 = vpop.permute.xlu0 %6501
      %6503 = vrot.lane.b32.xlu0 %v6492, 64
      %v6504 = vpop.permute.xlu0 %6503
      %6505 = vrot.lane.b32.xlu0 %v6493, 64
      %v6506 = vpop.permute.xlu0 %6505
      %6507 = vrot.lane.b32.xlu0 %v6494, 64
      %v6508 = vpop.permute.xlu0 %6507
      %6509 = vrot.lane.b32.xlu0 %v6495, 64
      %v6510 = vpop.permute.xlu0 %6509
      %6511 = vrot.lane.b32.xlu0 %v6496, 64
      %v6512 = vpop.permute.xlu0 %6511
      %6521 = vst.msk [vmem:[#allocation9 + $0x4] sm:$0xf] %vm6384, %v6498
      %6522 = vst.msk [vmem:[#allocation9 + $0x18] sm:$0xf] %vm6384, %v6500
      %6523 = vst.msk [vmem:[#allocation9 + $0x2c] sm:$0xf] %vm6384, %v6502
      %6524 = vst.msk [vmem:[#allocation9 + $0x40] sm:$0xf] %vm6384, %v6504
      %6525 = vst.msk [vmem:[#allocation9 + $0x54] sm:$0xf] %vm6384, %v6506
      %6526 = vst.msk [vmem:[#allocation9 + $0x68] sm:$0xf] %vm6384, %v6508
      %6527 = vst.msk [vmem:[#allocation9 + $0x7c] sm:$0xf] %vm6384, %v6510
      %6528 = vst.msk [vmem:[#allocation9 + $0x90] sm:$0xf] %vm6384, %v6512
      %v6529 = vld [vmem:[#allocation8 + $0x10] sm:$0xff]
      %v6530 = vld [vmem:[#allocation8 + $0x18] sm:$0xff]
      %v6531 = vld [vmem:[#allocation8 + $0x20] sm:$0xff]
      %v6532 = vld [vmem:[#allocation8 + $0x28] sm:$0xff]
      %v6533 = vld [vmem:[#allocation8 + $0x30] sm:$0xff]
      %v6534 = vld [vmem:[#allocation8 + $0x38] sm:$0xff]
      %v6535 = vld [vmem:[#allocation8 + $0x40] sm:$0xff]
      %v6536 = vld [vmem:[#allocation8 + $0x48] sm:$0xff]
      %v6537 = vpack.c.bf16 %v6530, %v6529
      %v6538 = vpack.c.bf16 %v6532, %v6531
      %v6539 = vpack.c.bf16 %v6534, %v6533
      %v6540 = vpack.c.bf16 %v6536, %v6535
      %v6545 = vunpack.c.l.b16 %v6537
      %v6546 = vunpack.c.h.b16 %v6537
      %v6547 = vunpack.c.l.b16 %v6538
      %v6548 = vunpack.c.h.b16 %v6538
      %v6549 = vunpack.c.l.b16 %v6539
      %v6550 = vunpack.c.h.b16 %v6539
      %v6551 = vunpack.c.l.b16 %v6540
      %v6552 = vunpack.c.h.b16 %v6540
      %v6553 = vpack.c.b16 %v6545, %v6545
      %v6554 = vpack.c.b16 %v6546, %v6546
      %v6555 = vpack.c.b16 %v6547, %v6547
      %v6556 = vpack.c.b16 %v6548, %v6548
      %v6557 = vpack.c.b16 %v6549, %v6549
      %v6558 = vpack.c.b16 %v6550, %v6550
      %v6559 = vpack.c.b16 %v6551, %v6551
      %v6560 = vpack.c.b16 %v6552, %v6552
      %6569 = vst.msk [vmem:[#allocation9 + $0x8] sm:$0xf] %vm6319, %v6553
      %6570 = vst.msk [vmem:[#allocation9 + $0x1c] sm:$0xf] %vm6319, %v6554
      %6571 = vst.msk [vmem:[#allocation9 + $0x30] sm:$0xf] %vm6319, %v6555
      %6572 = vst.msk [vmem:[#allocation9 + $0x44] sm:$0xf] %vm6319, %v6556
      %6573 = vst.msk [vmem:[#allocation9 + $0x58] sm:$0xf] %vm6319, %v6557
      %6574 = vst.msk [vmem:[#allocation9 + $0x6c] sm:$0xf] %vm6319, %v6558
      %6575 = vst.msk [vmem:[#allocation9 + $0x80] sm:$0xf] %vm6319, %v6559
      %6576 = vst.msk [vmem:[#allocation9 + $0x94] sm:$0xf] %vm6319, %v6560
      %v6577 = vld [vmem:[#allocation8 + $0x11] sm:$0xff]
      %v6578 = vld [vmem:[#allocation8 + $0x19] sm:$0xff]
      %v6579 = vld [vmem:[#allocation8 + $0x21] sm:$0xff]
      %v6580 = vld [vmem:[#allocation8 + $0x29] sm:$0xff]
      %v6581 = vld [vmem:[#allocation8 + $0x31] sm:$0xff]
      %v6582 = vld [vmem:[#allocation8 + $0x39] sm:$0xff]
      %v6583 = vld [vmem:[#allocation8 + $0x41] sm:$0xff]
      %v6584 = vld [vmem:[#allocation8 + $0x49] sm:$0xff]
      %v6585 = vsel %vm6401, %v6577, 0.0
      %v6586 = vsel %vm6402, %v6578, 0.0
      %v6587 = vsel %vm6403, %v6579, 0.0
      %v6588 = vsel %vm6404, %v6580, 0.0
      %v6589 = vsel %vm6405, %v6581, 0.0
      %v6590 = vsel %vm6406, %v6582, 0.0
      %v6591 = vsel %vm6407, %v6583, 0.0
      %v6592 = vsel %vm6408, %v6584, 0.0
      %v6593 = vpack.c.bf16 %v6586, %v6585
      %v6594 = vpack.c.bf16 %v6588, %v6587
      %v6595 = vpack.c.bf16 %v6590, %v6589
      %v6596 = vpack.c.bf16 %v6592, %v6591
      %v6601 = vunpack.c.l.b16 %v6593
      %v6602 = vunpack.c.h.b16 %v6593
      %v6603 = vunpack.c.l.b16 %v6594
      %v6604 = vunpack.c.h.b16 %v6594
      %v6605 = vunpack.c.l.b16 %v6595
      %v6606 = vunpack.c.h.b16 %v6595
      %v6607 = vunpack.c.l.b16 %v6596
      %v6608 = vunpack.c.h.b16 %v6596
      %v6609 = vpack.c.b16 %v6601, %v6601
      %v6610 = vpack.c.b16 %v6602, %v6602
      %v6611 = vpack.c.b16 %v6603, %v6603
      %v6612 = vpack.c.b16 %v6604, %v6604
      %v6613 = vpack.c.b16 %v6605, %v6605
      %v6614 = vpack.c.b16 %v6606, %v6606
      %v6615 = vpack.c.b16 %v6607, %v6607
      %v6616 = vpack.c.b16 %v6608, %v6608
      %6617 = vrot.lane.b32.xlu0 %v6609, 64
      %v6618 = vpop.permute.xlu0 %6617
      %6619 = vrot.lane.b32.xlu0 %v6610, 64
      %v6620 = vpop.permute.xlu0 %6619
      %6621 = vrot.lane.b32.xlu0 %v6611, 64
      %v6622 = vpop.permute.xlu0 %6621
      %6623 = vrot.lane.b32.xlu0 %v6612, 64
      %v6624 = vpop.permute.xlu0 %6623
      %6625 = vrot.lane.b32.xlu0 %v6613, 64
      %v6626 = vpop.permute.xlu0 %6625
      %6627 = vrot.lane.b32.xlu0 %v6614, 64
      %v6628 = vpop.permute.xlu0 %6627
      %6629 = vrot.lane.b32.xlu0 %v6615, 64
      %v6630 = vpop.permute.xlu0 %6629
      %6631 = vrot.lane.b32.xlu0 %v6616, 64
      %v6632 = vpop.permute.xlu0 %6631
      %6641 = vst.msk [vmem:[#allocation9 + $0x8] sm:$0xf] %vm6384, %v6618
      %6642 = vst.msk [vmem:[#allocation9 + $0x1c] sm:$0xf] %vm6384, %v6620
      %6643 = vst.msk [vmem:[#allocation9 + $0x30] sm:$0xf] %vm6384, %v6622
      %6644 = vst.msk [vmem:[#allocation9 + $0x44] sm:$0xf] %vm6384, %v6624
      %6645 = vst.msk [vmem:[#allocation9 + $0x58] sm:$0xf] %vm6384, %v6626
      %6646 = vst.msk [vmem:[#allocation9 + $0x6c] sm:$0xf] %vm6384, %v6628
      %6647 = vst.msk [vmem:[#allocation9 + $0x80] sm:$0xf] %vm6384, %v6630
      %6648 = vst.msk [vmem:[#allocation9 + $0x94] sm:$0xf] %vm6384, %v6632
      %v6649 = vld [vmem:[#allocation8 + $0x17] sm:$0xff]
      %v6650 = vld [vmem:[#allocation8 + $0x1f] sm:$0xff]
      %v6651 = vld [vmem:[#allocation8 + $0x27] sm:$0xff]
      %v6652 = vld [vmem:[#allocation8 + $0x2f] sm:$0xff]
      %v6653 = vld [vmem:[#allocation8 + $0x37] sm:$0xff]
      %v6654 = vld [vmem:[#allocation8 + $0x3f] sm:$0xff]
      %v6655 = vld [vmem:[#allocation8 + $0x47] sm:$0xff]
      %v6656 = vld [vmem:[#allocation8 + $0x4f] sm:$0xff]
      %v6657 = vsel %vm6271, %v6649, 0.0
      %v6658 = vsel %vm6272, %v6650, 0.0
      %v6659 = vsel %vm6273, %v6651, 0.0
      %v6660 = vsel %vm6274, %v6652, 0.0
      %v6661 = vsel %vm6275, %v6653, 0.0
      %v6662 = vsel %vm6276, %v6654, 0.0
      %v6663 = vsel %vm6277, %v6655, 0.0
      %v6664 = vsel %vm6278, %v6656, 0.0
      %v6665 = vpack.c.bf16 %v6658, %v6657
      %v6666 = vpack.c.bf16 %v6660, %v6659
      %v6667 = vpack.c.bf16 %v6662, %v6661
      %v6668 = vpack.c.bf16 %v6664, %v6663
      %v6673 = vunpack.c.l.b16 %v6665
      %v6674 = vunpack.c.h.b16 %v6665
      %v6675 = vunpack.c.l.b16 %v6666
      %v6676 = vunpack.c.h.b16 %v6666
      %v6677 = vunpack.c.l.b16 %v6667
      %v6678 = vunpack.c.h.b16 %v6667
      %v6679 = vunpack.c.l.b16 %v6668
      %v6680 = vunpack.c.h.b16 %v6668
      %v6681 = vpack.c.b16 %v6673, %v6673
      %v6682 = vpack.c.b16 %v6674, %v6674
      %v6683 = vpack.c.b16 %v6675, %v6675
      %v6684 = vpack.c.b16 %v6676, %v6676
      %v6685 = vpack.c.b16 %v6677, %v6677
      %v6686 = vpack.c.b16 %v6678, %v6678
      %v6687 = vpack.c.b16 %v6679, %v6679
      %v6688 = vpack.c.b16 %v6680, %v6680
      %6697 = vst.msk [vmem:[#allocation9 + $0xc] sm:$0xf] %vm6319, %v6681
      %6698 = vst.msk [vmem:[#allocation9 + $0x20] sm:$0xf] %vm6319, %v6682
      %6699 = vst.msk [vmem:[#allocation9 + $0x34] sm:$0xf] %vm6319, %v6683
      %6700 = vst.msk [vmem:[#allocation9 + $0x48] sm:$0xf] %vm6319, %v6684
      %6701 = vst.msk [vmem:[#allocation9 + $0x5c] sm:$0xf] %vm6319, %v6685
      %6702 = vst.msk [vmem:[#allocation9 + $0x70] sm:$0xf] %vm6319, %v6686
      %6703 = vst.msk [vmem:[#allocation9 + $0x84] sm:$0xf] %vm6319, %v6687
      %6704 = vst.msk [vmem:[#allocation9 + $0x98] sm:$0xf] %vm6319, %v6688
      %v6705 = vld [vmem:[#allocation8 + $0x18] sm:$0xff]
      %v6706 = vld [vmem:[#allocation8 + $0x20] sm:$0xff]
      %v6707 = vld [vmem:[#allocation8 + $0x28] sm:$0xff]
      %v6708 = vld [vmem:[#allocation8 + $0x30] sm:$0xff]
      %v6709 = vld [vmem:[#allocation8 + $0x38] sm:$0xff]
      %v6710 = vld [vmem:[#allocation8 + $0x40] sm:$0xff]
      %v6711 = vld [vmem:[#allocation8 + $0x48] sm:$0xff]
      %v6712 = vld [vmem:[#allocation8 + $0x50] sm:$0xff]
      %v6713 = vpack.c.bf16 %v6706, %v6705
      %v6714 = vpack.c.bf16 %v6708, %v6707
      %v6715 = vpack.c.bf16 %v6710, %v6709
      %v6716 = vpack.c.bf16 %v6712, %v6711
      %v6721 = vunpack.c.l.b16 %v6713
      %v6722 = vunpack.c.h.b16 %v6713
      %v6723 = vunpack.c.l.b16 %v6714
      %v6724 = vunpack.c.h.b16 %v6714
      %v6725 = vunpack.c.l.b16 %v6715
      %v6726 = vunpack.c.h.b16 %v6715
      %v6727 = vunpack.c.l.b16 %v6716
      %v6728 = vunpack.c.h.b16 %v6716
      %v6729 = vpack.c.b16 %v6721, %v6721
      %v6730 = vpack.c.b16 %v6722, %v6722
      %v6731 = vpack.c.b16 %v6723, %v6723
      %v6732 = vpack.c.b16 %v6724, %v6724
      %v6733 = vpack.c.b16 %v6725, %v6725
      %v6734 = vpack.c.b16 %v6726, %v6726
      %v6735 = vpack.c.b16 %v6727, %v6727
      %v6736 = vpack.c.b16 %v6728, %v6728
      %6737 = vrot.lane.b32.xlu0 %v6729, 64
      %v6738 = vpop.permute.xlu0 %6737
      %6739 = vrot.lane.b32.xlu0 %v6730, 64
      %v6740 = vpop.permute.xlu0 %6739
      %6741 = vrot.lane.b32.xlu0 %v6731, 64
      %v6742 = vpop.permute.xlu0 %6741
      %6743 = vrot.lane.b32.xlu0 %v6732, 64
      %v6744 = vpop.permute.xlu0 %6743
      %6745 = vrot.lane.b32.xlu0 %v6733, 64
      %v6746 = vpop.permute.xlu0 %6745
      %6747 = vrot.lane.b32.xlu0 %v6734, 64
      %v6748 = vpop.permute.xlu0 %6747
      %6749 = vrot.lane.b32.xlu0 %v6735, 64
      %v6750 = vpop.permute.xlu0 %6749
      %6751 = vrot.lane.b32.xlu0 %v6736, 64
      %v6752 = vpop.permute.xlu0 %6751
      %6761 = vst.msk [vmem:[#allocation9 + $0xc] sm:$0xf] %vm6384, %v6738
      %6762 = vst.msk [vmem:[#allocation9 + $0x20] sm:$0xf] %vm6384, %v6740
      %6763 = vst.msk [vmem:[#allocation9 + $0x34] sm:$0xf] %vm6384, %v6742
      %6764 = vst.msk [vmem:[#allocation9 + $0x48] sm:$0xf] %vm6384, %v6744
      %6765 = vst.msk [vmem:[#allocation9 + $0x5c] sm:$0xf] %vm6384, %v6746
      %6766 = vst.msk [vmem:[#allocation9 + $0x70] sm:$0xf] %vm6384, %v6748
      %6767 = vst.msk [vmem:[#allocation9 + $0x84] sm:$0xf] %vm6384, %v6750
      %6768 = vst.msk [vmem:[#allocation9 + $0x98] sm:$0xf] %vm6384, %v6752
      %v6769 = vld [vmem:[#allocation8 + $0x19] sm:$0xff]
      %v6770 = vld [vmem:[#allocation8 + $0x21] sm:$0xff]
      %v6771 = vld [vmem:[#allocation8 + $0x29] sm:$0xff]
      %v6772 = vld [vmem:[#allocation8 + $0x31] sm:$0xff]
      %v6773 = vld [vmem:[#allocation8 + $0x39] sm:$0xff]
      %v6774 = vld [vmem:[#allocation8 + $0x41] sm:$0xff]
      %v6775 = vld [vmem:[#allocation8 + $0x49] sm:$0xff]
      %v6776 = vld [vmem:[#allocation8 + $0x51] sm:$0xff]
      %v6777 = vsel %vm6401, %v6769, 0.0
      %v6778 = vsel %vm6402, %v6770, 0.0
      %v6779 = vsel %vm6403, %v6771, 0.0
      %v6780 = vsel %vm6404, %v6772, 0.0
      %v6781 = vsel %vm6405, %v6773, 0.0
      %v6782 = vsel %vm6406, %v6774, 0.0
      %v6783 = vsel %vm6407, %v6775, 0.0
      %v6784 = vsel %vm6408, %v6776, 0.0
      %v6785 = vpack.c.bf16 %v6778, %v6777
      %v6786 = vpack.c.bf16 %v6780, %v6779
      %v6787 = vpack.c.bf16 %v6782, %v6781
      %v6788 = vpack.c.bf16 %v6784, %v6783
      %v6793 = vunpack.c.l.b16 %v6785
      %v6794 = vunpack.c.h.b16 %v6785
      %v6795 = vunpack.c.l.b16 %v6786
      %v6796 = vunpack.c.h.b16 %v6786
      %v6797 = vunpack.c.l.b16 %v6787
      %v6798 = vunpack.c.h.b16 %v6787
      %v6799 = vunpack.c.l.b16 %v6788
      %v6800 = vunpack.c.h.b16 %v6788
      %v6801 = vpack.c.b16 %v6793, %v6793
      %v6802 = vpack.c.b16 %v6794, %v6794
      %v6803 = vpack.c.b16 %v6795, %v6795
      %v6804 = vpack.c.b16 %v6796, %v6796
      %v6805 = vpack.c.b16 %v6797, %v6797
      %v6806 = vpack.c.b16 %v6798, %v6798
      %v6807 = vpack.c.b16 %v6799, %v6799
      %v6808 = vpack.c.b16 %v6800, %v6800
      %6817 = vst.msk [vmem:[#allocation9 + $0x10] sm:$0xf] %vm6319, %v6801
      %6818 = vst.msk [vmem:[#allocation9 + $0x24] sm:$0xf] %vm6319, %v6802
      %6819 = vst.msk [vmem:[#allocation9 + $0x38] sm:$0xf] %vm6319, %v6803
      %6820 = vst.msk [vmem:[#allocation9 + $0x4c] sm:$0xf] %vm6319, %v6804
      %6821 = vst.msk [vmem:[#allocation9 + $0x60] sm:$0xf] %vm6319, %v6805
      %6822 = vst.msk [vmem:[#allocation9 + $0x74] sm:$0xf] %vm6319, %v6806
      %6823 = vst.msk [vmem:[#allocation9 + $0x88] sm:$0xf] %vm6319, %v6807
      %6824 = vst.msk [vmem:[#allocation9 + $0x9c] sm:$0xf] %vm6319, %v6808
      %v6825 = vld [vmem:[#allocation9] sm:$0xff]
      %v6826 = vld [vmem:[#allocation9 + $0x8] sm:$0xff]
      %v6827 = vld [vmem:[#allocation9 + $0x10] sm:$0xf]
      %v6828 = vld [vmem:[#allocation9 + $0x14] sm:$0xff]
      %v6829 = vld [vmem:[#allocation9 + $0x1c] sm:$0xff]
      %v6830 = vld [vmem:[#allocation9 + $0x24] sm:$0xf]
      %v6831 = vld [vmem:[#allocation9 + $0x28] sm:$0xff]
      %v6832 = vld [vmem:[#allocation9 + $0x30] sm:$0xff]
      %v6833 = vld [vmem:[#allocation9 + $0x38] sm:$0xf]
      %v6834 = vld [vmem:[#allocation9 + $0x3c] sm:$0xff]
      %v6835 = vld [vmem:[#allocation9 + $0x44] sm:$0xff]
      %v6836 = vld [vmem:[#allocation9 + $0x4c] sm:$0xf]
      %v6837 = vld [vmem:[#allocation9 + $0x50] sm:$0xff]
      %v6838 = vld [vmem:[#allocation9 + $0x58] sm:$0xff]
      %v6839 = vld [vmem:[#allocation9 + $0x60] sm:$0xf]
      %v6840 = vld [vmem:[#allocation9 + $0x64] sm:$0xff]
      %v6841 = vld [vmem:[#allocation9 + $0x6c] sm:$0xff]
      %v6842 = vld [vmem:[#allocation9 + $0x74] sm:$0xf]
      %v6843 = vld [vmem:[#allocation9 + $0x78] sm:$0xff]
      %v6844 = vld [vmem:[#allocation9 + $0x80] sm:$0xff]
      %v6845 = vld [vmem:[#allocation9 + $0x88] sm:$0xf]
      %v6846 = vld [vmem:[#allocation9 + $0x8c] sm:$0xff]
      %v6847 = vld [vmem:[#allocation9 + $0x94] sm:$0xff]
      %v6848 = vld [vmem:[#allocation9 + $0x9c] sm:$0xf]
      %v6849 = vld [vmem:[%s5] sm:$0xf]
      %v6850 = vld [vmem:[%s5 + $0x4] sm:$0xf]
      %v6851 = vld [vmem:[%s5 + $0x8] sm:$0xf]
      %v6852 = vld [vmem:[%s5 + $0xc] sm:$0xf]
      %v6853 = vld [vmem:[%s5 + $0x10] sm:$0xf]
      %v6854 = vld [vmem:[%s5 + $0x14] sm:$0xf]
      %v6855 = vld [vmem:[%s5 + $0x18] sm:$0xf]
      %v6856 = vld [vmem:[%s5 + $0x1c] sm:$0xf]
      %v6857 = vld [vmem:[%s5 + $0x20] sm:$0xf]
      %v6858 = vld [vmem:[%s5 + $0x24] sm:$0xf]
      %v6859 = vld [vmem:[%s5 + $0x28] sm:$0xf]
      %v6860 = vld [vmem:[%s5 + $0x2c] sm:$0xf]
      %v6861 = vld [vmem:[%s5 + $0x30] sm:$0xf]
      %v6862 = vld [vmem:[%s5 + $0x34] sm:$0xf]
      %v6863 = vld [vmem:[%s5 + $0x38] sm:$0xf]
      %v6864 = vld [vmem:[%s5 + $0x3c] sm:$0xf]
      %v6865 = vld [vmem:[%s5 + $0x40] sm:$0xf]
      %v6866 = vld [vmem:[%s5 + $0x44] sm:$0xf]
      %v6867 = vld [vmem:[%s5 + $0x48] sm:$0xf]
      %v6868 = vld [vmem:[%s5 + $0x4c] sm:$0xf]
      %v6869 = vld [vmem:[%s5 + $0x50] sm:$0xf]
      %v6870 = vld [vmem:[%s5 + $0x54] sm:$0xf]
      %v6871 = vld [vmem:[%s5 + $0x58] sm:$0xf]
      %v6872 = vld [vmem:[%s5 + $0x5c] sm:$0xf]
      %v6873 = vld [vmem:[%s5 + $0x60] sm:$0xf]
      %v6874 = vld [vmem:[%s5 + $0x64] sm:$0xf]
      %v6875 = vld [vmem:[%s5 + $0x68] sm:$0xf]
      %v6876 = vld [vmem:[%s5 + $0x6c] sm:$0xf]
      %v6877 = vld [vmem:[%s5 + $0x70] sm:$0xf]
      %v6878 = vld [vmem:[%s5 + $0x74] sm:$0xf]
      %v6879 = vld [vmem:[%s5 + $0x78] sm:$0xf]
      %v6880 = vld [vmem:[%s5 + $0x7c] sm:$0xf]
      %v6881 = vld [vmem:[%s5 + $0x80] sm:$0xf]
      %v6882 = vld [vmem:[%s5 + $0x84] sm:$0xf]
      %v6883 = vld [vmem:[%s5 + $0x88] sm:$0xf]
      %v6884 = vld [vmem:[%s5 + $0x8c] sm:$0xf]
      %v6885 = vld [vmem:[%s5 + $0x90] sm:$0xf]
      %v6886 = vld [vmem:[%s5 + $0x94] sm:$0xf]
      %v6887 = vld [vmem:[%s5 + $0x98] sm:$0xf]
      %v6888 = vld [vmem:[%s5 + $0x9c] sm:$0xf]
      %v6889 = vld [vmem:[%s5 + $0xa0] sm:$0xf]
      %v6890 = vld [vmem:[%s5 + $0xa4] sm:$0xf]
      %v6891 = vld [vmem:[%s5 + $0xa8] sm:$0xf]
      %v6892 = vld [vmem:[%s5 + $0xac] sm:$0xf]
      %v6893 = vld [vmem:[%s5 + $0xb0] sm:$0xf]
      %v6894 = vld [vmem:[%s5 + $0xb4] sm:$0xf]
      %v6895 = vld [vmem:[%s5 + $0xb8] sm:$0xf]
      %v6896 = vld [vmem:[%s5 + $0xbc] sm:$0xf]
      %v6897 = vld [vmem:[%s5 + $0xc0] sm:$0xf]
      %v6898 = vld [vmem:[%s5 + $0xc4] sm:$0xf]
      %v6899 = vld [vmem:[%s5 + $0xc8] sm:$0xf]
      %v6900 = vld [vmem:[%s5 + $0xcc] sm:$0xf]
      %v6901 = vld [vmem:[%s5 + $0xd0] sm:$0xf]
      %v6902 = vld [vmem:[%s5 + $0xd4] sm:$0xf]
      %v6903 = vld [vmem:[%s5 + $0xd8] sm:$0xf]
      %v6904 = vld [vmem:[%s5 + $0xdc] sm:$0xf]
      %v6905 = vld [vmem:[%s5 + $0xe0] sm:$0xf]
      %v6906 = vld [vmem:[%s5 + $0xe4] sm:$0xf]
      %v6907 = vld [vmem:[%s5 + $0xe8] sm:$0xf]
      %v6908 = vld [vmem:[%s5 + $0xec] sm:$0xf]
      %v6909 = vld [vmem:[%s5 + $0xf0] sm:$0xf]
      %v6910 = vld [vmem:[%s5 + $0xf4] sm:$0xf]
      %v6911 = vld [vmem:[%s5 + $0xf8] sm:$0xf]
      %v6912 = vld [vmem:[%s5 + $0xfc] sm:$0xf]
      %v6913 = vld [vmem:[%s5 + $0x100] sm:$0xf]
      %v6914 = vld [vmem:[%s5 + $0x104] sm:$0xf]
      %v6915 = vld [vmem:[%s5 + $0x108] sm:$0xf]
      %v6916 = vld [vmem:[%s5 + $0x10c] sm:$0xf]
      %v6917 = vld [vmem:[%s5 + $0x110] sm:$0xf]
      %v6918 = vld [vmem:[%s5 + $0x114] sm:$0xf]
      %v6919 = vld [vmem:[%s5 + $0x118] sm:$0xf]
      %v6920 = vld [vmem:[%s5 + $0x11c] sm:$0xf]
      %v6921 = vld [vmem:[%s6] sm:$0x1]
      %v6922 = vlaneseq
      %v6923 = vshrl.u32 %v6922, 7
      %v6924 = vsub.s32 0, %v6923
      %v6925 = vrot.slane %v6921, %v6924
      %v6950 = vunpack.c.l.b16 %v6825
      %v6951 = vunpack.c.h.b16 %v6825
      %v6952 = vunpack.c.l.b16 %v6826
      %v6953 = vunpack.c.h.b16 %v6826
      %v6954 = vunpack.c.l.b16 %v6827
      %v6955 = vunpack.c.l.b16 %v6828
      %v6956 = vunpack.c.h.b16 %v6828
      %v6957 = vunpack.c.l.b16 %v6829
      %v6958 = vunpack.c.h.b16 %v6829
      %v6959 = vunpack.c.l.b16 %v6830
      %v6960 = vunpack.c.l.b16 %v6831
      %v6961 = vunpack.c.h.b16 %v6831
      %v6962 = vunpack.c.l.b16 %v6832
      %v6963 = vunpack.c.h.b16 %v6832
      %v6964 = vunpack.c.l.b16 %v6833
      %v6965 = vunpack.c.l.b16 %v6834
      %v6966 = vunpack.c.h.b16 %v6834
      %v6967 = vunpack.c.l.b16 %v6835
      %v6968 = vunpack.c.h.b16 %v6835
      %v6969 = vunpack.c.l.b16 %v6836
      %v6970 = vunpack.c.l.b16 %v6837
      %v6971 = vunpack.c.h.b16 %v6837
      %v6972 = vunpack.c.l.b16 %v6838
      %v6973 = vunpack.c.h.b16 %v6838
      %v6974 = vunpack.c.l.b16 %v6839
      %v6975 = vunpack.c.l.b16 %v6840
      %v6976 = vunpack.c.h.b16 %v6840
      %v6977 = vunpack.c.l.b16 %v6841
      %v6978 = vunpack.c.h.b16 %v6841
      %v6979 = vunpack.c.l.b16 %v6842
      %v6980 = vunpack.c.l.b16 %v6843
      %v6981 = vunpack.c.h.b16 %v6843
      %v6982 = vunpack.c.l.b16 %v6844
      %v6983 = vunpack.c.h.b16 %v6844
      %v6984 = vunpack.c.l.b16 %v6845
      %v6985 = vunpack.c.l.b16 %v6846
      %v6986 = vunpack.c.h.b16 %v6846
      %v6987 = vunpack.c.l.b16 %v6847
      %v6988 = vunpack.c.h.b16 %v6847
      %v6989 = vunpack.c.l.b16 %v6848
      %v6990 = vpack.c.b16 %v6955, %v6950
      %v6991 = vpack.c.b16 %v6956, %v6951
      %v6992 = vpack.c.b16 %v6957, %v6952
      %v6993 = vpack.c.b16 %v6958, %v6953
      %v6994 = vpack.c.b16 %v6959, %v6954
      %v6995 = vpack.c.b16 %v6965, %v6960
      %v6996 = vpack.c.b16 %v6966, %v6961
      %v6997 = vpack.c.b16 %v6967, %v6962
      %v6998 = vpack.c.b16 %v6968, %v6963
      %v6999 = vpack.c.b16 %v6969, %v6964
      %v7000 = vpack.c.b16 %v6975, %v6970
      %v7001 = vpack.c.b16 %v6976, %v6971
      %v7002 = vpack.c.b16 %v6977, %v6972
      %v7003 = vpack.c.b16 %v6978, %v6973
      %v7004 = vpack.c.b16 %v6979, %v6974
      %v7005 = vpack.c.b16 %v6985, %v6980
      %v7006 = vpack.c.b16 %v6986, %v6981
      %v7007 = vpack.c.b16 %v6987, %v6982
      %v7008 = vpack.c.b16 %v6988, %v6983
      %v7009 = vpack.c.b16 %v6989, %v6984
      %v7098 = vunpack.c.l.b16 %v6849
      %v7099 = vunpack.c.l.b16 %v6850
      %v7100 = vunpack.c.l.b16 %v6851
      %v7101 = vunpack.c.l.b16 %v6852
      %v7102 = vunpack.c.l.b16 %v6853
      %v7103 = vunpack.c.l.b16 %v6854
      %v7104 = vunpack.c.l.b16 %v6855
      %v7105 = vunpack.c.l.b16 %v6856
      %v7106 = vunpack.c.l.b16 %v6857
      %v7107 = vunpack.c.l.b16 %v6858
      %v7108 = vunpack.c.l.b16 %v6859
      %v7109 = vunpack.c.l.b16 %v6860
      %v7110 = vunpack.c.l.b16 %v6861
      %v7111 = vunpack.c.l.b16 %v6862
      %v7112 = vunpack.c.l.b16 %v6863
      %v7113 = vunpack.c.l.b16 %v6864
      %v7114 = vunpack.c.l.b16 %v6865
      %v7115 = vunpack.c.l.b16 %v6866
      %v7116 = vunpack.c.l.b16 %v6867
      %v7117 = vunpack.c.l.b16 %v6868
      %v7118 = vunpack.c.l.b16 %v6869
      %v7119 = vunpack.c.l.b16 %v6870
      %v7120 = vunpack.c.l.b16 %v6871
      %v7121 = vunpack.c.l.b16 %v6872
      %v7122 = vunpack.c.l.b16 %v6873
      %v7123 = vunpack.c.l.b16 %v6874
      %v7124 = vunpack.c.l.b16 %v6875
      %v7125 = vunpack.c.l.b16 %v6876
      %v7126 = vunpack.c.l.b16 %v6877
      %v7127 = vunpack.c.l.b16 %v6878
      %v7128 = vunpack.c.l.b16 %v6879
      %v7129 = vunpack.c.l.b16 %v6880
      %v7130 = vunpack.c.l.b16 %v6881
      %v7131 = vunpack.c.l.b16 %v6882
      %v7132 = vunpack.c.l.b16 %v6883
      %v7133 = vunpack.c.l.b16 %v6884
      %v7134 = vunpack.c.l.b16 %v6885
      %v7135 = vunpack.c.l.b16 %v6886
      %v7136 = vunpack.c.l.b16 %v6887
      %v7137 = vunpack.c.l.b16 %v6888
      %v7138 = vunpack.c.l.b16 %v6889
      %v7139 = vunpack.c.l.b16 %v6890
      %v7140 = vunpack.c.l.b16 %v6891
      %v7141 = vunpack.c.l.b16 %v6892
      %v7142 = vunpack.c.l.b16 %v6893
      %v7143 = vunpack.c.l.b16 %v6894
      %v7144 = vunpack.c.l.b16 %v6895
      %v7145 = vunpack.c.l.b16 %v6896
      %v7146 = vunpack.c.l.b16 %v6897
      %v7147 = vunpack.c.l.b16 %v6898
      %v7148 = vunpack.c.l.b16 %v6899
      %v7149 = vunpack.c.l.b16 %v6900
      %v7150 = vunpack.c.l.b16 %v6901
      %v7151 = vunpack.c.l.b16 %v6902
      %v7152 = vunpack.c.l.b16 %v6903
      %v7153 = vunpack.c.l.b16 %v6904
      %v7154 = vunpack.c.l.b16 %v6905
      %v7155 = vunpack.c.l.b16 %v6906
      %v7156 = vunpack.c.l.b16 %v6907
      %v7157 = vunpack.c.l.b16 %v6908
      %v7158 = vunpack.c.l.b16 %v6909
      %v7159 = vunpack.c.l.b16 %v6910
      %v7160 = vunpack.c.l.b16 %v6911
      %v7161 = vunpack.c.l.b16 %v6912
      %v7162 = vunpack.c.l.b16 %v6913
      %v7163 = vunpack.c.l.b16 %v6914
      %v7164 = vunpack.c.l.b16 %v6915
      %v7165 = vunpack.c.l.b16 %v6916
      %v7166 = vunpack.c.l.b16 %v6917
      %v7167 = vunpack.c.l.b16 %v6918
      %v7168 = vunpack.c.l.b16 %v6919
      %v7169 = vunpack.c.l.b16 %v6920
      %v7170 = vpack.c.b16 %v7099, %v7098
      %v7171 = vpack.c.b16 %v7101, %v7100
      %v7172 = vpack.c.b16 %v7103, %v7102
      %v7173 = vpack.c.b16 %v7105, %v7104
      %v7174 = vpack.c.b16 %v7107, %v7106
      %v7175 = vpack.c.b16 %v7109, %v7108
      %v7176 = vpack.c.b16 %v7111, %v7110
      %v7177 = vpack.c.b16 %v7113, %v7112
      %v7178 = vpack.c.b16 %v7115, %v7114
      %v7179 = vpack.c.b16 %v7117, %v7116
      %v7180 = vpack.c.b16 %v7119, %v7118
      %v7181 = vpack.c.b16 %v7121, %v7120
      %v7182 = vpack.c.b16 %v7123, %v7122
      %v7183 = vpack.c.b16 %v7125, %v7124
      %v7184 = vpack.c.b16 %v7127, %v7126
      %v7185 = vpack.c.b16 %v7129, %v7128
      %v7186 = vpack.c.b16 %v7131, %v7130
      %v7187 = vpack.c.b16 %v7133, %v7132
      %v7188 = vpack.c.b16 %v7135, %v7134
      %v7189 = vpack.c.b16 %v7137, %v7136
      %v7190 = vpack.c.b16 %v7139, %v7138
      %v7191 = vpack.c.b16 %v7141, %v7140
      %v7192 = vpack.c.b16 %v7143, %v7142
      %v7193 = vpack.c.b16 %v7145, %v7144
      %v7194 = vpack.c.b16 %v7147, %v7146
      %v7195 = vpack.c.b16 %v7149, %v7148
      %v7196 = vpack.c.b16 %v7151, %v7150
      %v7197 = vpack.c.b16 %v7153, %v7152
      %v7198 = vpack.c.b16 %v7155, %v7154
      %v7199 = vpack.c.b16 %v7157, %v7156
      %v7200 = vpack.c.b16 %v7159, %v7158
      %v7201 = vpack.c.b16 %v7161, %v7160
      %v7202 = vpack.c.b16 %v7163, %v7162
      %v7203 = vpack.c.b16 %v7165, %v7164
      %v7204 = vpack.c.b16 %v7167, %v7166
      %v7205 = vpack.c.b16 %v7169, %v7168
      %v7243 = vsel %vm6083, %v6994, 0
      %v7246 = vsel %vm6083, %v6999, 0
      %v7249 = vsel %vm6083, %v7004, 0
      %v7252 = vsel %vm6083, %v7009, 0
      %7254 = vmatprep.subr.bf16.mxu0 0
      %7255 = vmatpush1.bf16.msra.mxu0 %v7177
      %7256 = vmatprep.subr.bf16.mxu0 0
      %7257 = vmatpush1.bf16.msra.mxu0 %v7176
      %7258 = vmatprep.subr.bf16.mxu0 0
      %7259 = vmatpush1.bf16.msra.mxu0 %v7175
      %7260 = vmatprep.subr.bf16.mxu0 0
      %7261 = vmatpush1.bf16.msra.mxu0 %v7174
      %7262 = vmatprep.subr.bf16.mxu0 0
      %7263 = vmatpush1.bf16.msra.mxu0 %v7173
      %7264 = vmatprep.subr.bf16.mxu0 0
      %7265 = vmatpush1.bf16.msra.mxu0 %v7172
      %7266 = vmatprep.subr.bf16.mxu0 0
      %7267 = vmatpush1.bf16.msra.mxu0 %v7171
      %7268 = vmatprep.subr.bf16.mxu0 0
      %7269 = vmatpush1.bf16.msra.mxu0 %v7170
      %7270 = vmatprep.subr.bf16.mxu0 0
      %7271 = vmatpush2.bf16.msra.mxu0 %v7185
      %7272 = vmatprep.subr.bf16.mxu0 0
      %7273 = vmatpush2.bf16.msra.mxu0 %v7184
      %7274 = vmatprep.subr.bf16.mxu0 0
      %7275 = vmatpush2.bf16.msra.mxu0 %v7183
      %7276 = vmatprep.subr.bf16.mxu0 0
      %7277 = vmatpush2.bf16.msra.mxu0 %v7182
      %7278 = vmatprep.subr.bf16.mxu0 0
      %7279 = vmatpush2.bf16.msra.mxu0 %v7181
      %7280 = vmatprep.subr.bf16.mxu0 0
      %7281 = vmatpush2.bf16.msra.mxu0 %v7180
      %7282 = vmatprep.subr.bf16.mxu0 0
      %7283 = vmatpush2.bf16.msra.mxu0 %v7179
      %7284 = vmatprep.subr.bf16.mxu0 0
      %7285 = vmatpush2.bf16.msra.mxu0 %v7178
      %7286 = vmatprep.mubr.bf16.mxu0 %v6991
      %7287 = vmatmul.mubr.bf16.gmra.mxu0 %v6990
      %v7288 = vpop.f32.mrf.mxu0
      %v7289 = vadd.f32 %v6925, %v7288
      %v7290 = vpop.f32.mrf.mxu0
      %v7291 = vpop.f32.mrf.mxu0
      %v7292 = vadd.f32 %v6925, %v7291
      %v7293 = vpop.f32.mrf.mxu0
      %7294 = vmatprep.mubr.bf16.mxu0 %v6996
      %7295 = vmatmul.mubr.bf16.gmra.mxu0 %v6995
      %v7296 = vpop.f32.mrf.mxu0
      %v7297 = vadd.f32 %v6925, %v7296
      %v7298 = vpop.f32.mrf.mxu0
      %v7299 = vpop.f32.mrf.mxu0
      %v7300 = vadd.f32 %v6925, %v7299
      %v7301 = vpop.f32.mrf.mxu0
      %7302 = vmatprep.mubr.bf16.mxu0 %v7001
      %7303 = vmatmul.mubr.bf16.gmra.mxu0 %v7000
      %v7304 = vpop.f32.mrf.mxu0
      %v7305 = vadd.f32 %v6925, %v7304
      %v7306 = vpop.f32.mrf.mxu0
      %v7307 = vpop.f32.mrf.mxu0
      %v7308 = vadd.f32 %v6925, %v7307
      %v7309 = vpop.f32.mrf.mxu0
      %7310 = vmatprep.mubr.bf16.mxu0 %v7006
      %7311 = vmatmul.mubr.bf16.gmra.mxu0 %v7005
      %v7312 = vpop.f32.mrf.mxu0
      %v7313 = vadd.f32 %v6925, %v7312
      %v7314 = vpop.f32.mrf.mxu0
      %v7315 = vpop.f32.mrf.mxu0
      %v7316 = vadd.f32 %v6925, %v7315
      %v7317 = vpop.f32.mrf.mxu0
      %7318 = vdwg.mxu0
      %7319 = vmatprep.subr.bf16.mxu0 0
      %7320 = vmatpush1.bf16.msra.mxu0 %v7193
      %7321 = vmatprep.subr.bf16.mxu0 0
      %7322 = vmatpush1.bf16.msra.mxu0 %v7192
      %7323 = vmatprep.subr.bf16.mxu0 0
      %7324 = vmatpush1.bf16.msra.mxu0 %v7191
      %7325 = vmatprep.subr.bf16.mxu0 0
      %7326 = vmatpush1.bf16.msra.mxu0 %v7190
      %7327 = vmatprep.subr.bf16.mxu0 0
      %7328 = vmatpush1.bf16.msra.mxu0 %v7189
      %7329 = vmatprep.subr.bf16.mxu0 0
      %7330 = vmatpush1.bf16.msra.mxu0 %v7188
      %7331 = vmatprep.subr.bf16.mxu0 0
      %7332 = vmatpush1.bf16.msra.mxu0 %v7187
      %7333 = vmatprep.subr.bf16.mxu0 0
      %7334 = vmatpush1.bf16.msra.mxu0 %v7186
      %7335 = vmatprep.subr.bf16.mxu0 0
      %7336 = vmatpush2.bf16.msra.mxu0 %v7201
      %7337 = vmatprep.subr.bf16.mxu0 0
      %7338 = vmatpush2.bf16.msra.mxu0 %v7200
      %7339 = vmatprep.subr.bf16.mxu0 0
      %7340 = vmatpush2.bf16.msra.mxu0 %v7199
      %7341 = vmatprep.subr.bf16.mxu0 0
      %7342 = vmatpush2.bf16.msra.mxu0 %v7198
      %7343 = vmatprep.subr.bf16.mxu0 0
      %7344 = vmatpush2.bf16.msra.mxu0 %v7197
      %7345 = vmatprep.subr.bf16.mxu0 0
      %7346 = vmatpush2.bf16.msra.mxu0 %v7196
      %7347 = vmatprep.subr.bf16.mxu0 0
      %7348 = vmatpush2.bf16.msra.mxu0 %v7195
      %7349 = vmatprep.subr.bf16.mxu0 0
      %7350 = vmatpush2.bf16.msra.mxu0 %v7194
      %7351 = vmatprep.mubr.bf16.mxu0 %v6993
      %7352 = vmatmul.mubr.bf16.gmra.mxu0 %v6992
      %v7353 = vpop.f32.mrf.mxu0
      %v7354 = vadd.f32 %v7289, %v7353
      %v7355 = vpop.f32.mrf.mxu0
      %v7356 = vpop.f32.mrf.mxu0
      %v7357 = vadd.f32 %v7292, %v7356
      %v7358 = vpop.f32.mrf.mxu0
      %7359 = vmatprep.mubr.bf16.mxu0 %v6998
      %7360 = vmatmul.mubr.bf16.gmra.mxu0 %v6997
      %v7361 = vpop.f32.mrf.mxu0
      %v7362 = vadd.f32 %v7297, %v7361
      %v7363 = vpop.f32.mrf.mxu0
      %v7364 = vpop.f32.mrf.mxu0
      %v7365 = vadd.f32 %v7300, %v7364
      %v7366 = vpop.f32.mrf.mxu0
      %7367 = vmatprep.mubr.bf16.mxu0 %v7003
      %7368 = vmatmul.mubr.bf16.gmra.mxu0 %v7002
      %v7369 = vpop.f32.mrf.mxu0
      %v7370 = vadd.f32 %v7305, %v7369
      %v7371 = vpop.f32.mrf.mxu0
      %v7372 = vpop.f32.mrf.mxu0
      %v7373 = vadd.f32 %v7308, %v7372
      %v7374 = vpop.f32.mrf.mxu0
      %7375 = vmatprep.mubr.bf16.mxu0 %v7008
      %7376 = vmatmul.mubr.bf16.gmra.mxu0 %v7007
      %v7377 = vpop.f32.mrf.mxu0
      %v7378 = vadd.f32 %v7313, %v7377
      %v7379 = vpop.f32.mrf.mxu0
      %v7380 = vpop.f32.mrf.mxu0
      %v7381 = vadd.f32 %v7316, %v7380
      %v7382 = vpop.f32.mrf.mxu0
      %7383 = vdwg.mxu0
      %7384 = vmatprep.subr.bf16.mxu0 0
      %7385 = vmatpush1.bf16.msra.mxu0 0
      %7386 = vmatprep.subr.bf16.mxu0 0
      %7387 = vmatpush1.bf16.msra.mxu0 0
      %7388 = vmatprep.subr.bf16.mxu0 0
      %7389 = vmatpush1.bf16.msra.mxu0 0
      %7390 = vmatprep.subr.bf16.mxu0 0
      %7391 = vmatpush1.bf16.msra.mxu0 0
      %7392 = vmatprep.subr.bf16.mxu0 0
      %7393 = vmatpush1.bf16.msra.mxu0 %v7205
      %7394 = vmatprep.subr.bf16.mxu0 0
      %7395 = vmatpush1.bf16.msra.mxu0 %v7204
      %7396 = vmatprep.subr.bf16.mxu0 0
      %7397 = vmatpush1.bf16.msra.mxu0 %v7203
      %7398 = vmatprep.subr.bf16.mxu0 0
      %7399 = vmatpush1.bf16.msra.mxu0 %v7202
      %7400 = vmatprep.subr.bf16.mxu0 0
      %7401 = vmatpush2.bf16.msra.mxu0 0
      %7402 = vmatprep.subr.bf16.mxu0 0
      %7403 = vmatpush2.bf16.msra.mxu0 0
      %7404 = vmatprep.subr.bf16.mxu0 0
      %7405 = vmatpush2.bf16.msra.mxu0 0
      %7406 = vmatprep.subr.bf16.mxu0 0
      %7407 = vmatpush2.bf16.msra.mxu0 0
      %7408 = vmatprep.subr.bf16.mxu0 0
      %7409 = vmatpush2.bf16.msra.mxu0 0
      %7410 = vmatprep.subr.bf16.mxu0 0
      %7411 = vmatpush2.bf16.msra.mxu0 0
      %7412 = vmatprep.subr.bf16.mxu0 0
      %7413 = vmatpush2.bf16.msra.mxu0 0
      %7414 = vmatprep.subr.bf16.mxu0 0
      %7415 = vmatpush2.bf16.msra.mxu0 0
      %7416 = vmatprep.mubr.bf16.mxu0 0
      %7417 = vmatmul.mubr.bf16.gmra.mxu0 %v7243
      %v7418 = vpop.f32.mrf.mxu0
      %v7419 = vadd.f32 %v7354, %v7418
      %v7420 = vpop.f32.mrf.mxu0
      %v7421 = vpop.f32.mrf.mxu0
      %v7422 = vadd.f32 %v7357, %v7421
      %v7423 = vpop.f32.mrf.mxu0
      %7424 = vmatprep.mubr.bf16.mxu0 0
      %7425 = vmatmul.mubr.bf16.gmra.mxu0 %v7246
      %v7426 = vpop.f32.mrf.mxu0
      %v7427 = vadd.f32 %v7362, %v7426
      %v7428 = vpop.f32.mrf.mxu0
      %v7429 = vpop.f32.mrf.mxu0
      %v7430 = vadd.f32 %v7365, %v7429
      %v7431 = vpop.f32.mrf.mxu0
      %7432 = vmatprep.mubr.bf16.mxu0 0
      %7433 = vmatmul.mubr.bf16.gmra.mxu0 %v7249
      %v7434 = vpop.f32.mrf.mxu0
      %v7435 = vadd.f32 %v7370, %v7434
      %v7436 = vpop.f32.mrf.mxu0
      %v7437 = vpop.f32.mrf.mxu0
      %v7438 = vadd.f32 %v7373, %v7437
      %v7439 = vpop.f32.mrf.mxu0
      %7440 = vmatprep.mubr.bf16.mxu0 0
      %7441 = vmatmul.mubr.bf16.gmra.mxu0 %v7252
      %v7442 = vpop.f32.mrf.mxu0
      %v7443 = vadd.f32 %v7378, %v7442
      %v7444 = vpop.f32.mrf.mxu0
      %v7445 = vpop.f32.mrf.mxu0
      %v7446 = vadd.f32 %v7381, %v7445
      %v7447 = vpop.f32.mrf.mxu0
      %7448 = vdwg.mxu0
      %v7449 = vmax.f32 %v7419, 0.0
      %v7450 = vmax.f32 %v7422, 0.0
      %v7451 = vmax.f32 %v7427, 0.0
      %v7452 = vmax.f32 %v7430, 0.0
      %v7453 = vmax.f32 %v7435, 0.0
      %v7454 = vmax.f32 %v7438, 0.0
      %v7455 = vmax.f32 %v7443, 0.0
      %v7456 = vmax.f32 %v7446, 0.0
      %v7457 = vld [vmem:[%s6 + $0x1] sm:$0x1]
      %v7458 = vlaneseq
      %v7459 = vshrl.u32 %v7458, 7
      %v7460 = vsub.s32 0, %v7459
      %v7461 = vrot.slane %v7457, %v7460
      %v7462 = vmul.f32 %v7449, %v7461
      %v7463 = vmul.f32 %v7450, %v7461
      %v7464 = vmul.f32 %v7451, %v7461
      %v7465 = vmul.f32 %v7452, %v7461
      %v7466 = vmul.f32 %v7453, %v7461
      %v7467 = vmul.f32 %v7454, %v7461
      %v7468 = vmul.f32 %v7455, %v7461
      %v7469 = vmul.f32 %v7456, %v7461
      %v7470 = vld [vmem:[%s6 + $0x2] sm:$0x1]
      %v7471 = vlaneseq
      %v7472 = vshrl.u32 %v7471, 7
      %v7473 = vsub.s32 0, %v7472
      %v7474 = vrot.slane %v7470, %v7473
      %v7475 = vadd.f32 %v7462, %v7474
      %v7476 = vadd.f32 %v7463, %v7474
      %v7477 = vadd.f32 %v7464, %v7474
      %v7478 = vadd.f32 %v7465, %v7474
      %v7479 = vadd.f32 %v7466, %v7474
      %v7480 = vadd.f32 %v7467, %v7474
      %v7481 = vadd.f32 %v7468, %v7474
      %v7482 = vadd.f32 %v7469, %v7474
      %7483 = vst [vmem:[#allocation10] sm:$0xff] %v7475
      %7484 = vst [vmem:[#allocation10 + $0x8] sm:$0xff] %v7476
      %7485 = vst [vmem:[#allocation10 + $0x10] sm:$0xff] %v7477
      %7486 = vst [vmem:[#allocation10 + $0x18] sm:$0xff] %v7478
      %7487 = vst [vmem:[#allocation10 + $0x20] sm:$0xff] %v7479
      %7488 = vst [vmem:[#allocation10 + $0x28] sm:$0xff] %v7480
      %7489 = vst [vmem:[#allocation10 + $0x30] sm:$0xff] %v7481
      %7490 = vst [vmem:[#allocation10 + $0x38] sm:$0xff] %v7482
      %v7491 = vld [vmem:[%s8] sm:$0x3]
      %v7492 = vld [vmem:[#allocation10] sm:$0x1]
      %v7493 = vadd.f32 %v7492, 0.0
      %v7494 = vld [vmem:[#allocation10 + $0x1] sm:$0x1]
      %v7495 = vadd.f32 %v7493, %v7494
      %v7496 = vld [vmem:[#allocation10 + $0x8] sm:$0x1]
      %v7497 = vadd.f32 %v7495, %v7496
      %v7498 = vld [vmem:[#allocation10 + $0x9] sm:$0x1]
      %v7499 = vadd.f32 %v7497, %v7498
      %v7500 = vmul.f32 %v7499, 0.25
      %v7501 = vpack.c.bf16 %v7500, %v7500
      %v7502 = vld [vmem:[%s7] sm:$0xff]
      %v7503 = vld [vmem:[%s7 + $0x8] sm:$0xff]
      %v7504 = vld [vmem:[%s7 + $0x10] sm:$0xff]
      %v7505 = vld [vmem:[%s7 + $0x18] sm:$0xff]
      %v7506 = vld [vmem:[%s7 + $0x20] sm:$0xff]
      %v7507 = vld [vmem:[%s7 + $0x28] sm:$0xff]
      %v7508 = vld [vmem:[%s7 + $0x30] sm:$0xff]
      %v7509 = vld [vmem:[%s7 + $0x38] sm:$0xff]
      %v7510 = vld [vmem:[%s7 + $0x40] sm:$0xff]
      %v7511 = vld [vmem:[%s7 + $0x48] sm:$0xff]
      %v7512 = vld [vmem:[%s7 + $0x50] sm:$0xff]
      %v7513 = vld [vmem:[%s7 + $0x58] sm:$0xff]
      %v7514 = vld [vmem:[%s7 + $0x60] sm:$0xff]
      %v7515 = vld [vmem:[%s7 + $0x68] sm:$0xff]
      %v7516 = vld [vmem:[%s7 + $0x70] sm:$0xff]
      %v7517 = vld [vmem:[%s7 + $0x78] sm:$0xff]
      %v7534 = vunpack.c.l.b16 %v7502
      %v7535 = vunpack.c.h.b16 %v7502
      %v7536 = vunpack.c.l.b16 %v7503
      %v7537 = vunpack.c.h.b16 %v7503
      %v7538 = vunpack.c.l.b16 %v7504
      %v7539 = vunpack.c.h.b16 %v7504
      %v7540 = vunpack.c.l.b16 %v7505
      %v7541 = vunpack.c.h.b16 %v7505
      %v7542 = vunpack.c.l.b16 %v7506
      %v7543 = vunpack.c.h.b16 %v7506
      %v7544 = vunpack.c.l.b16 %v7507
      %v7545 = vunpack.c.h.b16 %v7507
      %v7546 = vunpack.c.l.b16 %v7508
      %v7547 = vunpack.c.h.b16 %v7508
      %v7548 = vunpack.c.l.b16 %v7509
      %v7549 = vunpack.c.h.b16 %v7509
      %v7550 = vunpack.c.l.b16 %v7510
      %v7551 = vunpack.c.h.b16 %v7510
      %v7552 = vunpack.c.l.b16 %v7511
      %v7553 = vunpack.c.h.b16 %v7511
      %v7554 = vunpack.c.l.b16 %v7512
      %v7555 = vunpack.c.h.b16 %v7512
      %v7556 = vunpack.c.l.b16 %v7513
      %v7557 = vunpack.c.h.b16 %v7513
      %v7558 = vunpack.c.l.b16 %v7514
      %v7559 = vunpack.c.h.b16 %v7514
      %v7560 = vunpack.c.l.b16 %v7515
      %v7561 = vunpack.c.h.b16 %v7515
      %v7562 = vunpack.c.l.b16 %v7516
      %v7563 = vunpack.c.h.b16 %v7516
      %v7564 = vunpack.c.l.b16 %v7517
      %v7565 = vunpack.c.h.b16 %v7517
      %v7566 = vpack.c.b16 %v7536, %v7534
      %v7567 = vpack.c.b16 %v7537, %v7535
      %v7568 = vpack.c.b16 %v7540, %v7538
      %v7569 = vpack.c.b16 %v7541, %v7539
      %v7570 = vpack.c.b16 %v7544, %v7542
      %v7571 = vpack.c.b16 %v7545, %v7543
      %v7572 = vpack.c.b16 %v7548, %v7546
      %v7573 = vpack.c.b16 %v7549, %v7547
      %v7574 = vpack.c.b16 %v7552, %v7550
      %v7575 = vpack.c.b16 %v7553, %v7551
      %v7576 = vpack.c.b16 %v7556, %v7554
      %v7577 = vpack.c.b16 %v7557, %v7555
      %v7578 = vpack.c.b16 %v7560, %v7558
      %v7579 = vpack.c.b16 %v7561, %v7559
      %v7580 = vpack.c.b16 %v7564, %v7562
      %v7581 = vpack.c.b16 %v7565, %v7563
      %7598 = vmatprep.subr.bf16.mxu0 %v7581
      %7599 = vmatpush1.bf16.msra.mxu0 %v7580
      %7600 = vmatprep.subr.bf16.mxu0 %v7579
      %7601 = vmatpush1.bf16.msra.mxu0 %v7578
      %7602 = vmatprep.subr.bf16.mxu0 %v7577
      %7603 = vmatpush1.bf16.msra.mxu0 %v7576
      %7604 = vmatprep.subr.bf16.mxu0 %v7575
      %7605 = vmatpush1.bf16.msra.mxu0 %v7574
      %7606 = vmatprep.subr.bf16.mxu0 %v7573
      %7607 = vmatpush1.bf16.msra.mxu0 %v7572
      %7608 = vmatprep.subr.bf16.mxu0 %v7571
      %7609 = vmatpush1.bf16.msra.mxu0 %v7570
      %7610 = vmatprep.subr.bf16.mxu0 %v7569
      %7611 = vmatpush1.bf16.msra.mxu0 %v7568
      %7612 = vmatprep.subr.bf16.mxu0 %v7567
      %7613 = vmatpush1.bf16.msra.mxu0 %v7566
      %7614 = vmatprep.subr.bf16.mxu0 0
      %7615 = vmatpush2.bf16.msra.mxu0 0
      %7616 = vmatprep.subr.bf16.mxu0 0
      %7617 = vmatpush2.bf16.msra.mxu0 0
      %7618 = vmatprep.subr.bf16.mxu0 0
      %7619 = vmatpush2.bf16.msra.mxu0 0
      %7620 = vmatprep.subr.bf16.mxu0 0
      %7621 = vmatpush2.bf16.msra.mxu0 0
      %7622 = vmatprep.subr.bf16.mxu0 0
      %7623 = vmatpush2.bf16.msra.mxu0 0
      %7624 = vmatprep.subr.bf16.mxu0 0
      %7625 = vmatpush2.bf16.msra.mxu0 0
      %7626 = vmatprep.subr.bf16.mxu0 0
      %7627 = vmatpush2.bf16.msra.mxu0 0
      %7628 = vmatprep.subr.bf16.mxu0 0
      %7629 = vmatpush2.bf16.msra.mxu0 0
      %7630 = vmatprep.mubr.bf16.mxu0 0
      %7631 = vmatmul.mubr.bf16.gmra.mxu0 %v7501
      %v7632 = vpop.f32.mrf.mxu0
      %v7633 = vadd.f32 0.0, %v7632
      %v7634 = vpop.f32.mrf.mxu0
      %v7635 = vadd.f32 0.0, %v7634
      %v7636 = vpop.f32.mrf.mxu0
      %v7637 = vpop.f32.mrf.mxu0
      %7638 = vdwg.mxu0
      %v7641 = vcombine.low %v7633, %v7635
      %v7643 = vunpack.c.l.s4 1966171168
      %v7644 = vunpack.c.0.s8 %v7643
      %v7645 = vlaneseq
      %v7646 = vshrl.u32 %v7645, 7
      %v7647 = vsub.s32 %v7644, %v7646
      %v7648 = vrot.slane %v7641, %v7647
      %v7650 = vunpack.c.l.s4 1966171168
      %v7651 = vunpack.c.0.s8 %v7650
      %v7652 = vlaneseq
      %v7653 = vshrl.u32 %v7652, 7
      %v7654 = vsub.s32 %v7651, %v7653
      %v7655 = vrot.slane %v7648, %v7654
      %v7657 = vadd.f32 %v7491, %v7655
      %v7658 = vld [vmem:[#allocation10 + $0x2] sm:$0x1]
      %v7659 = vadd.f32 %v7658, 0.0
      %v7660 = vld [vmem:[#allocation10 + $0x3] sm:$0x1]
      %v7661 = vadd.f32 %v7659, %v7660
      %v7662 = vld [vmem:[#allocation10 + $0xa] sm:$0x1]
      %v7663 = vadd.f32 %v7661, %v7662
      %v7664 = vld [vmem:[#allocation10 + $0xb] sm:$0x1]
      %v7665 = vadd.f32 %v7663, %v7664
      %v7666 = vmul.f32 %v7665, 0.25
      %v7667 = vpack.c.bf16 %v7666, %v7666
      %s7668 = scalar_lea.vmem %s7, 128
      %v7669 = vld [vmem:[%s7668] sm:$0xff]
      %v7670 = vld [vmem:[%s7668 + $0x8] sm:$0xff]
      %v7671 = vld [vmem:[%s7668 + $0x10] sm:$0xff]
      %v7672 = vld [vmem:[%s7668 + $0x18] sm:$0xff]
      %v7673 = vld [vmem:[%s7668 + $0x20] sm:$0xff]
      %v7674 = vld [vmem:[%s7668 + $0x28] sm:$0xff]
      %v7675 = vld [vmem:[%s7668 + $0x30] sm:$0xff]
      %v7676 = vld [vmem:[%s7668 + $0x38] sm:$0xff]
      %v7677 = vld [vmem:[%s7668 + $0x40] sm:$0xff]
      %v7678 = vld [vmem:[%s7668 + $0x48] sm:$0xff]
      %v7679 = vld [vmem:[%s7668 + $0x50] sm:$0xff]
      %v7680 = vld [vmem:[%s7668 + $0x58] sm:$0xff]
      %v7681 = vld [vmem:[%s7668 + $0x60] sm:$0xff]
      %v7682 = vld [vmem:[%s7668 + $0x68] sm:$0xff]
      %v7683 = vld [vmem:[%s7668 + $0x70] sm:$0xff]
      %v7684 = vld [vmem:[%s7668 + $0x78] sm:$0xff]
      %v7701 = vunpack.c.l.b16 %v7669
      %v7702 = vunpack.c.h.b16 %v7669
      %v7703 = vunpack.c.l.b16 %v7670
      %v7704 = vunpack.c.h.b16 %v7670
      %v7705 = vunpack.c.l.b16 %v7671
      %v7706 = vunpack.c.h.b16 %v7671
      %v7707 = vunpack.c.l.b16 %v7672
      %v7708 = vunpack.c.h.b16 %v7672
      %v7709 = vunpack.c.l.b16 %v7673
      %v7710 = vunpack.c.h.b16 %v7673
      %v7711 = vunpack.c.l.b16 %v7674
      %v7712 = vunpack.c.h.b16 %v7674
      %v7713 = vunpack.c.l.b16 %v7675
      %v7714 = vunpack.c.h.b16 %v7675
      %v7715 = vunpack.c.l.b16 %v7676
      %v7716 = vunpack.c.h.b16 %v7676
      %v7717 = vunpack.c.l.b16 %v7677
      %v7718 = vunpack.c.h.b16 %v7677
      %v7719 = vunpack.c.l.b16 %v7678
      %v7720 = vunpack.c.h.b16 %v7678
      %v7721 = vunpack.c.l.b16 %v7679
      %v7722 = vunpack.c.h.b16 %v7679
      %v7723 = vunpack.c.l.b16 %v7680
      %v7724 = vunpack.c.h.b16 %v7680
      %v7725 = vunpack.c.l.b16 %v7681
      %v7726 = vunpack.c.h.b16 %v7681
      %v7727 = vunpack.c.l.b16 %v7682
      %v7728 = vunpack.c.h.b16 %v7682
      %v7729 = vunpack.c.l.b16 %v7683
      %v7730 = vunpack.c.h.b16 %v7683
      %v7731 = vunpack.c.l.b16 %v7684
      %v7732 = vunpack.c.h.b16 %v7684
      %v7733 = vpack.c.b16 %v7703, %v7701
      %v7734 = vpack.c.b16 %v7704, %v7702
      %v7735 = vpack.c.b16 %v7707, %v7705
      %v7736 = vpack.c.b16 %v7708, %v7706
      %v7737 = vpack.c.b16 %v7711, %v7709
      %v7738 = vpack.c.b16 %v7712, %v7710
      %v7739 = vpack.c.b16 %v7715, %v7713
      %v7740 = vpack.c.b16 %v7716, %v7714
      %v7741 = vpack.c.b16 %v7719, %v7717
      %v7742 = vpack.c.b16 %v7720, %v7718
      %v7743 = vpack.c.b16 %v7723, %v7721
      %v7744 = vpack.c.b16 %v7724, %v7722
      %v7745 = vpack.c.b16 %v7727, %v7725
      %v7746 = vpack.c.b16 %v7728, %v7726
      %v7747 = vpack.c.b16 %v7731, %v7729
      %v7748 = vpack.c.b16 %v7732, %v7730
      %7765 = vmatprep.subr.bf16.mxu0 %v7748
      %7766 = vmatpush1.bf16.msra.mxu0 %v7747
      %7767 = vmatprep.subr.bf16.mxu0 %v7746
      %7768 = vmatpush1.bf16.msra.mxu0 %v7745
      %7769 = vmatprep.subr.bf16.mxu0 %v7744
      %7770 = vmatpush1.bf16.msra.mxu0 %v7743
      %7771 = vmatprep.subr.bf16.mxu0 %v7742
      %7772 = vmatpush1.bf16.msra.mxu0 %v7741
      %7773 = vmatprep.subr.bf16.mxu0 %v7740
      %7774 = vmatpush1.bf16.msra.mxu0 %v7739
      %7775 = vmatprep.subr.bf16.mxu0 %v7738
      %7776 = vmatpush1.bf16.msra.mxu0 %v7737
      %7777 = vmatprep.subr.bf16.mxu0 %v7736
      %7778 = vmatpush1.bf16.msra.mxu0 %v7735
      %7779 = vmatprep.subr.bf16.mxu0 %v7734
      %7780 = vmatpush1.bf16.msra.mxu0 %v7733
      %7781 = vmatprep.subr.bf16.mxu0 0
      %7782 = vmatpush2.bf16.msra.mxu0 0
      %7783 = vmatprep.subr.bf16.mxu0 0
      %7784 = vmatpush2.bf16.msra.mxu0 0
      %7785 = vmatprep.subr.bf16.mxu0 0
      %7786 = vmatpush2.bf16.msra.mxu0 0
      %7787 = vmatprep.subr.bf16.mxu0 0
      %7788 = vmatpush2.bf16.msra.mxu0 0
      %7789 = vmatprep.subr.bf16.mxu0 0
      %7790 = vmatpush2.bf16.msra.mxu0 0
      %7791 = vmatprep.subr.bf16.mxu0 0
      %7792 = vmatpush2.bf16.msra.mxu0 0
      %7793 = vmatprep.subr.bf16.mxu0 0
      %7794 = vmatpush2.bf16.msra.mxu0 0
      %7795 = vmatprep.subr.bf16.mxu0 0
      %7796 = vmatpush2.bf16.msra.mxu0 0
      %7797 = vmatprep.mubr.bf16.mxu0 0
      %7798 = vmatmul.mubr.bf16.gmra.mxu0 %v7667
      %v7799 = vpop.f32.mrf.mxu0
      %v7800 = vadd.f32 0.0, %v7799
      %v7801 = vpop.f32.mrf.mxu0
      %v7802 = vadd.f32 0.0, %v7801
      %v7803 = vpop.f32.mrf.mxu0
      %v7804 = vpop.f32.mrf.mxu0
      %7805 = vdwg.mxu0
      %v7808 = vcombine.low %v7800, %v7802
      %v7810 = vunpack.c.l.s4 1966171168
      %v7811 = vunpack.c.0.s8 %v7810
      %v7812 = vlaneseq
      %v7813 = vshrl.u32 %v7812, 7
      %v7814 = vsub.s32 %v7811, %v7813
      %v7815 = vrot.slane %v7808, %v7814
      %v7817 = vunpack.c.l.s4 1966171168
      %v7818 = vunpack.c.0.s8 %v7817
      %v7819 = vlaneseq
      %v7820 = vshrl.u32 %v7819, 7
      %v7821 = vsub.s32 %v7818, %v7820
      %v7822 = vrot.slane %v7815, %v7821
      %v7824 = vadd.f32 %v7657, %v7822
      %v7825 = vld [vmem:[#allocation10 + $0x4] sm:$0x1]
      %v7826 = vadd.f32 %v7825, 0.0
      %v7827 = vld [vmem:[#allocation10 + $0x5] sm:$0x1]
      %v7828 = vadd.f32 %v7826, %v7827
      %v7829 = vld [vmem:[#allocation10 + $0xc] sm:$0x1]
      %v7830 = vadd.f32 %v7828, %v7829
      %v7831 = vld [vmem:[#allocation10 + $0xd] sm:$0x1]
      %v7832 = vadd.f32 %v7830, %v7831
      %v7833 = vmul.f32 %v7832, 0.25
      %v7834 = vpack.c.bf16 %v7833, %v7833
      %s7835 = scalar_lea.vmem %s7, 256
      %v7836 = vld [vmem:[%s7835] sm:$0xff]
      %v7837 = vld [vmem:[%s7835 + $0x8] sm:$0xff]
      %v7838 = vld [vmem:[%s7835 + $0x10] sm:$0xff]
      %v7839 = vld [vmem:[%s7835 + $0x18] sm:$0xff]
      %v7840 = vld [vmem:[%s7835 + $0x20] sm:$0xff]
      %v7841 = vld [vmem:[%s7835 + $0x28] sm:$0xff]
      %v7842 = vld [vmem:[%s7835 + $0x30] sm:$0xff]
      %v7843 = vld [vmem:[%s7835 + $0x38] sm:$0xff]
      %v7844 = vld [vmem:[%s7835 + $0x40] sm:$0xff]
      %v7845 = vld [vmem:[%s7835 + $0x48] sm:$0xff]
      %v7846 = vld [vmem:[%s7835 + $0x50] sm:$0xff]
      %v7847 = vld [vmem:[%s7835 + $0x58] sm:$0xff]
      %v7848 = vld [vmem:[%s7835 + $0x60] sm:$0xff]
      %v7849 = vld [vmem:[%s7835 + $0x68] sm:$0xff]
      %v7850 = vld [vmem:[%s7835 + $0x70] sm:$0xff]
      %v7851 = vld [vmem:[%s7835 + $0x78] sm:$0xff]
      %v7868 = vunpack.c.l.b16 %v7836
      %v7869 = vunpack.c.h.b16 %v7836
      %v7870 = vunpack.c.l.b16 %v7837
      %v7871 = vunpack.c.h.b16 %v7837
      %v7872 = vunpack.c.l.b16 %v7838
      %v7873 = vunpack.c.h.b16 %v7838
      %v7874 = vunpack.c.l.b16 %v7839
      %v7875 = vunpack.c.h.b16 %v7839
      %v7876 = vunpack.c.l.b16 %v7840
      %v7877 = vunpack.c.h.b16 %v7840
      %v7878 = vunpack.c.l.b16 %v7841
      %v7879 = vunpack.c.h.b16 %v7841
      %v7880 = vunpack.c.l.b16 %v7842
      %v7881 = vunpack.c.h.b16 %v7842
      %v7882 = vunpack.c.l.b16 %v7843
      %v7883 = vunpack.c.h.b16 %v7843
      %v7884 = vunpack.c.l.b16 %v7844
      %v7885 = vunpack.c.h.b16 %v7844
      %v7886 = vunpack.c.l.b16 %v7845
      %v7887 = vunpack.c.h.b16 %v7845
      %v7888 = vunpack.c.l.b16 %v7846
      %v7889 = vunpack.c.h.b16 %v7846
      %v7890 = vunpack.c.l.b16 %v7847
      %v7891 = vunpack.c.h.b16 %v7847
      %v7892 = vunpack.c.l.b16 %v7848
      %v7893 = vunpack.c.h.b16 %v7848
      %v7894 = vunpack.c.l.b16 %v7849
      %v7895 = vunpack.c.h.b16 %v7849
      %v7896 = vunpack.c.l.b16 %v7850
      %v7897 = vunpack.c.h.b16 %v7850
      %v7898 = vunpack.c.l.b16 %v7851
      %v7899 = vunpack.c.h.b16 %v7851
      %v7900 = vpack.c.b16 %v7870, %v7868
      %v7901 = vpack.c.b16 %v7871, %v7869
      %v7902 = vpack.c.b16 %v7874, %v7872
      %v7903 = vpack.c.b16 %v7875, %v7873
      %v7904 = vpack.c.b16 %v7878, %v7876
      %v7905 = vpack.c.b16 %v7879, %v7877
      %v7906 = vpack.c.b16 %v7882, %v7880
      %v7907 = vpack.c.b16 %v7883, %v7881
      %v7908 = vpack.c.b16 %v7886, %v7884
      %v7909 = vpack.c.b16 %v7887, %v7885
      %v7910 = vpack.c.b16 %v7890, %v7888
      %v7911 = vpack.c.b16 %v7891, %v7889
      %v7912 = vpack.c.b16 %v7894, %v7892
      %v7913 = vpack.c.b16 %v7895, %v7893
      %v7914 = vpack.c.b16 %v7898, %v7896
      %v7915 = vpack.c.b16 %v7899, %v7897
      %7932 = vmatprep.subr.bf16.mxu0 %v7915
      %7933 = vmatpush1.bf16.msra.mxu0 %v7914
      %7934 = vmatprep.subr.bf16.mxu0 %v7913
      %7935 = vmatpush1.bf16.msra.mxu0 %v7912
      %7936 = vmatprep.subr.bf16.mxu0 %v7911
      %7937 = vmatpush1.bf16.msra.mxu0 %v7910
      %7938 = vmatprep.subr.bf16.mxu0 %v7909
      %7939 = vmatpush1.bf16.msra.mxu0 %v7908
      %7940 = vmatprep.subr.bf16.mxu0 %v7907
      %7941 = vmatpush1.bf16.msra.mxu0 %v7906
      %7942 = vmatprep.subr.bf16.mxu0 %v7905
      %7943 = vmatpush1.bf16.msra.mxu0 %v7904
      %7944 = vmatprep.subr.bf16.mxu0 %v7903
      %7945 = vmatpush1.bf16.msra.mxu0 %v7902
      %7946 = vmatprep.subr.bf16.mxu0 %v7901
      %7947 = vmatpush1.bf16.msra.mxu0 %v7900
      %7948 = vmatprep.subr.bf16.mxu0 0
      %7949 = vmatpush2.bf16.msra.mxu0 0
      %7950 = vmatprep.subr.bf16.mxu0 0
      %7951 = vmatpush2.bf16.msra.mxu0 0
      %7952 = vmatprep.subr.bf16.mxu0 0
      %7953 = vmatpush2.bf16.msra.mxu0 0
      %7954 = vmatprep.subr.bf16.mxu0 0
      %7955 = vmatpush2.bf16.msra.mxu0 0
      %7956 = vmatprep.subr.bf16.mxu0 0
      %7957 = vmatpush2.bf16.msra.mxu0 0
      %7958 = vmatprep.subr.bf16.mxu0 0
      %7959 = vmatpush2.bf16.msra.mxu0 0
      %7960 = vmatprep.subr.bf16.mxu0 0
      %7961 = vmatpush2.bf16.msra.mxu0 0
      %7962 = vmatprep.subr.bf16.mxu0 0
      %7963 = vmatpush2.bf16.msra.mxu0 0
      %7964 = vmatprep.mubr.bf16.mxu0 0
      %7965 = vmatmul.mubr.bf16.gmra.mxu0 %v7834
      %v7966 = vpop.f32.mrf.mxu0
      %v7967 = vadd.f32 0.0, %v7966
      %v7968 = vpop.f32.mrf.mxu0
      %v7969 = vadd.f32 0.0, %v7968
      %v7970 = vpop.f32.mrf.mxu0
      %v7971 = vpop.f32.mrf.mxu0
      %7972 = vdwg.mxu0
      %v7975 = vcombine.low %v7967, %v7969
      %v7977 = vunpack.c.l.s4 1966171168
      %v7978 = vunpack.c.0.s8 %v7977
      %v7979 = vlaneseq
      %v7980 = vshrl.u32 %v7979, 7
      %v7981 = vsub.s32 %v7978, %v7980
      %v7982 = vrot.slane %v7975, %v7981
      %v7984 = vunpack.c.l.s4 1966171168
      %v7985 = vunpack.c.0.s8 %v7984
      %v7986 = vlaneseq
      %v7987 = vshrl.u32 %v7986, 7
      %v7988 = vsub.s32 %v7985, %v7987
      %v7989 = vrot.slane %v7982, %v7988
      %v7991 = vadd.f32 %v7824, %v7989
      %v7992 = vld [vmem:[#allocation10 + $0x6] sm:$0x1]
      %v7993 = vadd.f32 %v7992, 0.0
      %v7994 = vld [vmem:[#allocation10 + $0x7] sm:$0x1]
      %v7995 = vadd.f32 %v7993, %v7994
      %v7996 = vld [vmem:[#allocation10 + $0xe] sm:$0x1]
      %v7997 = vadd.f32 %v7995, %v7996
      %v7998 = vld [vmem:[#allocation10 + $0xf] sm:$0x1]
      %v7999 = vadd.f32 %v7997, %v7998
      %v8000 = vmul.f32 %v7999, 0.25
      %v8001 = vpack.c.bf16 %v8000, %v8000
      %s8002 = scalar_lea.vmem %s7, 384
      %v8003 = vld [vmem:[%s8002] sm:$0xff]
      %v8004 = vld [vmem:[%s8002 + $0x8] sm:$0xff]
      %v8005 = vld [vmem:[%s8002 + $0x10] sm:$0xff]
      %v8006 = vld [vmem:[%s8002 + $0x18] sm:$0xff]
      %v8007 = vld [vmem:[%s8002 + $0x20] sm:$0xff]
      %v8008 = vld [vmem:[%s8002 + $0x28] sm:$0xff]
      %v8009 = vld [vmem:[%s8002 + $0x30] sm:$0xff]
      %v8010 = vld [vmem:[%s8002 + $0x38] sm:$0xff]
      %v8011 = vld [vmem:[%s8002 + $0x40] sm:$0xff]
      %v8012 = vld [vmem:[%s8002 + $0x48] sm:$0xff]
      %v8013 = vld [vmem:[%s8002 + $0x50] sm:$0xff]
      %v8014 = vld [vmem:[%s8002 + $0x58] sm:$0xff]
      %v8015 = vld [vmem:[%s8002 + $0x60] sm:$0xff]
      %v8016 = vld [vmem:[%s8002 + $0x68] sm:$0xff]
      %v8017 = vld [vmem:[%s8002 + $0x70] sm:$0xff]
      %v8018 = vld [vmem:[%s8002 + $0x78] sm:$0xff]
      %v8035 = vunpack.c.l.b16 %v8003
      %v8036 = vunpack.c.h.b16 %v8003
      %v8037 = vunpack.c.l.b16 %v8004
      %v8038 = vunpack.c.h.b16 %v8004
      %v8039 = vunpack.c.l.b16 %v8005
      %v8040 = vunpack.c.h.b16 %v8005
      %v8041 = vunpack.c.l.b16 %v8006
      %v8042 = vunpack.c.h.b16 %v8006
      %v8043 = vunpack.c.l.b16 %v8007
      %v8044 = vunpack.c.h.b16 %v8007
      %v8045 = vunpack.c.l.b16 %v8008
      %v8046 = vunpack.c.h.b16 %v8008
      %v8047 = vunpack.c.l.b16 %v8009
      %v8048 = vunpack.c.h.b16 %v8009
      %v8049 = vunpack.c.l.b16 %v8010
      %v8050 = vunpack.c.h.b16 %v8010
      %v8051 = vunpack.c.l.b16 %v8011
      %v8052 = vunpack.c.h.b16 %v8011
      %v8053 = vunpack.c.l.b16 %v8012
      %v8054 = vunpack.c.h.b16 %v8012
      %v8055 = vunpack.c.l.b16 %v8013
      %v8056 = vunpack.c.h.b16 %v8013
      %v8057 = vunpack.c.l.b16 %v8014
      %v8058 = vunpack.c.h.b16 %v8014
      %v8059 = vunpack.c.l.b16 %v8015
      %v8060 = vunpack.c.h.b16 %v8015
      %v8061 = vunpack.c.l.b16 %v8016
      %v8062 = vunpack.c.h.b16 %v8016
      %v8063 = vunpack.c.l.b16 %v8017
      %v8064 = vunpack.c.h.b16 %v8017
      %v8065 = vunpack.c.l.b16 %v8018
      %v8066 = vunpack.c.h.b16 %v8018
      %v8067 = vpack.c.b16 %v8037, %v8035
      %v8068 = vpack.c.b16 %v8038, %v8036
      %v8069 = vpack.c.b16 %v8041, %v8039
      %v8070 = vpack.c.b16 %v8042, %v8040
      %v8071 = vpack.c.b16 %v8045, %v8043
      %v8072 = vpack.c.b16 %v8046, %v8044
      %v8073 = vpack.c.b16 %v8049, %v8047
      %v8074 = vpack.c.b16 %v8050, %v8048
      %v8075 = vpack.c.b16 %v8053, %v8051
      %v8076 = vpack.c.b16 %v8054, %v8052
      %v8077 = vpack.c.b16 %v8057, %v8055
      %v8078 = vpack.c.b16 %v8058, %v8056
      %v8079 = vpack.c.b16 %v8061, %v8059
      %v8080 = vpack.c.b16 %v8062, %v8060
      %v8081 = vpack.c.b16 %v8065, %v8063
      %v8082 = vpack.c.b16 %v8066, %v8064
      %8099 = vmatprep.subr.bf16.mxu0 %v8082
      %8100 = vmatpush1.bf16.msra.mxu0 %v8081
      %8101 = vmatprep.subr.bf16.mxu0 %v8080
      %8102 = vmatpush1.bf16.msra.mxu0 %v8079
      %8103 = vmatprep.subr.bf16.mxu0 %v8078
      %8104 = vmatpush1.bf16.msra.mxu0 %v8077
      %8105 = vmatprep.subr.bf16.mxu0 %v8076
      %8106 = vmatpush1.bf16.msra.mxu0 %v8075
      %8107 = vmatprep.subr.bf16.mxu0 %v8074
      %8108 = vmatpush1.bf16.msra.mxu0 %v8073
      %8109 = vmatprep.subr.bf16.mxu0 %v8072
      %8110 = vmatpush1.bf16.msra.mxu0 %v8071
      %8111 = vmatprep.subr.bf16.mxu0 %v8070
      %8112 = vmatpush1.bf16.msra.mxu0 %v8069
      %8113 = vmatprep.subr.bf16.mxu0 %v8068
      %8114 = vmatpush1.bf16.msra.mxu0 %v8067
      %8115 = vmatprep.subr.bf16.mxu0 0
      %8116 = vmatpush2.bf16.msra.mxu0 0
      %8117 = vmatprep.subr.bf16.mxu0 0
      %8118 = vmatpush2.bf16.msra.mxu0 0
      %8119 = vmatprep.subr.bf16.mxu0 0
      %8120 = vmatpush2.bf16.msra.mxu0 0
      %8121 = vmatprep.subr.bf16.mxu0 0
      %8122 = vmatpush2.bf16.msra.mxu0 0
      %8123 = vmatprep.subr.bf16.mxu0 0
      %8124 = vmatpush2.bf16.msra.mxu0 0
      %8125 = vmatprep.subr.bf16.mxu0 0
      %8126 = vmatpush2.bf16.msra.mxu0 0
      %8127 = vmatprep.subr.bf16.mxu0 0
      %8128 = vmatpush2.bf16.msra.mxu0 0
      %8129 = vmatprep.subr.bf16.mxu0 0
      %8130 = vmatpush2.bf16.msra.mxu0 0
      %8131 = vmatprep.mubr.bf16.mxu0 0
      %8132 = vmatmul.mubr.bf16.gmra.mxu0 %v8001
      %v8133 = vpop.f32.mrf.mxu0
      %v8134 = vadd.f32 0.0, %v8133
      %v8135 = vpop.f32.mrf.mxu0
      %v8136 = vadd.f32 0.0, %v8135
      %v8137 = vpop.f32.mrf.mxu0
      %v8138 = vpop.f32.mrf.mxu0
      %8139 = vdwg.mxu0
      %v8142 = vcombine.low %v8134, %v8136
      %v8144 = vunpack.c.l.s4 1966171168
      %v8145 = vunpack.c.0.s8 %v8144
      %v8146 = vlaneseq
      %v8147 = vshrl.u32 %v8146, 7
      %v8148 = vsub.s32 %v8145, %v8147
      %v8149 = vrot.slane %v8142, %v8148
      %v8151 = vunpack.c.l.s4 1966171168
      %v8152 = vunpack.c.0.s8 %v8151
      %v8153 = vlaneseq
      %v8154 = vshrl.u32 %v8153, 7
      %v8155 = vsub.s32 %v8152, %v8154
      %v8156 = vrot.slane %v8149, %v8155
      %v8158 = vadd.f32 %v7991, %v8156
      %v8159 = vld [vmem:[#allocation10 + $0x10] sm:$0x1]
      %v8160 = vadd.f32 %v8159, 0.0
      %v8161 = vld [vmem:[#allocation10 + $0x11] sm:$0x1]
      %v8162 = vadd.f32 %v8160, %v8161
      %v8163 = vld [vmem:[#allocation10 + $0x18] sm:$0x1]
      %v8164 = vadd.f32 %v8162, %v8163
      %v8165 = vld [vmem:[#allocation10 + $0x19] sm:$0x1]
      %v8166 = vadd.f32 %v8164, %v8165
      %v8167 = vmul.f32 %v8166, 0.25
      %v8168 = vpack.c.bf16 %v8167, %v8167
      %s8169 = scalar_lea.vmem %s7, 512
      %v8170 = vld [vmem:[%s8169] sm:$0xff]
      %v8171 = vld [vmem:[%s8169 + $0x8] sm:$0xff]
      %v8172 = vld [vmem:[%s8169 + $0x10] sm:$0xff]
      %v8173 = vld [vmem:[%s8169 + $0x18] sm:$0xff]
      %v8174 = vld [vmem:[%s8169 + $0x20] sm:$0xff]
      %v8175 = vld [vmem:[%s8169 + $0x28] sm:$0xff]
      %v8176 = vld [vmem:[%s8169 + $0x30] sm:$0xff]
      %v8177 = vld [vmem:[%s8169 + $0x38] sm:$0xff]
      %v8178 = vld [vmem:[%s8169 + $0x40] sm:$0xff]
      %v8179 = vld [vmem:[%s8169 + $0x48] sm:$0xff]
      %v8180 = vld [vmem:[%s8169 + $0x50] sm:$0xff]
      %v8181 = vld [vmem:[%s8169 + $0x58] sm:$0xff]
      %v8182 = vld [vmem:[%s8169 + $0x60] sm:$0xff]
      %v8183 = vld [vmem:[%s8169 + $0x68] sm:$0xff]
      %v8184 = vld [vmem:[%s8169 + $0x70] sm:$0xff]
      %v8185 = vld [vmem:[%s8169 + $0x78] sm:$0xff]
      %v8202 = vunpack.c.l.b16 %v8170
      %v8203 = vunpack.c.h.b16 %v8170
      %v8204 = vunpack.c.l.b16 %v8171
      %v8205 = vunpack.c.h.b16 %v8171
      %v8206 = vunpack.c.l.b16 %v8172
      %v8207 = vunpack.c.h.b16 %v8172
      %v8208 = vunpack.c.l.b16 %v8173
      %v8209 = vunpack.c.h.b16 %v8173
      %v8210 = vunpack.c.l.b16 %v8174
      %v8211 = vunpack.c.h.b16 %v8174
      %v8212 = vunpack.c.l.b16 %v8175
      %v8213 = vunpack.c.h.b16 %v8175
      %v8214 = vunpack.c.l.b16 %v8176
      %v8215 = vunpack.c.h.b16 %v8176
      %v8216 = vunpack.c.l.b16 %v8177
      %v8217 = vunpack.c.h.b16 %v8177
      %v8218 = vunpack.c.l.b16 %v8178
      %v8219 = vunpack.c.h.b16 %v8178
      %v8220 = vunpack.c.l.b16 %v8179
      %v8221 = vunpack.c.h.b16 %v8179
      %v8222 = vunpack.c.l.b16 %v8180
      %v8223 = vunpack.c.h.b16 %v8180
      %v8224 = vunpack.c.l.b16 %v8181
      %v8225 = vunpack.c.h.b16 %v8181
      %v8226 = vunpack.c.l.b16 %v8182
      %v8227 = vunpack.c.h.b16 %v8182
      %v8228 = vunpack.c.l.b16 %v8183
      %v8229 = vunpack.c.h.b16 %v8183
      %v8230 = vunpack.c.l.b16 %v8184
      %v8231 = vunpack.c.h.b16 %v8184
      %v8232 = vunpack.c.l.b16 %v8185
      %v8233 = vunpack.c.h.b16 %v8185
      %v8234 = vpack.c.b16 %v8204, %v8202
      %v8235 = vpack.c.b16 %v8205, %v8203
      %v8236 = vpack.c.b16 %v8208, %v8206
      %v8237 = vpack.c.b16 %v8209, %v8207
      %v8238 = vpack.c.b16 %v8212, %v8210
      %v8239 = vpack.c.b16 %v8213, %v8211
      %v8240 = vpack.c.b16 %v8216, %v8214
      %v8241 = vpack.c.b16 %v8217, %v8215
      %v8242 = vpack.c.b16 %v8220, %v8218
      %v8243 = vpack.c.b16 %v8221, %v8219
      %v8244 = vpack.c.b16 %v8224, %v8222
      %v8245 = vpack.c.b16 %v8225, %v8223
      %v8246 = vpack.c.b16 %v8228, %v8226
      %v8247 = vpack.c.b16 %v8229, %v8227
      %v8248 = vpack.c.b16 %v8232, %v8230
      %v8249 = vpack.c.b16 %v8233, %v8231
      %8266 = vmatprep.subr.bf16.mxu0 %v8249
      %8267 = vmatpush1.bf16.msra.mxu0 %v8248
      %8268 = vmatprep.subr.bf16.mxu0 %v8247
      %8269 = vmatpush1.bf16.msra.mxu0 %v8246
      %8270 = vmatprep.subr.bf16.mxu0 %v8245
      %8271 = vmatpush1.bf16.msra.mxu0 %v8244
      %8272 = vmatprep.subr.bf16.mxu0 %v8243
      %8273 = vmatpush1.bf16.msra.mxu0 %v8242
      %8274 = vmatprep.subr.bf16.mxu0 %v8241
      %8275 = vmatpush1.bf16.msra.mxu0 %v8240
      %8276 = vmatprep.subr.bf16.mxu0 %v8239
      %8277 = vmatpush1.bf16.msra.mxu0 %v8238
      %8278 = vmatprep.subr.bf16.mxu0 %v8237
      %8279 = vmatpush1.bf16.msra.mxu0 %v8236
      %8280 = vmatprep.subr.bf16.mxu0 %v8235
      %8281 = vmatpush1.bf16.msra.mxu0 %v8234
      %8282 = vmatprep.subr.bf16.mxu0 0
      %8283 = vmatpush2.bf16.msra.mxu0 0
      %8284 = vmatprep.subr.bf16.mxu0 0
      %8285 = vmatpush2.bf16.msra.mxu0 0
      %8286 = vmatprep.subr.bf16.mxu0 0
      %8287 = vmatpush2.bf16.msra.mxu0 0
      %8288 = vmatprep.subr.bf16.mxu0 0
      %8289 = vmatpush2.bf16.msra.mxu0 0
      %8290 = vmatprep.subr.bf16.mxu0 0
      %8291 = vmatpush2.bf16.msra.mxu0 0
      %8292 = vmatprep.subr.bf16.mxu0 0
      %8293 = vmatpush2.bf16.msra.mxu0 0
      %8294 = vmatprep.subr.bf16.mxu0 0
      %8295 = vmatpush2.bf16.msra.mxu0 0
      %8296 = vmatprep.subr.bf16.mxu0 0
      %8297 = vmatpush2.bf16.msra.mxu0 0
      %8298 = vmatprep.mubr.bf16.mxu0 0
      %8299 = vmatmul.mubr.bf16.gmra.mxu0 %v8168
      %v8300 = vpop.f32.mrf.mxu0
      %v8301 = vadd.f32 0.0, %v8300
      %v8302 = vpop.f32.mrf.mxu0
      %v8303 = vadd.f32 0.0, %v8302
      %v8304 = vpop.f32.mrf.mxu0
      %v8305 = vpop.f32.mrf.mxu0
      %8306 = vdwg.mxu0
      %v8309 = vcombine.low %v8301, %v8303
      %v8311 = vunpack.c.l.s4 1966171168
      %v8312 = vunpack.c.0.s8 %v8311
      %v8313 = vlaneseq
      %v8314 = vshrl.u32 %v8313, 7
      %v8315 = vsub.s32 %v8312, %v8314
      %v8316 = vrot.slane %v8309, %v8315
      %v8318 = vunpack.c.l.s4 1966171168
      %v8319 = vunpack.c.0.s8 %v8318
      %v8320 = vlaneseq
      %v8321 = vshrl.u32 %v8320, 7
      %v8322 = vsub.s32 %v8319, %v8321
      %v8323 = vrot.slane %v8316, %v8322
      %v8325 = vadd.f32 %v8158, %v8323
      %v8326 = vld [vmem:[#allocation10 + $0x12] sm:$0x1]
      %v8327 = vadd.f32 %v8326, 0.0
      %v8328 = vld [vmem:[#allocation10 + $0x13] sm:$0x1]
      %v8329 = vadd.f32 %v8327, %v8328
      %v8330 = vld [vmem:[#allocation10 + $0x1a] sm:$0x1]
      %v8331 = vadd.f32 %v8329, %v8330
      %v8332 = vld [vmem:[#allocation10 + $0x1b] sm:$0x1]
      %v8333 = vadd.f32 %v8331, %v8332
      %v8334 = vmul.f32 %v8333, 0.25
      %v8335 = vpack.c.bf16 %v8334, %v8334
      %s8336 = scalar_lea.vmem %s7, 640
      %v8337 = vld [vmem:[%s8336] sm:$0xff]
      %v8338 = vld [vmem:[%s8336 + $0x8] sm:$0xff]
      %v8339 = vld [vmem:[%s8336 + $0x10] sm:$0xff]
      %v8340 = vld [vmem:[%s8336 + $0x18] sm:$0xff]
      %v8341 = vld [vmem:[%s8336 + $0x20] sm:$0xff]
      %v8342 = vld [vmem:[%s8336 + $0x28] sm:$0xff]
      %v8343 = vld [vmem:[%s8336 + $0x30] sm:$0xff]
      %v8344 = vld [vmem:[%s8336 + $0x38] sm:$0xff]
      %v8345 = vld [vmem:[%s8336 + $0x40] sm:$0xff]
      %v8346 = vld [vmem:[%s8336 + $0x48] sm:$0xff]
      %v8347 = vld [vmem:[%s8336 + $0x50] sm:$0xff]
      %v8348 = vld [vmem:[%s8336 + $0x58] sm:$0xff]
      %v8349 = vld [vmem:[%s8336 + $0x60] sm:$0xff]
      %v8350 = vld [vmem:[%s8336 + $0x68] sm:$0xff]
      %v8351 = vld [vmem:[%s8336 + $0x70] sm:$0xff]
      %v8352 = vld [vmem:[%s8336 + $0x78] sm:$0xff]
      %v8369 = vunpack.c.l.b16 %v8337
      %v8370 = vunpack.c.h.b16 %v8337
      %v8371 = vunpack.c.l.b16 %v8338
      %v8372 = vunpack.c.h.b16 %v8338
      %v8373 = vunpack.c.l.b16 %v8339
      %v8374 = vunpack.c.h.b16 %v8339
      %v8375 = vunpack.c.l.b16 %v8340
      %v8376 = vunpack.c.h.b16 %v8340
      %v8377 = vunpack.c.l.b16 %v8341
      %v8378 = vunpack.c.h.b16 %v8341
      %v8379 = vunpack.c.l.b16 %v8342
      %v8380 = vunpack.c.h.b16 %v8342
      %v8381 = vunpack.c.l.b16 %v8343
      %v8382 = vunpack.c.h.b16 %v8343
      %v8383 = vunpack.c.l.b16 %v8344
      %v8384 = vunpack.c.h.b16 %v8344
      %v8385 = vunpack.c.l.b16 %v8345
      %v8386 = vunpack.c.h.b16 %v8345
      %v8387 = vunpack.c.l.b16 %v8346
      %v8388 = vunpack.c.h.b16 %v8346
      %v8389 = vunpack.c.l.b16 %v8347
      %v8390 = vunpack.c.h.b16 %v8347
      %v8391 = vunpack.c.l.b16 %v8348
      %v8392 = vunpack.c.h.b16 %v8348
      %v8393 = vunpack.c.l.b16 %v8349
      %v8394 = vunpack.c.h.b16 %v8349
      %v8395 = vunpack.c.l.b16 %v8350
      %v8396 = vunpack.c.h.b16 %v8350
      %v8397 = vunpack.c.l.b16 %v8351
      %v8398 = vunpack.c.h.b16 %v8351
      %v8399 = vunpack.c.l.b16 %v8352
      %v8400 = vunpack.c.h.b16 %v8352
      %v8401 = vpack.c.b16 %v8371, %v8369
      %v8402 = vpack.c.b16 %v8372, %v8370
      %v8403 = vpack.c.b16 %v8375, %v8373
      %v8404 = vpack.c.b16 %v8376, %v8374
      %v8405 = vpack.c.b16 %v8379, %v8377
      %v8406 = vpack.c.b16 %v8380, %v8378
      %v8407 = vpack.c.b16 %v8383, %v8381
      %v8408 = vpack.c.b16 %v8384, %v8382
      %v8409 = vpack.c.b16 %v8387, %v8385
      %v8410 = vpack.c.b16 %v8388, %v8386
      %v8411 = vpack.c.b16 %v8391, %v8389
      %v8412 = vpack.c.b16 %v8392, %v8390
      %v8413 = vpack.c.b16 %v8395, %v8393
      %v8414 = vpack.c.b16 %v8396, %v8394
      %v8415 = vpack.c.b16 %v8399, %v8397
      %v8416 = vpack.c.b16 %v8400, %v8398
      %8433 = vmatprep.subr.bf16.mxu0 %v8416
      %8434 = vmatpush1.bf16.msra.mxu0 %v8415
      %8435 = vmatprep.subr.bf16.mxu0 %v8414
      %8436 = vmatpush1.bf16.msra.mxu0 %v8413
      %8437 = vmatprep.subr.bf16.mxu0 %v8412
      %8438 = vmatpush1.bf16.msra.mxu0 %v8411
      %8439 = vmatprep.subr.bf16.mxu0 %v8410
      %8440 = vmatpush1.bf16.msra.mxu0 %v8409
      %8441 = vmatprep.subr.bf16.mxu0 %v8408
      %8442 = vmatpush1.bf16.msra.mxu0 %v8407
      %8443 = vmatprep.subr.bf16.mxu0 %v8406
      %8444 = vmatpush1.bf16.msra.mxu0 %v8405
      %8445 = vmatprep.subr.bf16.mxu0 %v8404
      %8446 = vmatpush1.bf16.msra.mxu0 %v8403
      %8447 = vmatprep.subr.bf16.mxu0 %v8402
      %8448 = vmatpush1.bf16.msra.mxu0 %v8401
      %8449 = vmatprep.subr.bf16.mxu0 0
      %8450 = vmatpush2.bf16.msra.mxu0 0
      %8451 = vmatprep.subr.bf16.mxu0 0
      %8452 = vmatpush2.bf16.msra.mxu0 0
      %8453 = vmatprep.subr.bf16.mxu0 0
      %8454 = vmatpush2.bf16.msra.mxu0 0
      %8455 = vmatprep.subr.bf16.mxu0 0
      %8456 = vmatpush2.bf16.msra.mxu0 0
      %8457 = vmatprep.subr.bf16.mxu0 0
      %8458 = vmatpush2.bf16.msra.mxu0 0
      %8459 = vmatprep.subr.bf16.mxu0 0
      %8460 = vmatpush2.bf16.msra.mxu0 0
      %8461 = vmatprep.subr.bf16.mxu0 0
      %8462 = vmatpush2.bf16.msra.mxu0 0
      %8463 = vmatprep.subr.bf16.mxu0 0
      %8464 = vmatpush2.bf16.msra.mxu0 0
      %8465 = vmatprep.mubr.bf16.mxu0 0
      %8466 = vmatmul.mubr.bf16.gmra.mxu0 %v8335
      %v8467 = vpop.f32.mrf.mxu0
      %v8468 = vadd.f32 0.0, %v8467
      %v8469 = vpop.f32.mrf.mxu0
      %v8470 = vadd.f32 0.0, %v8469
      %v8471 = vpop.f32.mrf.mxu0
      %v8472 = vpop.f32.mrf.mxu0
      %8473 = vdwg.mxu0
      %v8476 = vcombine.low %v8468, %v8470
      %v8478 = vunpack.c.l.s4 1966171168
      %v8479 = vunpack.c.0.s8 %v8478
      %v8480 = vlaneseq
      %v8481 = vshrl.u32 %v8480, 7
      %v8482 = vsub.s32 %v8479, %v8481
      %v8483 = vrot.slane %v8476, %v8482
      %v8485 = vunpack.c.l.s4 1966171168
      %v8486 = vunpack.c.0.s8 %v8485
      %v8487 = vlaneseq
      %v8488 = vshrl.u32 %v8487, 7
      %v8489 = vsub.s32 %v8486, %v8488
      %v8490 = vrot.slane %v8483, %v8489
      %v8492 = vadd.f32 %v8325, %v8490
      %v8493 = vld [vmem:[#allocation10 + $0x14] sm:$0x1]
      %v8494 = vadd.f32 %v8493, 0.0
      %v8495 = vld [vmem:[#allocation10 + $0x15] sm:$0x1]
      %v8496 = vadd.f32 %v8494, %v8495
      %v8497 = vld [vmem:[#allocation10 + $0x1c] sm:$0x1]
      %v8498 = vadd.f32 %v8496, %v8497
      %v8499 = vld [vmem:[#allocation10 + $0x1d] sm:$0x1]
      %v8500 = vadd.f32 %v8498, %v8499
      %v8501 = vmul.f32 %v8500, 0.25
      %v8502 = vpack.c.bf16 %v8501, %v8501
      %s8503 = scalar_lea.vmem %s7, 768
      %v8504 = vld [vmem:[%s8503] sm:$0xff]
      %v8505 = vld [vmem:[%s8503 + $0x8] sm:$0xff]
      %v8506 = vld [vmem:[%s8503 + $0x10] sm:$0xff]
      %v8507 = vld [vmem:[%s8503 + $0x18] sm:$0xff]
      %v8508 = vld [vmem:[%s8503 + $0x20] sm:$0xff]
      %v8509 = vld [vmem:[%s8503 + $0x28] sm:$0xff]
      %v8510 = vld [vmem:[%s8503 + $0x30] sm:$0xff]
      %v8511 = vld [vmem:[%s8503 + $0x38] sm:$0xff]
      %v8512 = vld [vmem:[%s8503 + $0x40] sm:$0xff]
      %v8513 = vld [vmem:[%s8503 + $0x48] sm:$0xff]
      %v8514 = vld [vmem:[%s8503 + $0x50] sm:$0xff]
      %v8515 = vld [vmem:[%s8503 + $0x58] sm:$0xff]
      %v8516 = vld [vmem:[%s8503 + $0x60] sm:$0xff]
      %v8517 = vld [vmem:[%s8503 + $0x68] sm:$0xff]
      %v8518 = vld [vmem:[%s8503 + $0x70] sm:$0xff]
      %v8519 = vld [vmem:[%s8503 + $0x78] sm:$0xff]
      %v8536 = vunpack.c.l.b16 %v8504
      %v8537 = vunpack.c.h.b16 %v8504
      %v8538 = vunpack.c.l.b16 %v8505
      %v8539 = vunpack.c.h.b16 %v8505
      %v8540 = vunpack.c.l.b16 %v8506
      %v8541 = vunpack.c.h.b16 %v8506
      %v8542 = vunpack.c.l.b16 %v8507
      %v8543 = vunpack.c.h.b16 %v8507
      %v8544 = vunpack.c.l.b16 %v8508
      %v8545 = vunpack.c.h.b16 %v8508
      %v8546 = vunpack.c.l.b16 %v8509
      %v8547 = vunpack.c.h.b16 %v8509
      %v8548 = vunpack.c.l.b16 %v8510
      %v8549 = vunpack.c.h.b16 %v8510
      %v8550 = vunpack.c.l.b16 %v8511
      %v8551 = vunpack.c.h.b16 %v8511
      %v8552 = vunpack.c.l.b16 %v8512
      %v8553 = vunpack.c.h.b16 %v8512
      %v8554 = vunpack.c.l.b16 %v8513
      %v8555 = vunpack.c.h.b16 %v8513
      %v8556 = vunpack.c.l.b16 %v8514
      %v8557 = vunpack.c.h.b16 %v8514
      %v8558 = vunpack.c.l.b16 %v8515
      %v8559 = vunpack.c.h.b16 %v8515
      %v8560 = vunpack.c.l.b16 %v8516
      %v8561 = vunpack.c.h.b16 %v8516
      %v8562 = vunpack.c.l.b16 %v8517
      %v8563 = vunpack.c.h.b16 %v8517
      %v8564 = vunpack.c.l.b16 %v8518
      %v8565 = vunpack.c.h.b16 %v8518
      %v8566 = vunpack.c.l.b16 %v8519
      %v8567 = vunpack.c.h.b16 %v8519
      %v8568 = vpack.c.b16 %v8538, %v8536
      %v8569 = vpack.c.b16 %v8539, %v8537
      %v8570 = vpack.c.b16 %v8542, %v8540
      %v8571 = vpack.c.b16 %v8543, %v8541
      %v8572 = vpack.c.b16 %v8546, %v8544
      %v8573 = vpack.c.b16 %v8547, %v8545
      %v8574 = vpack.c.b16 %v8550, %v8548
      %v8575 = vpack.c.b16 %v8551, %v8549
      %v8576 = vpack.c.b16 %v8554, %v8552
      %v8577 = vpack.c.b16 %v8555, %v8553
      %v8578 = vpack.c.b16 %v8558, %v8556
      %v8579 = vpack.c.b16 %v8559, %v8557
      %v8580 = vpack.c.b16 %v8562, %v8560
      %v8581 = vpack.c.b16 %v8563, %v8561
      %v8582 = vpack.c.b16 %v8566, %v8564
      %v8583 = vpack.c.b16 %v8567, %v8565
      %8600 = vmatprep.subr.bf16.mxu0 %v8583
      %8601 = vmatpush1.bf16.msra.mxu0 %v8582
      %8602 = vmatprep.subr.bf16.mxu0 %v8581
      %8603 = vmatpush1.bf16.msra.mxu0 %v8580
      %8604 = vmatprep.subr.bf16.mxu0 %v8579
      %8605 = vmatpush1.bf16.msra.mxu0 %v8578
      %8606 = vmatprep.subr.bf16.mxu0 %v8577
      %8607 = vmatpush1.bf16.msra.mxu0 %v8576
      %8608 = vmatprep.subr.bf16.mxu0 %v8575
      %8609 = vmatpush1.bf16.msra.mxu0 %v8574
      %8610 = vmatprep.subr.bf16.mxu0 %v8573
      %8611 = vmatpush1.bf16.msra.mxu0 %v8572
      %8612 = vmatprep.subr.bf16.mxu0 %v8571
      %8613 = vmatpush1.bf16.msra.mxu0 %v8570
      %8614 = vmatprep.subr.bf16.mxu0 %v8569
      %8615 = vmatpush1.bf16.msra.mxu0 %v8568
      %8616 = vmatprep.subr.bf16.mxu0 0
      %8617 = vmatpush2.bf16.msra.mxu0 0
      %8618 = vmatprep.subr.bf16.mxu0 0
      %8619 = vmatpush2.bf16.msra.mxu0 0
      %8620 = vmatprep.subr.bf16.mxu0 0
      %8621 = vmatpush2.bf16.msra.mxu0 0
      %8622 = vmatprep.subr.bf16.mxu0 0
      %8623 = vmatpush2.bf16.msra.mxu0 0
      %8624 = vmatprep.subr.bf16.mxu0 0
      %8625 = vmatpush2.bf16.msra.mxu0 0
      %8626 = vmatprep.subr.bf16.mxu0 0
      %8627 = vmatpush2.bf16.msra.mxu0 0
      %8628 = vmatprep.subr.bf16.mxu0 0
      %8629 = vmatpush2.bf16.msra.mxu0 0
      %8630 = vmatprep.subr.bf16.mxu0 0
      %8631 = vmatpush2.bf16.msra.mxu0 0
      %8632 = vmatprep.mubr.bf16.mxu0 0
      %8633 = vmatmul.mubr.bf16.gmra.mxu0 %v8502
      %v8634 = vpop.f32.mrf.mxu0
      %v8635 = vadd.f32 0.0, %v8634
      %v8636 = vpop.f32.mrf.mxu0
      %v8637 = vadd.f32 0.0, %v8636
      %v8638 = vpop.f32.mrf.mxu0
      %v8639 = vpop.f32.mrf.mxu0
      %8640 = vdwg.mxu0
      %v8643 = vcombine.low %v8635, %v8637
      %v8645 = vunpack.c.l.s4 1966171168
      %v8646 = vunpack.c.0.s8 %v8645
      %v8647 = vlaneseq
      %v8648 = vshrl.u32 %v8647, 7
      %v8649 = vsub.s32 %v8646, %v8648
      %v8650 = vrot.slane %v8643, %v8649
      %v8652 = vunpack.c.l.s4 1966171168
      %v8653 = vunpack.c.0.s8 %v8652
      %v8654 = vlaneseq
      %v8655 = vshrl.u32 %v8654, 7
      %v8656 = vsub.s32 %v8653, %v8655
      %v8657 = vrot.slane %v8650, %v8656
      %v8659 = vadd.f32 %v8492, %v8657
      %v8660 = vld [vmem:[#allocation10 + $0x16] sm:$0x1]
      %v8661 = vadd.f32 %v8660, 0.0
      %v8662 = vld [vmem:[#allocation10 + $0x17] sm:$0x1]
      %v8663 = vadd.f32 %v8661, %v8662
      %v8664 = vld [vmem:[#allocation10 + $0x1e] sm:$0x1]
      %v8665 = vadd.f32 %v8663, %v8664
      %v8666 = vld [vmem:[#allocation10 + $0x1f] sm:$0x1]
      %v8667 = vadd.f32 %v8665, %v8666
      %v8668 = vmul.f32 %v8667, 0.25
      %v8669 = vpack.c.bf16 %v8668, %v8668
      %s8670 = scalar_lea.vmem %s7, 896
      %v8671 = vld [vmem:[%s8670] sm:$0xff]
      %v8672 = vld [vmem:[%s8670 + $0x8] sm:$0xff]
      %v8673 = vld [vmem:[%s8670 + $0x10] sm:$0xff]
      %v8674 = vld [vmem:[%s8670 + $0x18] sm:$0xff]
      %v8675 = vld [vmem:[%s8670 + $0x20] sm:$0xff]
      %v8676 = vld [vmem:[%s8670 + $0x28] sm:$0xff]
      %v8677 = vld [vmem:[%s8670 + $0x30] sm:$0xff]
      %v8678 = vld [vmem:[%s8670 + $0x38] sm:$0xff]
      %v8679 = vld [vmem:[%s8670 + $0x40] sm:$0xff]
      %v8680 = vld [vmem:[%s8670 + $0x48] sm:$0xff]
      %v8681 = vld [vmem:[%s8670 + $0x50] sm:$0xff]
      %v8682 = vld [vmem:[%s8670 + $0x58] sm:$0xff]
      %v8683 = vld [vmem:[%s8670 + $0x60] sm:$0xff]
      %v8684 = vld [vmem:[%s8670 + $0x68] sm:$0xff]
      %v8685 = vld [vmem:[%s8670 + $0x70] sm:$0xff]
      %v8686 = vld [vmem:[%s8670 + $0x78] sm:$0xff]
      %v8703 = vunpack.c.l.b16 %v8671
      %v8704 = vunpack.c.h.b16 %v8671
      %v8705 = vunpack.c.l.b16 %v8672
      %v8706 = vunpack.c.h.b16 %v8672
      %v8707 = vunpack.c.l.b16 %v8673
      %v8708 = vunpack.c.h.b16 %v8673
      %v8709 = vunpack.c.l.b16 %v8674
      %v8710 = vunpack.c.h.b16 %v8674
      %v8711 = vunpack.c.l.b16 %v8675
      %v8712 = vunpack.c.h.b16 %v8675
      %v8713 = vunpack.c.l.b16 %v8676
      %v8714 = vunpack.c.h.b16 %v8676
      %v8715 = vunpack.c.l.b16 %v8677
      %v8716 = vunpack.c.h.b16 %v8677
      %v8717 = vunpack.c.l.b16 %v8678
      %v8718 = vunpack.c.h.b16 %v8678
      %v8719 = vunpack.c.l.b16 %v8679
      %v8720 = vunpack.c.h.b16 %v8679
      %v8721 = vunpack.c.l.b16 %v8680
      %v8722 = vunpack.c.h.b16 %v8680
      %v8723 = vunpack.c.l.b16 %v8681
      %v8724 = vunpack.c.h.b16 %v8681
      %v8725 = vunpack.c.l.b16 %v8682
      %v8726 = vunpack.c.h.b16 %v8682
      %v8727 = vunpack.c.l.b16 %v8683
      %v8728 = vunpack.c.h.b16 %v8683
      %v8729 = vunpack.c.l.b16 %v8684
      %v8730 = vunpack.c.h.b16 %v8684
      %v8731 = vunpack.c.l.b16 %v8685
      %v8732 = vunpack.c.h.b16 %v8685
      %v8733 = vunpack.c.l.b16 %v8686
      %v8734 = vunpack.c.h.b16 %v8686
      %v8735 = vpack.c.b16 %v8705, %v8703
      %v8736 = vpack.c.b16 %v8706, %v8704
      %v8737 = vpack.c.b16 %v8709, %v8707
      %v8738 = vpack.c.b16 %v8710, %v8708
      %v8739 = vpack.c.b16 %v8713, %v8711
      %v8740 = vpack.c.b16 %v8714, %v8712
      %v8741 = vpack.c.b16 %v8717, %v8715
      %v8742 = vpack.c.b16 %v8718, %v8716
      %v8743 = vpack.c.b16 %v8721, %v8719
      %v8744 = vpack.c.b16 %v8722, %v8720
      %v8745 = vpack.c.b16 %v8725, %v8723
      %v8746 = vpack.c.b16 %v8726, %v8724
      %v8747 = vpack.c.b16 %v8729, %v8727
      %v8748 = vpack.c.b16 %v8730, %v8728
      %v8749 = vpack.c.b16 %v8733, %v8731
      %v8750 = vpack.c.b16 %v8734, %v8732
      %8767 = vmatprep.subr.bf16.mxu0 %v8750
      %8768 = vmatpush1.bf16.msra.mxu0 %v8749
      %8769 = vmatprep.subr.bf16.mxu0 %v8748
      %8770 = vmatpush1.bf16.msra.mxu0 %v8747
      %8771 = vmatprep.subr.bf16.mxu0 %v8746
      %8772 = vmatpush1.bf16.msra.mxu0 %v8745
      %8773 = vmatprep.subr.bf16.mxu0 %v8744
      %8774 = vmatpush1.bf16.msra.mxu0 %v8743
      %8775 = vmatprep.subr.bf16.mxu0 %v8742
      %8776 = vmatpush1.bf16.msra.mxu0 %v8741
      %8777 = vmatprep.subr.bf16.mxu0 %v8740
      %8778 = vmatpush1.bf16.msra.mxu0 %v8739
      %8779 = vmatprep.subr.bf16.mxu0 %v8738
      %8780 = vmatpush1.bf16.msra.mxu0 %v8737
      %8781 = vmatprep.subr.bf16.mxu0 %v8736
      %8782 = vmatpush1.bf16.msra.mxu0 %v8735
      %8783 = vmatprep.subr.bf16.mxu0 0
      %8784 = vmatpush2.bf16.msra.mxu0 0
      %8785 = vmatprep.subr.bf16.mxu0 0
      %8786 = vmatpush2.bf16.msra.mxu0 0
      %8787 = vmatprep.subr.bf16.mxu0 0
      %8788 = vmatpush2.bf16.msra.mxu0 0
      %8789 = vmatprep.subr.bf16.mxu0 0
      %8790 = vmatpush2.bf16.msra.mxu0 0
      %8791 = vmatprep.subr.bf16.mxu0 0
      %8792 = vmatpush2.bf16.msra.mxu0 0
      %8793 = vmatprep.subr.bf16.mxu0 0
      %8794 = vmatpush2.bf16.msra.mxu0 0
      %8795 = vmatprep.subr.bf16.mxu0 0
      %8796 = vmatpush2.bf16.msra.mxu0 0
      %8797 = vmatprep.subr.bf16.mxu0 0
      %8798 = vmatpush2.bf16.msra.mxu0 0
      %8799 = vmatprep.mubr.bf16.mxu0 0
      %8800 = vmatmul.mubr.bf16.gmra.mxu0 %v8669
      %v8801 = vpop.f32.mrf.mxu0
      %v8802 = vadd.f32 0.0, %v8801
      %v8803 = vpop.f32.mrf.mxu0
      %v8804 = vadd.f32 0.0, %v8803
      %v8805 = vpop.f32.mrf.mxu0
      %v8806 = vpop.f32.mrf.mxu0
      %8807 = vdwg.mxu0
      %v8810 = vcombine.low %v8802, %v8804
      %v8812 = vunpack.c.l.s4 1966171168
      %v8813 = vunpack.c.0.s8 %v8812
      %v8814 = vlaneseq
      %v8815 = vshrl.u32 %v8814, 7
      %v8816 = vsub.s32 %v8813, %v8815
      %v8817 = vrot.slane %v8810, %v8816
      %v8819 = vunpack.c.l.s4 1966171168
      %v8820 = vunpack.c.0.s8 %v8819
      %v8821 = vlaneseq
      %v8822 = vshrl.u32 %v8821, 7
      %v8823 = vsub.s32 %v8820, %v8822
      %v8824 = vrot.slane %v8817, %v8823
      %v8826 = vadd.f32 %v8659, %v8824
      %v8827 = vld [vmem:[#allocation10 + $0x20] sm:$0x1]
      %v8828 = vadd.f32 %v8827, 0.0
      %v8829 = vld [vmem:[#allocation10 + $0x21] sm:$0x1]
      %v8830 = vadd.f32 %v8828, %v8829
      %v8831 = vld [vmem:[#allocation10 + $0x28] sm:$0x1]
      %v8832 = vadd.f32 %v8830, %v8831
      %v8833 = vld [vmem:[#allocation10 + $0x29] sm:$0x1]
      %v8834 = vadd.f32 %v8832, %v8833
      %v8835 = vmul.f32 %v8834, 0.25
      %v8836 = vpack.c.bf16 %v8835, %v8835
      %s8837 = scalar_lea.vmem %s7, 1024
      %v8838 = vld [vmem:[%s8837] sm:$0xff]
      %v8839 = vld [vmem:[%s8837 + $0x8] sm:$0xff]
      %v8840 = vld [vmem:[%s8837 + $0x10] sm:$0xff]
      %v8841 = vld [vmem:[%s8837 + $0x18] sm:$0xff]
      %v8842 = vld [vmem:[%s8837 + $0x20] sm:$0xff]
      %v8843 = vld [vmem:[%s8837 + $0x28] sm:$0xff]
      %v8844 = vld [vmem:[%s8837 + $0x30] sm:$0xff]
      %v8845 = vld [vmem:[%s8837 + $0x38] sm:$0xff]
      %v8846 = vld [vmem:[%s8837 + $0x40] sm:$0xff]
      %v8847 = vld [vmem:[%s8837 + $0x48] sm:$0xff]
      %v8848 = vld [vmem:[%s8837 + $0x50] sm:$0xff]
      %v8849 = vld [vmem:[%s8837 + $0x58] sm:$0xff]
      %v8850 = vld [vmem:[%s8837 + $0x60] sm:$0xff]
      %v8851 = vld [vmem:[%s8837 + $0x68] sm:$0xff]
      %v8852 = vld [vmem:[%s8837 + $0x70] sm:$0xff]
      %v8853 = vld [vmem:[%s8837 + $0x78] sm:$0xff]
      %v8870 = vunpack.c.l.b16 %v8838
      %v8871 = vunpack.c.h.b16 %v8838
      %v8872 = vunpack.c.l.b16 %v8839
      %v8873 = vunpack.c.h.b16 %v8839
      %v8874 = vunpack.c.l.b16 %v8840
      %v8875 = vunpack.c.h.b16 %v8840
      %v8876 = vunpack.c.l.b16 %v8841
      %v8877 = vunpack.c.h.b16 %v8841
      %v8878 = vunpack.c.l.b16 %v8842
      %v8879 = vunpack.c.h.b16 %v8842
      %v8880 = vunpack.c.l.b16 %v8843
      %v8881 = vunpack.c.h.b16 %v8843
      %v8882 = vunpack.c.l.b16 %v8844
      %v8883 = vunpack.c.h.b16 %v8844
      %v8884 = vunpack.c.l.b16 %v8845
      %v8885 = vunpack.c.h.b16 %v8845
      %v8886 = vunpack.c.l.b16 %v8846
      %v8887 = vunpack.c.h.b16 %v8846
      %v8888 = vunpack.c.l.b16 %v8847
      %v8889 = vunpack.c.h.b16 %v8847
      %v8890 = vunpack.c.l.b16 %v8848
      %v8891 = vunpack.c.h.b16 %v8848
      %v8892 = vunpack.c.l.b16 %v8849
      %v8893 = vunpack.c.h.b16 %v8849
      %v8894 = vunpack.c.l.b16 %v8850
      %v8895 = vunpack.c.h.b16 %v8850
      %v8896 = vunpack.c.l.b16 %v8851
      %v8897 = vunpack.c.h.b16 %v8851
      %v8898 = vunpack.c.l.b16 %v8852
      %v8899 = vunpack.c.h.b16 %v8852
      %v8900 = vunpack.c.l.b16 %v8853
      %v8901 = vunpack.c.h.b16 %v8853
      %v8902 = vpack.c.b16 %v8872, %v8870
      %v8903 = vpack.c.b16 %v8873, %v8871
      %v8904 = vpack.c.b16 %v8876, %v8874
      %v8905 = vpack.c.b16 %v8877, %v8875
      %v8906 = vpack.c.b16 %v8880, %v8878
      %v8907 = vpack.c.b16 %v8881, %v8879
      %v8908 = vpack.c.b16 %v8884, %v8882
      %v8909 = vpack.c.b16 %v8885, %v8883
      %v8910 = vpack.c.b16 %v8888, %v8886
      %v8911 = vpack.c.b16 %v8889, %v8887
      %v8912 = vpack.c.b16 %v8892, %v8890
      %v8913 = vpack.c.b16 %v8893, %v8891
      %v8914 = vpack.c.b16 %v8896, %v8894
      %v8915 = vpack.c.b16 %v8897, %v8895
      %v8916 = vpack.c.b16 %v8900, %v8898
      %v8917 = vpack.c.b16 %v8901, %v8899
      %8934 = vmatprep.subr.bf16.mxu0 %v8917
      %8935 = vmatpush1.bf16.msra.mxu0 %v8916
      %8936 = vmatprep.subr.bf16.mxu0 %v8915
      %8937 = vmatpush1.bf16.msra.mxu0 %v8914
      %8938 = vmatprep.subr.bf16.mxu0 %v8913
      %8939 = vmatpush1.bf16.msra.mxu0 %v8912
      %8940 = vmatprep.subr.bf16.mxu0 %v8911
      %8941 = vmatpush1.bf16.msra.mxu0 %v8910
      %8942 = vmatprep.subr.bf16.mxu0 %v8909
      %8943 = vmatpush1.bf16.msra.mxu0 %v8908
      %8944 = vmatprep.subr.bf16.mxu0 %v8907
      %8945 = vmatpush1.bf16.msra.mxu0 %v8906
      %8946 = vmatprep.subr.bf16.mxu0 %v8905
      %8947 = vmatpush1.bf16.msra.mxu0 %v8904
      %8948 = vmatprep.subr.bf16.mxu0 %v8903
      %8949 = vmatpush1.bf16.msra.mxu0 %v8902
      %8950 = vmatprep.subr.bf16.mxu0 0
      %8951 = vmatpush2.bf16.msra.mxu0 0
      %8952 = vmatprep.subr.bf16.mxu0 0
      %8953 = vmatpush2.bf16.msra.mxu0 0
      %8954 = vmatprep.subr.bf16.mxu0 0
      %8955 = vmatpush2.bf16.msra.mxu0 0
      %8956 = vmatprep.subr.bf16.mxu0 0
      %8957 = vmatpush2.bf16.msra.mxu0 0
      %8958 = vmatprep.subr.bf16.mxu0 0
      %8959 = vmatpush2.bf16.msra.mxu0 0
      %8960 = vmatprep.subr.bf16.mxu0 0
      %8961 = vmatpush2.bf16.msra.mxu0 0
      %8962 = vmatprep.subr.bf16.mxu0 0
      %8963 = vmatpush2.bf16.msra.mxu0 0
      %8964 = vmatprep.subr.bf16.mxu0 0
      %8965 = vmatpush2.bf16.msra.mxu0 0
      %8966 = vmatprep.mubr.bf16.mxu0 0
      %8967 = vmatmul.mubr.bf16.gmra.mxu0 %v8836
      %v8968 = vpop.f32.mrf.mxu0
      %v8969 = vadd.f32 0.0, %v8968
      %v8970 = vpop.f32.mrf.mxu0
      %v8971 = vadd.f32 0.0, %v8970
      %v8972 = vpop.f32.mrf.mxu0
      %v8973 = vpop.f32.mrf.mxu0
      %8974 = vdwg.mxu0
      %v8977 = vcombine.low %v8969, %v8971
      %v8979 = vunpack.c.l.s4 1966171168
      %v8980 = vunpack.c.0.s8 %v8979
      %v8981 = vlaneseq
      %v8982 = vshrl.u32 %v8981, 7
      %v8983 = vsub.s32 %v8980, %v8982
      %v8984 = vrot.slane %v8977, %v8983
      %v8986 = vunpack.c.l.s4 1966171168
      %v8987 = vunpack.c.0.s8 %v8986
      %v8988 = vlaneseq
      %v8989 = vshrl.u32 %v8988, 7
      %v8990 = vsub.s32 %v8987, %v8989
      %v8991 = vrot.slane %v8984, %v8990
      %v8993 = vadd.f32 %v8826, %v8991
      %v8994 = vld [vmem:[#allocation10 + $0x22] sm:$0x1]
      %v8995 = vadd.f32 %v8994, 0.0
      %v8996 = vld [vmem:[#allocation10 + $0x23] sm:$0x1]
      %v8997 = vadd.f32 %v8995, %v8996
      %v8998 = vld [vmem:[#allocation10 + $0x2a] sm:$0x1]
      %v8999 = vadd.f32 %v8997, %v8998
      %v9000 = vld [vmem:[#allocation10 + $0x2b] sm:$0x1]
      %v9001 = vadd.f32 %v8999, %v9000
      %v9002 = vmul.f32 %v9001, 0.25
      %v9003 = vpack.c.bf16 %v9002, %v9002
      %s9004 = scalar_lea.vmem %s7, 1152
      %v9005 = vld [vmem:[%s9004] sm:$0xff]
      %v9006 = vld [vmem:[%s9004 + $0x8] sm:$0xff]
      %v9007 = vld [vmem:[%s9004 + $0x10] sm:$0xff]
      %v9008 = vld [vmem:[%s9004 + $0x18] sm:$0xff]
      %v9009 = vld [vmem:[%s9004 + $0x20] sm:$0xff]
      %v9010 = vld [vmem:[%s9004 + $0x28] sm:$0xff]
      %v9011 = vld [vmem:[%s9004 + $0x30] sm:$0xff]
      %v9012 = vld [vmem:[%s9004 + $0x38] sm:$0xff]
      %v9013 = vld [vmem:[%s9004 + $0x40] sm:$0xff]
      %v9014 = vld [vmem:[%s9004 + $0x48] sm:$0xff]
      %v9015 = vld [vmem:[%s9004 + $0x50] sm:$0xff]
      %v9016 = vld [vmem:[%s9004 + $0x58] sm:$0xff]
      %v9017 = vld [vmem:[%s9004 + $0x60] sm:$0xff]
      %v9018 = vld [vmem:[%s9004 + $0x68] sm:$0xff]
      %v9019 = vld [vmem:[%s9004 + $0x70] sm:$0xff]
      %v9020 = vld [vmem:[%s9004 + $0x78] sm:$0xff]
      %v9037 = vunpack.c.l.b16 %v9005
      %v9038 = vunpack.c.h.b16 %v9005
      %v9039 = vunpack.c.l.b16 %v9006
      %v9040 = vunpack.c.h.b16 %v9006
      %v9041 = vunpack.c.l.b16 %v9007
      %v9042 = vunpack.c.h.b16 %v9007
      %v9043 = vunpack.c.l.b16 %v9008
      %v9044 = vunpack.c.h.b16 %v9008
      %v9045 = vunpack.c.l.b16 %v9009
      %v9046 = vunpack.c.h.b16 %v9009
      %v9047 = vunpack.c.l.b16 %v9010
      %v9048 = vunpack.c.h.b16 %v9010
      %v9049 = vunpack.c.l.b16 %v9011
      %v9050 = vunpack.c.h.b16 %v9011
      %v9051 = vunpack.c.l.b16 %v9012
      %v9052 = vunpack.c.h.b16 %v9012
      %v9053 = vunpack.c.l.b16 %v9013
      %v9054 = vunpack.c.h.b16 %v9013
      %v9055 = vunpack.c.l.b16 %v9014
      %v9056 = vunpack.c.h.b16 %v9014
      %v9057 = vunpack.c.l.b16 %v9015
      %v9058 = vunpack.c.h.b16 %v9015
      %v9059 = vunpack.c.l.b16 %v9016
      %v9060 = vunpack.c.h.b16 %v9016
      %v9061 = vunpack.c.l.b16 %v9017
      %v9062 = vunpack.c.h.b16 %v9017
      %v9063 = vunpack.c.l.b16 %v9018
      %v9064 = vunpack.c.h.b16 %v9018
      %v9065 = vunpack.c.l.b16 %v9019
      %v9066 = vunpack.c.h.b16 %v9019
      %v9067 = vunpack.c.l.b16 %v9020
      %v9068 = vunpack.c.h.b16 %v9020
      %v9069 = vpack.c.b16 %v9039, %v9037
      %v9070 = vpack.c.b16 %v9040, %v9038
      %v9071 = vpack.c.b16 %v9043, %v9041
      %v9072 = vpack.c.b16 %v9044, %v9042
      %v9073 = vpack.c.b16 %v9047, %v9045
      %v9074 = vpack.c.b16 %v9048, %v9046
      %v9075 = vpack.c.b16 %v9051, %v9049
      %v9076 = vpack.c.b16 %v9052, %v9050
      %v9077 = vpack.c.b16 %v9055, %v9053
      %v9078 = vpack.c.b16 %v9056, %v9054
      %v9079 = vpack.c.b16 %v9059, %v9057
      %v9080 = vpack.c.b16 %v9060, %v9058
      %v9081 = vpack.c.b16 %v9063, %v9061
      %v9082 = vpack.c.b16 %v9064, %v9062
      %v9083 = vpack.c.b16 %v9067, %v9065
      %v9084 = vpack.c.b16 %v9068, %v9066
      %9101 = vmatprep.subr.bf16.mxu0 %v9084
      %9102 = vmatpush1.bf16.msra.mxu0 %v9083
      %9103 = vmatprep.subr.bf16.mxu0 %v9082
      %9104 = vmatpush1.bf16.msra.mxu0 %v9081
      %9105 = vmatprep.subr.bf16.mxu0 %v9080
      %9106 = vmatpush1.bf16.msra.mxu0 %v9079
      %9107 = vmatprep.subr.bf16.mxu0 %v9078
      %9108 = vmatpush1.bf16.msra.mxu0 %v9077
      %9109 = vmatprep.subr.bf16.mxu0 %v9076
      %9110 = vmatpush1.bf16.msra.mxu0 %v9075
      %9111 = vmatprep.subr.bf16.mxu0 %v9074
      %9112 = vmatpush1.bf16.msra.mxu0 %v9073
      %9113 = vmatprep.subr.bf16.mxu0 %v9072
      %9114 = vmatpush1.bf16.msra.mxu0 %v9071
      %9115 = vmatprep.subr.bf16.mxu0 %v9070
      %9116 = vmatpush1.bf16.msra.mxu0 %v9069
      %9117 = vmatprep.subr.bf16.mxu0 0
      %9118 = vmatpush2.bf16.msra.mxu0 0
      %9119 = vmatprep.subr.bf16.mxu0 0
      %9120 = vmatpush2.bf16.msra.mxu0 0
      %9121 = vmatprep.subr.bf16.mxu0 0
      %9122 = vmatpush2.bf16.msra.mxu0 0
      %9123 = vmatprep.subr.bf16.mxu0 0
      %9124 = vmatpush2.bf16.msra.mxu0 0
      %9125 = vmatprep.subr.bf16.mxu0 0
      %9126 = vmatpush2.bf16.msra.mxu0 0
      %9127 = vmatprep.subr.bf16.mxu0 0
      %9128 = vmatpush2.bf16.msra.mxu0 0
      %9129 = vmatprep.subr.bf16.mxu0 0
      %9130 = vmatpush2.bf16.msra.mxu0 0
      %9131 = vmatprep.subr.bf16.mxu0 0
      %9132 = vmatpush2.bf16.msra.mxu0 0
      %9133 = vmatprep.mubr.bf16.mxu0 0
      %9134 = vmatmul.mubr.bf16.gmra.mxu0 %v9003
      %v9135 = vpop.f32.mrf.mxu0
      %v9136 = vadd.f32 0.0, %v9135
      %v9137 = vpop.f32.mrf.mxu0
      %v9138 = vadd.f32 0.0, %v9137
      %v9139 = vpop.f32.mrf.mxu0
      %v9140 = vpop.f32.mrf.mxu0
      %9141 = vdwg.mxu0
      %v9144 = vcombine.low %v9136, %v9138
      %v9146 = vunpack.c.l.s4 1966171168
      %v9147 = vunpack.c.0.s8 %v9146
      %v9148 = vlaneseq
      %v9149 = vshrl.u32 %v9148, 7
      %v9150 = vsub.s32 %v9147, %v9149
      %v9151 = vrot.slane %v9144, %v9150
      %v9153 = vunpack.c.l.s4 1966171168
      %v9154 = vunpack.c.0.s8 %v9153
      %v9155 = vlaneseq
      %v9156 = vshrl.u32 %v9155, 7
      %v9157 = vsub.s32 %v9154, %v9156
      %v9158 = vrot.slane %v9151, %v9157
      %v9160 = vadd.f32 %v8993, %v9158
      %v9161 = vld [vmem:[#allocation10 + $0x24] sm:$0x1]
      %v9162 = vadd.f32 %v9161, 0.0
      %v9163 = vld [vmem:[#allocation10 + $0x25] sm:$0x1]
      %v9164 = vadd.f32 %v9162, %v9163
      %v9165 = vld [vmem:[#allocation10 + $0x2c] sm:$0x1]
      %v9166 = vadd.f32 %v9164, %v9165
      %v9167 = vld [vmem:[#allocation10 + $0x2d] sm:$0x1]
      %v9168 = vadd.f32 %v9166, %v9167
      %v9169 = vmul.f32 %v9168, 0.25
      %v9170 = vpack.c.bf16 %v9169, %v9169
      %s9171 = scalar_lea.vmem %s7, 1280
      %v9172 = vld [vmem:[%s9171] sm:$0xff]
      %v9173 = vld [vmem:[%s9171 + $0x8] sm:$0xff]
      %v9174 = vld [vmem:[%s9171 + $0x10] sm:$0xff]
      %v9175 = vld [vmem:[%s9171 + $0x18] sm:$0xff]
      %v9176 = vld [vmem:[%s9171 + $0x20] sm:$0xff]
      %v9177 = vld [vmem:[%s9171 + $0x28] sm:$0xff]
      %v9178 = vld [vmem:[%s9171 + $0x30] sm:$0xff]
      %v9179 = vld [vmem:[%s9171 + $0x38] sm:$0xff]
      %v9180 = vld [vmem:[%s9171 + $0x40] sm:$0xff]
      %v9181 = vld [vmem:[%s9171 + $0x48] sm:$0xff]
      %v9182 = vld [vmem:[%s9171 + $0x50] sm:$0xff]
      %v9183 = vld [vmem:[%s9171 + $0x58] sm:$0xff]
      %v9184 = vld [vmem:[%s9171 + $0x60] sm:$0xff]
      %v9185 = vld [vmem:[%s9171 + $0x68] sm:$0xff]
      %v9186 = vld [vmem:[%s9171 + $0x70] sm:$0xff]
      %v9187 = vld [vmem:[%s9171 + $0x78] sm:$0xff]
      %v9204 = vunpack.c.l.b16 %v9172
      %v9205 = vunpack.c.h.b16 %v9172
      %v9206 = vunpack.c.l.b16 %v9173
      %v9207 = vunpack.c.h.b16 %v9173
      %v9208 = vunpack.c.l.b16 %v9174
      %v9209 = vunpack.c.h.b16 %v9174
      %v9210 = vunpack.c.l.b16 %v9175
      %v9211 = vunpack.c.h.b16 %v9175
      %v9212 = vunpack.c.l.b16 %v9176
      %v9213 = vunpack.c.h.b16 %v9176
      %v9214 = vunpack.c.l.b16 %v9177
      %v9215 = vunpack.c.h.b16 %v9177
      %v9216 = vunpack.c.l.b16 %v9178
      %v9217 = vunpack.c.h.b16 %v9178
      %v9218 = vunpack.c.l.b16 %v9179
      %v9219 = vunpack.c.h.b16 %v9179
      %v9220 = vunpack.c.l.b16 %v9180
      %v9221 = vunpack.c.h.b16 %v9180
      %v9222 = vunpack.c.l.b16 %v9181
      %v9223 = vunpack.c.h.b16 %v9181
      %v9224 = vunpack.c.l.b16 %v9182
      %v9225 = vunpack.c.h.b16 %v9182
      %v9226 = vunpack.c.l.b16 %v9183
      %v9227 = vunpack.c.h.b16 %v9183
      %v9228 = vunpack.c.l.b16 %v9184
      %v9229 = vunpack.c.h.b16 %v9184
      %v9230 = vunpack.c.l.b16 %v9185
      %v9231 = vunpack.c.h.b16 %v9185
      %v9232 = vunpack.c.l.b16 %v9186
      %v9233 = vunpack.c.h.b16 %v9186
      %v9234 = vunpack.c.l.b16 %v9187
      %v9235 = vunpack.c.h.b16 %v9187
      %v9236 = vpack.c.b16 %v9206, %v9204
      %v9237 = vpack.c.b16 %v9207, %v9205
      %v9238 = vpack.c.b16 %v9210, %v9208
      %v9239 = vpack.c.b16 %v9211, %v9209
      %v9240 = vpack.c.b16 %v9214, %v9212
      %v9241 = vpack.c.b16 %v9215, %v9213
      %v9242 = vpack.c.b16 %v9218, %v9216
      %v9243 = vpack.c.b16 %v9219, %v9217
      %v9244 = vpack.c.b16 %v9222, %v9220
      %v9245 = vpack.c.b16 %v9223, %v9221
      %v9246 = vpack.c.b16 %v9226, %v9224
      %v9247 = vpack.c.b16 %v9227, %v9225
      %v9248 = vpack.c.b16 %v9230, %v9228
      %v9249 = vpack.c.b16 %v9231, %v9229
      %v9250 = vpack.c.b16 %v9234, %v9232
      %v9251 = vpack.c.b16 %v9235, %v9233
      %9268 = vmatprep.subr.bf16.mxu0 %v9251
      %9269 = vmatpush1.bf16.msra.mxu0 %v9250
      %9270 = vmatprep.subr.bf16.mxu0 %v9249
      %9271 = vmatpush1.bf16.msra.mxu0 %v9248
      %9272 = vmatprep.subr.bf16.mxu0 %v9247
      %9273 = vmatpush1.bf16.msra.mxu0 %v9246
      %9274 = vmatprep.subr.bf16.mxu0 %v9245
      %9275 = vmatpush1.bf16.msra.mxu0 %v9244
      %9276 = vmatprep.subr.bf16.mxu0 %v9243
      %9277 = vmatpush1.bf16.msra.mxu0 %v9242
      %9278 = vmatprep.subr.bf16.mxu0 %v9241
      %9279 = vmatpush1.bf16.msra.mxu0 %v9240
      %9280 = vmatprep.subr.bf16.mxu0 %v9239
      %9281 = vmatpush1.bf16.msra.mxu0 %v9238
      %9282 = vmatprep.subr.bf16.mxu0 %v9237
      %9283 = vmatpush1.bf16.msra.mxu0 %v9236
      %9284 = vmatprep.subr.bf16.mxu0 0
      %9285 = vmatpush2.bf16.msra.mxu0 0
      %9286 = vmatprep.subr.bf16.mxu0 0
      %9287 = vmatpush2.bf16.msra.mxu0 0
      %9288 = vmatprep.subr.bf16.mxu0 0
      %9289 = vmatpush2.bf16.msra.mxu0 0
      %9290 = vmatprep.subr.bf16.mxu0 0
      %9291 = vmatpush2.bf16.msra.mxu0 0
      %9292 = vmatprep.subr.bf16.mxu0 0
      %9293 = vmatpush2.bf16.msra.mxu0 0
      %9294 = vmatprep.subr.bf16.mxu0 0
      %9295 = vmatpush2.bf16.msra.mxu0 0
      %9296 = vmatprep.subr.bf16.mxu0 0
      %9297 = vmatpush2.bf16.msra.mxu0 0
      %9298 = vmatprep.subr.bf16.mxu0 0
      %9299 = vmatpush2.bf16.msra.mxu0 0
      %9300 = vmatprep.mubr.bf16.mxu0 0
      %9301 = vmatmul.mubr.bf16.gmra.mxu0 %v9170
      %v9302 = vpop.f32.mrf.mxu0
      %v9303 = vadd.f32 0.0, %v9302
      %v9304 = vpop.f32.mrf.mxu0
      %v9305 = vadd.f32 0.0, %v9304
      %v9306 = vpop.f32.mrf.mxu0
      %v9307 = vpop.f32.mrf.mxu0
      %9308 = vdwg.mxu0
      %v9311 = vcombine.low %v9303, %v9305
      %v9313 = vunpack.c.l.s4 1966171168
      %v9314 = vunpack.c.0.s8 %v9313
      %v9315 = vlaneseq
      %v9316 = vshrl.u32 %v9315, 7
      %v9317 = vsub.s32 %v9314, %v9316
      %v9318 = vrot.slane %v9311, %v9317
      %v9320 = vunpack.c.l.s4 1966171168
      %v9321 = vunpack.c.0.s8 %v9320
      %v9322 = vlaneseq
      %v9323 = vshrl.u32 %v9322, 7
      %v9324 = vsub.s32 %v9321, %v9323
      %v9325 = vrot.slane %v9318, %v9324
      %v9327 = vadd.f32 %v9160, %v9325
      %v9328 = vld [vmem:[#allocation10 + $0x26] sm:$0x1]
      %v9329 = vadd.f32 %v9328, 0.0
      %v9330 = vld [vmem:[#allocation10 + $0x27] sm:$0x1]
      %v9331 = vadd.f32 %v9329, %v9330
      %v9332 = vld [vmem:[#allocation10 + $0x2e] sm:$0x1]
      %v9333 = vadd.f32 %v9331, %v9332
      %v9334 = vld [vmem:[#allocation10 + $0x2f] sm:$0x1]
      %v9335 = vadd.f32 %v9333, %v9334
      %v9336 = vmul.f32 %v9335, 0.25
      %v9337 = vpack.c.bf16 %v9336, %v9336
      %s9338 = scalar_lea.vmem %s7, 1408
      %v9339 = vld [vmem:[%s9338] sm:$0xff]
      %v9340 = vld [vmem:[%s9338 + $0x8] sm:$0xff]
      %v9341 = vld [vmem:[%s9338 + $0x10] sm:$0xff]
      %v9342 = vld [vmem:[%s9338 + $0x18] sm:$0xff]
      %v9343 = vld [vmem:[%s9338 + $0x20] sm:$0xff]
      %v9344 = vld [vmem:[%s9338 + $0x28] sm:$0xff]
      %v9345 = vld [vmem:[%s9338 + $0x30] sm:$0xff]
      %v9346 = vld [vmem:[%s9338 + $0x38] sm:$0xff]
      %v9347 = vld [vmem:[%s9338 + $0x40] sm:$0xff]
      %v9348 = vld [vmem:[%s9338 + $0x48] sm:$0xff]
      %v9349 = vld [vmem:[%s9338 + $0x50] sm:$0xff]
      %v9350 = vld [vmem:[%s9338 + $0x58] sm:$0xff]
      %v9351 = vld [vmem:[%s9338 + $0x60] sm:$0xff]
      %v9352 = vld [vmem:[%s9338 + $0x68] sm:$0xff]
      %v9353 = vld [vmem:[%s9338 + $0x70] sm:$0xff]
      %v9354 = vld [vmem:[%s9338 + $0x78] sm:$0xff]
      %v9371 = vunpack.c.l.b16 %v9339
      %v9372 = vunpack.c.h.b16 %v9339
      %v9373 = vunpack.c.l.b16 %v9340
      %v9374 = vunpack.c.h.b16 %v9340
      %v9375 = vunpack.c.l.b16 %v9341
      %v9376 = vunpack.c.h.b16 %v9341
      %v9377 = vunpack.c.l.b16 %v9342
      %v9378 = vunpack.c.h.b16 %v9342
      %v9379 = vunpack.c.l.b16 %v9343
      %v9380 = vunpack.c.h.b16 %v9343
      %v9381 = vunpack.c.l.b16 %v9344
      %v9382 = vunpack.c.h.b16 %v9344
      %v9383 = vunpack.c.l.b16 %v9345
      %v9384 = vunpack.c.h.b16 %v9345
      %v9385 = vunpack.c.l.b16 %v9346
      %v9386 = vunpack.c.h.b16 %v9346
      %v9387 = vunpack.c.l.b16 %v9347
      %v9388 = vunpack.c.h.b16 %v9347
      %v9389 = vunpack.c.l.b16 %v9348
      %v9390 = vunpack.c.h.b16 %v9348
      %v9391 = vunpack.c.l.b16 %v9349
      %v9392 = vunpack.c.h.b16 %v9349
      %v9393 = vunpack.c.l.b16 %v9350
      %v9394 = vunpack.c.h.b16 %v9350
      %v9395 = vunpack.c.l.b16 %v9351
      %v9396 = vunpack.c.h.b16 %v9351
      %v9397 = vunpack.c.l.b16 %v9352
      %v9398 = vunpack.c.h.b16 %v9352
      %v9399 = vunpack.c.l.b16 %v9353
      %v9400 = vunpack.c.h.b16 %v9353
      %v9401 = vunpack.c.l.b16 %v9354
      %v9402 = vunpack.c.h.b16 %v9354
      %v9403 = vpack.c.b16 %v9373, %v9371
      %v9404 = vpack.c.b16 %v9374, %v9372
      %v9405 = vpack.c.b16 %v9377, %v9375
      %v9406 = vpack.c.b16 %v9378, %v9376
      %v9407 = vpack.c.b16 %v9381, %v9379
      %v9408 = vpack.c.b16 %v9382, %v9380
      %v9409 = vpack.c.b16 %v9385, %v9383
      %v9410 = vpack.c.b16 %v9386, %v9384
      %v9411 = vpack.c.b16 %v9389, %v9387
      %v9412 = vpack.c.b16 %v9390, %v9388
      %v9413 = vpack.c.b16 %v9393, %v9391
      %v9414 = vpack.c.b16 %v9394, %v9392
      %v9415 = vpack.c.b16 %v9397, %v9395
      %v9416 = vpack.c.b16 %v9398, %v9396
      %v9417 = vpack.c.b16 %v9401, %v9399
      %v9418 = vpack.c.b16 %v9402, %v9400
      %9435 = vmatprep.subr.bf16.mxu0 %v9418
      %9436 = vmatpush1.bf16.msra.mxu0 %v9417
      %9437 = vmatprep.subr.bf16.mxu0 %v9416
      %9438 = vmatpush1.bf16.msra.mxu0 %v9415
      %9439 = vmatprep.subr.bf16.mxu0 %v9414
      %9440 = vmatpush1.bf16.msra.mxu0 %v9413
      %9441 = vmatprep.subr.bf16.mxu0 %v9412
      %9442 = vmatpush1.bf16.msra.mxu0 %v9411
      %9443 = vmatprep.subr.bf16.mxu0 %v9410
      %9444 = vmatpush1.bf16.msra.mxu0 %v9409
      %9445 = vmatprep.subr.bf16.mxu0 %v9408
      %9446 = vmatpush1.bf16.msra.mxu0 %v9407
      %9447 = vmatprep.subr.bf16.mxu0 %v9406
      %9448 = vmatpush1.bf16.msra.mxu0 %v9405
      %9449 = vmatprep.subr.bf16.mxu0 %v9404
      %9450 = vmatpush1.bf16.msra.mxu0 %v9403
      %9451 = vmatprep.subr.bf16.mxu0 0
      %9452 = vmatpush2.bf16.msra.mxu0 0
      %9453 = vmatprep.subr.bf16.mxu0 0
      %9454 = vmatpush2.bf16.msra.mxu0 0
      %9455 = vmatprep.subr.bf16.mxu0 0
      %9456 = vmatpush2.bf16.msra.mxu0 0
      %9457 = vmatprep.subr.bf16.mxu0 0
      %9458 = vmatpush2.bf16.msra.mxu0 0
      %9459 = vmatprep.subr.bf16.mxu0 0
      %9460 = vmatpush2.bf16.msra.mxu0 0
      %9461 = vmatprep.subr.bf16.mxu0 0
      %9462 = vmatpush2.bf16.msra.mxu0 0
      %9463 = vmatprep.subr.bf16.mxu0 0
      %9464 = vmatpush2.bf16.msra.mxu0 0
      %9465 = vmatprep.subr.bf16.mxu0 0
      %9466 = vmatpush2.bf16.msra.mxu0 0
      %9467 = vmatprep.mubr.bf16.mxu0 0
      %9468 = vmatmul.mubr.bf16.gmra.mxu0 %v9337
      %v9469 = vpop.f32.mrf.mxu0
      %v9470 = vadd.f32 0.0, %v9469
      %v9471 = vpop.f32.mrf.mxu0
      %v9472 = vadd.f32 0.0, %v9471
      %v9473 = vpop.f32.mrf.mxu0
      %v9474 = vpop.f32.mrf.mxu0
      %9475 = vdwg.mxu0
      %v9478 = vcombine.low %v9470, %v9472
      %v9480 = vunpack.c.l.s4 1966171168
      %v9481 = vunpack.c.0.s8 %v9480
      %v9482 = vlaneseq
      %v9483 = vshrl.u32 %v9482, 7
      %v9484 = vsub.s32 %v9481, %v9483
      %v9485 = vrot.slane %v9478, %v9484
      %v9487 = vunpack.c.l.s4 1966171168
      %v9488 = vunpack.c.0.s8 %v9487
      %v9489 = vlaneseq
      %v9490 = vshrl.u32 %v9489, 7
      %v9491 = vsub.s32 %v9488, %v9490
      %v9492 = vrot.slane %v9485, %v9491
      %v9494 = vadd.f32 %v9327, %v9492
      %v9495 = vld [vmem:[#allocation10 + $0x30] sm:$0x1]
      %v9496 = vadd.f32 %v9495, 0.0
      %v9497 = vld [vmem:[#allocation10 + $0x31] sm:$0x1]
      %v9498 = vadd.f32 %v9496, %v9497
      %v9499 = vld [vmem:[#allocation10 + $0x38] sm:$0x1]
      %v9500 = vadd.f32 %v9498, %v9499
      %v9501 = vld [vmem:[#allocation10 + $0x39] sm:$0x1]
      %v9502 = vadd.f32 %v9500, %v9501
      %v9503 = vmul.f32 %v9502, 0.25
      %v9504 = vpack.c.bf16 %v9503, %v9503
      %s9505 = scalar_lea.vmem %s7, 1536
      %v9506 = vld [vmem:[%s9505] sm:$0xff]
      %v9507 = vld [vmem:[%s9505 + $0x8] sm:$0xff]
      %v9508 = vld [vmem:[%s9505 + $0x10] sm:$0xff]
      %v9509 = vld [vmem:[%s9505 + $0x18] sm:$0xff]
      %v9510 = vld [vmem:[%s9505 + $0x20] sm:$0xff]
      %v9511 = vld [vmem:[%s9505 + $0x28] sm:$0xff]
      %v9512 = vld [vmem:[%s9505 + $0x30] sm:$0xff]
      %v9513 = vld [vmem:[%s9505 + $0x38] sm:$0xff]
      %v9514 = vld [vmem:[%s9505 + $0x40] sm:$0xff]
      %v9515 = vld [vmem:[%s9505 + $0x48] sm:$0xff]
      %v9516 = vld [vmem:[%s9505 + $0x50] sm:$0xff]
      %v9517 = vld [vmem:[%s9505 + $0x58] sm:$0xff]
      %v9518 = vld [vmem:[%s9505 + $0x60] sm:$0xff]
      %v9519 = vld [vmem:[%s9505 + $0x68] sm:$0xff]
      %v9520 = vld [vmem:[%s9505 + $0x70] sm:$0xff]
      %v9521 = vld [vmem:[%s9505 + $0x78] sm:$0xff]
      %v9538 = vunpack.c.l.b16 %v9506
      %v9539 = vunpack.c.h.b16 %v9506
      %v9540 = vunpack.c.l.b16 %v9507
      %v9541 = vunpack.c.h.b16 %v9507
      %v9542 = vunpack.c.l.b16 %v9508
      %v9543 = vunpack.c.h.b16 %v9508
      %v9544 = vunpack.c.l.b16 %v9509
      %v9545 = vunpack.c.h.b16 %v9509
      %v9546 = vunpack.c.l.b16 %v9510
      %v9547 = vunpack.c.h.b16 %v9510
      %v9548 = vunpack.c.l.b16 %v9511
      %v9549 = vunpack.c.h.b16 %v9511
      %v9550 = vunpack.c.l.b16 %v9512
      %v9551 = vunpack.c.h.b16 %v9512
      %v9552 = vunpack.c.l.b16 %v9513
      %v9553 = vunpack.c.h.b16 %v9513
      %v9554 = vunpack.c.l.b16 %v9514
      %v9555 = vunpack.c.h.b16 %v9514
      %v9556 = vunpack.c.l.b16 %v9515
      %v9557 = vunpack.c.h.b16 %v9515
      %v9558 = vunpack.c.l.b16 %v9516
      %v9559 = vunpack.c.h.b16 %v9516
      %v9560 = vunpack.c.l.b16 %v9517
      %v9561 = vunpack.c.h.b16 %v9517
      %v9562 = vunpack.c.l.b16 %v9518
      %v9563 = vunpack.c.h.b16 %v9518
      %v9564 = vunpack.c.l.b16 %v9519
      %v9565 = vunpack.c.h.b16 %v9519
      %v9566 = vunpack.c.l.b16 %v9520
      %v9567 = vunpack.c.h.b16 %v9520
      %v9568 = vunpack.c.l.b16 %v9521
      %v9569 = vunpack.c.h.b16 %v9521
      %v9570 = vpack.c.b16 %v9540, %v9538
      %v9571 = vpack.c.b16 %v9541, %v9539
      %v9572 = vpack.c.b16 %v9544, %v9542
      %v9573 = vpack.c.b16 %v9545, %v9543
      %v9574 = vpack.c.b16 %v9548, %v9546
      %v9575 = vpack.c.b16 %v9549, %v9547
      %v9576 = vpack.c.b16 %v9552, %v9550
      %v9577 = vpack.c.b16 %v9553, %v9551
      %v9578 = vpack.c.b16 %v9556, %v9554
      %v9579 = vpack.c.b16 %v9557, %v9555
      %v9580 = vpack.c.b16 %v9560, %v9558
      %v9581 = vpack.c.b16 %v9561, %v9559
      %v9582 = vpack.c.b16 %v9564, %v9562
      %v9583 = vpack.c.b16 %v9565, %v9563
      %v9584 = vpack.c.b16 %v9568, %v9566
      %v9585 = vpack.c.b16 %v9569, %v9567
      %9602 = vmatprep.subr.bf16.mxu0 %v9585
      %9603 = vmatpush1.bf16.msra.mxu0 %v9584
      %9604 = vmatprep.subr.bf16.mxu0 %v9583
      %9605 = vmatpush1.bf16.msra.mxu0 %v9582
      %9606 = vmatprep.subr.bf16.mxu0 %v9581
      %9607 = vmatpush1.bf16.msra.mxu0 %v9580
      %9608 = vmatprep.subr.bf16.mxu0 %v9579
      %9609 = vmatpush1.bf16.msra.mxu0 %v9578
      %9610 = vmatprep.subr.bf16.mxu0 %v9577
      %9611 = vmatpush1.bf16.msra.mxu0 %v9576
      %9612 = vmatprep.subr.bf16.mxu0 %v9575
      %9613 = vmatpush1.bf16.msra.mxu0 %v9574
      %9614 = vmatprep.subr.bf16.mxu0 %v9573
      %9615 = vmatpush1.bf16.msra.mxu0 %v9572
      %9616 = vmatprep.subr.bf16.mxu0 %v9571
      %9617 = vmatpush1.bf16.msra.mxu0 %v9570
      %9618 = vmatprep.subr.bf16.mxu0 0
      %9619 = vmatpush2.bf16.msra.mxu0 0
      %9620 = vmatprep.subr.bf16.mxu0 0
      %9621 = vmatpush2.bf16.msra.mxu0 0
      %9622 = vmatprep.subr.bf16.mxu0 0
      %9623 = vmatpush2.bf16.msra.mxu0 0
      %9624 = vmatprep.subr.bf16.mxu0 0
      %9625 = vmatpush2.bf16.msra.mxu0 0
      %9626 = vmatprep.subr.bf16.mxu0 0
      %9627 = vmatpush2.bf16.msra.mxu0 0
      %9628 = vmatprep.subr.bf16.mxu0 0
      %9629 = vmatpush2.bf16.msra.mxu0 0
      %9630 = vmatprep.subr.bf16.mxu0 0
      %9631 = vmatpush2.bf16.msra.mxu0 0
      %9632 = vmatprep.subr.bf16.mxu0 0
      %9633 = vmatpush2.bf16.msra.mxu0 0
      %9634 = vmatprep.mubr.bf16.mxu0 0
      %9635 = vmatmul.mubr.bf16.gmra.mxu0 %v9504
      %v9636 = vpop.f32.mrf.mxu0
      %v9637 = vadd.f32 0.0, %v9636
      %v9638 = vpop.f32.mrf.mxu0
      %v9639 = vadd.f32 0.0, %v9638
      %v9640 = vpop.f32.mrf.mxu0
      %v9641 = vpop.f32.mrf.mxu0
      %9642 = vdwg.mxu0
      %v9645 = vcombine.low %v9637, %v9639
      %v9647 = vunpack.c.l.s4 1966171168
      %v9648 = vunpack.c.0.s8 %v9647
      %v9649 = vlaneseq
      %v9650 = vshrl.u32 %v9649, 7
      %v9651 = vsub.s32 %v9648, %v9650
      %v9652 = vrot.slane %v9645, %v9651
      %v9654 = vunpack.c.l.s4 1966171168
      %v9655 = vunpack.c.0.s8 %v9654
      %v9656 = vlaneseq
      %v9657 = vshrl.u32 %v9656, 7
      %v9658 = vsub.s32 %v9655, %v9657
      %v9659 = vrot.slane %v9652, %v9658
      %v9661 = vadd.f32 %v9494, %v9659
      %v9662 = vld [vmem:[#allocation10 + $0x32] sm:$0x1]
      %v9663 = vadd.f32 %v9662, 0.0
      %v9664 = vld [vmem:[#allocation10 + $0x33] sm:$0x1]
      %v9665 = vadd.f32 %v9663, %v9664
      %v9666 = vld [vmem:[#allocation10 + $0x3a] sm:$0x1]
      %v9667 = vadd.f32 %v9665, %v9666
      %v9668 = vld [vmem:[#allocation10 + $0x3b] sm:$0x1]
      %v9669 = vadd.f32 %v9667, %v9668
      %v9670 = vmul.f32 %v9669, 0.25
      %v9671 = vpack.c.bf16 %v9670, %v9670
      %s9672 = scalar_lea.vmem %s7, 1664
      %v9673 = vld [vmem:[%s9672] sm:$0xff]
      %v9674 = vld [vmem:[%s9672 + $0x8] sm:$0xff]
      %v9675 = vld [vmem:[%s9672 + $0x10] sm:$0xff]
      %v9676 = vld [vmem:[%s9672 + $0x18] sm:$0xff]
      %v9677 = vld [vmem:[%s9672 + $0x20] sm:$0xff]
      %v9678 = vld [vmem:[%s9672 + $0x28] sm:$0xff]
      %v9679 = vld [vmem:[%s9672 + $0x30] sm:$0xff]
      %v9680 = vld [vmem:[%s9672 + $0x38] sm:$0xff]
      %v9681 = vld [vmem:[%s9672 + $0x40] sm:$0xff]
      %v9682 = vld [vmem:[%s9672 + $0x48] sm:$0xff]
      %v9683 = vld [vmem:[%s9672 + $0x50] sm:$0xff]
      %v9684 = vld [vmem:[%s9672 + $0x58] sm:$0xff]
      %v9685 = vld [vmem:[%s9672 + $0x60] sm:$0xff]
      %v9686 = vld [vmem:[%s9672 + $0x68] sm:$0xff]
      %v9687 = vld [vmem:[%s9672 + $0x70] sm:$0xff]
      %v9688 = vld [vmem:[%s9672 + $0x78] sm:$0xff]
      %v9705 = vunpack.c.l.b16 %v9673
      %v9706 = vunpack.c.h.b16 %v9673
      %v9707 = vunpack.c.l.b16 %v9674
      %v9708 = vunpack.c.h.b16 %v9674
      %v9709 = vunpack.c.l.b16 %v9675
      %v9710 = vunpack.c.h.b16 %v9675
      %v9711 = vunpack.c.l.b16 %v9676
      %v9712 = vunpack.c.h.b16 %v9676
      %v9713 = vunpack.c.l.b16 %v9677
      %v9714 = vunpack.c.h.b16 %v9677
      %v9715 = vunpack.c.l.b16 %v9678
      %v9716 = vunpack.c.h.b16 %v9678
      %v9717 = vunpack.c.l.b16 %v9679
      %v9718 = vunpack.c.h.b16 %v9679
      %v9719 = vunpack.c.l.b16 %v9680
      %v9720 = vunpack.c.h.b16 %v9680
      %v9721 = vunpack.c.l.b16 %v9681
      %v9722 = vunpack.c.h.b16 %v9681
      %v9723 = vunpack.c.l.b16 %v9682
      %v9724 = vunpack.c.h.b16 %v9682
      %v9725 = vunpack.c.l.b16 %v9683
      %v9726 = vunpack.c.h.b16 %v9683
      %v9727 = vunpack.c.l.b16 %v9684
      %v9728 = vunpack.c.h.b16 %v9684
      %v9729 = vunpack.c.l.b16 %v9685
      %v9730 = vunpack.c.h.b16 %v9685
      %v9731 = vunpack.c.l.b16 %v9686
      %v9732 = vunpack.c.h.b16 %v9686
      %v9733 = vunpack.c.l.b16 %v9687
      %v9734 = vunpack.c.h.b16 %v9687
      %v9735 = vunpack.c.l.b16 %v9688
      %v9736 = vunpack.c.h.b16 %v9688
      %v9737 = vpack.c.b16 %v9707, %v9705
      %v9738 = vpack.c.b16 %v9708, %v9706
      %v9739 = vpack.c.b16 %v9711, %v9709
      %v9740 = vpack.c.b16 %v9712, %v9710
      %v9741 = vpack.c.b16 %v9715, %v9713
      %v9742 = vpack.c.b16 %v9716, %v9714
      %v9743 = vpack.c.b16 %v9719, %v9717
      %v9744 = vpack.c.b16 %v9720, %v9718
      %v9745 = vpack.c.b16 %v9723, %v9721
      %v9746 = vpack.c.b16 %v9724, %v9722
      %v9747 = vpack.c.b16 %v9727, %v9725
      %v9748 = vpack.c.b16 %v9728, %v9726
      %v9749 = vpack.c.b16 %v9731, %v9729
      %v9750 = vpack.c.b16 %v9732, %v9730
      %v9751 = vpack.c.b16 %v9735, %v9733
      %v9752 = vpack.c.b16 %v9736, %v9734
      %9769 = vmatprep.subr.bf16.mxu0 %v9752
      %9770 = vmatpush1.bf16.msra.mxu0 %v9751
      %9771 = vmatprep.subr.bf16.mxu0 %v9750
      %9772 = vmatpush1.bf16.msra.mxu0 %v9749
      %9773 = vmatprep.subr.bf16.mxu0 %v9748
      %9774 = vmatpush1.bf16.msra.mxu0 %v9747
      %9775 = vmatprep.subr.bf16.mxu0 %v9746
      %9776 = vmatpush1.bf16.msra.mxu0 %v9745
      %9777 = vmatprep.subr.bf16.mxu0 %v9744
      %9778 = vmatpush1.bf16.msra.mxu0 %v9743
      %9779 = vmatprep.subr.bf16.mxu0 %v9742
      %9780 = vmatpush1.bf16.msra.mxu0 %v9741
      %9781 = vmatprep.subr.bf16.mxu0 %v9740
      %9782 = vmatpush1.bf16.msra.mxu0 %v9739
      %9783 = vmatprep.subr.bf16.mxu0 %v9738
      %9784 = vmatpush1.bf16.msra.mxu0 %v9737
      %9785 = vmatprep.subr.bf16.mxu0 0
      %9786 = vmatpush2.bf16.msra.mxu0 0
      %9787 = vmatprep.subr.bf16.mxu0 0
      %9788 = vmatpush2.bf16.msra.mxu0 0
      %9789 = vmatprep.subr.bf16.mxu0 0
      %9790 = vmatpush2.bf16.msra.mxu0 0
      %9791 = vmatprep.subr.bf16.mxu0 0
      %9792 = vmatpush2.bf16.msra.mxu0 0
      %9793 = vmatprep.subr.bf16.mxu0 0
      %9794 = vmatpush2.bf16.msra.mxu0 0
      %9795 = vmatprep.subr.bf16.mxu0 0
      %9796 = vmatpush2.bf16.msra.mxu0 0
      %9797 = vmatprep.subr.bf16.mxu0 0
      %9798 = vmatpush2.bf16.msra.mxu0 0
      %9799 = vmatprep.subr.bf16.mxu0 0
      %9800 = vmatpush2.bf16.msra.mxu0 0
      %9801 = vmatprep.mubr.bf16.mxu0 0
      %9802 = vmatmul.mubr.bf16.gmra.mxu0 %v9671
      %v9803 = vpop.f32.mrf.mxu0
      %v9804 = vadd.f32 0.0, %v9803
      %v9805 = vpop.f32.mrf.mxu0
      %v9806 = vadd.f32 0.0, %v9805
      %v9807 = vpop.f32.mrf.mxu0
      %v9808 = vpop.f32.mrf.mxu0
      %9809 = vdwg.mxu0
      %v9812 = vcombine.low %v9804, %v9806
      %v9814 = vunpack.c.l.s4 1966171168
      %v9815 = vunpack.c.0.s8 %v9814
      %v9816 = vlaneseq
      %v9817 = vshrl.u32 %v9816, 7
      %v9818 = vsub.s32 %v9815, %v9817
      %v9819 = vrot.slane %v9812, %v9818
      %v9821 = vunpack.c.l.s4 1966171168
      %v9822 = vunpack.c.0.s8 %v9821
      %v9823 = vlaneseq
      %v9824 = vshrl.u32 %v9823, 7
      %v9825 = vsub.s32 %v9822, %v9824
      %v9826 = vrot.slane %v9819, %v9825
      %v9828 = vadd.f32 %v9661, %v9826
      %v9829 = vld [vmem:[#allocation10 + $0x34] sm:$0x1]
      %v9830 = vadd.f32 %v9829, 0.0
      %v9831 = vld [vmem:[#allocation10 + $0x35] sm:$0x1]
      %v9832 = vadd.f32 %v9830, %v9831
      %v9833 = vld [vmem:[#allocation10 + $0x3c] sm:$0x1]
      %v9834 = vadd.f32 %v9832, %v9833
      %v9835 = vld [vmem:[#allocation10 + $0x3d] sm:$0x1]
      %v9836 = vadd.f32 %v9834, %v9835
      %v9837 = vmul.f32 %v9836, 0.25
      %v9838 = vpack.c.bf16 %v9837, %v9837
      %s9839 = scalar_lea.vmem %s7, 1792
      %v9840 = vld [vmem:[%s9839] sm:$0xff]
      %v9841 = vld [vmem:[%s9839 + $0x8] sm:$0xff]
      %v9842 = vld [vmem:[%s9839 + $0x10] sm:$0xff]
      %v9843 = vld [vmem:[%s9839 + $0x18] sm:$0xff]
      %v9844 = vld [vmem:[%s9839 + $0x20] sm:$0xff]
      %v9845 = vld [vmem:[%s9839 + $0x28] sm:$0xff]
      %v9846 = vld [vmem:[%s9839 + $0x30] sm:$0xff]
      %v9847 = vld [vmem:[%s9839 + $0x38] sm:$0xff]
      %v9848 = vld [vmem:[%s9839 + $0x40] sm:$0xff]
      %v9849 = vld [vmem:[%s9839 + $0x48] sm:$0xff]
      %v9850 = vld [vmem:[%s9839 + $0x50] sm:$0xff]
      %v9851 = vld [vmem:[%s9839 + $0x58] sm:$0xff]
      %v9852 = vld [vmem:[%s9839 + $0x60] sm:$0xff]
      %v9853 = vld [vmem:[%s9839 + $0x68] sm:$0xff]
      %v9854 = vld [vmem:[%s9839 + $0x70] sm:$0xff]
      %v9855 = vld [vmem:[%s9839 + $0x78] sm:$0xff]
      %v9872 = vunpack.c.l.b16 %v9840
      %v9873 = vunpack.c.h.b16 %v9840
      %v9874 = vunpack.c.l.b16 %v9841
      %v9875 = vunpack.c.h.b16 %v9841
      %v9876 = vunpack.c.l.b16 %v9842
      %v9877 = vunpack.c.h.b16 %v9842
      %v9878 = vunpack.c.l.b16 %v9843
      %v9879 = vunpack.c.h.b16 %v9843
      %v9880 = vunpack.c.l.b16 %v9844
      %v9881 = vunpack.c.h.b16 %v9844
      %v9882 = vunpack.c.l.b16 %v9845
      %v9883 = vunpack.c.h.b16 %v9845
      %v9884 = vunpack.c.l.b16 %v9846
      %v9885 = vunpack.c.h.b16 %v9846
      %v9886 = vunpack.c.l.b16 %v9847
      %v9887 = vunpack.c.h.b16 %v9847
      %v9888 = vunpack.c.l.b16 %v9848
      %v9889 = vunpack.c.h.b16 %v9848
      %v9890 = vunpack.c.l.b16 %v9849
      %v9891 = vunpack.c.h.b16 %v9849
      %v9892 = vunpack.c.l.b16 %v9850
      %v9893 = vunpack.c.h.b16 %v9850
      %v9894 = vunpack.c.l.b16 %v9851
      %v9895 = vunpack.c.h.b16 %v9851
      %v9896 = vunpack.c.l.b16 %v9852
      %v9897 = vunpack.c.h.b16 %v9852
      %v9898 = vunpack.c.l.b16 %v9853
      %v9899 = vunpack.c.h.b16 %v9853
      %v9900 = vunpack.c.l.b16 %v9854
      %v9901 = vunpack.c.h.b16 %v9854
      %v9902 = vunpack.c.l.b16 %v9855
      %v9903 = vunpack.c.h.b16 %v9855
      %v9904 = vpack.c.b16 %v9874, %v9872
      %v9905 = vpack.c.b16 %v9875, %v9873
      %v9906 = vpack.c.b16 %v9878, %v9876
      %v9907 = vpack.c.b16 %v9879, %v9877
      %v9908 = vpack.c.b16 %v9882, %v9880
      %v9909 = vpack.c.b16 %v9883, %v9881
      %v9910 = vpack.c.b16 %v9886, %v9884
      %v9911 = vpack.c.b16 %v9887, %v9885
      %v9912 = vpack.c.b16 %v9890, %v9888
      %v9913 = vpack.c.b16 %v9891, %v9889
      %v9914 = vpack.c.b16 %v9894, %v9892
      %v9915 = vpack.c.b16 %v9895, %v9893
      %v9916 = vpack.c.b16 %v9898, %v9896
      %v9917 = vpack.c.b16 %v9899, %v9897
      %v9918 = vpack.c.b16 %v9902, %v9900
      %v9919 = vpack.c.b16 %v9903, %v9901
      %9936 = vmatprep.subr.bf16.mxu0 %v9919
      %9937 = vmatpush1.bf16.msra.mxu0 %v9918
      %9938 = vmatprep.subr.bf16.mxu0 %v9917
      %9939 = vmatpush1.bf16.msra.mxu0 %v9916
      %9940 = vmatprep.subr.bf16.mxu0 %v9915
      %9941 = vmatpush1.bf16.msra.mxu0 %v9914
      %9942 = vmatprep.subr.bf16.mxu0 %v9913
      %9943 = vmatpush1.bf16.msra.mxu0 %v9912
      %9944 = vmatprep.subr.bf16.mxu0 %v9911
      %9945 = vmatpush1.bf16.msra.mxu0 %v9910
      %9946 = vmatprep.subr.bf16.mxu0 %v9909
      %9947 = vmatpush1.bf16.msra.mxu0 %v9908
      %9948 = vmatprep.subr.bf16.mxu0 %v9907
      %9949 = vmatpush1.bf16.msra.mxu0 %v9906
      %9950 = vmatprep.subr.bf16.mxu0 %v9905
      %9951 = vmatpush1.bf16.msra.mxu0 %v9904
      %9952 = vmatprep.subr.bf16.mxu0 0
      %9953 = vmatpush2.bf16.msra.mxu0 0
      %9954 = vmatprep.subr.bf16.mxu0 0
      %9955 = vmatpush2.bf16.msra.mxu0 0
      %9956 = vmatprep.subr.bf16.mxu0 0
      %9957 = vmatpush2.bf16.msra.mxu0 0
      %9958 = vmatprep.subr.bf16.mxu0 0
      %9959 = vmatpush2.bf16.msra.mxu0 0
      %9960 = vmatprep.subr.bf16.mxu0 0
      %9961 = vmatpush2.bf16.msra.mxu0 0
      %9962 = vmatprep.subr.bf16.mxu0 0
      %9963 = vmatpush2.bf16.msra.mxu0 0
      %9964 = vmatprep.subr.bf16.mxu0 0
      %9965 = vmatpush2.bf16.msra.mxu0 0
      %9966 = vmatprep.subr.bf16.mxu0 0
      %9967 = vmatpush2.bf16.msra.mxu0 0
      %9968 = vmatprep.mubr.bf16.mxu0 0
      %9969 = vmatmul.mubr.bf16.gmra.mxu0 %v9838
      %v9970 = vpop.f32.mrf.mxu0
      %v9971 = vadd.f32 0.0, %v9970
      %v9972 = vpop.f32.mrf.mxu0
      %v9973 = vadd.f32 0.0, %v9972
      %v9974 = vpop.f32.mrf.mxu0
      %v9975 = vpop.f32.mrf.mxu0
      %9976 = vdwg.mxu0
      %v9979 = vcombine.low %v9971, %v9973
      %v9981 = vunpack.c.l.s4 1966171168
      %v9982 = vunpack.c.0.s8 %v9981
      %v9983 = vlaneseq
      %v9984 = vshrl.u32 %v9983, 7
      %v9985 = vsub.s32 %v9982, %v9984
      %v9986 = vrot.slane %v9979, %v9985
      %v9988 = vunpack.c.l.s4 1966171168
      %v9989 = vunpack.c.0.s8 %v9988
      %v9990 = vlaneseq
      %v9991 = vshrl.u32 %v9990, 7
      %v9992 = vsub.s32 %v9989, %v9991
      %v9993 = vrot.slane %v9986, %v9992
      %v9995 = vadd.f32 %v9828, %v9993
      %v9996 = vld [vmem:[#allocation10 + $0x36] sm:$0x1]
      %v9997 = vadd.f32 %v9996, 0.0
      %v9998 = vld [vmem:[#allocation10 + $0x37] sm:$0x1]
      %v9999 = vadd.f32 %v9997, %v9998
      %v10000 = vld [vmem:[#allocation10 + $0x3e] sm:$0x1]
      %v10001 = vadd.f32 %v9999, %v10000
      %v10002 = vld [vmem:[#allocation10 + $0x3f] sm:$0x1]
      %v10003 = vadd.f32 %v10001, %v10002
      %v10004 = vmul.f32 %v10003, 0.25
      %v10005 = vpack.c.bf16 %v10004, %v10004
      %s10006 = scalar_lea.vmem %s7, 1920
      %v10007 = vld [vmem:[%s10006] sm:$0xff]
      %v10008 = vld [vmem:[%s10006 + $0x8] sm:$0xff]
      %v10009 = vld [vmem:[%s10006 + $0x10] sm:$0xff]
      %v10010 = vld [vmem:[%s10006 + $0x18] sm:$0xff]
      %v10011 = vld [vmem:[%s10006 + $0x20] sm:$0xff]
      %v10012 = vld [vmem:[%s10006 + $0x28] sm:$0xff]
      %v10013 = vld [vmem:[%s10006 + $0x30] sm:$0xff]
      %v10014 = vld [vmem:[%s10006 + $0x38] sm:$0xff]
      %v10015 = vld [vmem:[%s10006 + $0x40] sm:$0xff]
      %v10016 = vld [vmem:[%s10006 + $0x48] sm:$0xff]
      %v10017 = vld [vmem:[%s10006 + $0x50] sm:$0xff]
      %v10018 = vld [vmem:[%s10006 + $0x58] sm:$0xff]
      %v10019 = vld [vmem:[%s10006 + $0x60] sm:$0xff]
      %v10020 = vld [vmem:[%s10006 + $0x68] sm:$0xff]
      %v10021 = vld [vmem:[%s10006 + $0x70] sm:$0xff]
      %v10022 = vld [vmem:[%s10006 + $0x78] sm:$0xff]
      %v10039 = vunpack.c.l.b16 %v10007
      %v10040 = vunpack.c.h.b16 %v10007
      %v10041 = vunpack.c.l.b16 %v10008
      %v10042 = vunpack.c.h.b16 %v10008
      %v10043 = vunpack.c.l.b16 %v10009
      %v10044 = vunpack.c.h.b16 %v10009
      %v10045 = vunpack.c.l.b16 %v10010
      %v10046 = vunpack.c.h.b16 %v10010
      %v10047 = vunpack.c.l.b16 %v10011
      %v10048 = vunpack.c.h.b16 %v10011
      %v10049 = vunpack.c.l.b16 %v10012
      %v10050 = vunpack.c.h.b16 %v10012
      %v10051 = vunpack.c.l.b16 %v10013
      %v10052 = vunpack.c.h.b16 %v10013
      %v10053 = vunpack.c.l.b16 %v10014
      %v10054 = vunpack.c.h.b16 %v10014
      %v10055 = vunpack.c.l.b16 %v10015
      %v10056 = vunpack.c.h.b16 %v10015
      %v10057 = vunpack.c.l.b16 %v10016
      %v10058 = vunpack.c.h.b16 %v10016
      %v10059 = vunpack.c.l.b16 %v10017
      %v10060 = vunpack.c.h.b16 %v10017
      %v10061 = vunpack.c.l.b16 %v10018
      %v10062 = vunpack.c.h.b16 %v10018
      %v10063 = vunpack.c.l.b16 %v10019
      %v10064 = vunpack.c.h.b16 %v10019
      %v10065 = vunpack.c.l.b16 %v10020
      %v10066 = vunpack.c.h.b16 %v10020
      %v10067 = vunpack.c.l.b16 %v10021
      %v10068 = vunpack.c.h.b16 %v10021
      %v10069 = vunpack.c.l.b16 %v10022
      %v10070 = vunpack.c.h.b16 %v10022
      %v10071 = vpack.c.b16 %v10041, %v10039
      %v10072 = vpack.c.b16 %v10042, %v10040
      %v10073 = vpack.c.b16 %v10045, %v10043
      %v10074 = vpack.c.b16 %v10046, %v10044
      %v10075 = vpack.c.b16 %v10049, %v10047
      %v10076 = vpack.c.b16 %v10050, %v10048
      %v10077 = vpack.c.b16 %v10053, %v10051
      %v10078 = vpack.c.b16 %v10054, %v10052
      %v10079 = vpack.c.b16 %v10057, %v10055
      %v10080 = vpack.c.b16 %v10058, %v10056
      %v10081 = vpack.c.b16 %v10061, %v10059
      %v10082 = vpack.c.b16 %v10062, %v10060
      %v10083 = vpack.c.b16 %v10065, %v10063
      %v10084 = vpack.c.b16 %v10066, %v10064
      %v10085 = vpack.c.b16 %v10069, %v10067
      %v10086 = vpack.c.b16 %v10070, %v10068
      %10103 = vmatprep.subr.bf16.mxu0 %v10086
      %10104 = vmatpush1.bf16.msra.mxu0 %v10085
      %10105 = vmatprep.subr.bf16.mxu0 %v10084
      %10106 = vmatpush1.bf16.msra.mxu0 %v10083
      %10107 = vmatprep.subr.bf16.mxu0 %v10082
      %10108 = vmatpush1.bf16.msra.mxu0 %v10081
      %10109 = vmatprep.subr.bf16.mxu0 %v10080
      %10110 = vmatpush1.bf16.msra.mxu0 %v10079
      %10111 = vmatprep.subr.bf16.mxu0 %v10078
      %10112 = vmatpush1.bf16.msra.mxu0 %v10077
      %10113 = vmatprep.subr.bf16.mxu0 %v10076
      %10114 = vmatpush1.bf16.msra.mxu0 %v10075
      %10115 = vmatprep.subr.bf16.mxu0 %v10074
      %10116 = vmatpush1.bf16.msra.mxu0 %v10073
      %10117 = vmatprep.subr.bf16.mxu0 %v10072
      %10118 = vmatpush1.bf16.msra.mxu0 %v10071
      %10119 = vmatprep.subr.bf16.mxu0 0
      %10120 = vmatpush2.bf16.msra.mxu0 0
      %10121 = vmatprep.subr.bf16.mxu0 0
      %10122 = vmatpush2.bf16.msra.mxu0 0
      %10123 = vmatprep.subr.bf16.mxu0 0
      %10124 = vmatpush2.bf16.msra.mxu0 0
      %10125 = vmatprep.subr.bf16.mxu0 0
      %10126 = vmatpush2.bf16.msra.mxu0 0
      %10127 = vmatprep.subr.bf16.mxu0 0
      %10128 = vmatpush2.bf16.msra.mxu0 0
      %10129 = vmatprep.subr.bf16.mxu0 0
      %10130 = vmatpush2.bf16.msra.mxu0 0
      %10131 = vmatprep.subr.bf16.mxu0 0
      %10132 = vmatpush2.bf16.msra.mxu0 0
      %10133 = vmatprep.subr.bf16.mxu0 0
      %10134 = vmatpush2.bf16.msra.mxu0 0
      %10135 = vmatprep.mubr.bf16.mxu0 0
      %10136 = vmatmul.mubr.bf16.gmra.mxu0 %v10005
      %v10137 = vpop.f32.mrf.mxu0
      %v10138 = vadd.f32 0.0, %v10137
      %v10139 = vpop.f32.mrf.mxu0
      %v10140 = vadd.f32 0.0, %v10139
      %v10141 = vpop.f32.mrf.mxu0
      %v10142 = vpop.f32.mrf.mxu0
      %10143 = vdwg.mxu0
      %v10146 = vcombine.low %v10138, %v10140
      %v10148 = vunpack.c.l.s4 1966171168
      %v10149 = vunpack.c.0.s8 %v10148
      %v10150 = vlaneseq
      %v10151 = vshrl.u32 %v10150, 7
      %v10152 = vsub.s32 %v10149, %v10151
      %v10153 = vrot.slane %v10146, %v10152
      %v10155 = vunpack.c.l.s4 1966171168
      %v10156 = vunpack.c.0.s8 %v10155
      %v10157 = vlaneseq
      %v10158 = vshrl.u32 %v10157, 7
      %v10159 = vsub.s32 %v10156, %v10158
      %v10160 = vrot.slane %v10153, %v10159
      %v10162 = vadd.f32 %v9995, %v10160
      %v10163 = vmax.f32 %v10162, 0.0
      %v10165 = vlaneseq
      %v10166 = vshrl.u32 %v10165, 7
      %v10167 = vsub.s32 0, %v10166
      %v10168 = vrot.slane %v10163, %v10167
      %v10169 = vlaneseq
      %v10170 = vshrl.u32 %v10169, 7
      %v10171 = vsub.s32 1, %v10170
      %v10172 = vrot.slane %v10163, %v10171
      %v10175 = vpack.c.bf16 %v10168, %v10168
      %v10176 = vpack.c.bf16 %v10172, %v10172
      %v10177 = vld [vmem:[%s9] sm:$0xf]
      %v10178 = vld [vmem:[%s9 + $0x4] sm:$0xf]
      %v10179 = vld [vmem:[%s9 + $0x8] sm:$0xf]
      %v10180 = vld [vmem:[%s9 + $0xc] sm:$0xf]
      %v10181 = vld [vmem:[%s9 + $0x10] sm:$0xf]
      %v10182 = vld [vmem:[%s9 + $0x14] sm:$0xf]
      %v10183 = vld [vmem:[%s9 + $0x18] sm:$0xf]
      %v10184 = vld [vmem:[%s9 + $0x1c] sm:$0xf]
      %v10185 = vld [vmem:[%s9 + $0x20] sm:$0xf]
      %v10186 = vld [vmem:[%s9 + $0x24] sm:$0xf]
      %v10187 = vld [vmem:[%s9 + $0x28] sm:$0xf]
      %v10188 = vld [vmem:[%s9 + $0x2c] sm:$0xf]
      %v10189 = vld [vmem:[%s9 + $0x30] sm:$0xf]
      %v10190 = vld [vmem:[%s9 + $0x34] sm:$0xf]
      %v10191 = vld [vmem:[%s9 + $0x38] sm:$0xf]
      %v10192 = vld [vmem:[%s9 + $0x3c] sm:$0xf]
      %v10193 = vld [vmem:[%s9 + $0x40] sm:$0xf]
      %v10194 = vld [vmem:[%s9 + $0x44] sm:$0xf]
      %v10195 = vld [vmem:[%s9 + $0x48] sm:$0xf]
      %v10196 = vld [vmem:[%s9 + $0x4c] sm:$0xf]
      %v10197 = vld [vmem:[%s9 + $0x50] sm:$0xf]
      %v10198 = vld [vmem:[%s9 + $0x54] sm:$0xf]
      %v10199 = vld [vmem:[%s9 + $0x58] sm:$0xf]
      %v10200 = vld [vmem:[%s9 + $0x5c] sm:$0xf]
      %v10201 = vld [vmem:[%s9 + $0x60] sm:$0xf]
      %v10202 = vld [vmem:[%s9 + $0x64] sm:$0xf]
      %v10203 = vld [vmem:[%s9 + $0x68] sm:$0xf]
      %v10204 = vld [vmem:[%s9 + $0x6c] sm:$0xf]
      %v10205 = vld [vmem:[%s9 + $0x70] sm:$0xf]
      %v10206 = vld [vmem:[%s9 + $0x74] sm:$0xf]
      %v10207 = vld [vmem:[%s9 + $0x78] sm:$0xf]
      %v10208 = vld [vmem:[%s9 + $0x7c] sm:$0xf]
      %v10209 = vld [vmem:[%s10] sm:$0x1]
      %v10242 = vunpack.c.l.b16 %v10177
      %v10243 = vunpack.c.l.b16 %v10178
      %v10244 = vunpack.c.l.b16 %v10179
      %v10245 = vunpack.c.l.b16 %v10180
      %v10246 = vunpack.c.l.b16 %v10181
      %v10247 = vunpack.c.l.b16 %v10182
      %v10248 = vunpack.c.l.b16 %v10183
      %v10249 = vunpack.c.l.b16 %v10184
      %v10250 = vunpack.c.l.b16 %v10185
      %v10251 = vunpack.c.l.b16 %v10186
      %v10252 = vunpack.c.l.b16 %v10187
      %v10253 = vunpack.c.l.b16 %v10188
      %v10254 = vunpack.c.l.b16 %v10189
      %v10255 = vunpack.c.l.b16 %v10190
      %v10256 = vunpack.c.l.b16 %v10191
      %v10257 = vunpack.c.l.b16 %v10192
      %v10258 = vunpack.c.l.b16 %v10193
      %v10259 = vunpack.c.l.b16 %v10194
      %v10260 = vunpack.c.l.b16 %v10195
      %v10261 = vunpack.c.l.b16 %v10196
      %v10262 = vunpack.c.l.b16 %v10197
      %v10263 = vunpack.c.l.b16 %v10198
      %v10264 = vunpack.c.l.b16 %v10199
      %v10265 = vunpack.c.l.b16 %v10200
      %v10266 = vunpack.c.l.b16 %v10201
      %v10267 = vunpack.c.l.b16 %v10202
      %v10268 = vunpack.c.l.b16 %v10203
      %v10269 = vunpack.c.l.b16 %v10204
      %v10270 = vunpack.c.l.b16 %v10205
      %v10271 = vunpack.c.l.b16 %v10206
      %v10272 = vunpack.c.l.b16 %v10207
      %v10273 = vunpack.c.l.b16 %v10208
      %v10274 = vpack.c.b16 %v10243, %v10242
      %v10275 = vpack.c.b16 %v10245, %v10244
      %v10276 = vpack.c.b16 %v10247, %v10246
      %v10277 = vpack.c.b16 %v10249, %v10248
      %v10278 = vpack.c.b16 %v10251, %v10250
      %v10279 = vpack.c.b16 %v10253, %v10252
      %v10280 = vpack.c.b16 %v10255, %v10254
      %v10281 = vpack.c.b16 %v10257, %v10256
      %v10282 = vpack.c.b16 %v10259, %v10258
      %v10283 = vpack.c.b16 %v10261, %v10260
      %v10284 = vpack.c.b16 %v10263, %v10262
      %v10285 = vpack.c.b16 %v10265, %v10264
      %v10286 = vpack.c.b16 %v10267, %v10266
      %v10287 = vpack.c.b16 %v10269, %v10268
      %v10288 = vpack.c.b16 %v10271, %v10270
      %v10289 = vpack.c.b16 %v10273, %v10272
      %10306 = vmatprep.subr.bf16.mxu0 0
      %10307 = vmatpush1.bf16.msra.mxu0 %v10281
      %10308 = vmatprep.subr.bf16.mxu0 0
      %10309 = vmatpush1.bf16.msra.mxu0 %v10280
      %10310 = vmatprep.subr.bf16.mxu0 0
      %10311 = vmatpush1.bf16.msra.mxu0 %v10279
      %10312 = vmatprep.subr.bf16.mxu0 0
      %10313 = vmatpush1.bf16.msra.mxu0 %v10278
      %10314 = vmatprep.subr.bf16.mxu0 0
      %10315 = vmatpush1.bf16.msra.mxu0 %v10277
      %10316 = vmatprep.subr.bf16.mxu0 0
      %10317 = vmatpush1.bf16.msra.mxu0 %v10276
      %10318 = vmatprep.subr.bf16.mxu0 0
      %10319 = vmatpush1.bf16.msra.mxu0 %v10275
      %10320 = vmatprep.subr.bf16.mxu0 0
      %10321 = vmatpush1.bf16.msra.mxu0 %v10274
      %10322 = vmatprep.subr.bf16.mxu0 0
      %10323 = vmatpush2.bf16.msra.mxu0 %v10289
      %10324 = vmatprep.subr.bf16.mxu0 0
      %10325 = vmatpush2.bf16.msra.mxu0 %v10288
      %10326 = vmatprep.subr.bf16.mxu0 0
      %10327 = vmatpush2.bf16.msra.mxu0 %v10287
      %10328 = vmatprep.subr.bf16.mxu0 0
      %10329 = vmatpush2.bf16.msra.mxu0 %v10286
      %10330 = vmatprep.subr.bf16.mxu0 0
      %10331 = vmatpush2.bf16.msra.mxu0 %v10285
      %10332 = vmatprep.subr.bf16.mxu0 0
      %10333 = vmatpush2.bf16.msra.mxu0 %v10284
      %10334 = vmatprep.subr.bf16.mxu0 0
      %10335 = vmatpush2.bf16.msra.mxu0 %v10283
      %10336 = vmatprep.subr.bf16.mxu0 0
      %10337 = vmatpush2.bf16.msra.mxu0 %v10282
      %10338 = vmatprep.mubr.bf16.mxu0 %v10176
      %10339 = vmatmul.mubr.bf16.gmra.mxu0 %v10175
      %v10340 = vpop.f32.mrf.mxu0
      %v10341 = vadd.f32 %v10209, %v10340
      %v10342 = vpop.f32.mrf.mxu0
      %v10343 = vpop.f32.mrf.mxu0
      %v10344 = vpop.f32.mrf.mxu0
      %10345 = vdwg.mxu0
      %v10346 = vmax.f32 %v10341, 0.0
      %v10347 = vld [vmem:[%s11] sm:$0x1]
      %v10348 = vmul.f32 %v10346, %v10347
      %vm10349 = vcmask 516096
      %v10350 = vsel %vm10349, %v10348, 0.0
      %10351 = vadd.xlane.f32.xlu0 %v10350
      %v10352 = vpop.xlane.xlu0 %10351
      %v10353 = vld [vmem:[#allocation11] sm:$0x1]
      %v10354 = vadd.f32 %v10352, %v10353
      %vm10355 = vcmask 0
      %10356 = vst.msk [vmem:[%s438] sm:$0x1] %vm10355, %v10354
      %p10357 = scmp.lt.s32.totalorder %s26, 1
      %s10358 = scalar_select %p10357, %s26, 1
      %s10359 = scalar_lea.vmem %s13, %s10358
      // Predicated region
      $region73: #{cnn_forward.1} parent=71 // pred_check
        %p10360 = pneg %p322
      $region74: #{cnn_forward.1} parent=71 // pred_check_branch
        %10362 = sbr.rel (%p10360) target = $region76
      $region75: #{cnn_forward.1} parent=71 // pred_region
        _
      $region76: #{cnn_forward.1} parent=71 // pred_fallthru
        _
    $region72: #{cnn_forward.1} parent=5 // pred_fallthru
      _
    %p10363 = scmp.le.s32.totalorder 2, %s21
    // Predicated region
    $region77: #{cnn_forward.1} parent=5 // pred_check
      %p10364 = pneg %p10363
    $region78: #{cnn_forward.1} parent=5 // pred_check_branch
      %10366 = sbr.rel (%p10364) target = $region80
    $region79: #{cnn_forward.1} parent=5 // pred_region
      %s10367 = ssub.s32 %s21, 2
      // Predicated region
      $region81: #{cnn_forward.1} parent=79 // pred_check
        %p10368 = pneg %p328
      $region82: #{cnn_forward.1} parent=79 // pred_check_branch
        %10370 = sbr.rel (%p10368) target = $region84
      $region83: #{cnn_forward.1} parent=79 // pred_region
        %p10371 = scmp.lt.s32.totalorder %s27, 1
        %s10372 = scalar_select %p10371, %s27, 1
        %s10373 = scalar_lea.vmem %s13, %s10372
      $region84: #{cnn_forward.1} parent=79 // pred_fallthru
        _
    $region80: #{cnn_forward.1} parent=5 // pred_fallthru
      _
  $region6: #{cnn_forward.1} parent=0 // loop_footer
    %s25 = sadd.s32 1, %s21
  $region7: #{cnn_forward.1} parent=0 // loop_footer_branch
    %20 = sbr.rel target = $region3
  $region8: #{cnn_forward.1} parent=0 // loop_exit
    _

</llo_original>
